<compile_context>
chip_gen: v6e
topology: v6e:2x2x1
jax: 0.10.0
libtpu: 0.0.40
codegen_flags: <defaults>
</compile_context>

<pallas_src>
import functools

import numpy as np
import jax
import jax.numpy as jnp
from jax.experimental import pallas as pl
from jax.experimental.pallas import tpu as pltpu


# Encoder / decoder channel widths of the synthetic backbone.
_C1, _C2, _C3 = 8, 16, 32

# Order in which the conv layers' (weight, bias) pairs are passed to the kernel.
_LAYERS = ("e1a", "e1b", "e2a", "e2b", "ba", "bb",
           "d2a", "d2b", "d1a", "d1b", "head")

# Lane-aligned zero margin around the staged activation (must be >= W + 1).
_MARGIN = 128


# ----------------------------------------------------------------------------
# In-kernel building blocks (operate on (C, H*W) f32 values + VMEM scratch refs)
# ----------------------------------------------------------------------------
def _conv3x3(stage, im2col, parts, w_mat, b, H, W, act):
    """3x3 'same' conv on channels-first, spatially-flattened activations.

    parts : list of (C_i, H*W) values, concatenated along channels (skip concat).
    w_mat : (cout, 9*cin_pad), column index = (kh*3+kw)*cin_pad + c (pad cols are 0).
    b     : (cout, 1)
    Returns (cout, H*W) f32.
    """
    HW = H * W
    cin = sum(int(p.shape[0]) for p in parts)
    cin_pad = w_mat.shape[1] // 9

    # Stage the (channel-concatenated) input in the middle of a zeroed scratch so the
    # 9 tap shifts become static-slice reads, with free zero padding for the +-1 row
    # (H-direction) overflow.
    stage[...] = jnp.zeros(stage.shape, stage.dtype)
    row = 0
    for p in parts:
        c = int(p.shape[0])
        stage[row:row + c, _MARGIN:_MARGIN + HW] = p
        row += c

    # Lane masks that kill the horizontal (W-direction) wrap of the flattened layout.
    ww = jax.lax.broadcasted_iota(jnp.int32, (1, HW), 1) & (W - 1)   # W is a power of 2
    m_left = (ww >= 1).astype(jnp.float32)        # valid lanes for dw == -1 taps
    m_right = (ww <= W - 2).astype(jnp.float32)   # valid lanes for dw == +1 taps

    # im2col: stack the 9 shifted/masked copies -> ONE big-K MXU matmul.
    for kh in range(3):
        for kw in range(3):
            dh, dw = kh - 1, kw - 1
            start = _MARGIN + dh * W + dw
            patch = stage[0:cin, start:start + HW]
            if dw == -1:
                patch = patch * m_left
            elif dw == 1:
                patch = patch * m_right
            t = kh * 3 + kw
            im2col[t * cin_pad:t * cin_pad + cin, 0:HW] = patch

    acc = jnp.dot(w_mat, im2col[0:9 * cin_pad, 0:HW],
                  preferred_element_type=jnp.float32)
    acc = acc + b                                          # (cout, 1) broadcast
    if act == "relu":
        return jnp.maximum(acc, 0.0)
    return jax.nn.sigmoid(acc)                             # EUP path, free-ish


def _maxpool2x2(stage, x, d_mat, H, W):
    """2x2 / stride-2 max pool of (C, H*W) -> (C, H*W//4).

    Shifted reads from the zero-margin staging scratch build the 2x2 window max;
    d_mat is an exact 0/1 selection matrix picking the even (h, w) positions.
    """
    HW = H * W
    C = int(x.shape[0])
    stage[...] = jnp.zeros(stage.shape, stage.dtype)
    stage[0:C, _MARGIN:_MARGIN + HW] = x
    m = jnp.maximum(
        jnp.maximum(x, stage[0:C, _MARGIN + 1:_MARGIN + 1 + HW]),
        jnp.maximum(stage[0:C, _MARGIN + W:_MARGIN + W + HW],
                    stage[0:C, _MARGIN + W + 1:_MARGIN + W + 1 + HW]))
    return jnp.dot(m, d_mat, preferred_element_type=jnp.float32)


# ----------------------------------------------------------------------------
# The fused UNet kernel (one grid step == one batch element)
# ----------------------------------------------------------------------------
def _unet_kernel(x_ref, *refs, H, W):
    (w_e1a, b_e1a, w_e1b, b_e1b,
     w_e2a, b_e2a, w_e2b, b_e2b,
     w_ba, b_ba, w_bb, b_bb,
     w_d2a, b_d2a, w_d2b, b_d2b,
     w_d1a, b_d1a, w_d1b, b_d1b,
     w_hd, b_hd,
     d0_ref, d1_ref, u21_ref, u10_ref,
     o_ref, stage, im2col) = refs

    H2, W2, H4, W4 = H // 2, W // 2, H // 4, W // 4

    # Scratch starts uninitialized; the pad rows of the first conv (cin=4 padded to 8)
    # are read (times zero weight columns), so make sure they are finite.
    im2col[...] = jnp.zeros(im2col.shape, im2col.dtype)

    x = x_ref[0]                                                        # (Cin, H*W)

    def conv(parts, w, b, h, w_sp, act="relu"):
        return _conv3x3(stage, im2col, parts, w[...], b[...], h, w_sp, act)

    # ---- encoder ----
    e1 = conv([x], w_e1a, b_e1a, H, W)
    e1 = conv([e1], w_e1b, b_e1b, H, W)                                 # (c1, H*W)
    p1 = _maxpool2x2(stage, e1, d0_ref[...], H, W)                      # (c1, H2*W2)
    e2 = conv([p1], w_e2a, b_e2a, H2, W2)
    e2 = conv([e2], w_e2b, b_e2b, H2, W2)                               # (c2, H2*W2)
    p2 = _maxpool2x2(stage, e2, d1_ref[...], H2, W2)                    # (c2, H4*W4)
    # ---- bottleneck ----
    bt = conv([p2], w_ba, b_ba, H4, W4)
    bt = conv([bt], w_bb, b_bb, H4, W4)                                 # (c3, H4*W4)
    # ---- decoder (nearest upsample == 0/1 matmul; skip concat == stacked staging) ----
    u2 = jnp.dot(bt, u21_ref[...], preferred_element_type=jnp.float32)  # (c3, H2*W2)
    d2 = conv([u2, e2], w_d2a, b_d2a, H2, W2)
    d2 = conv([d2], w_d2b, b_d2b, H2, W2)                               # (c2, H2*W2)
    u1 = jnp.dot(d2, u10_ref[...], preferred_element_type=jnp.float32)  # (c2, H*W)
    d1 = conv([u1, e1], w_d1a, b_d1a, H, W)
    d1 = conv([d1], w_d1b, b_d1b, H, W)                                 # (c1, H*W)
    # ---- segmentation head + sigmoid ----
    o_ref[0] = conv([d1], w_hd, b_hd, H, W, act="sigmoid")              # (classes, H*W)


# ----------------------------------------------------------------------------
# Host-side constant matrices (exact 0/1 pooling / upsampling maps)
# ----------------------------------------------------------------------------
def _make_pool_matrix(H, W):
    """(H*W, H//2*W//2): column j selects the top-left element of 2x2 window j."""
    H2, W2 = H // 2, W // 2
    d = np.zeros((H * W, H2 * W2), np.float32)
    for jh in range(H2):
        for jw in range(W2):
            d[(2 * jh) * W + 2 * jw, jh * W2 + jw] = 1.0
    return jnp.asarray(d)


def _make_upsample_matrix(H, W):
    """(H//2*W//2, H*W): nearest-neighbor upsample map, coarse -> fine (H, W)."""
    H2, W2 = H // 2, W // 2
    u = np.zeros((H2 * W2, H * W), np.float32)
    for ih in range(H):
        for iw in range(W):
            u[(ih // 2) * W2 + iw // 2, ih * W + iw] = 1.0
    return jnp.asarray(u)


def _pad_weight_cols(w):
    """(cout, 9*cin) -> (cout, 9*cin_pad) with zero columns so every im2col tap block
    starts at a sublane-aligned (multiple-of-8) row offset."""
    cout, ncol = w.shape
    cin = ncol // 9
    cin_pad = -(-cin // 8) * 8
    if cin_pad == cin:
        return w
    w3 = jnp.pad(w.reshape(cout, 9, cin), ((0, 0), (0, 0), (0, cin_pad - cin)))
    return w3.reshape(cout, 9 * cin_pad)


# ----------------------------------------------------------------------------
# Wrapper: one pallas_call for the whole network
# ----------------------------------------------------------------------------
def unet_forward(params, x_nchw):
    N, cin, H, W = x_nchw.shape
    HW = H * W
    assert W & (W - 1) == 0 and H % 4 == 0 and W % 4 == 0, "expects power-of-2 spatial dims"
    assert W + 1 <= _MARGIN

    x = x_nchw.reshape(N, cin, HW).astype(jnp.float32)      # NCHW kept, just flattened

    wb_inputs = []
    for name in _LAYERS:
        wb_inputs.append(_pad_weight_cols(params[name]["w"].astype(jnp.float32)))
        wb_inputs.append(params[name]["b"].astype(jnp.float32))
    classes = params["head"]["w"].shape[0]

    consts = [_make_pool_matrix(H, W), _make_pool_matrix(H // 2, W // 2),
              _make_upsample_matrix(H // 2, W // 2), _make_upsample_matrix(H, W)]

    im2col_rows = max(w.shape[1] for w in wb_inputs[0::2])   # 9 * max cin_pad (= 432)
    stage_shape = (im2col_rows // 9, 2 * _MARGIN + HW)       # (48, 512) f32

    # Advisory cost estimate so XLA schedules the surrounding (tiny) reshapes sensibly.
    hw_per_layer = (HW, HW, HW // 4, HW // 4, HW // 16, HW // 16,
                    HW // 4, HW // 4, HW, HW, HW)
    flops = int(N * sum(2 * hw * w.shape[0] * w.shape[1]
                        for hw, w in zip(hw_per_layer, wb_inputs[0::2])))
    bytes_accessed = int(4 * (x.size + N * classes * HW
                              + sum(int(a.size) for a in wb_inputs + consts)))
    cost = pl.CostEstimate(flops=flops,
                           transcendentals=int(N * classes * HW),
                           bytes_accessed=bytes_accessed)

    in_specs = [pl.BlockSpec((1, cin, HW), lambda n: (n, 0, 0))]
    # Weights / biases / pool-upsample maps: constant block index -> fetched once, resident.
    in_specs += [pl.BlockSpec(a.shape, lambda n: (0, 0)) for a in wb_inputs + consts]

    out = pl.pallas_call(
        functools.partial(_unet_kernel, H=H, W=W),
        out_shape=jax.ShapeDtypeStruct((N, classes, HW), jnp.float32),
        grid=(N,),
        in_specs=in_specs,
        out_specs=pl.BlockSpec((1, classes, HW), lambda n: (n, 0, 0)),
        scratch_shapes=[pltpu.VMEM(stage_shape, jnp.float32),        # shift-staging
                        pltpu.VMEM((im2col_rows, HW), jnp.float32)], # im2col matrix
        compiler_params=pltpu.CompilerParams(dimension_semantics=("parallel",)),
        cost_estimate=cost,
    )(x, *wb_inputs, *consts)

    return out.reshape(N, classes, H, W)


# ----------------------------------------------------------------------------
# Deterministic parameter construction (synthetic "checkpoint")
# ----------------------------------------------------------------------------
def _conv_params(key, cin, cout):
    kw, kb = jax.random.split(key)
    scale = 1.0 / jnp.sqrt(9.0 * cin)
    w = jax.random.normal(kw, (cout, 9 * cin), jnp.float32) * scale   # (cout, (kh,kw,c))
    b = jax.random.normal(kb, (cout, 1), jnp.float32) * 0.01
    return dict(w=w, b=b)


def init_unet_params(key, in_channels, classes):
    c1, c2, c3 = _C1, _C2, _C3
    shapes = [("e1a", in_channels, c1), ("e1b", c1, c1),
              ("e2a", c1, c2), ("e2b", c2, c2),
              ("ba", c2, c3), ("bb", c3, c3),
              ("d2a", c3 + c2, c2), ("d2b", c2, c2),
              ("d1a", c2 + c1, c1), ("d1b", c1, c1),
              ("head", c1, classes)]
    keys = jax.random.split(key, len(shapes))
    return {name: _conv_params(k, ci, co) for k, (name, ci, co) in zip(keys, shapes)}


# ----------------------------------------------------------------------------
# Plain-JAX reference (for a cross-check of the fused kernel)
# ----------------------------------------------------------------------------
def _ref_forward(params, x_nchw):
    def conv(x, p, act):
        cout, ncol = p["w"].shape
        cin = ncol // 9
        w = p["w"].reshape(cout, 3, 3, cin).transpose(0, 3, 1, 2)     # OIHW
        y = jax.lax.conv_general_dilated(
            x, w, window_strides=(1, 1), padding="SAME",
            dimension_numbers=("NCHW", "OIHW", "NCHW"),
            precision=jax.lax.Precision.HIGHEST)
        y = y + p["b"].reshape(1, cout, 1, 1)
        return jnp.maximum(y, 0.0) if act == "relu" else jax.nn.sigmoid(y)

    def pool(x):
        N, C, H, W = x.shape
        return x.reshape(N, C, H // 2, 2, W // 2, 2).max(axis=(3, 5))

    def up(x):
        return jnp.repeat(jnp.repeat(x, 2, axis=2), 2, axis=3)

    e1 = conv(conv(x_nchw, params["e1a"], "relu"), params["e1b"], "relu")
    e2 = conv(conv(pool(e1), params["e2a"], "relu"), params["e2b"], "relu")
    bt = conv(conv(pool(e2), params["ba"], "relu"), params["bb"], "relu")
    d2 = conv(conv(jnp.concatenate([up(bt), e2], axis=1), params["d2a"], "relu"),
              params["d2b"], "relu")
    d1 = conv(conv(jnp.concatenate([up(d2), e1], axis=1), params["d1a"], "relu"),
              params["d1b"], "relu")
    return conv(d1, params["head"], "sigmoid")


if __name__ == "__main__":
    # cfg analogue: in_channels=4, classes=3, activation='sigmoid'
    in_channels, classes = 4, 3
    N, H, W = 2, 16, 16
    x = jax.random.normal(jax.random.PRNGKey(0), (N, in_channels, H, W), jnp.float32)
    params = init_unet_params(jax.random.PRNGKey(42), in_channels, classes)

    fwd = jax.jit(unet_forward)
    y = fwd(params, x)
    jax.block_until_ready(y)

    assert y.shape == (N, classes, H, W), y.shape
    assert bool(jnp.all(jnp.isfinite(y)))
    assert bool(jnp.all((y >= 0.0) & (y <= 1.0)))

    # Cross-check the fused Pallas kernel against the plain-JAX/XLA reference.
    y_ref = _ref_forward(params, x)
    err = float(jnp.max(jnp.abs(y - y_ref)))
    assert err < 5e-2, f"mismatch vs reference: max abs err = {err}"

    print("KERNEL_OK")
</pallas_src>

<mosaic_0001>
module attributes {stable_mosaic.version = 11 : i64} {
  func.func @_unet_kernel(%arg0: i32, %arg1: memref<1x4x256xf32, #tpu.memory_space<vmem>>, %arg2: memref<8x72xf32, #tpu.memory_space<vmem>>, %arg3: memref<8x1xf32, #tpu.memory_space<vmem>>, %arg4: memref<8x72xf32, #tpu.memory_space<vmem>>, %arg5: memref<8x1xf32, #tpu.memory_space<vmem>>, %arg6: memref<16x72xf32, #tpu.memory_space<vmem>>, %arg7: memref<16x1xf32, #tpu.memory_space<vmem>>, %arg8: memref<16x144xf32, #tpu.memory_space<vmem>>, %arg9: memref<16x1xf32, #tpu.memory_space<vmem>>, %arg10: memref<32x144xf32, #tpu.memory_space<vmem>>, %arg11: memref<32x1xf32, #tpu.memory_space<vmem>>, %arg12: memref<32x288xf32, #tpu.memory_space<vmem>>, %arg13: memref<32x1xf32, #tpu.memory_space<vmem>>, %arg14: memref<16x432xf32, #tpu.memory_space<vmem>>, %arg15: memref<16x1xf32, #tpu.memory_space<vmem>>, %arg16: memref<16x144xf32, #tpu.memory_space<vmem>>, %arg17: memref<16x1xf32, #tpu.memory_space<vmem>>, %arg18: memref<8x216xf32, #tpu.memory_space<vmem>>, %arg19: memref<8x1xf32, #tpu.memory_space<vmem>>, %arg20: memref<8x72xf32, #tpu.memory_space<vmem>>, %arg21: memref<8x1xf32, #tpu.memory_space<vmem>>, %arg22: memref<3x72xf32, #tpu.memory_space<vmem>>, %arg23: memref<3x1xf32, #tpu.memory_space<vmem>>, %arg24: memref<256x64xf32, #tpu.memory_space<vmem>>, %arg25: memref<64x16xf32, #tpu.memory_space<vmem>>, %arg26: memref<16x64xf32, #tpu.memory_space<vmem>>, %arg27: memref<64x256xf32, #tpu.memory_space<vmem>>, %arg28: memref<1x3x256xf32, #tpu.memory_space<vmem>>, %arg29: memref<48x512xf32, #tpu.memory_space<vmem>>, %arg30: memref<432x256xf32, #tpu.memory_space<vmem>>) attributes {dimension_semantics = [#tpu.dimension_semantics<parallel>], iteration_bounds = array<i64: 2>, scalar_prefetch = 0 : i64, scratch_operands = 2 : i64, tpu.core_type = #tpu.core_type<tc>, window_params = [{transform_indices = @transform_0, window_bounds = array<i64: 1, 4, 256>}, {pipeline_mode = #tpu.pipeline_mode<synchronous>, transform_indices = @transform_1, window_bounds = array<i64: 8, 72>}, {pipeline_mode = #tpu.pipeline_mode<synchronous>, transform_indices = @transform_2, window_bounds = array<i64: 8, 1>}, {pipeline_mode = #tpu.pipeline_mode<synchronous>, transform_indices = @transform_3, window_bounds = array<i64: 8, 72>}, {pipeline_mode = #tpu.pipeline_mode<synchronous>, transform_indices = @transform_4, window_bounds = array<i64: 8, 1>}, {pipeline_mode = #tpu.pipeline_mode<synchronous>, transform_indices = @transform_5, window_bounds = array<i64: 16, 72>}, {pipeline_mode = #tpu.pipeline_mode<synchronous>, transform_indices = @transform_6, window_bounds = array<i64: 16, 1>}, {pipeline_mode = #tpu.pipeline_mode<synchronous>, transform_indices = @transform_7, window_bounds = array<i64: 16, 144>}, {pipeline_mode = #tpu.pipeline_mode<synchronous>, transform_indices = @transform_8, window_bounds = array<i64: 16, 1>}, {pipeline_mode = #tpu.pipeline_mode<synchronous>, transform_indices = @transform_9, window_bounds = array<i64: 32, 144>}, {pipeline_mode = #tpu.pipeline_mode<synchronous>, transform_indices = @transform_10, window_bounds = array<i64: 32, 1>}, {pipeline_mode = #tpu.pipeline_mode<synchronous>, transform_indices = @transform_11, window_bounds = array<i64: 32, 288>}, {pipeline_mode = #tpu.pipeline_mode<synchronous>, transform_indices = @transform_12, window_bounds = array<i64: 32, 1>}, {pipeline_mode = #tpu.pipeline_mode<synchronous>, transform_indices = @transform_13, window_bounds = array<i64: 16, 432>}, {pipeline_mode = #tpu.pipeline_mode<synchronous>, transform_indices = @transform_14, window_bounds = array<i64: 16, 1>}, {pipeline_mode = #tpu.pipeline_mode<synchronous>, transform_indices = @transform_15, window_bounds = array<i64: 16, 144>}, {pipeline_mode = #tpu.pipeline_mode<synchronous>, transform_indices = @transform_16, window_bounds = array<i64: 16, 1>}, {pipeline_mode = #tpu.pipeline_mode<synchronous>, transform_indices = @transform_17, window_bounds = array<i64: 8, 216>}, {pipeline_mode = #tpu.pipeline_mode<synchronous>, transform_indices = @transform_18, window_bounds = array<i64: 8, 1>}, {pipeline_mode = #tpu.pipeline_mode<synchronous>, transform_indices = @transform_19, window_bounds = array<i64: 8, 72>}, {pipeline_mode = #tpu.pipeline_mode<synchronous>, transform_indices = @transform_20, window_bounds = array<i64: 8, 1>}, {pipeline_mode = #tpu.pipeline_mode<synchronous>, transform_indices = @transform_21, window_bounds = array<i64: 3, 72>}, {pipeline_mode = #tpu.pipeline_mode<synchronous>, transform_indices = @transform_22, window_bounds = array<i64: 3, 1>}, {pipeline_mode = #tpu.pipeline_mode<synchronous>, transform_indices = @transform_23, window_bounds = array<i64: 256, 64>}, {pipeline_mode = #tpu.pipeline_mode<synchronous>, transform_indices = @transform_24, window_bounds = array<i64: 64, 16>}, {pipeline_mode = #tpu.pipeline_mode<synchronous>, transform_indices = @transform_25, window_bounds = array<i64: 16, 64>}, {pipeline_mode = #tpu.pipeline_mode<synchronous>, transform_indices = @transform_26, window_bounds = array<i64: 64, 256>}, {transform_indices = @transform_27, window_bounds = array<i64: 1, 3, 256>}]} {
    %cst = arith.constant 0.000000e+00 : f32
    %0 = vector.broadcast %cst : f32 to vector<432x256xf32>
    %c0 = arith.constant 0 : index
    %c0_0 = arith.constant 0 : index
    %1 = vector.load %arg30[%c0, %c0_0] : memref<432x256xf32, #tpu.memory_space<vmem>>, vector<432x256xf32>
    tpu.vector_store %arg30[%c0, %c0_0], %0 {strides = array<i32>} : memref<432x256xf32, #tpu.memory_space<vmem>>, vector<432x256xf32>,
    %c0_1 = arith.constant 0 : index
    %c0_2 = arith.constant 0 : index
    %c0_3 = arith.constant 0 : index
    %2 = vector.load %arg1[%c0_1, %c0_2, %c0_3] : memref<1x4x256xf32, #tpu.memory_space<vmem>>, vector<1x4x256xf32>
    %3 = vector.shape_cast %2 : vector<1x4x256xf32> to vector<4x256xf32>
    %c0_4 = arith.constant 0 : index
    %c0_5 = arith.constant 0 : index
    %4 = vector.load %arg2[%c0_4, %c0_5] : memref<8x72xf32, #tpu.memory_space<vmem>>, vector<8x72xf32>
    %c0_6 = arith.constant 0 : index
    %c0_7 = arith.constant 0 : index
    %5 = vector.load %arg3[%c0_6, %c0_7] : memref<8x1xf32, #tpu.memory_space<vmem>>, vector<8x1xf32>
    %cst_8 = arith.constant 0.000000e+00 : f32
    %6 = vector.broadcast %cst_8 : f32 to vector<48x512xf32>
    %c0_9 = arith.constant 0 : index
    %c0_10 = arith.constant 0 : index
    %7 = vector.load %arg29[%c0_9, %c0_10] : memref<48x512xf32, #tpu.memory_space<vmem>>, vector<48x512xf32>
    tpu.vector_store %arg29[%c0_9, %c0_10], %6 {strides = array<i32>} : memref<48x512xf32, #tpu.memory_space<vmem>>, vector<48x512xf32>,
    %c0_11 = arith.constant 0 : index
    %c128 = arith.constant 128 : index
    %8 = vector.load %arg29[%c0_11, %c128] : memref<48x512xf32, #tpu.memory_space<vmem>>, vector<4x256xf32>
    tpu.vector_store %arg29[%c0_11, %c128], %3 {strides = array<i32>} : memref<48x512xf32, #tpu.memory_space<vmem>>, vector<4x256xf32>,
    %9 = tpu.iota {dimensions = array<i32: 1>} : vector<1x256xi32>
    %c15_i32 = arith.constant 15 : i32
    %10 = vector.broadcast %c15_i32 : i32 to vector<1x256xi32>
    %11 = arith.andi %9, %10 : vector<1x256xi32>
    %c1_i32 = arith.constant 1 : i32
    %12 = vector.broadcast %c1_i32 : i32 to vector<1x256xi32>
    %13 = arith.cmpi sge, %11, %12 : vector<1x256xi32>
    %14 = arith.extui %13 : vector<1x256xi1> to vector<1x256xi32>
    %15 = arith.sitofp %14 : vector<1x256xi32> to vector<1x256xf32>
    %c14_i32 = arith.constant 14 : i32
    %16 = vector.broadcast %c14_i32 : i32 to vector<1x256xi32>
    %17 = arith.cmpi sle, %11, %16 : vector<1x256xi32>
    %18 = arith.extui %17 : vector<1x256xi1> to vector<1x256xi32>
    %19 = arith.sitofp %18 : vector<1x256xi32> to vector<1x256xf32>
    %c0_12 = arith.constant 0 : index
    %c111 = arith.constant 111 : index
    %20 = vector.load %arg29[%c0_12, %c111] : memref<48x512xf32, #tpu.memory_space<vmem>>, vector<4x256xf32>
    %21 = vector.broadcast %15 : vector<1x256xf32> to vector<4x256xf32>
    %22 = arith.mulf %20, %21 : vector<4x256xf32>
    %c0_13 = arith.constant 0 : index
    %c0_14 = arith.constant 0 : index
    %23 = vector.load %arg30[%c0_13, %c0_14] : memref<432x256xf32, #tpu.memory_space<vmem>>, vector<4x256xf32>
    tpu.vector_store %arg30[%c0_13, %c0_14], %22 {strides = array<i32>} : memref<432x256xf32, #tpu.memory_space<vmem>>, vector<4x256xf32>,
    %c0_15 = arith.constant 0 : index
    %c112 = arith.constant 112 : index
    %24 = vector.load %arg29[%c0_15, %c112] : memref<48x512xf32, #tpu.memory_space<vmem>>, vector<4x256xf32>
    %c8 = arith.constant 8 : index
    %c0_16 = arith.constant 0 : index
    %25 = vector.load %arg30[%c8, %c0_16] : memref<432x256xf32, #tpu.memory_space<vmem>>, vector<4x256xf32>
    tpu.vector_store %arg30[%c8, %c0_16], %24 {strides = array<i32>} : memref<432x256xf32, #tpu.memory_space<vmem>>, vector<4x256xf32>,
    %c0_17 = arith.constant 0 : index
    %c113 = arith.constant 113 : index
    %26 = vector.load %arg29[%c0_17, %c113] : memref<48x512xf32, #tpu.memory_space<vmem>>, vector<4x256xf32>
    %27 = vector.broadcast %19 : vector<1x256xf32> to vector<4x256xf32>
    %28 = arith.mulf %26, %27 : vector<4x256xf32>
    %c16 = arith.constant 16 : index
    %c0_18 = arith.constant 0 : index
    %29 = vector.load %arg30[%c16, %c0_18] : memref<432x256xf32, #tpu.memory_space<vmem>>, vector<4x256xf32>
    tpu.vector_store %arg30[%c16, %c0_18], %28 {strides = array<i32>} : memref<432x256xf32, #tpu.memory_space<vmem>>, vector<4x256xf32>,
    %c0_19 = arith.constant 0 : index
    %c127 = arith.constant 127 : index
    %30 = vector.load %arg29[%c0_19, %c127] : memref<48x512xf32, #tpu.memory_space<vmem>>, vector<4x256xf32>
    %31 = vector.broadcast %15 : vector<1x256xf32> to vector<4x256xf32>
    %32 = arith.mulf %30, %31 : vector<4x256xf32>
    %c24 = arith.constant 24 : index
    %c0_20 = arith.constant 0 : index
    %33 = vector.load %arg30[%c24, %c0_20] : memref<432x256xf32, #tpu.memory_space<vmem>>, vector<4x256xf32>
    tpu.vector_store %arg30[%c24, %c0_20], %32 {strides = array<i32>} : memref<432x256xf32, #tpu.memory_space<vmem>>, vector<4x256xf32>,
    %c0_21 = arith.constant 0 : index
    %c128_22 = arith.constant 128 : index
    %34 = vector.load %arg29[%c0_21, %c128_22] : memref<48x512xf32, #tpu.memory_space<vmem>>, vector<4x256xf32>
    %c32 = arith.constant 32 : index
    %c0_23 = arith.constant 0 : index
    %35 = vector.load %arg30[%c32, %c0_23] : memref<432x256xf32, #tpu.memory_space<vmem>>, vector<4x256xf32>
    tpu.vector_store %arg30[%c32, %c0_23], %34 {strides = array<i32>} : memref<432x256xf32, #tpu.memory_space<vmem>>, vector<4x256xf32>,
    %c0_24 = arith.constant 0 : index
    %c129 = arith.constant 129 : index
    %36 = vector.load %arg29[%c0_24, %c129] : memref<48x512xf32, #tpu.memory_space<vmem>>, vector<4x256xf32>
    %37 = vector.broadcast %19 : vector<1x256xf32> to vector<4x256xf32>
    %38 = arith.mulf %36, %37 : vector<4x256xf32>
    %c40 = arith.constant 40 : index
    %c0_25 = arith.constant 0 : index
    %39 = vector.load %arg30[%c40, %c0_25] : memref<432x256xf32, #tpu.memory_space<vmem>>, vector<4x256xf32>
    tpu.vector_store %arg30[%c40, %c0_25], %38 {strides = array<i32>} : memref<432x256xf32, #tpu.memory_space<vmem>>, vector<4x256xf32>,
    %c0_26 = arith.constant 0 : index
    %c143 = arith.constant 143 : index
    %40 = vector.load %arg29[%c0_26, %c143] : memref<48x512xf32, #tpu.memory_space<vmem>>, vector<4x256xf32>
    %41 = vector.broadcast %15 : vector<1x256xf32> to vector<4x256xf32>
    %42 = arith.mulf %40, %41 : vector<4x256xf32>
    %c48 = arith.constant 48 : index
    %c0_27 = arith.constant 0 : index
    %43 = vector.load %arg30[%c48, %c0_27] : memref<432x256xf32, #tpu.memory_space<vmem>>, vector<4x256xf32>
    tpu.vector_store %arg30[%c48, %c0_27], %42 {strides = array<i32>} : memref<432x256xf32, #tpu.memory_space<vmem>>, vector<4x256xf32>,
    %c0_28 = arith.constant 0 : index
    %c144 = arith.constant 144 : index
    %44 = vector.load %arg29[%c0_28, %c144] : memref<48x512xf32, #tpu.memory_space<vmem>>, vector<4x256xf32>
    %c56 = arith.constant 56 : index
    %c0_29 = arith.constant 0 : index
    %45 = vector.load %arg30[%c56, %c0_29] : memref<432x256xf32, #tpu.memory_space<vmem>>, vector<4x256xf32>
    tpu.vector_store %arg30[%c56, %c0_29], %44 {strides = array<i32>} : memref<432x256xf32, #tpu.memory_space<vmem>>, vector<4x256xf32>,
    %c0_30 = arith.constant 0 : index
    %c145 = arith.constant 145 : index
    %46 = vector.load %arg29[%c0_30, %c145] : memref<48x512xf32, #tpu.memory_space<vmem>>, vector<4x256xf32>
    %47 = vector.broadcast %19 : vector<1x256xf32> to vector<4x256xf32>
    %48 = arith.mulf %46, %47 : vector<4x256xf32>
    %c64 = arith.constant 64 : index
    %c0_31 = arith.constant 0 : index
    %49 = vector.load %arg30[%c64, %c0_31] : memref<432x256xf32, #tpu.memory_space<vmem>>, vector<4x256xf32>
    tpu.vector_store %arg30[%c64, %c0_31], %48 {strides = array<i32>} : memref<432x256xf32, #tpu.memory_space<vmem>>, vector<4x256xf32>,
    %c0_32 = arith.constant 0 : index
    %c0_33 = arith.constant 0 : index
    %50 = vector.load %arg30[%c0_32, %c0_33] : memref<432x256xf32, #tpu.memory_space<vmem>>, vector<72x256xf32>
    %cst_34 = arith.constant dense<0.000000e+00> : vector<8x256xf32>
    %51 = tpu.matmul %4, %50, %cst_34 {dimension_numbers = #tpu.dot_dimension_numbers<[1], [0], [0], [1], [0, 0, 1, 1], [], []>} : vector<8x72xf32>, vector<72x256xf32>, vector<8x256xf32> -> vector<8x256xf32>
    %52 = vector.broadcast %5 : vector<8x1xf32> to vector<8x256xf32>
    %53 = arith.addf %51, %52 : vector<8x256xf32>
    %cst_35 = arith.constant 0.000000e+00 : f32
    %54 = vector.broadcast %cst_35 : f32 to vector<8x256xf32>
    %55 = arith.maximumf %53, %54 : vector<8x256xf32>
    %c0_36 = arith.constant 0 : index
    %c0_37 = arith.constant 0 : index
    %56 = vector.load %arg4[%c0_36, %c0_37] : memref<8x72xf32, #tpu.memory_space<vmem>>, vector<8x72xf32>
    %c0_38 = arith.constant 0 : index
    %c0_39 = arith.constant 0 : index
    %57 = vector.load %arg5[%c0_38, %c0_39] : memref<8x1xf32, #tpu.memory_space<vmem>>, vector<8x1xf32>
    %cst_40 = arith.constant 0.000000e+00 : f32
    %58 = vector.broadcast %cst_40 : f32 to vector<48x512xf32>
    %c0_41 = arith.constant 0 : index
    %c0_42 = arith.constant 0 : index
    %59 = vector.load %arg29[%c0_41, %c0_42] : memref<48x512xf32, #tpu.memory_space<vmem>>, vector<48x512xf32>
    tpu.vector_store %arg29[%c0_41, %c0_42], %58 {strides = array<i32>} : memref<48x512xf32, #tpu.memory_space<vmem>>, vector<48x512xf32>,
    %c0_43 = arith.constant 0 : index
    %c128_44 = arith.constant 128 : index
    %60 = vector.load %arg29[%c0_43, %c128_44] : memref<48x512xf32, #tpu.memory_space<vmem>>, vector<8x256xf32>
    tpu.vector_store %arg29[%c0_43, %c128_44], %55 {strides = array<i32>} : memref<48x512xf32, #tpu.memory_space<vmem>>, vector<8x256xf32>,
    %61 = tpu.iota {dimensions = array<i32: 1>} : vector<1x256xi32>
    %c15_i32_45 = arith.constant 15 : i32
    %62 = vector.broadcast %c15_i32_45 : i32 to vector<1x256xi32>
    %63 = arith.andi %61, %62 : vector<1x256xi32>
    %c1_i32_46 = arith.constant 1 : i32
    %64 = vector.broadcast %c1_i32_46 : i32 to vector<1x256xi32>
    %65 = arith.cmpi sge, %63, %64 : vector<1x256xi32>
    %66 = arith.extui %65 : vector<1x256xi1> to vector<1x256xi32>
    %67 = arith.sitofp %66 : vector<1x256xi32> to vector<1x256xf32>
    %c14_i32_47 = arith.constant 14 : i32
    %68 = vector.broadcast %c14_i32_47 : i32 to vector<1x256xi32>
    %69 = arith.cmpi sle, %63, %68 : vector<1x256xi32>
    %70 = arith.extui %69 : vector<1x256xi1> to vector<1x256xi32>
    %71 = arith.sitofp %70 : vector<1x256xi32> to vector<1x256xf32>
    %c0_48 = arith.constant 0 : index
    %c111_49 = arith.constant 111 : index
    %72 = vector.load %arg29[%c0_48, %c111_49] : memref<48x512xf32, #tpu.memory_space<vmem>>, vector<8x256xf32>
    %73 = vector.broadcast %67 : vector<1x256xf32> to vector<8x256xf32>
    %74 = arith.mulf %72, %73 : vector<8x256xf32>
    %c0_50 = arith.constant 0 : index
    %c0_51 = arith.constant 0 : index
    %75 = vector.load %arg30[%c0_50, %c0_51] : memref<432x256xf32, #tpu.memory_space<vmem>>, vector<8x256xf32>
    tpu.vector_store %arg30[%c0_50, %c0_51], %74 {strides = array<i32>} : memref<432x256xf32, #tpu.memory_space<vmem>>, vector<8x256xf32>,
    %c0_52 = arith.constant 0 : index
    %c112_53 = arith.constant 112 : index
    %76 = vector.load %arg29[%c0_52, %c112_53] : memref<48x512xf32, #tpu.memory_space<vmem>>, vector<8x256xf32>
    %c8_54 = arith.constant 8 : index
    %c0_55 = arith.constant 0 : index
    %77 = vector.load %arg30[%c8_54, %c0_55] : memref<432x256xf32, #tpu.memory_space<vmem>>, vector<8x256xf32>
    tpu.vector_store %arg30[%c8_54, %c0_55], %76 {strides = array<i32>} : memref<432x256xf32, #tpu.memory_space<vmem>>, vector<8x256xf32>,
    %c0_56 = arith.constant 0 : index
    %c113_57 = arith.constant 113 : index
    %78 = vector.load %arg29[%c0_56, %c113_57] : memref<48x512xf32, #tpu.memory_space<vmem>>, vector<8x256xf32>
    %79 = vector.broadcast %71 : vector<1x256xf32> to vector<8x256xf32>
    %80 = arith.mulf %78, %79 : vector<8x256xf32>
    %c16_58 = arith.constant 16 : index
    %c0_59 = arith.constant 0 : index
    %81 = vector.load %arg30[%c16_58, %c0_59] : memref<432x256xf32, #tpu.memory_space<vmem>>, vector<8x256xf32>
    tpu.vector_store %arg30[%c16_58, %c0_59], %80 {strides = array<i32>} : memref<432x256xf32, #tpu.memory_space<vmem>>, vector<8x256xf32>,
    %c0_60 = arith.constant 0 : index
    %c127_61 = arith.constant 127 : index
    %82 = vector.load %arg29[%c0_60, %c127_61] : memref<48x512xf32, #tpu.memory_space<vmem>>, vector<8x256xf32>
    %83 = vector.broadcast %67 : vector<1x256xf32> to vector<8x256xf32>
    %84 = arith.mulf %82, %83 : vector<8x256xf32>
    %c24_62 = arith.constant 24 : index
    %c0_63 = arith.constant 0 : index
    %85 = vector.load %arg30[%c24_62, %c0_63] : memref<432x256xf32, #tpu.memory_space<vmem>>, vector<8x256xf32>
    tpu.vector_store %arg30[%c24_62, %c0_63], %84 {strides = array<i32>} : memref<432x256xf32, #tpu.memory_space<vmem>>, vector<8x256xf32>,
    %c0_64 = arith.constant 0 : index
    %c128_65 = arith.constant 128 : index
    %86 = vector.load %arg29[%c0_64, %c128_65] : memref<48x512xf32, #tpu.memory_space<vmem>>, vector<8x256xf32>
    %c32_66 = arith.constant 32 : index
    %c0_67 = arith.constant 0 : index
    %87 = vector.load %arg30[%c32_66, %c0_67] : memref<432x256xf32, #tpu.memory_space<vmem>>, vector<8x256xf32>
    tpu.vector_store %arg30[%c32_66, %c0_67], %86 {strides = array<i32>} : memref<432x256xf32, #tpu.memory_space<vmem>>, vector<8x256xf32>,
    %c0_68 = arith.constant 0 : index
    %c129_69 = arith.constant 129 : index
    %88 = vector.load %arg29[%c0_68, %c129_69] : memref<48x512xf32, #tpu.memory_space<vmem>>, vector<8x256xf32>
    %89 = vector.broadcast %71 : vector<1x256xf32> to vector<8x256xf32>
    %90 = arith.mulf %88, %89 : vector<8x256xf32>
    %c40_70 = arith.constant 40 : index
    %c0_71 = arith.constant 0 : index
    %91 = vector.load %arg30[%c40_70, %c0_71] : memref<432x256xf32, #tpu.memory_space<vmem>>, vector<8x256xf32>
    tpu.vector_store %arg30[%c40_70, %c0_71], %90 {strides = array<i32>} : memref<432x256xf32, #tpu.memory_space<vmem>>, vector<8x256xf32>,
    %c0_72 = arith.constant 0 : index
    %c143_73 = arith.constant 143 : index
    %92 = vector.load %arg29[%c0_72, %c143_73] : memref<48x512xf32, #tpu.memory_space<vmem>>, vector<8x256xf32>
    %93 = vector.broadcast %67 : vector<1x256xf32> to vector<8x256xf32>
    %94 = arith.mulf %92, %93 : vector<8x256xf32>
    %c48_74 = arith.constant 48 : index
    %c0_75 = arith.constant 0 : index
    %95 = vector.load %arg30[%c48_74, %c0_75] : memref<432x256xf32, #tpu.memory_space<vmem>>, vector<8x256xf32>
    tpu.vector_store %arg30[%c48_74, %c0_75], %94 {strides = array<i32>} : memref<432x256xf32, #tpu.memory_space<vmem>>, vector<8x256xf32>,
    %c0_76 = arith.constant 0 : index
    %c144_77 = arith.constant 144 : index
    %96 = vector.load %arg29[%c0_76, %c144_77] : memref<48x512xf32, #tpu.memory_space<vmem>>, vector<8x256xf32>
    %c56_78 = arith.constant 56 : index
    %c0_79 = arith.constant 0 : index
    %97 = vector.load %arg30[%c56_78, %c0_79] : memref<432x256xf32, #tpu.memory_space<vmem>>, vector<8x256xf32>
    tpu.vector_store %arg30[%c56_78, %c0_79], %96 {strides = array<i32>} : memref<432x256xf32, #tpu.memory_space<vmem>>, vector<8x256xf32>,
    %c0_80 = arith.constant 0 : index
    %c145_81 = arith.constant 145 : index
    %98 = vector.load %arg29[%c0_80, %c145_81] : memref<48x512xf32, #tpu.memory_space<vmem>>, vector<8x256xf32>
    %99 = vector.broadcast %71 : vector<1x256xf32> to vector<8x256xf32>
    %100 = arith.mulf %98, %99 : vector<8x256xf32>
    %c64_82 = arith.constant 64 : index
    %c0_83 = arith.constant 0 : index
    %101 = vector.load %arg30[%c64_82, %c0_83] : memref<432x256xf32, #tpu.memory_space<vmem>>, vector<8x256xf32>
    tpu.vector_store %arg30[%c64_82, %c0_83], %100 {strides = array<i32>} : memref<432x256xf32, #tpu.memory_space<vmem>>, vector<8x256xf32>,
    %c0_84 = arith.constant 0 : index
    %c0_85 = arith.constant 0 : index
    %102 = vector.load %arg30[%c0_84, %c0_85] : memref<432x256xf32, #tpu.memory_space<vmem>>, vector<72x256xf32>
    %cst_86 = arith.constant dense<0.000000e+00> : vector<8x256xf32>
    %103 = tpu.matmul %56, %102, %cst_86 {dimension_numbers = #tpu.dot_dimension_numbers<[1], [0], [0], [1], [0, 0, 1, 1], [], []>} : vector<8x72xf32>, vector<72x256xf32>, vector<8x256xf32> -> vector<8x256xf32>
    %104 = vector.broadcast %57 : vector<8x1xf32> to vector<8x256xf32>
    %105 = arith.addf %103, %104 : vector<8x256xf32>
    %cst_87 = arith.constant 0.000000e+00 : f32
    %106 = vector.broadcast %cst_87 : f32 to vector<8x256xf32>
    %107 = arith.maximumf %105, %106 : vector<8x256xf32>
    %c0_88 = arith.constant 0 : index
    %c0_89 = arith.constant 0 : index
    %108 = vector.load %arg24[%c0_88, %c0_89] : memref<256x64xf32, #tpu.memory_space<vmem>>, vector<256x64xf32>
    %cst_90 = arith.constant 0.000000e+00 : f32
    %109 = vector.broadcast %cst_90 : f32 to vector<48x512xf32>
    %c0_91 = arith.constant 0 : index
    %c0_92 = arith.constant 0 : index
    %110 = vector.load %arg29[%c0_91, %c0_92] : memref<48x512xf32, #tpu.memory_space<vmem>>, vector<48x512xf32>
    tpu.vector_store %arg29[%c0_91, %c0_92], %109 {strides = array<i32>} : memref<48x512xf32, #tpu.memory_space<vmem>>, vector<48x512xf32>,
    %c0_93 = arith.constant 0 : index
    %c128_94 = arith.constant 128 : index
    %111 = vector.load %arg29[%c0_93, %c128_94] : memref<48x512xf32, #tpu.memory_space<vmem>>, vector<8x256xf32>
    tpu.vector_store %arg29[%c0_93, %c128_94], %107 {strides = array<i32>} : memref<48x512xf32, #tpu.memory_space<vmem>>, vector<8x256xf32>,
    %c0_95 = arith.constant 0 : index
    %c129_96 = arith.constant 129 : index
    %112 = vector.load %arg29[%c0_95, %c129_96] : memref<48x512xf32, #tpu.memory_space<vmem>>, vector<8x256xf32>
    %113 = arith.maximumf %107, %112 : vector<8x256xf32>
    %c0_97 = arith.constant 0 : index
    %c144_98 = arith.constant 144 : index
    %114 = vector.load %arg29[%c0_97, %c144_98] : memref<48x512xf32, #tpu.memory_space<vmem>>, vector<8x256xf32>
    %c0_99 = arith.constant 0 : index
    %c145_100 = arith.constant 145 : index
    %115 = vector.load %arg29[%c0_99, %c145_100] : memref<48x512xf32, #tpu.memory_space<vmem>>, vector<8x256xf32>
    %116 = arith.maximumf %114, %115 : vector<8x256xf32>
    %117 = arith.maximumf %113, %116 : vector<8x256xf32>
    %cst_101 = arith.constant dense<0.000000e+00> : vector<8x64xf32>
    %118 = tpu.matmul %117, %108, %cst_101 {dimension_numbers = #tpu.dot_dimension_numbers<[1], [0], [0], [1], [0, 0, 1, 1], [], []>} : vector<8x256xf32>, vector<256x64xf32>, vector<8x64xf32> -> vector<8x64xf32>
    %c0_102 = arith.constant 0 : index
    %c0_103 = arith.constant 0 : index
    %119 = vector.load %arg6[%c0_102, %c0_103] : memref<16x72xf32, #tpu.memory_space<vmem>>, vector<16x72xf32>
    %c0_104 = arith.constant 0 : index
    %c0_105 = arith.constant 0 : index
    %120 = vector.load %arg7[%c0_104, %c0_105] : memref<16x1xf32, #tpu.memory_space<vmem>>, vector<16x1xf32>
    %cst_106 = arith.constant 0.000000e+00 : f32
    %121 = vector.broadcast %cst_106 : f32 to vector<48x512xf32>
    %c0_107 = arith.constant 0 : index
    %c0_108 = arith.constant 0 : index
    %122 = vector.load %arg29[%c0_107, %c0_108] : memref<48x512xf32, #tpu.memory_space<vmem>>, vector<48x512xf32>
    tpu.vector_store %arg29[%c0_107, %c0_108], %121 {strides = array<i32>} : memref<48x512xf32, #tpu.memory_space<vmem>>, vector<48x512xf32>,
    %c0_109 = arith.constant 0 : index
    %c128_110 = arith.constant 128 : index
    %123 = vector.load %arg29[%c0_109, %c128_110] : memref<48x512xf32, #tpu.memory_space<vmem>>, vector<8x64xf32>
    tpu.vector_store %arg29[%c0_109, %c128_110], %118 {strides = array<i32>} : memref<48x512xf32, #tpu.memory_space<vmem>>, vector<8x64xf32>,
    %124 = tpu.iota {dimensions = array<i32: 1>} : vector<1x64xi32>
    %c7_i32 = arith.constant 7 : i32
    %125 = vector.broadcast %c7_i32 : i32 to vector<1x64xi32>
    %126 = arith.andi %124, %125 : vector<1x64xi32>
    %c1_i32_111 = arith.constant 1 : i32
    %127 = vector.broadcast %c1_i32_111 : i32 to vector<1x64xi32>
    %128 = arith.cmpi sge, %126, %127 : vector<1x64xi32>
    %129 = arith.extui %128 : vector<1x64xi1> to vector<1x64xi32>
    %130 = arith.sitofp %129 : vector<1x64xi32> to vector<1x64xf32>
    %c6_i32 = arith.constant 6 : i32
    %131 = vector.broadcast %c6_i32 : i32 to vector<1x64xi32>
    %132 = arith.cmpi sle, %126, %131 : vector<1x64xi32>
    %133 = arith.extui %132 : vector<1x64xi1> to vector<1x64xi32>
    %134 = arith.sitofp %133 : vector<1x64xi32> to vector<1x64xf32>
    %c0_112 = arith.constant 0 : index
    %c119 = arith.constant 119 : index
    %135 = vector.load %arg29[%c0_112, %c119] : memref<48x512xf32, #tpu.memory_space<vmem>>, vector<8x64xf32>
    %136 = vector.broadcast %130 : vector<1x64xf32> to vector<8x64xf32>
    %137 = arith.mulf %135, %136 : vector<8x64xf32>
    %c0_113 = arith.constant 0 : index
    %c0_114 = arith.constant 0 : index
    %138 = vector.load %arg30[%c0_113, %c0_114] : memref<432x256xf32, #tpu.memory_space<vmem>>, vector<8x64xf32>
    tpu.vector_store %arg30[%c0_113, %c0_114], %137 {strides = array<i32>} : memref<432x256xf32, #tpu.memory_space<vmem>>, vector<8x64xf32>,
    %c0_115 = arith.constant 0 : index
    %c120 = arith.constant 120 : index
    %139 = vector.load %arg29[%c0_115, %c120] : memref<48x512xf32, #tpu.memory_space<vmem>>, vector<8x64xf32>
    %c8_116 = arith.constant 8 : index
    %c0_117 = arith.constant 0 : index
    %140 = vector.load %arg30[%c8_116, %c0_117] : memref<432x256xf32, #tpu.memory_space<vmem>>, vector<8x64xf32>
    tpu.vector_store %arg30[%c8_116, %c0_117], %139 {strides = array<i32>} : memref<432x256xf32, #tpu.memory_space<vmem>>, vector<8x64xf32>,
    %c0_118 = arith.constant 0 : index
    %c121 = arith.constant 121 : index
    %141 = vector.load %arg29[%c0_118, %c121] : memref<48x512xf32, #tpu.memory_space<vmem>>, vector<8x64xf32>
    %142 = vector.broadcast %134 : vector<1x64xf32> to vector<8x64xf32>
    %143 = arith.mulf %141, %142 : vector<8x64xf32>
    %c16_119 = arith.constant 16 : index
    %c0_120 = arith.constant 0 : index
    %144 = vector.load %arg30[%c16_119, %c0_120] : memref<432x256xf32, #tpu.memory_space<vmem>>, vector<8x64xf32>
    tpu.vector_store %arg30[%c16_119, %c0_120], %143 {strides = array<i32>} : memref<432x256xf32, #tpu.memory_space<vmem>>, vector<8x64xf32>,
    %c0_121 = arith.constant 0 : index
    %c127_122 = arith.constant 127 : index
    %145 = vector.load %arg29[%c0_121, %c127_122] : memref<48x512xf32, #tpu.memory_space<vmem>>, vector<8x64xf32>
    %146 = vector.broadcast %130 : vector<1x64xf32> to vector<8x64xf32>
    %147 = arith.mulf %145, %146 : vector<8x64xf32>
    %c24_123 = arith.constant 24 : index
    %c0_124 = arith.constant 0 : index
    %148 = vector.load %arg30[%c24_123, %c0_124] : memref<432x256xf32, #tpu.memory_space<vmem>>, vector<8x64xf32>
    tpu.vector_store %arg30[%c24_123, %c0_124], %147 {strides = array<i32>} : memref<432x256xf32, #tpu.memory_space<vmem>>, vector<8x64xf32>,
    %c0_125 = arith.constant 0 : index
    %c128_126 = arith.constant 128 : index
    %149 = vector.load %arg29[%c0_125, %c128_126] : memref<48x512xf32, #tpu.memory_space<vmem>>, vector<8x64xf32>
    %c32_127 = arith.constant 32 : index
    %c0_128 = arith.constant 0 : index
    %150 = vector.load %arg30[%c32_127, %c0_128] : memref<432x256xf32, #tpu.memory_space<vmem>>, vector<8x64xf32>
    tpu.vector_store %arg30[%c32_127, %c0_128], %149 {strides = array<i32>} : memref<432x256xf32, #tpu.memory_space<vmem>>, vector<8x64xf32>,
    %c0_129 = arith.constant 0 : index
    %c129_130 = arith.constant 129 : index
    %151 = vector.load %arg29[%c0_129, %c129_130] : memref<48x512xf32, #tpu.memory_space<vmem>>, vector<8x64xf32>
    %152 = vector.broadcast %134 : vector<1x64xf32> to vector<8x64xf32>
    %153 = arith.mulf %151, %152 : vector<8x64xf32>
    %c40_131 = arith.constant 40 : index
    %c0_132 = arith.constant 0 : index
    %154 = vector.load %arg30[%c40_131, %c0_132] : memref<432x256xf32, #tpu.memory_space<vmem>>, vector<8x64xf32>
    tpu.vector_store %arg30[%c40_131, %c0_132], %153 {strides = array<i32>} : memref<432x256xf32, #tpu.memory_space<vmem>>, vector<8x64xf32>,
    %c0_133 = arith.constant 0 : index
    %c135 = arith.constant 135 : index
    %155 = vector.load %arg29[%c0_133, %c135] : memref<48x512xf32, #tpu.memory_space<vmem>>, vector<8x64xf32>
    %156 = vector.broadcast %130 : vector<1x64xf32> to vector<8x64xf32>
    %157 = arith.mulf %155, %156 : vector<8x64xf32>
    %c48_134 = arith.constant 48 : index
    %c0_135 = arith.constant 0 : index
    %158 = vector.load %arg30[%c48_134, %c0_135] : memref<432x256xf32, #tpu.memory_space<vmem>>, vector<8x64xf32>
    tpu.vector_store %arg30[%c48_134, %c0_135], %157 {strides = array<i32>} : memref<432x256xf32, #tpu.memory_space<vmem>>, vector<8x64xf32>,
    %c0_136 = arith.constant 0 : index
    %c136 = arith.constant 136 : index
    %159 = vector.load %arg29[%c0_136, %c136] : memref<48x512xf32, #tpu.memory_space<vmem>>, vector<8x64xf32>
    %c56_137 = arith.constant 56 : index
    %c0_138 = arith.constant 0 : index
    %160 = vector.load %arg30[%c56_137, %c0_138] : memref<432x256xf32, #tpu.memory_space<vmem>>, vector<8x64xf32>
    tpu.vector_store %arg30[%c56_137, %c0_138], %159 {strides = array<i32>} : memref<432x256xf32, #tpu.memory_space<vmem>>, vector<8x64xf32>,
    %c0_139 = arith.constant 0 : index
    %c137 = arith.constant 137 : index
    %161 = vector.load %arg29[%c0_139, %c137] : memref<48x512xf32, #tpu.memory_space<vmem>>, vector<8x64xf32>
    %162 = vector.broadcast %134 : vector<1x64xf32> to vector<8x64xf32>
    %163 = arith.mulf %161, %162 : vector<8x64xf32>
    %c64_140 = arith.constant 64 : index
    %c0_141 = arith.constant 0 : index
    %164 = vector.load %arg30[%c64_140, %c0_141] : memref<432x256xf32, #tpu.memory_space<vmem>>, vector<8x64xf32>
    tpu.vector_store %arg30[%c64_140, %c0_141], %163 {strides = array<i32>} : memref<432x256xf32, #tpu.memory_space<vmem>>, vector<8x64xf32>,
    %c0_142 = arith.constant 0 : index
    %c0_143 = arith.constant 0 : index
    %165 = vector.load %arg30[%c0_142, %c0_143] : memref<432x256xf32, #tpu.memory_space<vmem>>, vector<72x64xf32>
    %cst_144 = arith.constant dense<0.000000e+00> : vector<16x64xf32>
    %166 = tpu.matmul %119, %165, %cst_144 {dimension_numbers = #tpu.dot_dimension_numbers<[1], [0], [0], [1], [0, 0, 1, 1], [], []>} : vector<16x72xf32>, vector<72x64xf32>, vector<16x64xf32> -> vector<16x64xf32>
    %167 = vector.broadcast %120 : vector<16x1xf32> to vector<16x64xf32>
    %168 = arith.addf %166, %167 : vector<16x64xf32>
    %cst_145 = arith.constant 0.000000e+00 : f32
    %169 = vector.broadcast %cst_145 : f32 to vector<16x64xf32>
    %170 = arith.maximumf %168, %169 : vector<16x64xf32>
    %c0_146 = arith.constant 0 : index
    %c0_147 = arith.constant 0 : index
    %171 = vector.load %arg8[%c0_146, %c0_147] : memref<16x144xf32, #tpu.memory_space<vmem>>, vector<16x144xf32>
    %c0_148 = arith.constant 0 : index
    %c0_149 = arith.constant 0 : index
    %172 = vector.load %arg9[%c0_148, %c0_149] : memref<16x1xf32, #tpu.memory_space<vmem>>, vector<16x1xf32>
    %cst_150 = arith.constant 0.000000e+00 : f32
    %173 = vector.broadcast %cst_150 : f32 to vector<48x512xf32>
    %c0_151 = arith.constant 0 : index
    %c0_152 = arith.constant 0 : index
    %174 = vector.load %arg29[%c0_151, %c0_152] : memref<48x512xf32, #tpu.memory_space<vmem>>, vector<48x512xf32>
    tpu.vector_store %arg29[%c0_151, %c0_152], %173 {strides = array<i32>} : memref<48x512xf32, #tpu.memory_space<vmem>>, vector<48x512xf32>,
    %c0_153 = arith.constant 0 : index
    %c128_154 = arith.constant 128 : index
    %175 = vector.load %arg29[%c0_153, %c128_154] : memref<48x512xf32, #tpu.memory_space<vmem>>, vector<16x64xf32>
    tpu.vector_store %arg29[%c0_153, %c128_154], %170 {strides = array<i32>} : memref<48x512xf32, #tpu.memory_space<vmem>>, vector<16x64xf32>,
    %176 = tpu.iota {dimensions = array<i32: 1>} : vector<1x64xi32>
    %c7_i32_155 = arith.constant 7 : i32
    %177 = vector.broadcast %c7_i32_155 : i32 to vector<1x64xi32>
    %178 = arith.andi %176, %177 : vector<1x64xi32>
    %c1_i32_156 = arith.constant 1 : i32
    %179 = vector.broadcast %c1_i32_156 : i32 to vector<1x64xi32>
    %180 = arith.cmpi sge, %178, %179 : vector<1x64xi32>
    %181 = arith.extui %180 : vector<1x64xi1> to vector<1x64xi32>
    %182 = arith.sitofp %181 : vector<1x64xi32> to vector<1x64xf32>
    %c6_i32_157 = arith.constant 6 : i32
    %183 = vector.broadcast %c6_i32_157 : i32 to vector<1x64xi32>
    %184 = arith.cmpi sle, %178, %183 : vector<1x64xi32>
    %185 = arith.extui %184 : vector<1x64xi1> to vector<1x64xi32>
    %186 = arith.sitofp %185 : vector<1x64xi32> to vector<1x64xf32>
    %c0_158 = arith.constant 0 : index
    %c119_159 = arith.constant 119 : index
    %187 = vector.load %arg29[%c0_158, %c119_159] : memref<48x512xf32, #tpu.memory_space<vmem>>, vector<16x64xf32>
    %188 = vector.broadcast %182 : vector<1x64xf32> to vector<16x64xf32>
    %189 = arith.mulf %187, %188 : vector<16x64xf32>
    %c0_160 = arith.constant 0 : index
    %c0_161 = arith.constant 0 : index
    %190 = vector.load %arg30[%c0_160, %c0_161] : memref<432x256xf32, #tpu.memory_space<vmem>>, vector<16x64xf32>
    tpu.vector_store %arg30[%c0_160, %c0_161], %189 {strides = array<i32>} : memref<432x256xf32, #tpu.memory_space<vmem>>, vector<16x64xf32>,
    %c0_162 = arith.constant 0 : index
    %c120_163 = arith.constant 120 : index
    %191 = vector.load %arg29[%c0_162, %c120_163] : memref<48x512xf32, #tpu.memory_space<vmem>>, vector<16x64xf32>
    %c16_164 = arith.constant 16 : index
    %c0_165 = arith.constant 0 : index
    %192 = vector.load %arg30[%c16_164, %c0_165] : memref<432x256xf32, #tpu.memory_space<vmem>>, vector<16x64xf32>
    tpu.vector_store %arg30[%c16_164, %c0_165], %191 {strides = array<i32>} : memref<432x256xf32, #tpu.memory_space<vmem>>, vector<16x64xf32>,
    %c0_166 = arith.constant 0 : index
    %c121_167 = arith.constant 121 : index
    %193 = vector.load %arg29[%c0_166, %c121_167] : memref<48x512xf32, #tpu.memory_space<vmem>>, vector<16x64xf32>
    %194 = vector.broadcast %186 : vector<1x64xf32> to vector<16x64xf32>
    %195 = arith.mulf %193, %194 : vector<16x64xf32>
    %c32_168 = arith.constant 32 : index
    %c0_169 = arith.constant 0 : index
    %196 = vector.load %arg30[%c32_168, %c0_169] : memref<432x256xf32, #tpu.memory_space<vmem>>, vector<16x64xf32>
    tpu.vector_store %arg30[%c32_168, %c0_169], %195 {strides = array<i32>} : memref<432x256xf32, #tpu.memory_space<vmem>>, vector<16x64xf32>,
    %c0_170 = arith.constant 0 : index
    %c127_171 = arith.constant 127 : index
    %197 = vector.load %arg29[%c0_170, %c127_171] : memref<48x512xf32, #tpu.memory_space<vmem>>, vector<16x64xf32>
    %198 = vector.broadcast %182 : vector<1x64xf32> to vector<16x64xf32>
    %199 = arith.mulf %197, %198 : vector<16x64xf32>
    %c48_172 = arith.constant 48 : index
    %c0_173 = arith.constant 0 : index
    %200 = vector.load %arg30[%c48_172, %c0_173] : memref<432x256xf32, #tpu.memory_space<vmem>>, vector<16x64xf32>
    tpu.vector_store %arg30[%c48_172, %c0_173], %199 {strides = array<i32>} : memref<432x256xf32, #tpu.memory_space<vmem>>, vector<16x64xf32>,
    %c0_174 = arith.constant 0 : index
    %c128_175 = arith.constant 128 : index
    %201 = vector.load %arg29[%c0_174, %c128_175] : memref<48x512xf32, #tpu.memory_space<vmem>>, vector<16x64xf32>
    %c64_176 = arith.constant 64 : index
    %c0_177 = arith.constant 0 : index
    %202 = vector.load %arg30[%c64_176, %c0_177] : memref<432x256xf32, #tpu.memory_space<vmem>>, vector<16x64xf32>
    tpu.vector_store %arg30[%c64_176, %c0_177], %201 {strides = array<i32>} : memref<432x256xf32, #tpu.memory_space<vmem>>, vector<16x64xf32>,
    %c0_178 = arith.constant 0 : index
    %c129_179 = arith.constant 129 : index
    %203 = vector.load %arg29[%c0_178, %c129_179] : memref<48x512xf32, #tpu.memory_space<vmem>>, vector<16x64xf32>
    %204 = vector.broadcast %186 : vector<1x64xf32> to vector<16x64xf32>
    %205 = arith.mulf %203, %204 : vector<16x64xf32>
    %c80 = arith.constant 80 : index
    %c0_180 = arith.constant 0 : index
    %206 = vector.load %arg30[%c80, %c0_180] : memref<432x256xf32, #tpu.memory_space<vmem>>, vector<16x64xf32>
    tpu.vector_store %arg30[%c80, %c0_180], %205 {strides = array<i32>} : memref<432x256xf32, #tpu.memory_space<vmem>>, vector<16x64xf32>,
    %c0_181 = arith.constant 0 : index
    %c135_182 = arith.constant 135 : index
    %207 = vector.load %arg29[%c0_181, %c135_182] : memref<48x512xf32, #tpu.memory_space<vmem>>, vector<16x64xf32>
    %208 = vector.broadcast %182 : vector<1x64xf32> to vector<16x64xf32>
    %209 = arith.mulf %207, %208 : vector<16x64xf32>
    %c96 = arith.constant 96 : index
    %c0_183 = arith.constant 0 : index
    %210 = vector.load %arg30[%c96, %c0_183] : memref<432x256xf32, #tpu.memory_space<vmem>>, vector<16x64xf32>
    tpu.vector_store %arg30[%c96, %c0_183], %209 {strides = array<i32>} : memref<432x256xf32, #tpu.memory_space<vmem>>, vector<16x64xf32>,
    %c0_184 = arith.constant 0 : index
    %c136_185 = arith.constant 136 : index
    %211 = vector.load %arg29[%c0_184, %c136_185] : memref<48x512xf32, #tpu.memory_space<vmem>>, vector<16x64xf32>
    %c112_186 = arith.constant 112 : index
    %c0_187 = arith.constant 0 : index
    %212 = vector.load %arg30[%c112_186, %c0_187] : memref<432x256xf32, #tpu.memory_space<vmem>>, vector<16x64xf32>
    tpu.vector_store %arg30[%c112_186, %c0_187], %211 {strides = array<i32>} : memref<432x256xf32, #tpu.memory_space<vmem>>, vector<16x64xf32>,
    %c0_188 = arith.constant 0 : index
    %c137_189 = arith.constant 137 : index
    %213 = vector.load %arg29[%c0_188, %c137_189] : memref<48x512xf32, #tpu.memory_space<vmem>>, vector<16x64xf32>
    %214 = vector.broadcast %186 : vector<1x64xf32> to vector<16x64xf32>
    %215 = arith.mulf %213, %214 : vector<16x64xf32>
    %c128_190 = arith.constant 128 : index
    %c0_191 = arith.constant 0 : index
    %216 = vector.load %arg30[%c128_190, %c0_191] : memref<432x256xf32, #tpu.memory_space<vmem>>, vector<16x64xf32>
    tpu.vector_store %arg30[%c128_190, %c0_191], %215 {strides = array<i32>} : memref<432x256xf32, #tpu.memory_space<vmem>>, vector<16x64xf32>,
    %c0_192 = arith.constant 0 : index
    %c0_193 = arith.constant 0 : index
    %217 = vector.load %arg30[%c0_192, %c0_193] : memref<432x256xf32, #tpu.memory_space<vmem>>, vector<144x64xf32>
    %cst_194 = arith.constant dense<0.000000e+00> : vector<16x64xf32>
    %218 = tpu.matmul %171, %217, %cst_194 {dimension_numbers = #tpu.dot_dimension_numbers<[1], [0], [0], [1], [0, 0, 1, 1], [], []>} : vector<16x144xf32>, vector<144x64xf32>, vector<16x64xf32> -> vector<16x64xf32>
    %219 = vector.broadcast %172 : vector<16x1xf32> to vector<16x64xf32>
    %220 = arith.addf %218, %219 : vector<16x64xf32>
    %cst_195 = arith.constant 0.000000e+00 : f32
    %221 = vector.broadcast %cst_195 : f32 to vector<16x64xf32>
    %222 = arith.maximumf %220, %221 : vector<16x64xf32>
    %c0_196 = arith.constant 0 : index
    %c0_197 = arith.constant 0 : index
    %223 = vector.load %arg25[%c0_196, %c0_197] : memref<64x16xf32, #tpu.memory_space<vmem>>, vector<64x16xf32>
    %cst_198 = arith.constant 0.000000e+00 : f32
    %224 = vector.broadcast %cst_198 : f32 to vector<48x512xf32>
    %c0_199 = arith.constant 0 : index
    %c0_200 = arith.constant 0 : index
    %225 = vector.load %arg29[%c0_199, %c0_200] : memref<48x512xf32, #tpu.memory_space<vmem>>, vector<48x512xf32>
    tpu.vector_store %arg29[%c0_199, %c0_200], %224 {strides = array<i32>} : memref<48x512xf32, #tpu.memory_space<vmem>>, vector<48x512xf32>,
    %c0_201 = arith.constant 0 : index
    %c128_202 = arith.constant 128 : index
    %226 = vector.load %arg29[%c0_201, %c128_202] : memref<48x512xf32, #tpu.memory_space<vmem>>, vector<16x64xf32>
    tpu.vector_store %arg29[%c0_201, %c128_202], %222 {strides = array<i32>} : memref<48x512xf32, #tpu.memory_space<vmem>>, vector<16x64xf32>,
    %c0_203 = arith.constant 0 : index
    %c129_204 = arith.constant 129 : index
    %227 = vector.load %arg29[%c0_203, %c129_204] : memref<48x512xf32, #tpu.memory_space<vmem>>, vector<16x64xf32>
    %228 = arith.maximumf %222, %227 : vector<16x64xf32>
    %c0_205 = arith.constant 0 : index
    %c136_206 = arith.constant 136 : index
    %229 = vector.load %arg29[%c0_205, %c136_206] : memref<48x512xf32, #tpu.memory_space<vmem>>, vector<16x64xf32>
    %c0_207 = arith.constant 0 : index
    %c137_208 = arith.constant 137 : index
    %230 = vector.load %arg29[%c0_207, %c137_208] : memref<48x512xf32, #tpu.memory_space<vmem>>, vector<16x64xf32>
    %231 = arith.maximumf %229, %230 : vector<16x64xf32>
    %232 = arith.maximumf %228, %231 : vector<16x64xf32>
    %cst_209 = arith.constant dense<0.000000e+00> : vector<16x16xf32>
    %233 = tpu.matmul %232, %223, %cst_209 {dimension_numbers = #tpu.dot_dimension_numbers<[1], [0], [0], [1], [0, 0, 1, 1], [], []>} : vector<16x64xf32>, vector<64x16xf32>, vector<16x16xf32> -> vector<16x16xf32>
    %c0_210 = arith.constant 0 : index
    %c0_211 = arith.constant 0 : index
    %234 = vector.load %arg10[%c0_210, %c0_211] : memref<32x144xf32, #tpu.memory_space<vmem>>, vector<32x144xf32>
    %c0_212 = arith.constant 0 : index
    %c0_213 = arith.constant 0 : index
    %235 = vector.load %arg11[%c0_212, %c0_213] : memref<32x1xf32, #tpu.memory_space<vmem>>, vector<32x1xf32>
    %cst_214 = arith.constant 0.000000e+00 : f32
    %236 = vector.broadcast %cst_214 : f32 to vector<48x512xf32>
    %c0_215 = arith.constant 0 : index
    %c0_216 = arith.constant 0 : index
    %237 = vector.load %arg29[%c0_215, %c0_216] : memref<48x512xf32, #tpu.memory_space<vmem>>, vector<48x512xf32>
    tpu.vector_store %arg29[%c0_215, %c0_216], %236 {strides = array<i32>} : memref<48x512xf32, #tpu.memory_space<vmem>>, vector<48x512xf32>,
    %c0_217 = arith.constant 0 : index
    %c128_218 = arith.constant 128 : index
    %238 = vector.load %arg29[%c0_217, %c128_218] : memref<48x512xf32, #tpu.memory_space<vmem>>, vector<16x16xf32>
    tpu.vector_store %arg29[%c0_217, %c128_218], %233 {strides = array<i32>} : memref<48x512xf32, #tpu.memory_space<vmem>>, vector<16x16xf32>,
    %239 = tpu.iota {dimensions = array<i32: 1>} : vector<1x16xi32>
    %c3_i32 = arith.constant 3 : i32
    %240 = vector.broadcast %c3_i32 : i32 to vector<1x16xi32>
    %241 = arith.andi %239, %240 : vector<1x16xi32>
    %c1_i32_219 = arith.constant 1 : i32
    %242 = vector.broadcast %c1_i32_219 : i32 to vector<1x16xi32>
    %243 = arith.cmpi sge, %241, %242 : vector<1x16xi32>
    %244 = arith.extui %243 : vector<1x16xi1> to vector<1x16xi32>
    %245 = arith.sitofp %244 : vector<1x16xi32> to vector<1x16xf32>
    %c2_i32 = arith.constant 2 : i32
    %246 = vector.broadcast %c2_i32 : i32 to vector<1x16xi32>
    %247 = arith.cmpi sle, %241, %246 : vector<1x16xi32>
    %248 = arith.extui %247 : vector<1x16xi1> to vector<1x16xi32>
    %249 = arith.sitofp %248 : vector<1x16xi32> to vector<1x16xf32>
    %c0_220 = arith.constant 0 : index
    %c123 = arith.constant 123 : index
    %250 = vector.load %arg29[%c0_220, %c123] : memref<48x512xf32, #tpu.memory_space<vmem>>, vector<16x16xf32>
    %251 = vector.broadcast %245 : vector<1x16xf32> to vector<16x16xf32>
    %252 = arith.mulf %250, %251 : vector<16x16xf32>
    %c0_221 = arith.constant 0 : index
    %c0_222 = arith.constant 0 : index
    %253 = vector.load %arg30[%c0_221, %c0_222] : memref<432x256xf32, #tpu.memory_space<vmem>>, vector<16x16xf32>
    tpu.vector_store %arg30[%c0_221, %c0_222], %252 {strides = array<i32>} : memref<432x256xf32, #tpu.memory_space<vmem>>, vector<16x16xf32>,
    %c0_223 = arith.constant 0 : index
    %c124 = arith.constant 124 : index
    %254 = vector.load %arg29[%c0_223, %c124] : memref<48x512xf32, #tpu.memory_space<vmem>>, vector<16x16xf32>
    %c16_224 = arith.constant 16 : index
    %c0_225 = arith.constant 0 : index
    %255 = vector.load %arg30[%c16_224, %c0_225] : memref<432x256xf32, #tpu.memory_space<vmem>>, vector<16x16xf32>
    tpu.vector_store %arg30[%c16_224, %c0_225], %254 {strides = array<i32>} : memref<432x256xf32, #tpu.memory_space<vmem>>, vector<16x16xf32>,
    %c0_226 = arith.constant 0 : index
    %c125 = arith.constant 125 : index
    %256 = vector.load %arg29[%c0_226, %c125] : memref<48x512xf32, #tpu.memory_space<vmem>>, vector<16x16xf32>
    %257 = vector.broadcast %249 : vector<1x16xf32> to vector<16x16xf32>
    %258 = arith.mulf %256, %257 : vector<16x16xf32>
    %c32_227 = arith.constant 32 : index
    %c0_228 = arith.constant 0 : index
    %259 = vector.load %arg30[%c32_227, %c0_228] : memref<432x256xf32, #tpu.memory_space<vmem>>, vector<16x16xf32>
    tpu.vector_store %arg30[%c32_227, %c0_228], %258 {strides = array<i32>} : memref<432x256xf32, #tpu.memory_space<vmem>>, vector<16x16xf32>,
    %c0_229 = arith.constant 0 : index
    %c127_230 = arith.constant 127 : index
    %260 = vector.load %arg29[%c0_229, %c127_230] : memref<48x512xf32, #tpu.memory_space<vmem>>, vector<16x16xf32>
    %261 = vector.broadcast %245 : vector<1x16xf32> to vector<16x16xf32>
    %262 = arith.mulf %260, %261 : vector<16x16xf32>
    %c48_231 = arith.constant 48 : index
    %c0_232 = arith.constant 0 : index
    %263 = vector.load %arg30[%c48_231, %c0_232] : memref<432x256xf32, #tpu.memory_space<vmem>>, vector<16x16xf32>
    tpu.vector_store %arg30[%c48_231, %c0_232], %262 {strides = array<i32>} : memref<432x256xf32, #tpu.memory_space<vmem>>, vector<16x16xf32>,
    %c0_233 = arith.constant 0 : index
    %c128_234 = arith.constant 128 : index
    %264 = vector.load %arg29[%c0_233, %c128_234] : memref<48x512xf32, #tpu.memory_space<vmem>>, vector<16x16xf32>
    %c64_235 = arith.constant 64 : index
    %c0_236 = arith.constant 0 : index
    %265 = vector.load %arg30[%c64_235, %c0_236] : memref<432x256xf32, #tpu.memory_space<vmem>>, vector<16x16xf32>
    tpu.vector_store %arg30[%c64_235, %c0_236], %264 {strides = array<i32>} : memref<432x256xf32, #tpu.memory_space<vmem>>, vector<16x16xf32>,
    %c0_237 = arith.constant 0 : index
    %c129_238 = arith.constant 129 : index
    %266 = vector.load %arg29[%c0_237, %c129_238] : memref<48x512xf32, #tpu.memory_space<vmem>>, vector<16x16xf32>
    %267 = vector.broadcast %249 : vector<1x16xf32> to vector<16x16xf32>
    %268 = arith.mulf %266, %267 : vector<16x16xf32>
    %c80_239 = arith.constant 80 : index
    %c0_240 = arith.constant 0 : index
    %269 = vector.load %arg30[%c80_239, %c0_240] : memref<432x256xf32, #tpu.memory_space<vmem>>, vector<16x16xf32>
    tpu.vector_store %arg30[%c80_239, %c0_240], %268 {strides = array<i32>} : memref<432x256xf32, #tpu.memory_space<vmem>>, vector<16x16xf32>,
    %c0_241 = arith.constant 0 : index
    %c131 = arith.constant 131 : index
    %270 = vector.load %arg29[%c0_241, %c131] : memref<48x512xf32, #tpu.memory_space<vmem>>, vector<16x16xf32>
    %271 = vector.broadcast %245 : vector<1x16xf32> to vector<16x16xf32>
    %272 = arith.mulf %270, %271 : vector<16x16xf32>
    %c96_242 = arith.constant 96 : index
    %c0_243 = arith.constant 0 : index
    %273 = vector.load %arg30[%c96_242, %c0_243] : memref<432x256xf32, #tpu.memory_space<vmem>>, vector<16x16xf32>
    tpu.vector_store %arg30[%c96_242, %c0_243], %272 {strides = array<i32>} : memref<432x256xf32, #tpu.memory_space<vmem>>, vector<16x16xf32>,
    %c0_244 = arith.constant 0 : index
    %c132 = arith.constant 132 : index
    %274 = vector.load %arg29[%c0_244, %c132] : memref<48x512xf32, #tpu.memory_space<vmem>>, vector<16x16xf32>
    %c112_245 = arith.constant 112 : index
    %c0_246 = arith.constant 0 : index
    %275 = vector.load %arg30[%c112_245, %c0_246] : memref<432x256xf32, #tpu.memory_space<vmem>>, vector<16x16xf32>
    tpu.vector_store %arg30[%c112_245, %c0_246], %274 {strides = array<i32>} : memref<432x256xf32, #tpu.memory_space<vmem>>, vector<16x16xf32>,
    %c0_247 = arith.constant 0 : index
    %c133 = arith.constant 133 : index
    %276 = vector.load %arg29[%c0_247, %c133] : memref<48x512xf32, #tpu.memory_space<vmem>>, vector<16x16xf32>
    %277 = vector.broadcast %249 : vector<1x16xf32> to vector<16x16xf32>
    %278 = arith.mulf %276, %277 : vector<16x16xf32>
    %c128_248 = arith.constant 128 : index
    %c0_249 = arith.constant 0 : index
    %279 = vector.load %arg30[%c128_248, %c0_249] : memref<432x256xf32, #tpu.memory_space<vmem>>, vector<16x16xf32>
    tpu.vector_store %arg30[%c128_248, %c0_249], %278 {strides = array<i32>} : memref<432x256xf32, #tpu.memory_space<vmem>>, vector<16x16xf32>,
    %c0_250 = arith.constant 0 : index
    %c0_251 = arith.constant 0 : index
    %280 = vector.load %arg30[%c0_250, %c0_251] : memref<432x256xf32, #tpu.memory_space<vmem>>, vector<144x16xf32>
    %cst_252 = arith.constant dense<0.000000e+00> : vector<32x16xf32>
    %281 = tpu.matmul %234, %280, %cst_252 {dimension_numbers = #tpu.dot_dimension_numbers<[1], [0], [0], [1], [0, 0, 1, 1], [], []>} : vector<32x144xf32>, vector<144x16xf32>, vector<32x16xf32> -> vector<32x16xf32>
    %282 = vector.broadcast %235 : vector<32x1xf32> to vector<32x16xf32>
    %283 = arith.addf %281, %282 : vector<32x16xf32>
    %cst_253 = arith.constant 0.000000e+00 : f32
    %284 = vector.broadcast %cst_253 : f32 to vector<32x16xf32>
    %285 = arith.maximumf %283, %284 : vector<32x16xf32>
    %c0_254 = arith.constant 0 : index
    %c0_255 = arith.constant 0 : index
    %286 = vector.load %arg12[%c0_254, %c0_255] : memref<32x288xf32, #tpu.memory_space<vmem>>, vector<32x288xf32>
    %c0_256 = arith.constant 0 : index
    %c0_257 = arith.constant 0 : index
    %287 = vector.load %arg13[%c0_256, %c0_257] : memref<32x1xf32, #tpu.memory_space<vmem>>, vector<32x1xf32>
    %cst_258 = arith.constant 0.000000e+00 : f32
    %288 = vector.broadcast %cst_258 : f32 to vector<48x512xf32>
    %c0_259 = arith.constant 0 : index
    %c0_260 = arith.constant 0 : index
    %289 = vector.load %arg29[%c0_259, %c0_260] : memref<48x512xf32, #tpu.memory_space<vmem>>, vector<48x512xf32>
    tpu.vector_store %arg29[%c0_259, %c0_260], %288 {strides = array<i32>} : memref<48x512xf32, #tpu.memory_space<vmem>>, vector<48x512xf32>,
    %c0_261 = arith.constant 0 : index
    %c128_262 = arith.constant 128 : index
    %290 = vector.load %arg29[%c0_261, %c128_262] : memref<48x512xf32, #tpu.memory_space<vmem>>, vector<32x16xf32>
    tpu.vector_store %arg29[%c0_261, %c128_262], %285 {strides = array<i32>} : memref<48x512xf32, #tpu.memory_space<vmem>>, vector<32x16xf32>,
    %291 = tpu.iota {dimensions = array<i32: 1>} : vector<1x16xi32>
    %c3_i32_263 = arith.constant 3 : i32
    %292 = vector.broadcast %c3_i32_263 : i32 to vector<1x16xi32>
    %293 = arith.andi %291, %292 : vector<1x16xi32>
    %c1_i32_264 = arith.constant 1 : i32
    %294 = vector.broadcast %c1_i32_264 : i32 to vector<1x16xi32>
    %295 = arith.cmpi sge, %293, %294 : vector<1x16xi32>
    %296 = arith.extui %295 : vector<1x16xi1> to vector<1x16xi32>
    %297 = arith.sitofp %296 : vector<1x16xi32> to vector<1x16xf32>
    %c2_i32_265 = arith.constant 2 : i32
    %298 = vector.broadcast %c2_i32_265 : i32 to vector<1x16xi32>
    %299 = arith.cmpi sle, %293, %298 : vector<1x16xi32>
    %300 = arith.extui %299 : vector<1x16xi1> to vector<1x16xi32>
    %301 = arith.sitofp %300 : vector<1x16xi32> to vector<1x16xf32>
    %c0_266 = arith.constant 0 : index
    %c123_267 = arith.constant 123 : index
    %302 = vector.load %arg29[%c0_266, %c123_267] : memref<48x512xf32, #tpu.memory_space<vmem>>, vector<32x16xf32>
    %303 = vector.broadcast %297 : vector<1x16xf32> to vector<32x16xf32>
    %304 = arith.mulf %302, %303 : vector<32x16xf32>
    %c0_268 = arith.constant 0 : index
    %c0_269 = arith.constant 0 : index
    %305 = vector.load %arg30[%c0_268, %c0_269] : memref<432x256xf32, #tpu.memory_space<vmem>>, vector<32x16xf32>
    tpu.vector_store %arg30[%c0_268, %c0_269], %304 {strides = array<i32>} : memref<432x256xf32, #tpu.memory_space<vmem>>, vector<32x16xf32>,
    %c0_270 = arith.constant 0 : index
    %c124_271 = arith.constant 124 : index
    %306 = vector.load %arg29[%c0_270, %c124_271] : memref<48x512xf32, #tpu.memory_space<vmem>>, vector<32x16xf32>
    %c32_272 = arith.constant 32 : index
    %c0_273 = arith.constant 0 : index
    %307 = vector.load %arg30[%c32_272, %c0_273] : memref<432x256xf32, #tpu.memory_space<vmem>>, vector<32x16xf32>
    tpu.vector_store %arg30[%c32_272, %c0_273], %306 {strides = array<i32>} : memref<432x256xf32, #tpu.memory_space<vmem>>, vector<32x16xf32>,
    %c0_274 = arith.constant 0 : index
    %c125_275 = arith.constant 125 : index
    %308 = vector.load %arg29[%c0_274, %c125_275] : memref<48x512xf32, #tpu.memory_space<vmem>>, vector<32x16xf32>
    %309 = vector.broadcast %301 : vector<1x16xf32> to vector<32x16xf32>
    %310 = arith.mulf %308, %309 : vector<32x16xf32>
    %c64_276 = arith.constant 64 : index
    %c0_277 = arith.constant 0 : index
    %311 = vector.load %arg30[%c64_276, %c0_277] : memref<432x256xf32, #tpu.memory_space<vmem>>, vector<32x16xf32>
    tpu.vector_store %arg30[%c64_276, %c0_277], %310 {strides = array<i32>} : memref<432x256xf32, #tpu.memory_space<vmem>>, vector<32x16xf32>,
    %c0_278 = arith.constant 0 : index
    %c127_279 = arith.constant 127 : index
    %312 = vector.load %arg29[%c0_278, %c127_279] : memref<48x512xf32, #tpu.memory_space<vmem>>, vector<32x16xf32>
    %313 = vector.broadcast %297 : vector<1x16xf32> to vector<32x16xf32>
    %314 = arith.mulf %312, %313 : vector<32x16xf32>
    %c96_280 = arith.constant 96 : index
    %c0_281 = arith.constant 0 : index
    %315 = vector.load %arg30[%c96_280, %c0_281] : memref<432x256xf32, #tpu.memory_space<vmem>>, vector<32x16xf32>
    tpu.vector_store %arg30[%c96_280, %c0_281], %314 {strides = array<i32>} : memref<432x256xf32, #tpu.memory_space<vmem>>, vector<32x16xf32>,
    %c0_282 = arith.constant 0 : index
    %c128_283 = arith.constant 128 : index
    %316 = vector.load %arg29[%c0_282, %c128_283] : memref<48x512xf32, #tpu.memory_space<vmem>>, vector<32x16xf32>
    %c128_284 = arith.constant 128 : index
    %c0_285 = arith.constant 0 : index
    %317 = vector.load %arg30[%c128_284, %c0_285] : memref<432x256xf32, #tpu.memory_space<vmem>>, vector<32x16xf32>
    tpu.vector_store %arg30[%c128_284, %c0_285], %316 {strides = array<i32>} : memref<432x256xf32, #tpu.memory_space<vmem>>, vector<32x16xf32>,
    %c0_286 = arith.constant 0 : index
    %c129_287 = arith.constant 129 : index
    %318 = vector.load %arg29[%c0_286, %c129_287] : memref<48x512xf32, #tpu.memory_space<vmem>>, vector<32x16xf32>
    %319 = vector.broadcast %301 : vector<1x16xf32> to vector<32x16xf32>
    %320 = arith.mulf %318, %319 : vector<32x16xf32>
    %c160 = arith.constant 160 : index
    %c0_288 = arith.constant 0 : index
    %321 = vector.load %arg30[%c160, %c0_288] : memref<432x256xf32, #tpu.memory_space<vmem>>, vector<32x16xf32>
    tpu.vector_store %arg30[%c160, %c0_288], %320 {strides = array<i32>} : memref<432x256xf32, #tpu.memory_space<vmem>>, vector<32x16xf32>,
    %c0_289 = arith.constant 0 : index
    %c131_290 = arith.constant 131 : index
    %322 = vector.load %arg29[%c0_289, %c131_290] : memref<48x512xf32, #tpu.memory_space<vmem>>, vector<32x16xf32>
    %323 = vector.broadcast %297 : vector<1x16xf32> to vector<32x16xf32>
    %324 = arith.mulf %322, %323 : vector<32x16xf32>
    %c192 = arith.constant 192 : index
    %c0_291 = arith.constant 0 : index
    %325 = vector.load %arg30[%c192, %c0_291] : memref<432x256xf32, #tpu.memory_space<vmem>>, vector<32x16xf32>
    tpu.vector_store %arg30[%c192, %c0_291], %324 {strides = array<i32>} : memref<432x256xf32, #tpu.memory_space<vmem>>, vector<32x16xf32>,
    %c0_292 = arith.constant 0 : index
    %c132_293 = arith.constant 132 : index
    %326 = vector.load %arg29[%c0_292, %c132_293] : memref<48x512xf32, #tpu.memory_space<vmem>>, vector<32x16xf32>
    %c224 = arith.constant 224 : index
    %c0_294 = arith.constant 0 : index
    %327 = vector.load %arg30[%c224, %c0_294] : memref<432x256xf32, #tpu.memory_space<vmem>>, vector<32x16xf32>
    tpu.vector_store %arg30[%c224, %c0_294], %326 {strides = array<i32>} : memref<432x256xf32, #tpu.memory_space<vmem>>, vector<32x16xf32>,
    %c0_295 = arith.constant 0 : index
    %c133_296 = arith.constant 133 : index
    %328 = vector.load %arg29[%c0_295, %c133_296] : memref<48x512xf32, #tpu.memory_space<vmem>>, vector<32x16xf32>
    %329 = vector.broadcast %301 : vector<1x16xf32> to vector<32x16xf32>
    %330 = arith.mulf %328, %329 : vector<32x16xf32>
    %c256 = arith.constant 256 : index
    %c0_297 = arith.constant 0 : index
    %331 = vector.load %arg30[%c256, %c0_297] : memref<432x256xf32, #tpu.memory_space<vmem>>, vector<32x16xf32>
    tpu.vector_store %arg30[%c256, %c0_297], %330 {strides = array<i32>} : memref<432x256xf32, #tpu.memory_space<vmem>>, vector<32x16xf32>,
    %c0_298 = arith.constant 0 : index
    %c0_299 = arith.constant 0 : index
    %332 = vector.load %arg30[%c0_298, %c0_299] : memref<432x256xf32, #tpu.memory_space<vmem>>, vector<288x16xf32>
    %cst_300 = arith.constant dense<0.000000e+00> : vector<32x16xf32>
    %333 = tpu.matmul %286, %332, %cst_300 {dimension_numbers = #tpu.dot_dimension_numbers<[1], [0], [0], [1], [0, 0, 1, 1], [], []>} : vector<32x288xf32>, vector<288x16xf32>, vector<32x16xf32> -> vector<32x16xf32>
    %334 = vector.broadcast %287 : vector<32x1xf32> to vector<32x16xf32>
    %335 = arith.addf %333, %334 : vector<32x16xf32>
    %cst_301 = arith.constant 0.000000e+00 : f32
    %336 = vector.broadcast %cst_301 : f32 to vector<32x16xf32>
    %337 = arith.maximumf %335, %336 : vector<32x16xf32>
    %c0_302 = arith.constant 0 : index
    %c0_303 = arith.constant 0 : index
    %338 = vector.load %arg26[%c0_302, %c0_303] : memref<16x64xf32, #tpu.memory_space<vmem>>, vector<16x64xf32>
    %cst_304 = arith.constant dense<0.000000e+00> : vector<32x64xf32>
    %339 = tpu.matmul %337, %338, %cst_304 {dimension_numbers = #tpu.dot_dimension_numbers<[1], [0], [0], [1], [0, 0, 1, 1], [], []>} : vector<32x16xf32>, vector<16x64xf32>, vector<32x64xf32> -> vector<32x64xf32>
    %c0_305 = arith.constant 0 : index
    %c0_306 = arith.constant 0 : index
    %340 = vector.load %arg14[%c0_305, %c0_306] : memref<16x432xf32, #tpu.memory_space<vmem>>, vector<16x432xf32>
    %c0_307 = arith.constant 0 : index
    %c0_308 = arith.constant 0 : index
    %341 = vector.load %arg15[%c0_307, %c0_308] : memref<16x1xf32, #tpu.memory_space<vmem>>, vector<16x1xf32>
    %cst_309 = arith.constant 0.000000e+00 : f32
    %342 = vector.broadcast %cst_309 : f32 to vector<48x512xf32>
    %c0_310 = arith.constant 0 : index
    %c0_311 = arith.constant 0 : index
    %343 = vector.load %arg29[%c0_310, %c0_311] : memref<48x512xf32, #tpu.memory_space<vmem>>, vector<48x512xf32>
    tpu.vector_store %arg29[%c0_310, %c0_311], %342 {strides = array<i32>} : memref<48x512xf32, #tpu.memory_space<vmem>>, vector<48x512xf32>,
    %c0_312 = arith.constant 0 : index
    %c128_313 = arith.constant 128 : index
    %344 = vector.load %arg29[%c0_312, %c128_313] : memref<48x512xf32, #tpu.memory_space<vmem>>, vector<32x64xf32>
    tpu.vector_store %arg29[%c0_312, %c128_313], %339 {strides = array<i32>} : memref<48x512xf32, #tpu.memory_space<vmem>>, vector<32x64xf32>,
    %c32_314 = arith.constant 32 : index
    %c128_315 = arith.constant 128 : index
    %345 = vector.load %arg29[%c32_314, %c128_315] : memref<48x512xf32, #tpu.memory_space<vmem>>, vector<16x64xf32>
    tpu.vector_store %arg29[%c32_314, %c128_315], %222 {strides = array<i32>} : memref<48x512xf32, #tpu.memory_space<vmem>>, vector<16x64xf32>,
    %346 = tpu.iota {dimensions = array<i32: 1>} : vector<1x64xi32>
    %c7_i32_316 = arith.constant 7 : i32
    %347 = vector.broadcast %c7_i32_316 : i32 to vector<1x64xi32>
    %348 = arith.andi %346, %347 : vector<1x64xi32>
    %c1_i32_317 = arith.constant 1 : i32
    %349 = vector.broadcast %c1_i32_317 : i32 to vector<1x64xi32>
    %350 = arith.cmpi sge, %348, %349 : vector<1x64xi32>
    %351 = arith.extui %350 : vector<1x64xi1> to vector<1x64xi32>
    %352 = arith.sitofp %351 : vector<1x64xi32> to vector<1x64xf32>
    %c6_i32_318 = arith.constant 6 : i32
    %353 = vector.broadcast %c6_i32_318 : i32 to vector<1x64xi32>
    %354 = arith.cmpi sle, %348, %353 : vector<1x64xi32>
    %355 = arith.extui %354 : vector<1x64xi1> to vector<1x64xi32>
    %356 = arith.sitofp %355 : vector<1x64xi32> to vector<1x64xf32>
    %c0_319 = arith.constant 0 : index
    %c119_320 = arith.constant 119 : index
    %357 = vector.load %arg29[%c0_319, %c119_320] : memref<48x512xf32, #tpu.memory_space<vmem>>, vector<48x64xf32>
    %358 = vector.broadcast %352 : vector<1x64xf32> to vector<48x64xf32>
    %359 = arith.mulf %357, %358 : vector<48x64xf32>
    %c0_321 = arith.constant 0 : index
    %c0_322 = arith.constant 0 : index
    %360 = vector.load %arg30[%c0_321, %c0_322] : memref<432x256xf32, #tpu.memory_space<vmem>>, vector<48x64xf32>
    tpu.vector_store %arg30[%c0_321, %c0_322], %359 {strides = array<i32>} : memref<432x256xf32, #tpu.memory_space<vmem>>, vector<48x64xf32>,
    %c0_323 = arith.constant 0 : index
    %c120_324 = arith.constant 120 : index
    %361 = vector.load %arg29[%c0_323, %c120_324] : memref<48x512xf32, #tpu.memory_space<vmem>>, vector<48x64xf32>
    %c48_325 = arith.constant 48 : index
    %c0_326 = arith.constant 0 : index
    %362 = vector.load %arg30[%c48_325, %c0_326] : memref<432x256xf32, #tpu.memory_space<vmem>>, vector<48x64xf32>
    tpu.vector_store %arg30[%c48_325, %c0_326], %361 {strides = array<i32>} : memref<432x256xf32, #tpu.memory_space<vmem>>, vector<48x64xf32>,
    %c0_327 = arith.constant 0 : index
    %c121_328 = arith.constant 121 : index
    %363 = vector.load %arg29[%c0_327, %c121_328] : memref<48x512xf32, #tpu.memory_space<vmem>>, vector<48x64xf32>
    %364 = vector.broadcast %356 : vector<1x64xf32> to vector<48x64xf32>
    %365 = arith.mulf %363, %364 : vector<48x64xf32>
    %c96_329 = arith.constant 96 : index
    %c0_330 = arith.constant 0 : index
    %366 = vector.load %arg30[%c96_329, %c0_330] : memref<432x256xf32, #tpu.memory_space<vmem>>, vector<48x64xf32>
    tpu.vector_store %arg30[%c96_329, %c0_330], %365 {strides = array<i32>} : memref<432x256xf32, #tpu.memory_space<vmem>>, vector<48x64xf32>,
    %c0_331 = arith.constant 0 : index
    %c127_332 = arith.constant 127 : index
    %367 = vector.load %arg29[%c0_331, %c127_332] : memref<48x512xf32, #tpu.memory_space<vmem>>, vector<48x64xf32>
    %368 = vector.broadcast %352 : vector<1x64xf32> to vector<48x64xf32>
    %369 = arith.mulf %367, %368 : vector<48x64xf32>
    %c144_333 = arith.constant 144 : index
    %c0_334 = arith.constant 0 : index
    %370 = vector.load %arg30[%c144_333, %c0_334] : memref<432x256xf32, #tpu.memory_space<vmem>>, vector<48x64xf32>
    tpu.vector_store %arg30[%c144_333, %c0_334], %369 {strides = array<i32>} : memref<432x256xf32, #tpu.memory_space<vmem>>, vector<48x64xf32>,
    %c0_335 = arith.constant 0 : index
    %c128_336 = arith.constant 128 : index
    %371 = vector.load %arg29[%c0_335, %c128_336] : memref<48x512xf32, #tpu.memory_space<vmem>>, vector<48x64xf32>
    %c192_337 = arith.constant 192 : index
    %c0_338 = arith.constant 0 : index
    %372 = vector.load %arg30[%c192_337, %c0_338] : memref<432x256xf32, #tpu.memory_space<vmem>>, vector<48x64xf32>
    tpu.vector_store %arg30[%c192_337, %c0_338], %371 {strides = array<i32>} : memref<432x256xf32, #tpu.memory_space<vmem>>, vector<48x64xf32>,
    %c0_339 = arith.constant 0 : index
    %c129_340 = arith.constant 129 : index
    %373 = vector.load %arg29[%c0_339, %c129_340] : memref<48x512xf32, #tpu.memory_space<vmem>>, vector<48x64xf32>
    %374 = vector.broadcast %356 : vector<1x64xf32> to vector<48x64xf32>
    %375 = arith.mulf %373, %374 : vector<48x64xf32>
    %c240 = arith.constant 240 : index
    %c0_341 = arith.constant 0 : index
    %376 = vector.load %arg30[%c240, %c0_341] : memref<432x256xf32, #tpu.memory_space<vmem>>, vector<48x64xf32>
    tpu.vector_store %arg30[%c240, %c0_341], %375 {strides = array<i32>} : memref<432x256xf32, #tpu.memory_space<vmem>>, vector<48x64xf32>,
    %c0_342 = arith.constant 0 : index
    %c135_343 = arith.constant 135 : index
    %377 = vector.load %arg29[%c0_342, %c135_343] : memref<48x512xf32, #tpu.memory_space<vmem>>, vector<48x64xf32>
    %378 = vector.broadcast %352 : vector<1x64xf32> to vector<48x64xf32>
    %379 = arith.mulf %377, %378 : vector<48x64xf32>
    %c288 = arith.constant 288 : index
    %c0_344 = arith.constant 0 : index
    %380 = vector.load %arg30[%c288, %c0_344] : memref<432x256xf32, #tpu.memory_space<vmem>>, vector<48x64xf32>
    tpu.vector_store %arg30[%c288, %c0_344], %379 {strides = array<i32>} : memref<432x256xf32, #tpu.memory_space<vmem>>, vector<48x64xf32>,
    %c0_345 = arith.constant 0 : index
    %c136_346 = arith.constant 136 : index
    %381 = vector.load %arg29[%c0_345, %c136_346] : memref<48x512xf32, #tpu.memory_space<vmem>>, vector<48x64xf32>
    %c336 = arith.constant 336 : index
    %c0_347 = arith.constant 0 : index
    %382 = vector.load %arg30[%c336, %c0_347] : memref<432x256xf32, #tpu.memory_space<vmem>>, vector<48x64xf32>
    tpu.vector_store %arg30[%c336, %c0_347], %381 {strides = array<i32>} : memref<432x256xf32, #tpu.memory_space<vmem>>, vector<48x64xf32>,
    %c0_348 = arith.constant 0 : index
    %c137_349 = arith.constant 137 : index
    %383 = vector.load %arg29[%c0_348, %c137_349] : memref<48x512xf32, #tpu.memory_space<vmem>>, vector<48x64xf32>
    %384 = vector.broadcast %356 : vector<1x64xf32> to vector<48x64xf32>
    %385 = arith.mulf %383, %384 : vector<48x64xf32>
    %c384 = arith.constant 384 : index
    %c0_350 = arith.constant 0 : index
    %386 = vector.load %arg30[%c384, %c0_350] : memref<432x256xf32, #tpu.memory_space<vmem>>, vector<48x64xf32>
    tpu.vector_store %arg30[%c384, %c0_350], %385 {strides = array<i32>} : memref<432x256xf32, #tpu.memory_space<vmem>>, vector<48x64xf32>,
    %c0_351 = arith.constant 0 : index
    %c0_352 = arith.constant 0 : index
    %387 = vector.load %arg30[%c0_351, %c0_352] : memref<432x256xf32, #tpu.memory_space<vmem>>, vector<432x64xf32>
    %cst_353 = arith.constant dense<0.000000e+00> : vector<16x64xf32>
    %388 = tpu.matmul %340, %387, %cst_353 {dimension_numbers = #tpu.dot_dimension_numbers<[1], [0], [0], [1], [0, 0, 1, 1], [], []>} : vector<16x432xf32>, vector<432x64xf32>, vector<16x64xf32> -> vector<16x64xf32>
    %389 = vector.broadcast %341 : vector<16x1xf32> to vector<16x64xf32>
    %390 = arith.addf %388, %389 : vector<16x64xf32>
    %cst_354 = arith.constant 0.000000e+00 : f32
    %391 = vector.broadcast %cst_354 : f32 to vector<16x64xf32>
    %392 = arith.maximumf %390, %391 : vector<16x64xf32>
    %c0_355 = arith.constant 0 : index
    %c0_356 = arith.constant 0 : index
    %393 = vector.load %arg16[%c0_355, %c0_356] : memref<16x144xf32, #tpu.memory_space<vmem>>, vector<16x144xf32>
    %c0_357 = arith.constant 0 : index
    %c0_358 = arith.constant 0 : index
    %394 = vector.load %arg17[%c0_357, %c0_358] : memref<16x1xf32, #tpu.memory_space<vmem>>, vector<16x1xf32>
    %cst_359 = arith.constant 0.000000e+00 : f32
    %395 = vector.broadcast %cst_359 : f32 to vector<48x512xf32>
    %c0_360 = arith.constant 0 : index
    %c0_361 = arith.constant 0 : index
    %396 = vector.load %arg29[%c0_360, %c0_361] : memref<48x512xf32, #tpu.memory_space<vmem>>, vector<48x512xf32>
    tpu.vector_store %arg29[%c0_360, %c0_361], %395 {strides = array<i32>} : memref<48x512xf32, #tpu.memory_space<vmem>>, vector<48x512xf32>,
    %c0_362 = arith.constant 0 : index
    %c128_363 = arith.constant 128 : index
    %397 = vector.load %arg29[%c0_362, %c128_363] : memref<48x512xf32, #tpu.memory_space<vmem>>, vector<16x64xf32>
    tpu.vector_store %arg29[%c0_362, %c128_363], %392 {strides = array<i32>} : memref<48x512xf32, #tpu.memory_space<vmem>>, vector<16x64xf32>,
    %398 = tpu.iota {dimensions = array<i32: 1>} : vector<1x64xi32>
    %c7_i32_364 = arith.constant 7 : i32
    %399 = vector.broadcast %c7_i32_364 : i32 to vector<1x64xi32>
    %400 = arith.andi %398, %399 : vector<1x64xi32>
    %c1_i32_365 = arith.constant 1 : i32
    %401 = vector.broadcast %c1_i32_365 : i32 to vector<1x64xi32>
    %402 = arith.cmpi sge, %400, %401 : vector<1x64xi32>
    %403 = arith.extui %402 : vector<1x64xi1> to vector<1x64xi32>
    %404 = arith.sitofp %403 : vector<1x64xi32> to vector<1x64xf32>
    %c6_i32_366 = arith.constant 6 : i32
    %405 = vector.broadcast %c6_i32_366 : i32 to vector<1x64xi32>
    %406 = arith.cmpi sle, %400, %405 : vector<1x64xi32>
    %407 = arith.extui %406 : vector<1x64xi1> to vector<1x64xi32>
    %408 = arith.sitofp %407 : vector<1x64xi32> to vector<1x64xf32>
    %c0_367 = arith.constant 0 : index
    %c119_368 = arith.constant 119 : index
    %409 = vector.load %arg29[%c0_367, %c119_368] : memref<48x512xf32, #tpu.memory_space<vmem>>, vector<16x64xf32>
    %410 = vector.broadcast %404 : vector<1x64xf32> to vector<16x64xf32>
    %411 = arith.mulf %409, %410 : vector<16x64xf32>
    %c0_369 = arith.constant 0 : index
    %c0_370 = arith.constant 0 : index
    %412 = vector.load %arg30[%c0_369, %c0_370] : memref<432x256xf32, #tpu.memory_space<vmem>>, vector<16x64xf32>
    tpu.vector_store %arg30[%c0_369, %c0_370], %411 {strides = array<i32>} : memref<432x256xf32, #tpu.memory_space<vmem>>, vector<16x64xf32>,
    %c0_371 = arith.constant 0 : index
    %c120_372 = arith.constant 120 : index
    %413 = vector.load %arg29[%c0_371, %c120_372] : memref<48x512xf32, #tpu.memory_space<vmem>>, vector<16x64xf32>
    %c16_373 = arith.constant 16 : index
    %c0_374 = arith.constant 0 : index
    %414 = vector.load %arg30[%c16_373, %c0_374] : memref<432x256xf32, #tpu.memory_space<vmem>>, vector<16x64xf32>
    tpu.vector_store %arg30[%c16_373, %c0_374], %413 {strides = array<i32>} : memref<432x256xf32, #tpu.memory_space<vmem>>, vector<16x64xf32>,
    %c0_375 = arith.constant 0 : index
    %c121_376 = arith.constant 121 : index
    %415 = vector.load %arg29[%c0_375, %c121_376] : memref<48x512xf32, #tpu.memory_space<vmem>>, vector<16x64xf32>
    %416 = vector.broadcast %408 : vector<1x64xf32> to vector<16x64xf32>
    %417 = arith.mulf %415, %416 : vector<16x64xf32>
    %c32_377 = arith.constant 32 : index
    %c0_378 = arith.constant 0 : index
    %418 = vector.load %arg30[%c32_377, %c0_378] : memref<432x256xf32, #tpu.memory_space<vmem>>, vector<16x64xf32>
    tpu.vector_store %arg30[%c32_377, %c0_378], %417 {strides = array<i32>} : memref<432x256xf32, #tpu.memory_space<vmem>>, vector<16x64xf32>,
    %c0_379 = arith.constant 0 : index
    %c127_380 = arith.constant 127 : index
    %419 = vector.load %arg29[%c0_379, %c127_380] : memref<48x512xf32, #tpu.memory_space<vmem>>, vector<16x64xf32>
    %420 = vector.broadcast %404 : vector<1x64xf32> to vector<16x64xf32>
    %421 = arith.mulf %419, %420 : vector<16x64xf32>
    %c48_381 = arith.constant 48 : index
    %c0_382 = arith.constant 0 : index
    %422 = vector.load %arg30[%c48_381, %c0_382] : memref<432x256xf32, #tpu.memory_space<vmem>>, vector<16x64xf32>
    tpu.vector_store %arg30[%c48_381, %c0_382], %421 {strides = array<i32>} : memref<432x256xf32, #tpu.memory_space<vmem>>, vector<16x64xf32>,
    %c0_383 = arith.constant 0 : index
    %c128_384 = arith.constant 128 : index
    %423 = vector.load %arg29[%c0_383, %c128_384] : memref<48x512xf32, #tpu.memory_space<vmem>>, vector<16x64xf32>
    %c64_385 = arith.constant 64 : index
    %c0_386 = arith.constant 0 : index
    %424 = vector.load %arg30[%c64_385, %c0_386] : memref<432x256xf32, #tpu.memory_space<vmem>>, vector<16x64xf32>
    tpu.vector_store %arg30[%c64_385, %c0_386], %423 {strides = array<i32>} : memref<432x256xf32, #tpu.memory_space<vmem>>, vector<16x64xf32>,
    %c0_387 = arith.constant 0 : index
    %c129_388 = arith.constant 129 : index
    %425 = vector.load %arg29[%c0_387, %c129_388] : memref<48x512xf32, #tpu.memory_space<vmem>>, vector<16x64xf32>
    %426 = vector.broadcast %408 : vector<1x64xf32> to vector<16x64xf32>
    %427 = arith.mulf %425, %426 : vector<16x64xf32>
    %c80_389 = arith.constant 80 : index
    %c0_390 = arith.constant 0 : index
    %428 = vector.load %arg30[%c80_389, %c0_390] : memref<432x256xf32, #tpu.memory_space<vmem>>, vector<16x64xf32>
    tpu.vector_store %arg30[%c80_389, %c0_390], %427 {strides = array<i32>} : memref<432x256xf32, #tpu.memory_space<vmem>>, vector<16x64xf32>,
    %c0_391 = arith.constant 0 : index
    %c135_392 = arith.constant 135 : index
    %429 = vector.load %arg29[%c0_391, %c135_392] : memref<48x512xf32, #tpu.memory_space<vmem>>, vector<16x64xf32>
    %430 = vector.broadcast %404 : vector<1x64xf32> to vector<16x64xf32>
    %431 = arith.mulf %429, %430 : vector<16x64xf32>
    %c96_393 = arith.constant 96 : index
    %c0_394 = arith.constant 0 : index
    %432 = vector.load %arg30[%c96_393, %c0_394] : memref<432x256xf32, #tpu.memory_space<vmem>>, vector<16x64xf32>
    tpu.vector_store %arg30[%c96_393, %c0_394], %431 {strides = array<i32>} : memref<432x256xf32, #tpu.memory_space<vmem>>, vector<16x64xf32>,
    %c0_395 = arith.constant 0 : index
    %c136_396 = arith.constant 136 : index
    %433 = vector.load %arg29[%c0_395, %c136_396] : memref<48x512xf32, #tpu.memory_space<vmem>>, vector<16x64xf32>
    %c112_397 = arith.constant 112 : index
    %c0_398 = arith.constant 0 : index
    %434 = vector.load %arg30[%c112_397, %c0_398] : memref<432x256xf32, #tpu.memory_space<vmem>>, vector<16x64xf32>
    tpu.vector_store %arg30[%c112_397, %c0_398], %433 {strides = array<i32>} : memref<432x256xf32, #tpu.memory_space<vmem>>, vector<16x64xf32>,
    %c0_399 = arith.constant 0 : index
    %c137_400 = arith.constant 137 : index
    %435 = vector.load %arg29[%c0_399, %c137_400] : memref<48x512xf32, #tpu.memory_space<vmem>>, vector<16x64xf32>
    %436 = vector.broadcast %408 : vector<1x64xf32> to vector<16x64xf32>
    %437 = arith.mulf %435, %436 : vector<16x64xf32>
    %c128_401 = arith.constant 128 : index
    %c0_402 = arith.constant 0 : index
    %438 = vector.load %arg30[%c128_401, %c0_402] : memref<432x256xf32, #tpu.memory_space<vmem>>, vector<16x64xf32>
    tpu.vector_store %arg30[%c128_401, %c0_402], %437 {strides = array<i32>} : memref<432x256xf32, #tpu.memory_space<vmem>>, vector<16x64xf32>,
    %c0_403 = arith.constant 0 : index
    %c0_404 = arith.constant 0 : index
    %439 = vector.load %arg30[%c0_403, %c0_404] : memref<432x256xf32, #tpu.memory_space<vmem>>, vector<144x64xf32>
    %cst_405 = arith.constant dense<0.000000e+00> : vector<16x64xf32>
    %440 = tpu.matmul %393, %439, %cst_405 {dimension_numbers = #tpu.dot_dimension_numbers<[1], [0], [0], [1], [0, 0, 1, 1], [], []>} : vector<16x144xf32>, vector<144x64xf32>, vector<16x64xf32> -> vector<16x64xf32>
    %441 = vector.broadcast %394 : vector<16x1xf32> to vector<16x64xf32>
    %442 = arith.addf %440, %441 : vector<16x64xf32>
    %cst_406 = arith.constant 0.000000e+00 : f32
    %443 = vector.broadcast %cst_406 : f32 to vector<16x64xf32>
    %444 = arith.maximumf %442, %443 : vector<16x64xf32>
    %c0_407 = arith.constant 0 : index
    %c0_408 = arith.constant 0 : index
    %445 = vector.load %arg27[%c0_407, %c0_408] : memref<64x256xf32, #tpu.memory_space<vmem>>, vector<64x256xf32>
    %cst_409 = arith.constant dense<0.000000e+00> : vector<16x256xf32>
    %446 = tpu.matmul %444, %445, %cst_409 {dimension_numbers = #tpu.dot_dimension_numbers<[1], [0], [0], [1], [0, 0, 1, 1], [], []>} : vector<16x64xf32>, vector<64x256xf32>, vector<16x256xf32> -> vector<16x256xf32>
    %c0_410 = arith.constant 0 : index
    %c0_411 = arith.constant 0 : index
    %447 = vector.load %arg18[%c0_410, %c0_411] : memref<8x216xf32, #tpu.memory_space<vmem>>, vector<8x216xf32>
    %c0_412 = arith.constant 0 : index
    %c0_413 = arith.constant 0 : index
    %448 = vector.load %arg19[%c0_412, %c0_413] : memref<8x1xf32, #tpu.memory_space<vmem>>, vector<8x1xf32>
    %cst_414 = arith.constant 0.000000e+00 : f32
    %449 = vector.broadcast %cst_414 : f32 to vector<48x512xf32>
    %c0_415 = arith.constant 0 : index
    %c0_416 = arith.constant 0 : index
    %450 = vector.load %arg29[%c0_415, %c0_416] : memref<48x512xf32, #tpu.memory_space<vmem>>, vector<48x512xf32>
    tpu.vector_store %arg29[%c0_415, %c0_416], %449 {strides = array<i32>} : memref<48x512xf32, #tpu.memory_space<vmem>>, vector<48x512xf32>,
    %c0_417 = arith.constant 0 : index
    %c128_418 = arith.constant 128 : index
    %451 = vector.load %arg29[%c0_417, %c128_418] : memref<48x512xf32, #tpu.memory_space<vmem>>, vector<16x256xf32>
    tpu.vector_store %arg29[%c0_417, %c128_418], %446 {strides = array<i32>} : memref<48x512xf32, #tpu.memory_space<vmem>>, vector<16x256xf32>,
    %c16_419 = arith.constant 16 : index
    %c128_420 = arith.constant 128 : index
    %452 = vector.load %arg29[%c16_419, %c128_420] : memref<48x512xf32, #tpu.memory_space<vmem>>, vector<8x256xf32>
    tpu.vector_store %arg29[%c16_419, %c128_420], %107 {strides = array<i32>} : memref<48x512xf32, #tpu.memory_space<vmem>>, vector<8x256xf32>,
    %453 = tpu.iota {dimensions = array<i32: 1>} : vector<1x256xi32>
    %c15_i32_421 = arith.constant 15 : i32
    %454 = vector.broadcast %c15_i32_421 : i32 to vector<1x256xi32>
    %455 = arith.andi %453, %454 : vector<1x256xi32>
    %c1_i32_422 = arith.constant 1 : i32
    %456 = vector.broadcast %c1_i32_422 : i32 to vector<1x256xi32>
    %457 = arith.cmpi sge, %455, %456 : vector<1x256xi32>
    %458 = arith.extui %457 : vector<1x256xi1> to vector<1x256xi32>
    %459 = arith.sitofp %458 : vector<1x256xi32> to vector<1x256xf32>
    %c14_i32_423 = arith.constant 14 : i32
    %460 = vector.broadcast %c14_i32_423 : i32 to vector<1x256xi32>
    %461 = arith.cmpi sle, %455, %460 : vector<1x256xi32>
    %462 = arith.extui %461 : vector<1x256xi1> to vector<1x256xi32>
    %463 = arith.sitofp %462 : vector<1x256xi32> to vector<1x256xf32>
    %c0_424 = arith.constant 0 : index
    %c111_425 = arith.constant 111 : index
    %464 = vector.load %arg29[%c0_424, %c111_425] : memref<48x512xf32, #tpu.memory_space<vmem>>, vector<24x256xf32>
    %465 = vector.broadcast %459 : vector<1x256xf32> to vector<24x256xf32>
    %466 = arith.mulf %464, %465 : vector<24x256xf32>
    %c0_426 = arith.constant 0 : index
    %c0_427 = arith.constant 0 : index
    %467 = vector.load %arg30[%c0_426, %c0_427] : memref<432x256xf32, #tpu.memory_space<vmem>>, vector<24x256xf32>
    tpu.vector_store %arg30[%c0_426, %c0_427], %466 {strides = array<i32>} : memref<432x256xf32, #tpu.memory_space<vmem>>, vector<24x256xf32>,
    %c0_428 = arith.constant 0 : index
    %c112_429 = arith.constant 112 : index
    %468 = vector.load %arg29[%c0_428, %c112_429] : memref<48x512xf32, #tpu.memory_space<vmem>>, vector<24x256xf32>
    %c24_430 = arith.constant 24 : index
    %c0_431 = arith.constant 0 : index
    %469 = vector.load %arg30[%c24_430, %c0_431] : memref<432x256xf32, #tpu.memory_space<vmem>>, vector<24x256xf32>
    tpu.vector_store %arg30[%c24_430, %c0_431], %468 {strides = array<i32>} : memref<432x256xf32, #tpu.memory_space<vmem>>, vector<24x256xf32>,
    %c0_432 = arith.constant 0 : index
    %c113_433 = arith.constant 113 : index
    %470 = vector.load %arg29[%c0_432, %c113_433] : memref<48x512xf32, #tpu.memory_space<vmem>>, vector<24x256xf32>
    %471 = vector.broadcast %463 : vector<1x256xf32> to vector<24x256xf32>
    %472 = arith.mulf %470, %471 : vector<24x256xf32>
    %c48_434 = arith.constant 48 : index
    %c0_435 = arith.constant 0 : index
    %473 = vector.load %arg30[%c48_434, %c0_435] : memref<432x256xf32, #tpu.memory_space<vmem>>, vector<24x256xf32>
    tpu.vector_store %arg30[%c48_434, %c0_435], %472 {strides = array<i32>} : memref<432x256xf32, #tpu.memory_space<vmem>>, vector<24x256xf32>,
    %c0_436 = arith.constant 0 : index
    %c127_437 = arith.constant 127 : index
    %474 = vector.load %arg29[%c0_436, %c127_437] : memref<48x512xf32, #tpu.memory_space<vmem>>, vector<24x256xf32>
    %475 = vector.broadcast %459 : vector<1x256xf32> to vector<24x256xf32>
    %476 = arith.mulf %474, %475 : vector<24x256xf32>
    %c72 = arith.constant 72 : index
    %c0_438 = arith.constant 0 : index
    %477 = vector.load %arg30[%c72, %c0_438] : memref<432x256xf32, #tpu.memory_space<vmem>>, vector<24x256xf32>
    tpu.vector_store %arg30[%c72, %c0_438], %476 {strides = array<i32>} : memref<432x256xf32, #tpu.memory_space<vmem>>, vector<24x256xf32>,
    %c0_439 = arith.constant 0 : index
    %c128_440 = arith.constant 128 : index
    %478 = vector.load %arg29[%c0_439, %c128_440] : memref<48x512xf32, #tpu.memory_space<vmem>>, vector<24x256xf32>
    %c96_441 = arith.constant 96 : index
    %c0_442 = arith.constant 0 : index
    %479 = vector.load %arg30[%c96_441, %c0_442] : memref<432x256xf32, #tpu.memory_space<vmem>>, vector<24x256xf32>
    tpu.vector_store %arg30[%c96_441, %c0_442], %478 {strides = array<i32>} : memref<432x256xf32, #tpu.memory_space<vmem>>, vector<24x256xf32>,
    %c0_443 = arith.constant 0 : index
    %c129_444 = arith.constant 129 : index
    %480 = vector.load %arg29[%c0_443, %c129_444] : memref<48x512xf32, #tpu.memory_space<vmem>>, vector<24x256xf32>
    %481 = vector.broadcast %463 : vector<1x256xf32> to vector<24x256xf32>
    %482 = arith.mulf %480, %481 : vector<24x256xf32>
    %c120_445 = arith.constant 120 : index
    %c0_446 = arith.constant 0 : index
    %483 = vector.load %arg30[%c120_445, %c0_446] : memref<432x256xf32, #tpu.memory_space<vmem>>, vector<24x256xf32>
    tpu.vector_store %arg30[%c120_445, %c0_446], %482 {strides = array<i32>} : memref<432x256xf32, #tpu.memory_space<vmem>>, vector<24x256xf32>,
    %c0_447 = arith.constant 0 : index
    %c143_448 = arith.constant 143 : index
    %484 = vector.load %arg29[%c0_447, %c143_448] : memref<48x512xf32, #tpu.memory_space<vmem>>, vector<24x256xf32>
    %485 = vector.broadcast %459 : vector<1x256xf32> to vector<24x256xf32>
    %486 = arith.mulf %484, %485 : vector<24x256xf32>
    %c144_449 = arith.constant 144 : index
    %c0_450 = arith.constant 0 : index
    %487 = vector.load %arg30[%c144_449, %c0_450] : memref<432x256xf32, #tpu.memory_space<vmem>>, vector<24x256xf32>
    tpu.vector_store %arg30[%c144_449, %c0_450], %486 {strides = array<i32>} : memref<432x256xf32, #tpu.memory_space<vmem>>, vector<24x256xf32>,
    %c0_451 = arith.constant 0 : index
    %c144_452 = arith.constant 144 : index
    %488 = vector.load %arg29[%c0_451, %c144_452] : memref<48x512xf32, #tpu.memory_space<vmem>>, vector<24x256xf32>
    %c168 = arith.constant 168 : index
    %c0_453 = arith.constant 0 : index
    %489 = vector.load %arg30[%c168, %c0_453] : memref<432x256xf32, #tpu.memory_space<vmem>>, vector<24x256xf32>
    tpu.vector_store %arg30[%c168, %c0_453], %488 {strides = array<i32>} : memref<432x256xf32, #tpu.memory_space<vmem>>, vector<24x256xf32>,
    %c0_454 = arith.constant 0 : index
    %c145_455 = arith.constant 145 : index
    %490 = vector.load %arg29[%c0_454, %c145_455] : memref<48x512xf32, #tpu.memory_space<vmem>>, vector<24x256xf32>
    %491 = vector.broadcast %463 : vector<1x256xf32> to vector<24x256xf32>
    %492 = arith.mulf %490, %491 : vector<24x256xf32>
    %c192_456 = arith.constant 192 : index
    %c0_457 = arith.constant 0 : index
    %493 = vector.load %arg30[%c192_456, %c0_457] : memref<432x256xf32, #tpu.memory_space<vmem>>, vector<24x256xf32>
    tpu.vector_store %arg30[%c192_456, %c0_457], %492 {strides = array<i32>} : memref<432x256xf32, #tpu.memory_space<vmem>>, vector<24x256xf32>,
    %c0_458 = arith.constant 0 : index
    %c0_459 = arith.constant 0 : index
    %494 = vector.load %arg30[%c0_458, %c0_459] : memref<432x256xf32, #tpu.memory_space<vmem>>, vector<216x256xf32>
    %cst_460 = arith.constant dense<0.000000e+00> : vector<8x256xf32>
    %495 = tpu.matmul %447, %494, %cst_460 {dimension_numbers = #tpu.dot_dimension_numbers<[1], [0], [0], [1], [0, 0, 1, 1], [], []>} : vector<8x216xf32>, vector<216x256xf32>, vector<8x256xf32> -> vector<8x256xf32>
    %496 = vector.broadcast %448 : vector<8x1xf32> to vector<8x256xf32>
    %497 = arith.addf %495, %496 : vector<8x256xf32>
    %cst_461 = arith.constant 0.000000e+00 : f32
    %498 = vector.broadcast %cst_461 : f32 to vector<8x256xf32>
    %499 = arith.maximumf %497, %498 : vector<8x256xf32>
    %c0_462 = arith.constant 0 : index
    %c0_463 = arith.constant 0 : index
    %500 = vector.load %arg20[%c0_462, %c0_463] : memref<8x72xf32, #tpu.memory_space<vmem>>, vector<8x72xf32>
    %c0_464 = arith.constant 0 : index
    %c0_465 = arith.constant 0 : index
    %501 = vector.load %arg21[%c0_464, %c0_465] : memref<8x1xf32, #tpu.memory_space<vmem>>, vector<8x1xf32>
    %cst_466 = arith.constant 0.000000e+00 : f32
    %502 = vector.broadcast %cst_466 : f32 to vector<48x512xf32>
    %c0_467 = arith.constant 0 : index
    %c0_468 = arith.constant 0 : index
    %503 = vector.load %arg29[%c0_467, %c0_468] : memref<48x512xf32, #tpu.memory_space<vmem>>, vector<48x512xf32>
    tpu.vector_store %arg29[%c0_467, %c0_468], %502 {strides = array<i32>} : memref<48x512xf32, #tpu.memory_space<vmem>>, vector<48x512xf32>,
    %c0_469 = arith.constant 0 : index
    %c128_470 = arith.constant 128 : index
    %504 = vector.load %arg29[%c0_469, %c128_470] : memref<48x512xf32, #tpu.memory_space<vmem>>, vector<8x256xf32>
    tpu.vector_store %arg29[%c0_469, %c128_470], %499 {strides = array<i32>} : memref<48x512xf32, #tpu.memory_space<vmem>>, vector<8x256xf32>,
    %505 = tpu.iota {dimensions = array<i32: 1>} : vector<1x256xi32>
    %c15_i32_471 = arith.constant 15 : i32
    %506 = vector.broadcast %c15_i32_471 : i32 to vector<1x256xi32>
    %507 = arith.andi %505, %506 : vector<1x256xi32>
    %c1_i32_472 = arith.constant 1 : i32
    %508 = vector.broadcast %c1_i32_472 : i32 to vector<1x256xi32>
    %509 = arith.cmpi sge, %507, %508 : vector<1x256xi32>
    %510 = arith.extui %509 : vector<1x256xi1> to vector<1x256xi32>
    %511 = arith.sitofp %510 : vector<1x256xi32> to vector<1x256xf32>
    %c14_i32_473 = arith.constant 14 : i32
    %512 = vector.broadcast %c14_i32_473 : i32 to vector<1x256xi32>
    %513 = arith.cmpi sle, %507, %512 : vector<1x256xi32>
    %514 = arith.extui %513 : vector<1x256xi1> to vector<1x256xi32>
    %515 = arith.sitofp %514 : vector<1x256xi32> to vector<1x256xf32>
    %c0_474 = arith.constant 0 : index
    %c111_475 = arith.constant 111 : index
    %516 = vector.load %arg29[%c0_474, %c111_475] : memref<48x512xf32, #tpu.memory_space<vmem>>, vector<8x256xf32>
    %517 = vector.broadcast %511 : vector<1x256xf32> to vector<8x256xf32>
    %518 = arith.mulf %516, %517 : vector<8x256xf32>
    %c0_476 = arith.constant 0 : index
    %c0_477 = arith.constant 0 : index
    %519 = vector.load %arg30[%c0_476, %c0_477] : memref<432x256xf32, #tpu.memory_space<vmem>>, vector<8x256xf32>
    tpu.vector_store %arg30[%c0_476, %c0_477], %518 {strides = array<i32>} : memref<432x256xf32, #tpu.memory_space<vmem>>, vector<8x256xf32>,
    %c0_478 = arith.constant 0 : index
    %c112_479 = arith.constant 112 : index
    %520 = vector.load %arg29[%c0_478, %c112_479] : memref<48x512xf32, #tpu.memory_space<vmem>>, vector<8x256xf32>
    %c8_480 = arith.constant 8 : index
    %c0_481 = arith.constant 0 : index
    %521 = vector.load %arg30[%c8_480, %c0_481] : memref<432x256xf32, #tpu.memory_space<vmem>>, vector<8x256xf32>
    tpu.vector_store %arg30[%c8_480, %c0_481], %520 {strides = array<i32>} : memref<432x256xf32, #tpu.memory_space<vmem>>, vector<8x256xf32>,
    %c0_482 = arith.constant 0 : index
    %c113_483 = arith.constant 113 : index
    %522 = vector.load %arg29[%c0_482, %c113_483] : memref<48x512xf32, #tpu.memory_space<vmem>>, vector<8x256xf32>
    %523 = vector.broadcast %515 : vector<1x256xf32> to vector<8x256xf32>
    %524 = arith.mulf %522, %523 : vector<8x256xf32>
    %c16_484 = arith.constant 16 : index
    %c0_485 = arith.constant 0 : index
    %525 = vector.load %arg30[%c16_484, %c0_485] : memref<432x256xf32, #tpu.memory_space<vmem>>, vector<8x256xf32>
    tpu.vector_store %arg30[%c16_484, %c0_485], %524 {strides = array<i32>} : memref<432x256xf32, #tpu.memory_space<vmem>>, vector<8x256xf32>,
    %c0_486 = arith.constant 0 : index
    %c127_487 = arith.constant 127 : index
    %526 = vector.load %arg29[%c0_486, %c127_487] : memref<48x512xf32, #tpu.memory_space<vmem>>, vector<8x256xf32>
    %527 = vector.broadcast %511 : vector<1x256xf32> to vector<8x256xf32>
    %528 = arith.mulf %526, %527 : vector<8x256xf32>
    %c24_488 = arith.constant 24 : index
    %c0_489 = arith.constant 0 : index
    %529 = vector.load %arg30[%c24_488, %c0_489] : memref<432x256xf32, #tpu.memory_space<vmem>>, vector<8x256xf32>
    tpu.vector_store %arg30[%c24_488, %c0_489], %528 {strides = array<i32>} : memref<432x256xf32, #tpu.memory_space<vmem>>, vector<8x256xf32>,
    %c0_490 = arith.constant 0 : index
    %c128_491 = arith.constant 128 : index
    %530 = vector.load %arg29[%c0_490, %c128_491] : memref<48x512xf32, #tpu.memory_space<vmem>>, vector<8x256xf32>
    %c32_492 = arith.constant 32 : index
    %c0_493 = arith.constant 0 : index
    %531 = vector.load %arg30[%c32_492, %c0_493] : memref<432x256xf32, #tpu.memory_space<vmem>>, vector<8x256xf32>
    tpu.vector_store %arg30[%c32_492, %c0_493], %530 {strides = array<i32>} : memref<432x256xf32, #tpu.memory_space<vmem>>, vector<8x256xf32>,
    %c0_494 = arith.constant 0 : index
    %c129_495 = arith.constant 129 : index
    %532 = vector.load %arg29[%c0_494, %c129_495] : memref<48x512xf32, #tpu.memory_space<vmem>>, vector<8x256xf32>
    %533 = vector.broadcast %515 : vector<1x256xf32> to vector<8x256xf32>
    %534 = arith.mulf %532, %533 : vector<8x256xf32>
    %c40_496 = arith.constant 40 : index
    %c0_497 = arith.constant 0 : index
    %535 = vector.load %arg30[%c40_496, %c0_497] : memref<432x256xf32, #tpu.memory_space<vmem>>, vector<8x256xf32>
    tpu.vector_store %arg30[%c40_496, %c0_497], %534 {strides = array<i32>} : memref<432x256xf32, #tpu.memory_space<vmem>>, vector<8x256xf32>,
    %c0_498 = arith.constant 0 : index
    %c143_499 = arith.constant 143 : index
    %536 = vector.load %arg29[%c0_498, %c143_499] : memref<48x512xf32, #tpu.memory_space<vmem>>, vector<8x256xf32>
    %537 = vector.broadcast %511 : vector<1x256xf32> to vector<8x256xf32>
    %538 = arith.mulf %536, %537 : vector<8x256xf32>
    %c48_500 = arith.constant 48 : index
    %c0_501 = arith.constant 0 : index
    %539 = vector.load %arg30[%c48_500, %c0_501] : memref<432x256xf32, #tpu.memory_space<vmem>>, vector<8x256xf32>
    tpu.vector_store %arg30[%c48_500, %c0_501], %538 {strides = array<i32>} : memref<432x256xf32, #tpu.memory_space<vmem>>, vector<8x256xf32>,
    %c0_502 = arith.constant 0 : index
    %c144_503 = arith.constant 144 : index
    %540 = vector.load %arg29[%c0_502, %c144_503] : memref<48x512xf32, #tpu.memory_space<vmem>>, vector<8x256xf32>
    %c56_504 = arith.constant 56 : index
    %c0_505 = arith.constant 0 : index
    %541 = vector.load %arg30[%c56_504, %c0_505] : memref<432x256xf32, #tpu.memory_space<vmem>>, vector<8x256xf32>
    tpu.vector_store %arg30[%c56_504, %c0_505], %540 {strides = array<i32>} : memref<432x256xf32, #tpu.memory_space<vmem>>, vector<8x256xf32>,
    %c0_506 = arith.constant 0 : index
    %c145_507 = arith.constant 145 : index
    %542 = vector.load %arg29[%c0_506, %c145_507] : memref<48x512xf32, #tpu.memory_space<vmem>>, vector<8x256xf32>
    %543 = vector.broadcast %515 : vector<1x256xf32> to vector<8x256xf32>
    %544 = arith.mulf %542, %543 : vector<8x256xf32>
    %c64_508 = arith.constant 64 : index
    %c0_509 = arith.constant 0 : index
    %545 = vector.load %arg30[%c64_508, %c0_509] : memref<432x256xf32, #tpu.memory_space<vmem>>, vector<8x256xf32>
    tpu.vector_store %arg30[%c64_508, %c0_509], %544 {strides = array<i32>} : memref<432x256xf32, #tpu.memory_space<vmem>>, vector<8x256xf32>,
    %c0_510 = arith.constant 0 : index
    %c0_511 = arith.constant 0 : index
    %546 = vector.load %arg30[%c0_510, %c0_511] : memref<432x256xf32, #tpu.memory_space<vmem>>, vector<72x256xf32>
    %cst_512 = arith.constant dense<0.000000e+00> : vector<8x256xf32>
    %547 = tpu.matmul %500, %546, %cst_512 {dimension_numbers = #tpu.dot_dimension_numbers<[1], [0], [0], [1], [0, 0, 1, 1], [], []>} : vector<8x72xf32>, vector<72x256xf32>, vector<8x256xf32> -> vector<8x256xf32>
    %548 = vector.broadcast %501 : vector<8x1xf32> to vector<8x256xf32>
    %549 = arith.addf %547, %548 : vector<8x256xf32>
    %cst_513 = arith.constant 0.000000e+00 : f32
    %550 = vector.broadcast %cst_513 : f32 to vector<8x256xf32>
    %551 = arith.maximumf %549, %550 : vector<8x256xf32>
    %c0_514 = arith.constant 0 : index
    %c0_515 = arith.constant 0 : index
    %552 = vector.load %arg22[%c0_514, %c0_515] : memref<3x72xf32, #tpu.memory_space<vmem>>, vector<3x72xf32>
    %c0_516 = arith.constant 0 : index
    %c0_517 = arith.constant 0 : index
    %553 = vector.load %arg23[%c0_516, %c0_517] : memref<3x1xf32, #tpu.memory_space<vmem>>, vector<3x1xf32>
    %cst_518 = arith.constant 0.000000e+00 : f32
    %554 = vector.broadcast %cst_518 : f32 to vector<48x512xf32>
    %c0_519 = arith.constant 0 : index
    %c0_520 = arith.constant 0 : index
    %555 = vector.load %arg29[%c0_519, %c0_520] : memref<48x512xf32, #tpu.memory_space<vmem>>, vector<48x512xf32>
    tpu.vector_store %arg29[%c0_519, %c0_520], %554 {strides = array<i32>} : memref<48x512xf32, #tpu.memory_space<vmem>>, vector<48x512xf32>,
    %c0_521 = arith.constant 0 : index
    %c128_522 = arith.constant 128 : index
    %556 = vector.load %arg29[%c0_521, %c128_522] : memref<48x512xf32, #tpu.memory_space<vmem>>, vector<8x256xf32>
    tpu.vector_store %arg29[%c0_521, %c128_522], %551 {strides = array<i32>} : memref<48x512xf32, #tpu.memory_space<vmem>>, vector<8x256xf32>,
    %557 = tpu.iota {dimensions = array<i32: 1>} : vector<1x256xi32>
    %c15_i32_523 = arith.constant 15 : i32
    %558 = vector.broadcast %c15_i32_523 : i32 to vector<1x256xi32>
    %559 = arith.andi %557, %558 : vector<1x256xi32>
    %c1_i32_524 = arith.constant 1 : i32
    %560 = vector.broadcast %c1_i32_524 : i32 to vector<1x256xi32>
    %561 = arith.cmpi sge, %559, %560 : vector<1x256xi32>
    %562 = arith.extui %561 : vector<1x256xi1> to vector<1x256xi32>
    %563 = arith.sitofp %562 : vector<1x256xi32> to vector<1x256xf32>
    %c14_i32_525 = arith.constant 14 : i32
    %564 = vector.broadcast %c14_i32_525 : i32 to vector<1x256xi32>
    %565 = arith.cmpi sle, %559, %564 : vector<1x256xi32>
    %566 = arith.extui %565 : vector<1x256xi1> to vector<1x256xi32>
    %567 = arith.sitofp %566 : vector<1x256xi32> to vector<1x256xf32>
    %c0_526 = arith.constant 0 : index
    %c111_527 = arith.constant 111 : index
    %568 = vector.load %arg29[%c0_526, %c111_527] : memref<48x512xf32, #tpu.memory_space<vmem>>, vector<8x256xf32>
    %569 = vector.broadcast %563 : vector<1x256xf32> to vector<8x256xf32>
    %570 = arith.mulf %568, %569 : vector<8x256xf32>
    %c0_528 = arith.constant 0 : index
    %c0_529 = arith.constant 0 : index
    %571 = vector.load %arg30[%c0_528, %c0_529] : memref<432x256xf32, #tpu.memory_space<vmem>>, vector<8x256xf32>
    tpu.vector_store %arg30[%c0_528, %c0_529], %570 {strides = array<i32>} : memref<432x256xf32, #tpu.memory_space<vmem>>, vector<8x256xf32>,
    %c0_530 = arith.constant 0 : index
    %c112_531 = arith.constant 112 : index
    %572 = vector.load %arg29[%c0_530, %c112_531] : memref<48x512xf32, #tpu.memory_space<vmem>>, vector<8x256xf32>
    %c8_532 = arith.constant 8 : index
    %c0_533 = arith.constant 0 : index
    %573 = vector.load %arg30[%c8_532, %c0_533] : memref<432x256xf32, #tpu.memory_space<vmem>>, vector<8x256xf32>
    tpu.vector_store %arg30[%c8_532, %c0_533], %572 {strides = array<i32>} : memref<432x256xf32, #tpu.memory_space<vmem>>, vector<8x256xf32>,
    %c0_534 = arith.constant 0 : index
    %c113_535 = arith.constant 113 : index
    %574 = vector.load %arg29[%c0_534, %c113_535] : memref<48x512xf32, #tpu.memory_space<vmem>>, vector<8x256xf32>
    %575 = vector.broadcast %567 : vector<1x256xf32> to vector<8x256xf32>
    %576 = arith.mulf %574, %575 : vector<8x256xf32>
    %c16_536 = arith.constant 16 : index
    %c0_537 = arith.constant 0 : index
    %577 = vector.load %arg30[%c16_536, %c0_537] : memref<432x256xf32, #tpu.memory_space<vmem>>, vector<8x256xf32>
    tpu.vector_store %arg30[%c16_536, %c0_537], %576 {strides = array<i32>} : memref<432x256xf32, #tpu.memory_space<vmem>>, vector<8x256xf32>,
    %c0_538 = arith.constant 0 : index
    %c127_539 = arith.constant 127 : index
    %578 = vector.load %arg29[%c0_538, %c127_539] : memref<48x512xf32, #tpu.memory_space<vmem>>, vector<8x256xf32>
    %579 = vector.broadcast %563 : vector<1x256xf32> to vector<8x256xf32>
    %580 = arith.mulf %578, %579 : vector<8x256xf32>
    %c24_540 = arith.constant 24 : index
    %c0_541 = arith.constant 0 : index
    %581 = vector.load %arg30[%c24_540, %c0_541] : memref<432x256xf32, #tpu.memory_space<vmem>>, vector<8x256xf32>
    tpu.vector_store %arg30[%c24_540, %c0_541], %580 {strides = array<i32>} : memref<432x256xf32, #tpu.memory_space<vmem>>, vector<8x256xf32>,
    %c0_542 = arith.constant 0 : index
    %c128_543 = arith.constant 128 : index
    %582 = vector.load %arg29[%c0_542, %c128_543] : memref<48x512xf32, #tpu.memory_space<vmem>>, vector<8x256xf32>
    %c32_544 = arith.constant 32 : index
    %c0_545 = arith.constant 0 : index
    %583 = vector.load %arg30[%c32_544, %c0_545] : memref<432x256xf32, #tpu.memory_space<vmem>>, vector<8x256xf32>
    tpu.vector_store %arg30[%c32_544, %c0_545], %582 {strides = array<i32>} : memref<432x256xf32, #tpu.memory_space<vmem>>, vector<8x256xf32>,
    %c0_546 = arith.constant 0 : index
    %c129_547 = arith.constant 129 : index
    %584 = vector.load %arg29[%c0_546, %c129_547] : memref<48x512xf32, #tpu.memory_space<vmem>>, vector<8x256xf32>
    %585 = vector.broadcast %567 : vector<1x256xf32> to vector<8x256xf32>
    %586 = arith.mulf %584, %585 : vector<8x256xf32>
    %c40_548 = arith.constant 40 : index
    %c0_549 = arith.constant 0 : index
    %587 = vector.load %arg30[%c40_548, %c0_549] : memref<432x256xf32, #tpu.memory_space<vmem>>, vector<8x256xf32>
    tpu.vector_store %arg30[%c40_548, %c0_549], %586 {strides = array<i32>} : memref<432x256xf32, #tpu.memory_space<vmem>>, vector<8x256xf32>,
    %c0_550 = arith.constant 0 : index
    %c143_551 = arith.constant 143 : index
    %588 = vector.load %arg29[%c0_550, %c143_551] : memref<48x512xf32, #tpu.memory_space<vmem>>, vector<8x256xf32>
    %589 = vector.broadcast %563 : vector<1x256xf32> to vector<8x256xf32>
    %590 = arith.mulf %588, %589 : vector<8x256xf32>
    %c48_552 = arith.constant 48 : index
    %c0_553 = arith.constant 0 : index
    %591 = vector.load %arg30[%c48_552, %c0_553] : memref<432x256xf32, #tpu.memory_space<vmem>>, vector<8x256xf32>
    tpu.vector_store %arg30[%c48_552, %c0_553], %590 {strides = array<i32>} : memref<432x256xf32, #tpu.memory_space<vmem>>, vector<8x256xf32>,
    %c0_554 = arith.constant 0 : index
    %c144_555 = arith.constant 144 : index
    %592 = vector.load %arg29[%c0_554, %c144_555] : memref<48x512xf32, #tpu.memory_space<vmem>>, vector<8x256xf32>
    %c56_556 = arith.constant 56 : index
    %c0_557 = arith.constant 0 : index
    %593 = vector.load %arg30[%c56_556, %c0_557] : memref<432x256xf32, #tpu.memory_space<vmem>>, vector<8x256xf32>
    tpu.vector_store %arg30[%c56_556, %c0_557], %592 {strides = array<i32>} : memref<432x256xf32, #tpu.memory_space<vmem>>, vector<8x256xf32>,
    %c0_558 = arith.constant 0 : index
    %c145_559 = arith.constant 145 : index
    %594 = vector.load %arg29[%c0_558, %c145_559] : memref<48x512xf32, #tpu.memory_space<vmem>>, vector<8x256xf32>
    %595 = vector.broadcast %567 : vector<1x256xf32> to vector<8x256xf32>
    %596 = arith.mulf %594, %595 : vector<8x256xf32>
    %c64_560 = arith.constant 64 : index
    %c0_561 = arith.constant 0 : index
    %597 = vector.load %arg30[%c64_560, %c0_561] : memref<432x256xf32, #tpu.memory_space<vmem>>, vector<8x256xf32>
    tpu.vector_store %arg30[%c64_560, %c0_561], %596 {strides = array<i32>} : memref<432x256xf32, #tpu.memory_space<vmem>>, vector<8x256xf32>,
    %c0_562 = arith.constant 0 : index
    %c0_563 = arith.constant 0 : index
    %598 = vector.load %arg30[%c0_562, %c0_563] : memref<432x256xf32, #tpu.memory_space<vmem>>, vector<72x256xf32>
    %cst_564 = arith.constant dense<0.000000e+00> : vector<3x256xf32>
    %599 = tpu.matmul %552, %598, %cst_564 {dimension_numbers = #tpu.dot_dimension_numbers<[1], [0], [0], [1], [0, 0, 1, 1], [], []>} : vector<3x72xf32>, vector<72x256xf32>, vector<3x256xf32> -> vector<3x256xf32>
    %600 = vector.broadcast %553 : vector<3x1xf32> to vector<3x256xf32>
    %601 = arith.addf %599, %600 : vector<3x256xf32>
    %602 = arith.negf %601 : vector<3x256xf32>
    %603 = math.exp %602 : vector<3x256xf32>
    %cst_565 = arith.constant 1.000000e+00 : f32
    %604 = vector.broadcast %cst_565 : f32 to vector<3x256xf32>
    %605 = arith.addf %604, %603 : vector<3x256xf32>
    %606 = arith.divf %604, %605 : vector<3x256xf32>
    %c0_566 = arith.constant 0 : index
    %c0_567 = arith.constant 0 : index
    %c0_568 = arith.constant 0 : index
    %607 = vector.load %arg28[%c0_566, %c0_567, %c0_568] : memref<1x3x256xf32, #tpu.memory_space<vmem>>, vector<1x3x256xf32>
    %608 = vector.shape_cast %607 : vector<1x3x256xf32> to vector<3x256xf32>
    %609 = vector.shape_cast %606 : vector<3x256xf32> to vector<1x3x256xf32>
    tpu.vector_store %arg28[%c0_566, %c0_567, %c0_568], %609 {strides = array<i32>} : memref<1x3x256xf32, #tpu.memory_space<vmem>>, vector<1x3x256xf32>,
    return
  }
  func.func @transform_0(%arg0: i32) -> (i32, i32, i32) {
    %c0_i32 = arith.constant 0 : i32
    %c0_i32_0 = arith.constant 0 : i32
    %c0_i32_1 = arith.constant 0 : i32
    return %arg0, %c0_i32, %c0_i32_0 : i32, i32, i32
  }
  func.func @transform_1(%arg0: i32) -> (i32, i32) {
    %c0_i32 = arith.constant 0 : i32
    %c0_i32_0 = arith.constant 0 : i32
    %c0_i32_1 = arith.constant 0 : i32
    return %c0_i32, %c0_i32_0 : i32, i32
  }
  func.func @transform_2(%arg0: i32) -> (i32, i32) {
    %c0_i32 = arith.constant 0 : i32
    %c0_i32_0 = arith.constant 0 : i32
    %c0_i32_1 = arith.constant 0 : i32
    return %c0_i32, %c0_i32_0 : i32, i32
  }
  func.func @transform_3(%arg0: i32) -> (i32, i32) {
    %c0_i32 = arith.constant 0 : i32
    %c0_i32_0 = arith.constant 0 : i32
    %c0_i32_1 = arith.constant 0 : i32
    return %c0_i32, %c0_i32_0 : i32, i32
  }
  func.func @transform_4(%arg0: i32) -> (i32, i32) {
    %c0_i32 = arith.constant 0 : i32
    %c0_i32_0 = arith.constant 0 : i32
    %c0_i32_1 = arith.constant 0 : i32
    return %c0_i32, %c0_i32_0 : i32, i32
  }
  func.func @transform_5(%arg0: i32) -> (i32, i32) {
    %c0_i32 = arith.constant 0 : i32
    %c0_i32_0 = arith.constant 0 : i32
    %c0_i32_1 = arith.constant 0 : i32
    return %c0_i32, %c0_i32_0 : i32, i32
  }
  func.func @transform_6(%arg0: i32) -> (i32, i32) {
    %c0_i32 = arith.constant 0 : i32
    %c0_i32_0 = arith.constant 0 : i32
    %c0_i32_1 = arith.constant 0 : i32
    return %c0_i32, %c0_i32_0 : i32, i32
  }
  func.func @transform_7(%arg0: i32) -> (i32, i32) {
    %c0_i32 = arith.constant 0 : i32
    %c0_i32_0 = arith.constant 0 : i32
    %c0_i32_1 = arith.constant 0 : i32
    return %c0_i32, %c0_i32_0 : i32, i32
  }
  func.func @transform_8(%arg0: i32) -> (i32, i32) {
    %c0_i32 = arith.constant 0 : i32
    %c0_i32_0 = arith.constant 0 : i32
    %c0_i32_1 = arith.constant 0 : i32
    return %c0_i32, %c0_i32_0 : i32, i32
  }
  func.func @transform_9(%arg0: i32) -> (i32, i32) {
    %c0_i32 = arith.constant 0 : i32
    %c0_i32_0 = arith.constant 0 : i32
    %c0_i32_1 = arith.constant 0 : i32
    return %c0_i32, %c0_i32_0 : i32, i32
  }
  func.func @transform_10(%arg0: i32) -> (i32, i32) {
    %c0_i32 = arith.constant 0 : i32
    %c0_i32_0 = arith.constant 0 : i32
    %c0_i32_1 = arith.constant 0 : i32
    return %c0_i32, %c0_i32_0 : i32, i32
  }
  func.func @transform_11(%arg0: i32) -> (i32, i32) {
    %c0_i32 = arith.constant 0 : i32
    %c0_i32_0 = arith.constant 0 : i32
    %c0_i32_1 = arith.constant 0 : i32
    return %c0_i32, %c0_i32_0 : i32, i32
  }
  func.func @transform_12(%arg0: i32) -> (i32, i32) {
    %c0_i32 = arith.constant 0 : i32
    %c0_i32_0 = arith.constant 0 : i32
    %c0_i32_1 = arith.constant 0 : i32
    return %c0_i32, %c0_i32_0 : i32, i32
  }
  func.func @transform_13(%arg0: i32) -> (i32, i32) {
    %c0_i32 = arith.constant 0 : i32
    %c0_i32_0 = arith.constant 0 : i32
    %c0_i32_1 = arith.constant 0 : i32
    return %c0_i32, %c0_i32_0 : i32, i32
  }
  func.func @transform_14(%arg0: i32) -> (i32, i32) {
    %c0_i32 = arith.constant 0 : i32
    %c0_i32_0 = arith.constant 0 : i32
    %c0_i32_1 = arith.constant 0 : i32
    return %c0_i32, %c0_i32_0 : i32, i32
  }
  func.func @transform_15(%arg0: i32) -> (i32, i32) {
    %c0_i32 = arith.constant 0 : i32
    %c0_i32_0 = arith.constant 0 : i32
    %c0_i32_1 = arith.constant 0 : i32
    return %c0_i32, %c0_i32_0 : i32, i32
  }
  func.func @transform_16(%arg0: i32) -> (i32, i32) {
    %c0_i32 = arith.constant 0 : i32
    %c0_i32_0 = arith.constant 0 : i32
    %c0_i32_1 = arith.constant 0 : i32
    return %c0_i32, %c0_i32_0 : i32, i32
  }
  func.func @transform_17(%arg0: i32) -> (i32, i32) {
    %c0_i32 = arith.constant 0 : i32
    %c0_i32_0 = arith.constant 0 : i32
    %c0_i32_1 = arith.constant 0 : i32
    return %c0_i32, %c0_i32_0 : i32, i32
  }
  func.func @transform_18(%arg0: i32) -> (i32, i32) {
    %c0_i32 = arith.constant 0 : i32
    %c0_i32_0 = arith.constant 0 : i32
    %c0_i32_1 = arith.constant 0 : i32
    return %c0_i32, %c0_i32_0 : i32, i32
  }
  func.func @transform_19(%arg0: i32) -> (i32, i32) {
    %c0_i32 = arith.constant 0 : i32
    %c0_i32_0 = arith.constant 0 : i32
    %c0_i32_1 = arith.constant 0 : i32
    return %c0_i32, %c0_i32_0 : i32, i32
  }
  func.func @transform_20(%arg0: i32) -> (i32, i32) {
    %c0_i32 = arith.constant 0 : i32
    %c0_i32_0 = arith.constant 0 : i32
    %c0_i32_1 = arith.constant 0 : i32
    return %c0_i32, %c0_i32_0 : i32, i32
  }
  func.func @transform_21(%arg0: i32) -> (i32, i32) {
    %c0_i32 = arith.constant 0 : i32
    %c0_i32_0 = arith.constant 0 : i32
    %c0_i32_1 = arith.constant 0 : i32
    return %c0_i32, %c0_i32_0 : i32, i32
  }
  func.func @transform_22(%arg0: i32) -> (i32, i32) {
    %c0_i32 = arith.constant 0 : i32
    %c0_i32_0 = arith.constant 0 : i32
    %c0_i32_1 = arith.constant 0 : i32
    return %c0_i32, %c0_i32_0 : i32, i32
  }
  func.func @transform_23(%arg0: i32) -> (i32, i32) {
    %c0_i32 = arith.constant 0 : i32
    %c0_i32_0 = arith.constant 0 : i32
    %c0_i32_1 = arith.constant 0 : i32
    return %c0_i32, %c0_i32_0 : i32, i32
  }
  func.func @transform_24(%arg0: i32) -> (i32, i32) {
    %c0_i32 = arith.constant 0 : i32
    %c0_i32_0 = arith.constant 0 : i32
    %c0_i32_1 = arith.constant 0 : i32
    return %c0_i32, %c0_i32_0 : i32, i32
  }
  func.func @transform_25(%arg0: i32) -> (i32, i32) {
    %c0_i32 = arith.constant 0 : i32
    %c0_i32_0 = arith.constant 0 : i32
    %c0_i32_1 = arith.constant 0 : i32
    return %c0_i32, %c0_i32_0 : i32, i32
  }
  func.func @transform_26(%arg0: i32) -> (i32, i32) {
    %c0_i32 = arith.constant 0 : i32
    %c0_i32_0 = arith.constant 0 : i32
    %c0_i32_1 = arith.constant 0 : i32
    return %c0_i32, %c0_i32_0 : i32, i32
  }
  func.func @transform_27(%arg0: i32) -> (i32, i32, i32) {
    %c0_i32 = arith.constant 0 : i32
    %c0_i32_0 = arith.constant 0 : i32
    %c0_i32_1 = arith.constant 0 : i32
    return %arg0, %c0_i32, %c0_i32_0 : i32, i32, i32
  }
}

</mosaic_0001>

<llo_original>
// kernel: unet_forward.1
$region0: #{unet_forward.1}
  #allocation0 [shape = 'u32[]', space=smem, size = 0x4, offset = 0x4, fixed_abs, tag = 'smem constant byte address 0x4 - core index']
  #allocation1 [shape = 'u32[144,128]{1,0:T(1,128)}', space=vmem, size = 0x12000, scoped, tag = 'internal scratch']
  #allocation2 [shape = 'f32[48,512]{1,0:T(8,128)}', space=vmem, size = 0x18000, scoped, tag = 'scratch operand']
  #allocation3 [shape = 'f32[432,256]{1,0:T(8,128)}', space=vmem, size = 0x6c000, scoped, tag = 'scratch operand']
  %s0 = inlined_call_operand.vmem [shape: f32[2,4,256], index: 0, kind: input, shape index: {}]
  %s1 = inlined_call_operand.vmem [shape: f32[8,72], index: 1, kind: input, shape index: {}]
  %s2 = inlined_call_operand.vmem [shape: f32[8,1], index: 2, kind: input, shape index: {}]
  %s3 = inlined_call_operand.hbm [shape: f32[8,72], index: 3, kind: input, shape index: {}]
  %s4 = inlined_call_operand.vmem [shape: f32[8,1], index: 4, kind: input, shape index: {}]
  %s5 = inlined_call_operand.hbm [shape: f32[16,72], index: 5, kind: input, shape index: {}]
  %s6 = inlined_call_operand.vmem [shape: f32[16,1], index: 6, kind: input, shape index: {}]
  %s7 = inlined_call_operand.hbm [shape: f32[16,144], index: 7, kind: input, shape index: {}]
  %s8 = inlined_call_operand.vmem [shape: f32[16,1], index: 8, kind: input, shape index: {}]
  %s9 = inlined_call_operand.hbm [shape: f32[32,144], index: 9, kind: input, shape index: {}]
  %s10 = inlined_call_operand.vmem [shape: f32[32,1], index: 10, kind: input, shape index: {}]
  %s11 = inlined_call_operand.vmem [shape: f32[32,288], index: 11, kind: input, shape index: {}]
  %s12 = inlined_call_operand.vmem [shape: f32[32,1], index: 12, kind: input, shape index: {}]
  %s13 = inlined_call_operand.hbm [shape: f32[16,432], index: 13, kind: input, shape index: {}]
  %s14 = inlined_call_operand.vmem [shape: f32[16,1], index: 14, kind: input, shape index: {}]
  %s15 = inlined_call_operand.hbm [shape: f32[16,144], index: 15, kind: input, shape index: {}]
  %s16 = inlined_call_operand.vmem [shape: f32[16,1], index: 16, kind: input, shape index: {}]
  %s17 = inlined_call_operand.hbm [shape: f32[8,216], index: 17, kind: input, shape index: {}]
  %s18 = inlined_call_operand.vmem [shape: f32[8,1], index: 18, kind: input, shape index: {}]
  %s19 = inlined_call_operand.hbm [shape: f32[8,72], index: 19, kind: input, shape index: {}]
  %s20 = inlined_call_operand.vmem [shape: f32[8,1], index: 20, kind: input, shape index: {}]
  %s21 = inlined_call_operand.hbm [shape: f32[3,72], index: 21, kind: input, shape index: {}]
  %s22 = inlined_call_operand.vmem [shape: f32[3,1], index: 22, kind: input, shape index: {}]
  %s23 = inlined_call_operand.vmem [shape: f32[256,64], index: 23, kind: input, shape index: {}]
  %s24 = inlined_call_operand.vmem [shape: f32[64,16], index: 24, kind: input, shape index: {}]
  %s25 = inlined_call_operand.hbm [shape: f32[16,64], index: 25, kind: input, shape index: {}]
  %s26 = inlined_call_operand.vmem [shape: f32[64,256], index: 26, kind: input, shape index: {}]
  %s27 = inlined_call_operand.vmem [shape: f32[2,3,256], index: 27, kind: output, shape index: {}]
  %s28 = sld [smem:[#allocation0]]
  $region181: #{unet_forward.1} parent=0
    _
  %s30 = ssub.s32 1, %s28
  %s31 = scalar_select 0, %s30, %s28
  $region1: #{unet_forward.1} parent=0
    #allocation4 [shape = 'u8[4096]{0}', space=vmem, size = 0x1000, scoped, tag = 'input window, operand 3, single buffered']
    #allocation5 [shape = 's32[2]{0}', space=sflag, size = 0x8, scoped, tag = 'scoped memory for unet_forward.1']
    #allocation6 [shape = 'u8[8192]{0}', space=vmem, size = 0x2000, scoped, tag = 'input window, operand 5, single buffered']
    #allocation7 [shape = 's32[1]{0}', space=sflag, size = 0x4, scoped, tag = 'scoped memory for unet_forward.1']
    #allocation8 [shape = 'u8[16384]{0}', space=vmem, size = 0x4000, scoped, tag = 'input window, operand 7, single buffered']
    #allocation9 [shape = 'u8[32768]{0}', space=vmem, size = 0x8000, scoped, tag = 'input window, operand 9, single buffered']
    #allocation10 [shape = 's32[1]{0}', space=sflag, size = 0x4, scoped, tag = 'scoped memory for unet_forward.1']
    #allocation11 [shape = 'u8[32768]{0}', space=vmem, size = 0x8000, scoped, tag = 'input window, operand 13, single buffered']
    #allocation12 [shape = 'u8[16384]{0}', space=vmem, size = 0x4000, scoped, tag = 'input window, operand 15, single buffered']
    #allocation13 [shape = 's32[1]{0}', space=sflag, size = 0x4, scoped, tag = 'scoped memory for unet_forward.1']
    #allocation14 [shape = 'u8[8192]{0}', space=vmem, size = 0x2000, scoped, tag = 'input window, operand 17, single buffered']
    #allocation15 [shape = 'u8[4096]{0}', space=vmem, size = 0x1000, scoped, tag = 'input window, operand 19, single buffered']
    #allocation16 [shape = 's32[1]{0}', space=sflag, size = 0x4, scoped, tag = 'scoped memory for unet_forward.1']
    #allocation17 [shape = 'u8[2048]{0}', space=vmem, size = 0x800, scoped, tag = 'input window, operand 21, single buffered']
    #allocation18 [shape = 'u8[8192]{0}', space=vmem, size = 0x2000, scoped, tag = 'input window, operand 25, single buffered']
    #allocation19 [shape = 's32[1]{0}', space=sflag, size = 0x4, scoped, tag = 'scoped memory for unet_forward.1']
    %32 = vsyncpa [#allocation5], 0
    %33 = vsyncpa [#allocation7], 0
    %34 = vsyncpa [#allocation10], 0
    %35 = vsyncpa [#allocation13], 0
    %36 = vsyncpa [#allocation16], 0
    %37 = vsyncpa [#allocation19], 0
    loop: start=0, step=1, limit=4
    $region2: #{unet_forward.1} parent=1 // loop_pre_header
      _
    $region3: #{unet_forward.1} parent=1 // loop_header
      %s39 = sphi 0, %s43
      %p40 = scmp.ge.s32.totalorder %s39, 4
      %s49 = sphi 0, %s51
      %s52 = sphi 0, %s49
      %s53 = sphi 0, %s52
      %s69 = sphi 0, %s53
      %s73 = sphi 0, %s73
      %s75 = sphi 0, %s73
      %s76 = sphi 0, %s75
      %s90 = sphi 0, %s76
      %s94 = sphi 0, %s94
      %s96 = sphi 0, %s94
      %s97 = sphi 0, %s96
      %s111 = sphi 0, %s97
      %s115 = sphi 0, %s115
      %s117 = sphi 0, %s115
      %s118 = sphi 0, %s117
      %s132 = sphi 0, %s118
      %s136 = sphi 0, %s136
      %s138 = sphi 0, %s136
      %s139 = sphi 0, %s138
      %s153 = sphi 0, %s139
      %s157 = sphi 0, %s157
      %s159 = sphi 0, %s157
      %s160 = sphi 0, %s159
      %s174 = sphi 0, %s160
      %s178 = sphi 0, %s178
      %s180 = sphi 0, %s178
      %s181 = sphi 0, %s180
      %s195 = sphi 0, %s181
      %s199 = sphi 0, %s199
      %s201 = sphi 0, %s199
      %s202 = sphi 0, %s201
      %s216 = sphi 0, %s202
      %s220 = sphi 0, %s220
      %s222 = sphi 0, %s220
      %s223 = sphi 0, %s222
      %s237 = sphi 0, %s223
      %s241 = sphi 0, %s241
      %s243 = sphi 0, %s241
      %s244 = sphi 0, %s243
      %s258 = sphi 0, %s244
      %s262 = sphi 0, %s262
      %s264 = sphi 0, %s262
      %s265 = sphi 0, %s264
      %s279 = sphi 0, %s265
      %s283 = sphi 0, %s283
      %s285 = sphi 0, %s283
      %s286 = sphi 0, %s285
      %s300 = sphi 0, %s286
      %s304 = sphi 0, %s304
      %s306 = sphi 0, %s304
      %s307 = sphi 0, %s306
      %s321 = sphi 0, %s307
      %s325 = sphi 0, %s325
      %s327 = sphi 0, %s325
      %s328 = sphi 0, %s327
      %s342 = sphi 0, %s328
      %s346 = sphi 0, %s346
      %s348 = sphi 0, %s346
      %s349 = sphi 0, %s348
      %s363 = sphi 0, %s349
      %s367 = sphi 0, %s367
      %s369 = sphi 0, %s367
      %s370 = sphi 0, %s369
      %s384 = sphi 0, %s370
      %s388 = sphi 0, %s388
      %s390 = sphi 0, %s388
      %s391 = sphi 0, %s390
      %s405 = sphi 0, %s391
      %s409 = sphi 0, %s409
      %s411 = sphi 0, %s409
      %s412 = sphi 0, %s411
      %s426 = sphi 0, %s412
      %s430 = sphi 0, %s430
      %s432 = sphi 0, %s430
      %s433 = sphi 0, %s432
      %s447 = sphi 0, %s433
      %s451 = sphi 0, %s451
      %s453 = sphi 0, %s451
      %s454 = sphi 0, %s453
      %s468 = sphi 0, %s454
      %s472 = sphi 0, %s472
      %s474 = sphi 0, %s472
      %s475 = sphi 0, %s474
      %s489 = sphi 0, %s475
      %s493 = sphi 0, %s493
      %s495 = sphi 0, %s493
      %s496 = sphi 0, %s495
      %s510 = sphi 0, %s496
      %s514 = sphi 0, %s514
      %s516 = sphi 0, %s514
      %s517 = sphi 0, %s516
      %s531 = sphi 0, %s517
      %s535 = sphi 0, %s535
      %s537 = sphi 0, %s535
      %s538 = sphi 0, %s537
      %s552 = sphi 0, %s538
      %s556 = sphi 0, %s556
      %s558 = sphi 0, %s556
      %s559 = sphi 0, %s558
      %s573 = sphi 0, %s559
      %s577 = sphi 0, %s577
      %s579 = sphi 0, %s577
      %s580 = sphi 0, %s579
      %s594 = sphi 0, %s580
      %s598 = sphi 0, %s598
      %s600 = sphi 0, %s598
      %s601 = sphi 0, %s600
      %s615 = sphi 0, %s601
      %s621 = sphi 0, %s623
      %s624 = sphi 0, %s621
      %s625 = sphi 0, %s624
      %s641 = sphi 0, %s625
    $region4: #{unet_forward.1} parent=1 // loop_header_branch
      %42 = sbr.rel (%p40) target = $region8
    $region5: #{unet_forward.1} parent=1 // loop_body
      %s44 = ssub.s32 %s39, 1
      %s45 = ssub.s32 %s39, 2
      %s46 = sadd.s32 %s39, 1
      %s47 = ssub.s32 %s39, %s46
      %p48 = scmp.eq.s32.totalorder %s47, 0
      %s50 = sadd.s32 %s49, 1
      %s51 = scalar_select %p48, %s49, %s50
      %p54 = pneg %p48
      %p55 = scmp.eq.s32.totalorder %s39, 1
      %p56 = por %p54, %p55
      %p57 = scmp.ne.s32.totalorder %s49, %s52
      %p58 = scmp.eq.s32.totalorder %s39, 0
      %p59 = por %p57, %p58
      %p60 = scmp.ne.s32.totalorder %s49, %s52
      %p61 = scmp.eq.s32.totalorder %s44, 1
      %p62 = por %p60, %p61
      %p63 = scmp.ne.s32.totalorder %s52, %s53
      %p64 = scmp.eq.s32.totalorder %s44, 0
      %p65 = por %p63, %p64
      %p66 = scmp.ne.s32.totalorder %s52, %s53
      %p67 = scmp.eq.s32.totalorder %s45, 1
      %p68 = por %p66, %p67
      %p70 = scmp.ne.s32.totalorder %s53, %s69
      %p71 = scmp.eq.s32.totalorder %s45, 0
      %p72 = por %p70, %p71
      %s74 = sadd.s32 %s73, 1
      %p77 = scmp.eq.s32.totalorder %s39, 1
      %p78 = scmp.ne.s32.totalorder %s73, %s75
      %p79 = scmp.eq.s32.totalorder %s39, 0
      %p80 = por %p78, %p79
      %p81 = scmp.ne.s32.totalorder %s73, %s75
      %p82 = scmp.eq.s32.totalorder %s44, 1
      %p83 = por %p81, %p82
      %p84 = scmp.ne.s32.totalorder %s75, %s76
      %p85 = scmp.eq.s32.totalorder %s44, 0
      %p86 = por %p84, %p85
      %p87 = scmp.ne.s32.totalorder %s75, %s76
      %p88 = scmp.eq.s32.totalorder %s45, 1
      %p89 = por %p87, %p88
      %p91 = scmp.ne.s32.totalorder %s76, %s90
      %p92 = scmp.eq.s32.totalorder %s45, 0
      %p93 = por %p91, %p92
      %s95 = sadd.s32 %s94, 1
      %p98 = scmp.eq.s32.totalorder %s39, 1
      %p99 = scmp.ne.s32.totalorder %s94, %s96
      %p100 = scmp.eq.s32.totalorder %s39, 0
      %p101 = por %p99, %p100
      %p102 = scmp.ne.s32.totalorder %s94, %s96
      %p103 = scmp.eq.s32.totalorder %s44, 1
      %p104 = por %p102, %p103
      %p105 = scmp.ne.s32.totalorder %s96, %s97
      %p106 = scmp.eq.s32.totalorder %s44, 0
      %p107 = por %p105, %p106
      %p108 = scmp.ne.s32.totalorder %s96, %s97
      %p109 = scmp.eq.s32.totalorder %s45, 1
      %p110 = por %p108, %p109
      %p112 = scmp.ne.s32.totalorder %s97, %s111
      %p113 = scmp.eq.s32.totalorder %s45, 0
      %p114 = por %p112, %p113
      %s116 = sadd.s32 %s115, 1
      %p119 = scmp.eq.s32.totalorder %s39, 1
      %p120 = scmp.ne.s32.totalorder %s115, %s117
      %p121 = scmp.eq.s32.totalorder %s39, 0
      %p122 = por %p120, %p121
      %p123 = scmp.ne.s32.totalorder %s115, %s117
      %p124 = scmp.eq.s32.totalorder %s44, 1
      %p125 = por %p123, %p124
      %p126 = scmp.ne.s32.totalorder %s117, %s118
      %p127 = scmp.eq.s32.totalorder %s44, 0
      %p128 = por %p126, %p127
      %p129 = scmp.ne.s32.totalorder %s117, %s118
      %p130 = scmp.eq.s32.totalorder %s45, 1
      %p131 = por %p129, %p130
      %p133 = scmp.ne.s32.totalorder %s118, %s132
      %p134 = scmp.eq.s32.totalorder %s45, 0
      %p135 = por %p133, %p134
      %s137 = sadd.s32 %s136, 1
      %p140 = scmp.eq.s32.totalorder %s39, 1
      %p141 = scmp.ne.s32.totalorder %s136, %s138
      %p142 = scmp.eq.s32.totalorder %s39, 0
      %p143 = por %p141, %p142
      %p144 = scmp.ne.s32.totalorder %s136, %s138
      %p145 = scmp.eq.s32.totalorder %s44, 1
      %p146 = por %p144, %p145
      %p147 = scmp.ne.s32.totalorder %s138, %s139
      %p148 = scmp.eq.s32.totalorder %s44, 0
      %p149 = por %p147, %p148
      %p150 = scmp.ne.s32.totalorder %s138, %s139
      %p151 = scmp.eq.s32.totalorder %s45, 1
      %p152 = por %p150, %p151
      %p154 = scmp.ne.s32.totalorder %s139, %s153
      %p155 = scmp.eq.s32.totalorder %s45, 0
      %p156 = por %p154, %p155
      %s158 = sadd.s32 %s157, 1
      %p161 = scmp.eq.s32.totalorder %s39, 1
      %p162 = scmp.ne.s32.totalorder %s157, %s159
      %p163 = scmp.eq.s32.totalorder %s39, 0
      %p164 = por %p162, %p163
      %p165 = scmp.ne.s32.totalorder %s157, %s159
      %p166 = scmp.eq.s32.totalorder %s44, 1
      %p167 = por %p165, %p166
      %p168 = scmp.ne.s32.totalorder %s159, %s160
      %p169 = scmp.eq.s32.totalorder %s44, 0
      %p170 = por %p168, %p169
      %p171 = scmp.ne.s32.totalorder %s159, %s160
      %p172 = scmp.eq.s32.totalorder %s45, 1
      %p173 = por %p171, %p172
      %p175 = scmp.ne.s32.totalorder %s160, %s174
      %p176 = scmp.eq.s32.totalorder %s45, 0
      %p177 = por %p175, %p176
      %s179 = sadd.s32 %s178, 1
      %p182 = scmp.eq.s32.totalorder %s39, 1
      %p183 = scmp.ne.s32.totalorder %s178, %s180
      %p184 = scmp.eq.s32.totalorder %s39, 0
      %p185 = por %p183, %p184
      %p186 = scmp.ne.s32.totalorder %s178, %s180
      %p187 = scmp.eq.s32.totalorder %s44, 1
      %p188 = por %p186, %p187
      %p189 = scmp.ne.s32.totalorder %s180, %s181
      %p190 = scmp.eq.s32.totalorder %s44, 0
      %p191 = por %p189, %p190
      %p192 = scmp.ne.s32.totalorder %s180, %s181
      %p193 = scmp.eq.s32.totalorder %s45, 1
      %p194 = por %p192, %p193
      %p196 = scmp.ne.s32.totalorder %s181, %s195
      %p197 = scmp.eq.s32.totalorder %s45, 0
      %p198 = por %p196, %p197
      %s200 = sadd.s32 %s199, 1
      %p203 = scmp.eq.s32.totalorder %s39, 1
      %p204 = scmp.ne.s32.totalorder %s199, %s201
      %p205 = scmp.eq.s32.totalorder %s39, 0
      %p206 = por %p204, %p205
      %p207 = scmp.ne.s32.totalorder %s199, %s201
      %p208 = scmp.eq.s32.totalorder %s44, 1
      %p209 = por %p207, %p208
      %p210 = scmp.ne.s32.totalorder %s201, %s202
      %p211 = scmp.eq.s32.totalorder %s44, 0
      %p212 = por %p210, %p211
      %p213 = scmp.ne.s32.totalorder %s201, %s202
      %p214 = scmp.eq.s32.totalorder %s45, 1
      %p215 = por %p213, %p214
      %p217 = scmp.ne.s32.totalorder %s202, %s216
      %p218 = scmp.eq.s32.totalorder %s45, 0
      %p219 = por %p217, %p218
      %s221 = sadd.s32 %s220, 1
      %p224 = scmp.eq.s32.totalorder %s39, 1
      %p225 = scmp.ne.s32.totalorder %s220, %s222
      %p226 = scmp.eq.s32.totalorder %s39, 0
      %p227 = por %p225, %p226
      %p228 = scmp.ne.s32.totalorder %s220, %s222
      %p229 = scmp.eq.s32.totalorder %s44, 1
      %p230 = por %p228, %p229
      %p231 = scmp.ne.s32.totalorder %s222, %s223
      %p232 = scmp.eq.s32.totalorder %s44, 0
      %p233 = por %p231, %p232
      %p234 = scmp.ne.s32.totalorder %s222, %s223
      %p235 = scmp.eq.s32.totalorder %s45, 1
      %p236 = por %p234, %p235
      %p238 = scmp.ne.s32.totalorder %s223, %s237
      %p239 = scmp.eq.s32.totalorder %s45, 0
      %p240 = por %p238, %p239
      %s242 = sadd.s32 %s241, 1
      %p245 = scmp.eq.s32.totalorder %s39, 1
      %p246 = scmp.ne.s32.totalorder %s241, %s243
      %p247 = scmp.eq.s32.totalorder %s39, 0
      %p248 = por %p246, %p247
      %p249 = scmp.ne.s32.totalorder %s241, %s243
      %p250 = scmp.eq.s32.totalorder %s44, 1
      %p251 = por %p249, %p250
      %p252 = scmp.ne.s32.totalorder %s243, %s244
      %p253 = scmp.eq.s32.totalorder %s44, 0
      %p254 = por %p252, %p253
      %p255 = scmp.ne.s32.totalorder %s243, %s244
      %p256 = scmp.eq.s32.totalorder %s45, 1
      %p257 = por %p255, %p256
      %p259 = scmp.ne.s32.totalorder %s244, %s258
      %p260 = scmp.eq.s32.totalorder %s45, 0
      %p261 = por %p259, %p260
      %s263 = sadd.s32 %s262, 1
      %p266 = scmp.eq.s32.totalorder %s39, 1
      %p267 = scmp.ne.s32.totalorder %s262, %s264
      %p268 = scmp.eq.s32.totalorder %s39, 0
      %p269 = por %p267, %p268
      %p270 = scmp.ne.s32.totalorder %s262, %s264
      %p271 = scmp.eq.s32.totalorder %s44, 1
      %p272 = por %p270, %p271
      %p273 = scmp.ne.s32.totalorder %s264, %s265
      %p274 = scmp.eq.s32.totalorder %s44, 0
      %p275 = por %p273, %p274
      %p276 = scmp.ne.s32.totalorder %s264, %s265
      %p277 = scmp.eq.s32.totalorder %s45, 1
      %p278 = por %p276, %p277
      %p280 = scmp.ne.s32.totalorder %s265, %s279
      %p281 = scmp.eq.s32.totalorder %s45, 0
      %p282 = por %p280, %p281
      %s284 = sadd.s32 %s283, 1
      %p287 = scmp.eq.s32.totalorder %s39, 1
      %p288 = scmp.ne.s32.totalorder %s283, %s285
      %p289 = scmp.eq.s32.totalorder %s39, 0
      %p290 = por %p288, %p289
      %p291 = scmp.ne.s32.totalorder %s283, %s285
      %p292 = scmp.eq.s32.totalorder %s44, 1
      %p293 = por %p291, %p292
      %p294 = scmp.ne.s32.totalorder %s285, %s286
      %p295 = scmp.eq.s32.totalorder %s44, 0
      %p296 = por %p294, %p295
      %p297 = scmp.ne.s32.totalorder %s285, %s286
      %p298 = scmp.eq.s32.totalorder %s45, 1
      %p299 = por %p297, %p298
      %p301 = scmp.ne.s32.totalorder %s286, %s300
      %p302 = scmp.eq.s32.totalorder %s45, 0
      %p303 = por %p301, %p302
      %s305 = sadd.s32 %s304, 1
      %p308 = scmp.eq.s32.totalorder %s39, 1
      %p309 = scmp.ne.s32.totalorder %s304, %s306
      %p310 = scmp.eq.s32.totalorder %s39, 0
      %p311 = por %p309, %p310
      %p312 = scmp.ne.s32.totalorder %s304, %s306
      %p313 = scmp.eq.s32.totalorder %s44, 1
      %p314 = por %p312, %p313
      %p315 = scmp.ne.s32.totalorder %s306, %s307
      %p316 = scmp.eq.s32.totalorder %s44, 0
      %p317 = por %p315, %p316
      %p318 = scmp.ne.s32.totalorder %s306, %s307
      %p319 = scmp.eq.s32.totalorder %s45, 1
      %p320 = por %p318, %p319
      %p322 = scmp.ne.s32.totalorder %s307, %s321
      %p323 = scmp.eq.s32.totalorder %s45, 0
      %p324 = por %p322, %p323
      %s326 = sadd.s32 %s325, 1
      %p329 = scmp.eq.s32.totalorder %s39, 1
      %p330 = scmp.ne.s32.totalorder %s325, %s327
      %p331 = scmp.eq.s32.totalorder %s39, 0
      %p332 = por %p330, %p331
      %p333 = scmp.ne.s32.totalorder %s325, %s327
      %p334 = scmp.eq.s32.totalorder %s44, 1
      %p335 = por %p333, %p334
      %p336 = scmp.ne.s32.totalorder %s327, %s328
      %p337 = scmp.eq.s32.totalorder %s44, 0
      %p338 = por %p336, %p337
      %p339 = scmp.ne.s32.totalorder %s327, %s328
      %p340 = scmp.eq.s32.totalorder %s45, 1
      %p341 = por %p339, %p340
      %p343 = scmp.ne.s32.totalorder %s328, %s342
      %p344 = scmp.eq.s32.totalorder %s45, 0
      %p345 = por %p343, %p344
      %s347 = sadd.s32 %s346, 1
      %p350 = scmp.eq.s32.totalorder %s39, 1
      %p351 = scmp.ne.s32.totalorder %s346, %s348
      %p352 = scmp.eq.s32.totalorder %s39, 0
      %p353 = por %p351, %p352
      %p354 = scmp.ne.s32.totalorder %s346, %s348
      %p355 = scmp.eq.s32.totalorder %s44, 1
      %p356 = por %p354, %p355
      %p357 = scmp.ne.s32.totalorder %s348, %s349
      %p358 = scmp.eq.s32.totalorder %s44, 0
      %p359 = por %p357, %p358
      %p360 = scmp.ne.s32.totalorder %s348, %s349
      %p361 = scmp.eq.s32.totalorder %s45, 1
      %p362 = por %p360, %p361
      %p364 = scmp.ne.s32.totalorder %s349, %s363
      %p365 = scmp.eq.s32.totalorder %s45, 0
      %p366 = por %p364, %p365
      %s368 = sadd.s32 %s367, 1
      %p371 = scmp.eq.s32.totalorder %s39, 1
      %p372 = scmp.ne.s32.totalorder %s367, %s369
      %p373 = scmp.eq.s32.totalorder %s39, 0
      %p374 = por %p372, %p373
      %p375 = scmp.ne.s32.totalorder %s367, %s369
      %p376 = scmp.eq.s32.totalorder %s44, 1
      %p377 = por %p375, %p376
      %p378 = scmp.ne.s32.totalorder %s369, %s370
      %p379 = scmp.eq.s32.totalorder %s44, 0
      %p380 = por %p378, %p379
      %p381 = scmp.ne.s32.totalorder %s369, %s370
      %p382 = scmp.eq.s32.totalorder %s45, 1
      %p383 = por %p381, %p382
      %p385 = scmp.ne.s32.totalorder %s370, %s384
      %p386 = scmp.eq.s32.totalorder %s45, 0
      %p387 = por %p385, %p386
      %s389 = sadd.s32 %s388, 1
      %p392 = scmp.eq.s32.totalorder %s39, 1
      %p393 = scmp.ne.s32.totalorder %s388, %s390
      %p394 = scmp.eq.s32.totalorder %s39, 0
      %p395 = por %p393, %p394
      %p396 = scmp.ne.s32.totalorder %s388, %s390
      %p397 = scmp.eq.s32.totalorder %s44, 1
      %p398 = por %p396, %p397
      %p399 = scmp.ne.s32.totalorder %s390, %s391
      %p400 = scmp.eq.s32.totalorder %s44, 0
      %p401 = por %p399, %p400
      %p402 = scmp.ne.s32.totalorder %s390, %s391
      %p403 = scmp.eq.s32.totalorder %s45, 1
      %p404 = por %p402, %p403
      %p406 = scmp.ne.s32.totalorder %s391, %s405
      %p407 = scmp.eq.s32.totalorder %s45, 0
      %p408 = por %p406, %p407
      %s410 = sadd.s32 %s409, 1
      %p413 = scmp.eq.s32.totalorder %s39, 1
      %p414 = scmp.ne.s32.totalorder %s409, %s411
      %p415 = scmp.eq.s32.totalorder %s39, 0
      %p416 = por %p414, %p415
      %p417 = scmp.ne.s32.totalorder %s409, %s411
      %p418 = scmp.eq.s32.totalorder %s44, 1
      %p419 = por %p417, %p418
      %p420 = scmp.ne.s32.totalorder %s411, %s412
      %p421 = scmp.eq.s32.totalorder %s44, 0
      %p422 = por %p420, %p421
      %p423 = scmp.ne.s32.totalorder %s411, %s412
      %p424 = scmp.eq.s32.totalorder %s45, 1
      %p425 = por %p423, %p424
      %p427 = scmp.ne.s32.totalorder %s412, %s426
      %p428 = scmp.eq.s32.totalorder %s45, 0
      %p429 = por %p427, %p428
      %s431 = sadd.s32 %s430, 1
      %p434 = scmp.eq.s32.totalorder %s39, 1
      %p435 = scmp.ne.s32.totalorder %s430, %s432
      %p436 = scmp.eq.s32.totalorder %s39, 0
      %p437 = por %p435, %p436
      %p438 = scmp.ne.s32.totalorder %s430, %s432
      %p439 = scmp.eq.s32.totalorder %s44, 1
      %p440 = por %p438, %p439
      %p441 = scmp.ne.s32.totalorder %s432, %s433
      %p442 = scmp.eq.s32.totalorder %s44, 0
      %p443 = por %p441, %p442
      %p444 = scmp.ne.s32.totalorder %s432, %s433
      %p445 = scmp.eq.s32.totalorder %s45, 1
      %p446 = por %p444, %p445
      %p448 = scmp.ne.s32.totalorder %s433, %s447
      %p449 = scmp.eq.s32.totalorder %s45, 0
      %p450 = por %p448, %p449
      %s452 = sadd.s32 %s451, 1
      %p455 = scmp.eq.s32.totalorder %s39, 1
      %p456 = scmp.ne.s32.totalorder %s451, %s453
      %p457 = scmp.eq.s32.totalorder %s39, 0
      %p458 = por %p456, %p457
      %p459 = scmp.ne.s32.totalorder %s451, %s453
      %p460 = scmp.eq.s32.totalorder %s44, 1
      %p461 = por %p459, %p460
      %p462 = scmp.ne.s32.totalorder %s453, %s454
      %p463 = scmp.eq.s32.totalorder %s44, 0
      %p464 = por %p462, %p463
      %p465 = scmp.ne.s32.totalorder %s453, %s454
      %p466 = scmp.eq.s32.totalorder %s45, 1
      %p467 = por %p465, %p466
      %p469 = scmp.ne.s32.totalorder %s454, %s468
      %p470 = scmp.eq.s32.totalorder %s45, 0
      %p471 = por %p469, %p470
      %s473 = sadd.s32 %s472, 1
      %p476 = scmp.eq.s32.totalorder %s39, 1
      %p477 = scmp.ne.s32.totalorder %s472, %s474
      %p478 = scmp.eq.s32.totalorder %s39, 0
      %p479 = por %p477, %p478
      %p480 = scmp.ne.s32.totalorder %s472, %s474
      %p481 = scmp.eq.s32.totalorder %s44, 1
      %p482 = por %p480, %p481
      %p483 = scmp.ne.s32.totalorder %s474, %s475
      %p484 = scmp.eq.s32.totalorder %s44, 0
      %p485 = por %p483, %p484
      %p486 = scmp.ne.s32.totalorder %s474, %s475
      %p487 = scmp.eq.s32.totalorder %s45, 1
      %p488 = por %p486, %p487
      %p490 = scmp.ne.s32.totalorder %s475, %s489
      %p491 = scmp.eq.s32.totalorder %s45, 0
      %p492 = por %p490, %p491
      %s494 = sadd.s32 %s493, 1
      %p497 = scmp.eq.s32.totalorder %s39, 1
      %p498 = scmp.ne.s32.totalorder %s493, %s495
      %p499 = scmp.eq.s32.totalorder %s39, 0
      %p500 = por %p498, %p499
      %p501 = scmp.ne.s32.totalorder %s493, %s495
      %p502 = scmp.eq.s32.totalorder %s44, 1
      %p503 = por %p501, %p502
      %p504 = scmp.ne.s32.totalorder %s495, %s496
      %p505 = scmp.eq.s32.totalorder %s44, 0
      %p506 = por %p504, %p505
      %p507 = scmp.ne.s32.totalorder %s495, %s496
      %p508 = scmp.eq.s32.totalorder %s45, 1
      %p509 = por %p507, %p508
      %p511 = scmp.ne.s32.totalorder %s496, %s510
      %p512 = scmp.eq.s32.totalorder %s45, 0
      %p513 = por %p511, %p512
      %s515 = sadd.s32 %s514, 1
      %p518 = scmp.eq.s32.totalorder %s39, 1
      %p519 = scmp.ne.s32.totalorder %s514, %s516
      %p520 = scmp.eq.s32.totalorder %s39, 0
      %p521 = por %p519, %p520
      %p522 = scmp.ne.s32.totalorder %s514, %s516
      %p523 = scmp.eq.s32.totalorder %s44, 1
      %p524 = por %p522, %p523
      %p525 = scmp.ne.s32.totalorder %s516, %s517
      %p526 = scmp.eq.s32.totalorder %s44, 0
      %p527 = por %p525, %p526
      %p528 = scmp.ne.s32.totalorder %s516, %s517
      %p529 = scmp.eq.s32.totalorder %s45, 1
      %p530 = por %p528, %p529
      %p532 = scmp.ne.s32.totalorder %s517, %s531
      %p533 = scmp.eq.s32.totalorder %s45, 0
      %p534 = por %p532, %p533
      %s536 = sadd.s32 %s535, 1
      %p539 = scmp.eq.s32.totalorder %s39, 1
      %p540 = scmp.ne.s32.totalorder %s535, %s537
      %p541 = scmp.eq.s32.totalorder %s39, 0
      %p542 = por %p540, %p541
      %p543 = scmp.ne.s32.totalorder %s535, %s537
      %p544 = scmp.eq.s32.totalorder %s44, 1
      %p545 = por %p543, %p544
      %p546 = scmp.ne.s32.totalorder %s537, %s538
      %p547 = scmp.eq.s32.totalorder %s44, 0
      %p548 = por %p546, %p547
      %p549 = scmp.ne.s32.totalorder %s537, %s538
      %p550 = scmp.eq.s32.totalorder %s45, 1
      %p551 = por %p549, %p550
      %p553 = scmp.ne.s32.totalorder %s538, %s552
      %p554 = scmp.eq.s32.totalorder %s45, 0
      %p555 = por %p553, %p554
      %s557 = sadd.s32 %s556, 1
      %p560 = scmp.eq.s32.totalorder %s39, 1
      %p561 = scmp.ne.s32.totalorder %s556, %s558
      %p562 = scmp.eq.s32.totalorder %s39, 0
      %p563 = por %p561, %p562
      %p564 = scmp.ne.s32.totalorder %s556, %s558
      %p565 = scmp.eq.s32.totalorder %s44, 1
      %p566 = por %p564, %p565
      %p567 = scmp.ne.s32.totalorder %s558, %s559
      %p568 = scmp.eq.s32.totalorder %s44, 0
      %p569 = por %p567, %p568
      %p570 = scmp.ne.s32.totalorder %s558, %s559
      %p571 = scmp.eq.s32.totalorder %s45, 1
      %p572 = por %p570, %p571
      %p574 = scmp.ne.s32.totalorder %s559, %s573
      %p575 = scmp.eq.s32.totalorder %s45, 0
      %p576 = por %p574, %p575
      %s578 = sadd.s32 %s577, 1
      %p581 = scmp.eq.s32.totalorder %s39, 1
      %p582 = scmp.ne.s32.totalorder %s577, %s579
      %p583 = scmp.eq.s32.totalorder %s39, 0
      %p584 = por %p582, %p583
      %p585 = scmp.ne.s32.totalorder %s577, %s579
      %p586 = scmp.eq.s32.totalorder %s44, 1
      %p587 = por %p585, %p586
      %p588 = scmp.ne.s32.totalorder %s579, %s580
      %p589 = scmp.eq.s32.totalorder %s44, 0
      %p590 = por %p588, %p589
      %p591 = scmp.ne.s32.totalorder %s579, %s580
      %p592 = scmp.eq.s32.totalorder %s45, 1
      %p593 = por %p591, %p592
      %p595 = scmp.ne.s32.totalorder %s580, %s594
      %p596 = scmp.eq.s32.totalorder %s45, 0
      %p597 = por %p595, %p596
      %s599 = sadd.s32 %s598, 1
      %p602 = scmp.eq.s32.totalorder %s39, 1
      %p603 = scmp.ne.s32.totalorder %s598, %s600
      %p604 = scmp.eq.s32.totalorder %s39, 0
      %p605 = por %p603, %p604
      %p606 = scmp.ne.s32.totalorder %s598, %s600
      %p607 = scmp.eq.s32.totalorder %s44, 1
      %p608 = por %p606, %p607
      %p609 = scmp.ne.s32.totalorder %s600, %s601
      %p610 = scmp.eq.s32.totalorder %s44, 0
      %p611 = por %p609, %p610
      %p612 = scmp.ne.s32.totalorder %s600, %s601
      %p613 = scmp.eq.s32.totalorder %s45, 1
      %p614 = por %p612, %p613
      %p616 = scmp.ne.s32.totalorder %s601, %s615
      %p617 = scmp.eq.s32.totalorder %s45, 0
      %p618 = por %p616, %p617
      %s619 = ssub.s32 %s39, %s46
      %p620 = scmp.eq.s32.totalorder %s619, 0
      %s622 = sadd.s32 %s621, 1
      %s623 = scalar_select %p620, %s621, %s622
      %p626 = pneg %p620
      %p627 = scmp.eq.s32.totalorder %s39, 1
      %p628 = por %p626, %p627
      %p629 = scmp.ne.s32.totalorder %s621, %s624
      %p630 = scmp.eq.s32.totalorder %s39, 0
      %p631 = por %p629, %p630
      %p632 = scmp.ne.s32.totalorder %s621, %s624
      %p633 = scmp.eq.s32.totalorder %s44, 1
      %p634 = por %p632, %p633
      %p635 = scmp.ne.s32.totalorder %s624, %s625
      %p636 = scmp.eq.s32.totalorder %s44, 0
      %p637 = por %p635, %p636
      %p638 = scmp.ne.s32.totalorder %s624, %s625
      %p639 = scmp.eq.s32.totalorder %s45, 1
      %p640 = por %p638, %p639
      %p642 = scmp.ne.s32.totalorder %s625, %s641
      %p643 = scmp.eq.s32.totalorder %s45, 0
      %p644 = por %p642, %p643
      %p645 = scmp.le.s32.totalorder 1, %s39
      %p646 = scmp.lt.s32.totalorder %s39, 3
      %p647 = pnand %p645, %p646
      %p648 = pneg %p647
      // Predicated region
      $region9: #{unet_forward.1} parent=5 // pred_check
        _
      $region10: #{unet_forward.1} parent=5 // pred_check_branch
        %650 = sbr.rel (%p647) target = $region12
      $region11: #{unet_forward.1} parent=5 // pred_region
        %s651 = ssub.s32 %s39, 1
        // Predicated region
        $region13: #{unet_forward.1} parent=11 // pred_check
          %p652 = pneg %p86
        $region14: #{unet_forward.1} parent=11 // pred_check_branch
          %654 = sbr.rel (%p652) target = $region16
        $region15: #{unet_forward.1} parent=11 // pred_region
          _
        $region16: #{unet_forward.1} parent=11 // pred_fallthru
          _
        // Predicated region
        $region17: #{unet_forward.1} parent=11 // pred_check
          %p655 = pneg %p107
        $region18: #{unet_forward.1} parent=11 // pred_check_branch
          %657 = sbr.rel (%p655) target = $region20
        $region19: #{unet_forward.1} parent=11 // pred_region
          _
        $region20: #{unet_forward.1} parent=11 // pred_fallthru
          _
        // Predicated region
        $region21: #{unet_forward.1} parent=11 // pred_check
          %p658 = pneg %p128
        $region22: #{unet_forward.1} parent=11 // pred_check_branch
          %660 = sbr.rel (%p658) target = $region24
        $region23: #{unet_forward.1} parent=11 // pred_region
          %s662 = ssub.s32 128, 128
          %663 = vsyncadd [#allocation5], %s662
          %s665 = sshll.u32 [#allocation4], 4
          %s666 = int_to_ptr.vmem [resolvable:$true] %s665
          %668 = dma.hbm_to_vmem [thread:$0]  %s3, 128, %s666, [#allocation5]
        $region24: #{unet_forward.1} parent=11 // pred_fallthru
          _
        // Predicated region
        $region25: #{unet_forward.1} parent=11 // pred_check
          %p669 = pneg %p149
        $region26: #{unet_forward.1} parent=11 // pred_check_branch
          %671 = sbr.rel (%p669) target = $region28
        $region27: #{unet_forward.1} parent=11 // pred_region
          _
        $region28: #{unet_forward.1} parent=11 // pred_fallthru
          _
        // Predicated region
        $region29: #{unet_forward.1} parent=11 // pred_check
          %p672 = pneg %p170
        $region30: #{unet_forward.1} parent=11 // pred_check_branch
          %674 = sbr.rel (%p672) target = $region32
        $region31: #{unet_forward.1} parent=11 // pred_region
          %s676 = ssub.s32 256, 256
          %677 = vsyncadd [#allocation7], %s676
          %s678 = sshll.u32 [#allocation6], 4
          %s679 = int_to_ptr.vmem [resolvable:$true] %s678
          %684 = dma.hbm_to_vmem [thread:$0]  %s5, 256, %s679, [#allocation7], 128, 128, 8
        $region32: #{unet_forward.1} parent=11 // pred_fallthru
          _
        // Predicated region
        $region33: #{unet_forward.1} parent=11 // pred_check
          %p685 = pneg %p191
        $region34: #{unet_forward.1} parent=11 // pred_check_branch
          %687 = sbr.rel (%p685) target = $region36
        $region35: #{unet_forward.1} parent=11 // pred_region
          _
        $region36: #{unet_forward.1} parent=11 // pred_fallthru
          _
        // Predicated region
        $region37: #{unet_forward.1} parent=11 // pred_check
          %p688 = pneg %p212
        $region38: #{unet_forward.1} parent=11 // pred_check_branch
          %690 = sbr.rel (%p688) target = $region40
        $region39: #{unet_forward.1} parent=11 // pred_region
          %s692 = ssub.s32 512, 512
          %693 = vsyncadd [#allocation7], %s692
          %s694 = sshll.u32 [#allocation8], 4
          %s695 = int_to_ptr.vmem [resolvable:$true] %s694
          %700 = dma.hbm_to_vmem [thread:$0]  %s7, 512, %s695, [#allocation7], 256, 256, 16
        $region40: #{unet_forward.1} parent=11 // pred_fallthru
          _
        // Predicated region
        $region41: #{unet_forward.1} parent=11 // pred_check
          %p701 = pneg %p233
        $region42: #{unet_forward.1} parent=11 // pred_check_branch
          %703 = sbr.rel (%p701) target = $region44
        $region43: #{unet_forward.1} parent=11 // pred_region
          _
        $region44: #{unet_forward.1} parent=11 // pred_fallthru
          _
        // Predicated region
        $region45: #{unet_forward.1} parent=11 // pred_check
          %p704 = pneg %p254
        $region46: #{unet_forward.1} parent=11 // pred_check_branch
          %706 = sbr.rel (%p704) target = $region48
        $region47: #{unet_forward.1} parent=11 // pred_region
          %s708 = ssub.s32 1024, 1024
          %709 = vsyncadd [#allocation10], %s708
          %s710 = sshll.u32 [#allocation9], 4
          %s711 = int_to_ptr.vmem [resolvable:$true] %s710
          %716 = dma.hbm_to_vmem [thread:$0]  %s9, 1024, %s711, [#allocation10], 256, 256, 16
        $region48: #{unet_forward.1} parent=11 // pred_fallthru
          _
        // Predicated region
        $region49: #{unet_forward.1} parent=11 // pred_check
          %p717 = pneg %p275
        $region50: #{unet_forward.1} parent=11 // pred_check_branch
          %719 = sbr.rel (%p717) target = $region52
        $region51: #{unet_forward.1} parent=11 // pred_region
          _
        $region52: #{unet_forward.1} parent=11 // pred_fallthru
          _
        // Predicated region
        $region53: #{unet_forward.1} parent=11 // pred_check
          %p720 = pneg %p296
        $region54: #{unet_forward.1} parent=11 // pred_check_branch
          %722 = sbr.rel (%p720) target = $region56
        $region55: #{unet_forward.1} parent=11 // pred_region
          _
        $region56: #{unet_forward.1} parent=11 // pred_fallthru
          _
        // Predicated region
        $region57: #{unet_forward.1} parent=11 // pred_check
          %p723 = pneg %p317
        $region58: #{unet_forward.1} parent=11 // pred_check_branch
          %725 = sbr.rel (%p723) target = $region60
        $region59: #{unet_forward.1} parent=11 // pred_region
          _
        $region60: #{unet_forward.1} parent=11 // pred_fallthru
          _
        // Predicated region
        $region61: #{unet_forward.1} parent=11 // pred_check
          %p726 = pneg %p338
        $region62: #{unet_forward.1} parent=11 // pred_check_branch
          %728 = sbr.rel (%p726) target = $region64
        $region63: #{unet_forward.1} parent=11 // pred_region
          %s730 = ssub.s32 1024, 1024
          %731 = vsyncadd [#allocation10], %s730
          %s732 = sshll.u32 [#allocation11], 4
          %s733 = int_to_ptr.vmem [resolvable:$true] %s732
          %738 = dma.hbm_to_vmem [thread:$0]  %s13, 1024, %s733, [#allocation10], 512, 512, 32
        $region64: #{unet_forward.1} parent=11 // pred_fallthru
          _
        // Predicated region
        $region65: #{unet_forward.1} parent=11 // pred_check
          %p739 = pneg %p359
        $region66: #{unet_forward.1} parent=11 // pred_check_branch
          %741 = sbr.rel (%p739) target = $region68
        $region67: #{unet_forward.1} parent=11 // pred_region
          _
        $region68: #{unet_forward.1} parent=11 // pred_fallthru
          _
        // Predicated region
        $region69: #{unet_forward.1} parent=11 // pred_check
          %p742 = pneg %p380
        $region70: #{unet_forward.1} parent=11 // pred_check_branch
          %744 = sbr.rel (%p742) target = $region72
        $region71: #{unet_forward.1} parent=11 // pred_region
          %s746 = ssub.s32 512, 512
          %747 = vsyncadd [#allocation13], %s746
          %s748 = sshll.u32 [#allocation12], 4
          %s749 = int_to_ptr.vmem [resolvable:$true] %s748
          %754 = dma.hbm_to_vmem [thread:$0]  %s15, 512, %s749, [#allocation13], 256, 256, 16
        $region72: #{unet_forward.1} parent=11 // pred_fallthru
          _
        // Predicated region
        $region73: #{unet_forward.1} parent=11 // pred_check
          %p755 = pneg %p401
        $region74: #{unet_forward.1} parent=11 // pred_check_branch
          %757 = sbr.rel (%p755) target = $region76
        $region75: #{unet_forward.1} parent=11 // pred_region
          _
        $region76: #{unet_forward.1} parent=11 // pred_fallthru
          _
        // Predicated region
        $region77: #{unet_forward.1} parent=11 // pred_check
          %p758 = pneg %p422
        $region78: #{unet_forward.1} parent=11 // pred_check_branch
          %760 = sbr.rel (%p758) target = $region80
        $region79: #{unet_forward.1} parent=11 // pred_region
          %s762 = ssub.s32 256, 256
          %763 = vsyncadd [#allocation13], %s762
          %s765 = sshll.u32 [#allocation14], 4
          %s766 = int_to_ptr.vmem [resolvable:$true] %s765
          %768 = dma.hbm_to_vmem [thread:$0]  %s17, 256, %s766, [#allocation13]
        $region80: #{unet_forward.1} parent=11 // pred_fallthru
          _
        // Predicated region
        $region81: #{unet_forward.1} parent=11 // pred_check
          %p769 = pneg %p443
        $region82: #{unet_forward.1} parent=11 // pred_check_branch
          %771 = sbr.rel (%p769) target = $region84
        $region83: #{unet_forward.1} parent=11 // pred_region
          _
        $region84: #{unet_forward.1} parent=11 // pred_fallthru
          _
        // Predicated region
        $region85: #{unet_forward.1} parent=11 // pred_check
          %p772 = pneg %p464
        $region86: #{unet_forward.1} parent=11 // pred_check_branch
          %774 = sbr.rel (%p772) target = $region88
        $region87: #{unet_forward.1} parent=11 // pred_region
          %s776 = ssub.s32 128, 128
          %777 = vsyncadd [#allocation16], %s776
          %s779 = sshll.u32 [#allocation15], 4
          %s780 = int_to_ptr.vmem [resolvable:$true] %s779
          %782 = dma.hbm_to_vmem [thread:$0]  %s19, 128, %s780, [#allocation16]
        $region88: #{unet_forward.1} parent=11 // pred_fallthru
          _
        // Predicated region
        $region89: #{unet_forward.1} parent=11 // pred_check
          %p783 = pneg %p485
        $region90: #{unet_forward.1} parent=11 // pred_check_branch
          %785 = sbr.rel (%p783) target = $region92
        $region91: #{unet_forward.1} parent=11 // pred_region
          _
        $region92: #{unet_forward.1} parent=11 // pred_fallthru
          _
        // Predicated region
        $region93: #{unet_forward.1} parent=11 // pred_check
          %p786 = pneg %p506
        $region94: #{unet_forward.1} parent=11 // pred_check_branch
          %788 = sbr.rel (%p786) target = $region96
        $region95: #{unet_forward.1} parent=11 // pred_region
          %s790 = ssub.s32 64, 64
          %791 = vsyncadd [#allocation16], %s790
          %s793 = sshll.u32 [#allocation17], 4
          %s794 = int_to_ptr.vmem [resolvable:$true] %s793
          %796 = dma.hbm_to_vmem [thread:$0]  %s21, 64, %s794, [#allocation16]
        $region96: #{unet_forward.1} parent=11 // pred_fallthru
          _
        // Predicated region
        $region97: #{unet_forward.1} parent=11 // pred_check
          %p797 = pneg %p527
        $region98: #{unet_forward.1} parent=11 // pred_check_branch
          %799 = sbr.rel (%p797) target = $region100
        $region99: #{unet_forward.1} parent=11 // pred_region
          _
        $region100: #{unet_forward.1} parent=11 // pred_fallthru
          _
        // Predicated region
        $region101: #{unet_forward.1} parent=11 // pred_check
          %p800 = pneg %p548
        $region102: #{unet_forward.1} parent=11 // pred_check_branch
          %802 = sbr.rel (%p800) target = $region104
        $region103: #{unet_forward.1} parent=11 // pred_region
          _
        $region104: #{unet_forward.1} parent=11 // pred_fallthru
          _
        // Predicated region
        $region105: #{unet_forward.1} parent=11 // pred_check
          %p803 = pneg %p569
        $region106: #{unet_forward.1} parent=11 // pred_check_branch
          %805 = sbr.rel (%p803) target = $region108
        $region107: #{unet_forward.1} parent=11 // pred_region
          _
        $region108: #{unet_forward.1} parent=11 // pred_fallthru
          _
        // Predicated region
        $region109: #{unet_forward.1} parent=11 // pred_check
          %p806 = pneg %p590
        $region110: #{unet_forward.1} parent=11 // pred_check_branch
          %808 = sbr.rel (%p806) target = $region112
        $region111: #{unet_forward.1} parent=11 // pred_region
          %s810 = ssub.s32 256, 256
          %811 = vsyncadd [#allocation19], %s810
          %s812 = sshll.u32 [#allocation18], 4
          %s813 = int_to_ptr.vmem [resolvable:$true] %s812
          %818 = dma.hbm_to_vmem [thread:$0]  %s25, 256, %s813, [#allocation19], 128, 128, 8
        $region112: #{unet_forward.1} parent=11 // pred_fallthru
          _
        // Predicated region
        $region113: #{unet_forward.1} parent=11 // pred_check
          %p819 = pneg %p611
        $region114: #{unet_forward.1} parent=11 // pred_check_branch
          %821 = sbr.rel (%p819) target = $region116
        $region115: #{unet_forward.1} parent=11 // pred_region
          _
        $region116: #{unet_forward.1} parent=11 // pred_fallthru
          _
      $region12: #{unet_forward.1} parent=5 // pred_fallthru
        _
      %p822 = scmp.lt.s32.totalorder %s39, 2
      // Predicated region
      $region117: #{unet_forward.1} parent=5 // pred_check
        %p823 = pneg %p822
      $region118: #{unet_forward.1} parent=5 // pred_check_branch
        %825 = sbr.rel (%p823) target = $region120
      $region119: #{unet_forward.1} parent=5 // pred_region
        // Predicated region
        $region121: #{unet_forward.1} parent=119 // pred_check
          %p826 = pneg %p59
        $region122: #{unet_forward.1} parent=119 // pred_check_branch
          %828 = sbr.rel (%p826) target = $region124
        $region123: #{unet_forward.1} parent=119 // pred_region
          %p829 = scmp.lt.s32.totalorder %s39, 1
          %s830 = scalar_select %p829, %s39, 1
          %s831 = smul.addr %s830, 2
          %s832 = smul.addr %s831, 4
          %s833 = scalar_lea.vmem %s0, %s832
        $region124: #{unet_forward.1} parent=119 // pred_fallthru
          _
      $region120: #{unet_forward.1} parent=5 // pred_fallthru
        _
      %p834 = scmp.le.s32.totalorder 1, %s39
      %p835 = scmp.lt.s32.totalorder %s39, 3
      %p836 = pnand %p834, %p835
      %p837 = pneg %p836
      // Predicated region
      $region125: #{unet_forward.1} parent=5 // pred_check
        _
      $region126: #{unet_forward.1} parent=5 // pred_check_branch
        %839 = sbr.rel (%p836) target = $region128
      $region127: #{unet_forward.1} parent=5 // pred_region
        %s840 = ssub.s32 %s39, 1
        // Predicated region
        $region129: #{unet_forward.1} parent=127 // pred_check
          %p841 = pneg %p128
        $region130: #{unet_forward.1} parent=127 // pred_check_branch
          %843 = sbr.rel (%p841) target = $region132
        $region131: #{unet_forward.1} parent=127 // pred_region
          %844 = dma.done [#allocation5], 128
        $region132: #{unet_forward.1} parent=127 // pred_fallthru
          _
        // Predicated region
        $region133: #{unet_forward.1} parent=127 // pred_check
          %p845 = pneg %p170
        $region134: #{unet_forward.1} parent=127 // pred_check_branch
          %847 = sbr.rel (%p845) target = $region136
        $region135: #{unet_forward.1} parent=127 // pred_region
          %848 = dma.done [#allocation7], 256
        $region136: #{unet_forward.1} parent=127 // pred_fallthru
          _
        // Predicated region
        $region137: #{unet_forward.1} parent=127 // pred_check
          %p849 = pneg %p212
        $region138: #{unet_forward.1} parent=127 // pred_check_branch
          %851 = sbr.rel (%p849) target = $region140
        $region139: #{unet_forward.1} parent=127 // pred_region
          %852 = dma.done [#allocation7], 512
        $region140: #{unet_forward.1} parent=127 // pred_fallthru
          _
        // Predicated region
        $region141: #{unet_forward.1} parent=127 // pred_check
          %p853 = pneg %p254
        $region142: #{unet_forward.1} parent=127 // pred_check_branch
          %855 = sbr.rel (%p853) target = $region144
        $region143: #{unet_forward.1} parent=127 // pred_region
          %856 = dma.done [#allocation10], 1024
        $region144: #{unet_forward.1} parent=127 // pred_fallthru
          _
        // Predicated region
        $region145: #{unet_forward.1} parent=127 // pred_check
          %p857 = pneg %p338
        $region146: #{unet_forward.1} parent=127 // pred_check_branch
          %859 = sbr.rel (%p857) target = $region148
        $region147: #{unet_forward.1} parent=127 // pred_region
          %860 = dma.done [#allocation10], 1024
        $region148: #{unet_forward.1} parent=127 // pred_fallthru
          _
        // Predicated region
        $region149: #{unet_forward.1} parent=127 // pred_check
          %p861 = pneg %p380
        $region150: #{unet_forward.1} parent=127 // pred_check_branch
          %863 = sbr.rel (%p861) target = $region152
        $region151: #{unet_forward.1} parent=127 // pred_region
          %864 = dma.done [#allocation13], 512
        $region152: #{unet_forward.1} parent=127 // pred_fallthru
          _
        // Predicated region
        $region153: #{unet_forward.1} parent=127 // pred_check
          %p865 = pneg %p422
        $region154: #{unet_forward.1} parent=127 // pred_check_branch
          %867 = sbr.rel (%p865) target = $region156
        $region155: #{unet_forward.1} parent=127 // pred_region
          %868 = dma.done [#allocation13], 256
        $region156: #{unet_forward.1} parent=127 // pred_fallthru
          _
        // Predicated region
        $region157: #{unet_forward.1} parent=127 // pred_check
          %p869 = pneg %p464
        $region158: #{unet_forward.1} parent=127 // pred_check_branch
          %871 = sbr.rel (%p869) target = $region160
        $region159: #{unet_forward.1} parent=127 // pred_region
          %872 = dma.done [#allocation16], 128
        $region160: #{unet_forward.1} parent=127 // pred_fallthru
          _
        // Predicated region
        $region161: #{unet_forward.1} parent=127 // pred_check
          %p873 = pneg %p506
        $region162: #{unet_forward.1} parent=127 // pred_check_branch
          %875 = sbr.rel (%p873) target = $region164
        $region163: #{unet_forward.1} parent=127 // pred_region
          %876 = dma.done [#allocation16], 64
        $region164: #{unet_forward.1} parent=127 // pred_fallthru
          _
        // Predicated region
        $region165: #{unet_forward.1} parent=127 // pred_check
          %p877 = pneg %p590
        $region166: #{unet_forward.1} parent=127 // pred_check_branch
          %879 = sbr.rel (%p877) target = $region168
        $region167: #{unet_forward.1} parent=127 // pred_region
          %880 = dma.done [#allocation19], 256
        $region168: #{unet_forward.1} parent=127 // pred_fallthru
          _
        %p881 = scmp.lt.s32.totalorder %s44, 1
        %s882 = scalar_select %p881, %s44, 1
        %s883 = smul.addr %s882, 2
        %s884 = smul.addr %s883, 4
        %s885 = scalar_lea.vmem %s0, %s884
        %p886 = pneg %p65
        %p887 = pneg %p62
        %p888 = pneg %p86
        %p889 = pneg %p83
        %p890 = pneg %p107
        %p891 = pneg %p104
        %p892 = pneg %p128
        %p893 = pneg %p125
        %p894 = pneg %p149
        %p895 = pneg %p146
        %p896 = pneg %p170
        %p897 = pneg %p167
        %p898 = pneg %p191
        %p899 = pneg %p188
        %p900 = pneg %p212
        %p901 = pneg %p209
        %p902 = pneg %p233
        %p903 = pneg %p230
        %p904 = pneg %p254
        %p905 = pneg %p251
        %p906 = pneg %p275
        %p907 = pneg %p272
        %p908 = pneg %p296
        %p909 = pneg %p293
        %p910 = pneg %p317
        %p911 = pneg %p314
        %p912 = pneg %p338
        %p913 = pneg %p335
        %p914 = pneg %p359
        %p915 = pneg %p356
        %p916 = pneg %p380
        %p917 = pneg %p377
        %p918 = pneg %p401
        %p919 = pneg %p398
        %p920 = pneg %p422
        %p921 = pneg %p419
        %p922 = pneg %p443
        %p923 = pneg %p440
        %p924 = pneg %p464
        %p925 = pneg %p461
        %p926 = pneg %p485
        %p927 = pneg %p482
        %p928 = pneg %p506
        %p929 = pneg %p503
        %p930 = pneg %p527
        %p931 = pneg %p524
        %p932 = pneg %p548
        %p933 = pneg %p545
        %p934 = pneg %p569
        %p935 = pneg %p566
        %p936 = pneg %p590
        %p937 = pneg %p587
        %p938 = pneg %p611
        %p939 = pneg %p608
        %p940 = pneg %p637
        %p941 = pneg %p634
        %p942 = scmp.lt.s32.totalorder %s44, 1
        %s943 = scalar_select %p942, %s44, 1
        %s944 = smul.addr %s943, 2
        %s945 = smul.addr %s944, 4
        %s946 = scalar_lea.vmem %s27, %s945
        %p947 = scmp.lt.s32.totalorder %s44, 1
        %s948 = scalar_select %p947, %s44, 1
        %s949 = smul.addr %s948, 2
        %s950 = smul.addr %s949, 4
        %s951 = scalar_lea.vmem %s0, %s950
        %p952 = scmp.lt.s32.totalorder %s44, 1
        %s953 = scalar_select %p952, %s44, 1
        %s954 = smul.addr %s953, 2
        %s955 = smul.addr %s954, 4
        %s956 = scalar_lea.vmem %s27, %s955
        %957 = vst [vmem:[#allocation3] sm:$0xff] 0.0
        %958 = vst [vmem:[#allocation3 + $0x8] sm:$0xff] 0.0
        %959 = vst [vmem:[#allocation3 + $0x10] sm:$0xff] 0.0
        %960 = vst [vmem:[#allocation3 + $0x18] sm:$0xff] 0.0
        %961 = vst [vmem:[#allocation3 + $0x20] sm:$0xff] 0.0
        %962 = vst [vmem:[#allocation3 + $0x28] sm:$0xff] 0.0
        %963 = vst [vmem:[#allocation3 + $0x30] sm:$0xff] 0.0
        %964 = vst [vmem:[#allocation3 + $0x38] sm:$0xff] 0.0
        %965 = vst [vmem:[#allocation3 + $0x40] sm:$0xff] 0.0
        %966 = vst [vmem:[#allocation3 + $0x48] sm:$0xff] 0.0
        %967 = vst [vmem:[#allocation3 + $0x50] sm:$0xff] 0.0
        %968 = vst [vmem:[#allocation3 + $0x58] sm:$0xff] 0.0
        %969 = vst [vmem:[#allocation3 + $0x60] sm:$0xff] 0.0
        %970 = vst [vmem:[#allocation3 + $0x68] sm:$0xff] 0.0
        %971 = vst [vmem:[#allocation3 + $0x70] sm:$0xff] 0.0
        %972 = vst [vmem:[#allocation3 + $0x78] sm:$0xff] 0.0
        %973 = vst [vmem:[#allocation3 + $0x80] sm:$0xff] 0.0
        %974 = vst [vmem:[#allocation3 + $0x88] sm:$0xff] 0.0
        %975 = vst [vmem:[#allocation3 + $0x90] sm:$0xff] 0.0
        %976 = vst [vmem:[#allocation3 + $0x98] sm:$0xff] 0.0
        %977 = vst [vmem:[#allocation3 + $0xa0] sm:$0xff] 0.0
        %978 = vst [vmem:[#allocation3 + $0xa8] sm:$0xff] 0.0
        %979 = vst [vmem:[#allocation3 + $0xb0] sm:$0xff] 0.0
        %980 = vst [vmem:[#allocation3 + $0xb8] sm:$0xff] 0.0
        %981 = vst [vmem:[#allocation3 + $0xc0] sm:$0xff] 0.0
        %982 = vst [vmem:[#allocation3 + $0xc8] sm:$0xff] 0.0
        %983 = vst [vmem:[#allocation3 + $0xd0] sm:$0xff] 0.0
        %984 = vst [vmem:[#allocation3 + $0xd8] sm:$0xff] 0.0
        %985 = vst [vmem:[#allocation3 + $0xe0] sm:$0xff] 0.0
        %986 = vst [vmem:[#allocation3 + $0xe8] sm:$0xff] 0.0
        %987 = vst [vmem:[#allocation3 + $0xf0] sm:$0xff] 0.0
        %988 = vst [vmem:[#allocation3 + $0xf8] sm:$0xff] 0.0
        %989 = vst [vmem:[#allocation3 + $0x100] sm:$0xff] 0.0
        %990 = vst [vmem:[#allocation3 + $0x108] sm:$0xff] 0.0
        %991 = vst [vmem:[#allocation3 + $0x110] sm:$0xff] 0.0
        %992 = vst [vmem:[#allocation3 + $0x118] sm:$0xff] 0.0
        %993 = vst [vmem:[#allocation3 + $0x120] sm:$0xff] 0.0
        %994 = vst [vmem:[#allocation3 + $0x128] sm:$0xff] 0.0
        %995 = vst [vmem:[#allocation3 + $0x130] sm:$0xff] 0.0
        %996 = vst [vmem:[#allocation3 + $0x138] sm:$0xff] 0.0
        %997 = vst [vmem:[#allocation3 + $0x140] sm:$0xff] 0.0
        %998 = vst [vmem:[#allocation3 + $0x148] sm:$0xff] 0.0
        %999 = vst [vmem:[#allocation3 + $0x150] sm:$0xff] 0.0
        %1000 = vst [vmem:[#allocation3 + $0x158] sm:$0xff] 0.0
        %1001 = vst [vmem:[#allocation3 + $0x160] sm:$0xff] 0.0
        %1002 = vst [vmem:[#allocation3 + $0x168] sm:$0xff] 0.0
        %1003 = vst [vmem:[#allocation3 + $0x170] sm:$0xff] 0.0
        %1004 = vst [vmem:[#allocation3 + $0x178] sm:$0xff] 0.0
        %1005 = vst [vmem:[#allocation3 + $0x180] sm:$0xff] 0.0
        %1006 = vst [vmem:[#allocation3 + $0x188] sm:$0xff] 0.0
        %1007 = vst [vmem:[#allocation3 + $0x190] sm:$0xff] 0.0
        %1008 = vst [vmem:[#allocation3 + $0x198] sm:$0xff] 0.0
        %1009 = vst [vmem:[#allocation3 + $0x1a0] sm:$0xff] 0.0
        %1010 = vst [vmem:[#allocation3 + $0x1a8] sm:$0xff] 0.0
        %1011 = vst [vmem:[#allocation3 + $0x1b0] sm:$0xff] 0.0
        %1012 = vst [vmem:[#allocation3 + $0x1b8] sm:$0xff] 0.0
        %1013 = vst [vmem:[#allocation3 + $0x1c0] sm:$0xff] 0.0
        %1014 = vst [vmem:[#allocation3 + $0x1c8] sm:$0xff] 0.0
        %1015 = vst [vmem:[#allocation3 + $0x1d0] sm:$0xff] 0.0
        %1016 = vst [vmem:[#allocation3 + $0x1d8] sm:$0xff] 0.0
        %1017 = vst [vmem:[#allocation3 + $0x1e0] sm:$0xff] 0.0
        %1018 = vst [vmem:[#allocation3 + $0x1e8] sm:$0xff] 0.0
        %1019 = vst [vmem:[#allocation3 + $0x1f0] sm:$0xff] 0.0
        %1020 = vst [vmem:[#allocation3 + $0x1f8] sm:$0xff] 0.0
        %1021 = vst [vmem:[#allocation3 + $0x200] sm:$0xff] 0.0
        %1022 = vst [vmem:[#allocation3 + $0x208] sm:$0xff] 0.0
        %1023 = vst [vmem:[#allocation3 + $0x210] sm:$0xff] 0.0
        %1024 = vst [vmem:[#allocation3 + $0x218] sm:$0xff] 0.0
        %1025 = vst [vmem:[#allocation3 + $0x220] sm:$0xff] 0.0
        %1026 = vst [vmem:[#allocation3 + $0x228] sm:$0xff] 0.0
        %1027 = vst [vmem:[#allocation3 + $0x230] sm:$0xff] 0.0
        %1028 = vst [vmem:[#allocation3 + $0x238] sm:$0xff] 0.0
        %1029 = vst [vmem:[#allocation3 + $0x240] sm:$0xff] 0.0
        %1030 = vst [vmem:[#allocation3 + $0x248] sm:$0xff] 0.0
        %1031 = vst [vmem:[#allocation3 + $0x250] sm:$0xff] 0.0
        %1032 = vst [vmem:[#allocation3 + $0x258] sm:$0xff] 0.0
        %1033 = vst [vmem:[#allocation3 + $0x260] sm:$0xff] 0.0
        %1034 = vst [vmem:[#allocation3 + $0x268] sm:$0xff] 0.0
        %1035 = vst [vmem:[#allocation3 + $0x270] sm:$0xff] 0.0
        %1036 = vst [vmem:[#allocation3 + $0x278] sm:$0xff] 0.0
        %1037 = vst [vmem:[#allocation3 + $0x280] sm:$0xff] 0.0
        %1038 = vst [vmem:[#allocation3 + $0x288] sm:$0xff] 0.0
        %1039 = vst [vmem:[#allocation3 + $0x290] sm:$0xff] 0.0
        %1040 = vst [vmem:[#allocation3 + $0x298] sm:$0xff] 0.0
        %1041 = vst [vmem:[#allocation3 + $0x2a0] sm:$0xff] 0.0
        %1042 = vst [vmem:[#allocation3 + $0x2a8] sm:$0xff] 0.0
        %1043 = vst [vmem:[#allocation3 + $0x2b0] sm:$0xff] 0.0
        %1044 = vst [vmem:[#allocation3 + $0x2b8] sm:$0xff] 0.0
        %1045 = vst [vmem:[#allocation3 + $0x2c0] sm:$0xff] 0.0
        %1046 = vst [vmem:[#allocation3 + $0x2c8] sm:$0xff] 0.0
        %1047 = vst [vmem:[#allocation3 + $0x2d0] sm:$0xff] 0.0
        %1048 = vst [vmem:[#allocation3 + $0x2d8] sm:$0xff] 0.0
        %1049 = vst [vmem:[#allocation3 + $0x2e0] sm:$0xff] 0.0
        %1050 = vst [vmem:[#allocation3 + $0x2e8] sm:$0xff] 0.0
        %1051 = vst [vmem:[#allocation3 + $0x2f0] sm:$0xff] 0.0
        %1052 = vst [vmem:[#allocation3 + $0x2f8] sm:$0xff] 0.0
        %1053 = vst [vmem:[#allocation3 + $0x300] sm:$0xff] 0.0
        %1054 = vst [vmem:[#allocation3 + $0x308] sm:$0xff] 0.0
        %1055 = vst [vmem:[#allocation3 + $0x310] sm:$0xff] 0.0
        %1056 = vst [vmem:[#allocation3 + $0x318] sm:$0xff] 0.0
        %1057 = vst [vmem:[#allocation3 + $0x320] sm:$0xff] 0.0
        %1058 = vst [vmem:[#allocation3 + $0x328] sm:$0xff] 0.0
        %1059 = vst [vmem:[#allocation3 + $0x330] sm:$0xff] 0.0
        %1060 = vst [vmem:[#allocation3 + $0x338] sm:$0xff] 0.0
        %1061 = vst [vmem:[#allocation3 + $0x340] sm:$0xff] 0.0
        %1062 = vst [vmem:[#allocation3 + $0x348] sm:$0xff] 0.0
        %1063 = vst [vmem:[#allocation3 + $0x350] sm:$0xff] 0.0
        %1064 = vst [vmem:[#allocation3 + $0x358] sm:$0xff] 0.0
        %v1065 = vld [vmem:[%s951] sm:$0xff]
        %v1066 = vld [vmem:[%s1] sm:$0xff]
        %v1067 = vld [vmem:[%s2] sm:$0xff]
        %1068 = vst [vmem:[#allocation2] sm:$0xff] 0.0
        %1069 = vst [vmem:[#allocation2 + $0x8] sm:$0xff] 0.0
        %1070 = vst [vmem:[#allocation2 + $0x10] sm:$0xff] 0.0
        %1071 = vst [vmem:[#allocation2 + $0x18] sm:$0xff] 0.0
        %1072 = vst [vmem:[#allocation2 + $0x20] sm:$0xff] 0.0
        %1073 = vst [vmem:[#allocation2 + $0x28] sm:$0xff] 0.0
        %1074 = vst [vmem:[#allocation2 + $0x30] sm:$0xff] 0.0
        %1075 = vst [vmem:[#allocation2 + $0x38] sm:$0xff] 0.0
        %1076 = vst [vmem:[#allocation2 + $0x40] sm:$0xff] 0.0
        %1077 = vst [vmem:[#allocation2 + $0x48] sm:$0xff] 0.0
        %1078 = vst [vmem:[#allocation2 + $0x50] sm:$0xff] 0.0
        %1079 = vst [vmem:[#allocation2 + $0x58] sm:$0xff] 0.0
        %1080 = vst [vmem:[#allocation2 + $0x60] sm:$0xff] 0.0
        %1081 = vst [vmem:[#allocation2 + $0x68] sm:$0xff] 0.0
        %1082 = vst [vmem:[#allocation2 + $0x70] sm:$0xff] 0.0
        %1083 = vst [vmem:[#allocation2 + $0x78] sm:$0xff] 0.0
        %1084 = vst [vmem:[#allocation2 + $0x80] sm:$0xff] 0.0
        %1085 = vst [vmem:[#allocation2 + $0x88] sm:$0xff] 0.0
        %1086 = vst [vmem:[#allocation2 + $0x90] sm:$0xff] 0.0
        %1087 = vst [vmem:[#allocation2 + $0x98] sm:$0xff] 0.0
        %1088 = vst [vmem:[#allocation2 + $0xa0] sm:$0xff] 0.0
        %1089 = vst [vmem:[#allocation2 + $0xa8] sm:$0xff] 0.0
        %1090 = vst [vmem:[#allocation2 + $0xb0] sm:$0xff] 0.0
        %1091 = vst [vmem:[#allocation2 + $0xb8] sm:$0xff] 0.0
        %v1093 = vcombine.high %v1065, %v1065
        %1095 = vst [vmem:[#allocation2 + $0x8] sm:$0xf] %v1065
        %1096 = vst [vmem:[#allocation2 + $0x10] sm:$0xf] %v1093
        %v1097 = vlaneseq
        %v1098 = vand.u32 %v1097, 127
        %v1099 = vadd.s32 %v1098, 128
        %v1100 = vand.u32 %v1098, 15
        %v1101 = vand.u32 %v1099, 15
        %vm1102 = vcmp.ge.s32.totalorder %v1100, 1
        %vm1103 = vcmp.ge.s32.totalorder %v1101, 1
        %v1104 = vsel %vm1102, 1, 0
        %v1105 = vsel %vm1103, 1, 0
        %v1106 = vcvt.s32.f32 %v1104
        %v1107 = vcvt.s32.f32 %v1105
        %vm1108 = vcmp.le.s32.totalorder %v1100, 14
        %vm1109 = vcmp.le.s32.totalorder %v1101, 14
        %v1110 = vsel %vm1108, 1, 0
        %v1111 = vsel %vm1109, 1, 0
        %v1112 = vcvt.s32.f32 %v1110
        %v1113 = vcvt.s32.f32 %v1111
        %v1114 = vld [vmem:[#allocation2] sm:$0xf]
        %v1115 = vld [vmem:[#allocation2 + $0x8] sm:$0xf]
        %v1116 = vld [vmem:[#allocation2 + $0x10] sm:$0xf]
        %1119 = vrot.lane.b32.xlu0 %v1106, 111
        %v1120 = vpop.permute.xlu0 %1119
        %1121 = vrot.lane.b32.xlu0 %v1107, 111
        %v1122 = vpop.permute.xlu0 %1121
        %vm1123 = vcmask 908288
        %v1124 = vsel %vm1123, %v1120, %v1122
        %v1128 = vmul.f32 %v1114, %v1120
        %v1129 = vmul.f32 %v1115, %v1124
        %v1130 = vmul.f32 %v1116, %v1122
        %1134 = vrot.lane.b32.xlu0 %v1128, 17
        %v1135 = vpop.permute.xlu0 %1134
        %1136 = vrot.lane.b32.xlu0 %v1129, 17
        %v1137 = vpop.permute.xlu0 %1136
        %1138 = vrot.lane.b32.xlu0 %v1130, 17
        %v1139 = vpop.permute.xlu0 %1138
        %vm1140 = vcmask 138240
        %v1141 = vsel %vm1140, %v1135, %v1137
        %v1142 = vsel %vm1140, %v1137, %v1139
        %1145 = vst [vmem:[#allocation3] sm:$0xf] %v1141
        %1146 = vst [vmem:[#allocation3 + $0x8] sm:$0xf] %v1142
        %v1147 = vld [vmem:[#allocation2] sm:$0xf]
        %v1148 = vld [vmem:[#allocation2 + $0x8] sm:$0xf]
        %v1149 = vld [vmem:[#allocation2 + $0x10] sm:$0xf]
        %1153 = vrot.lane.b32.xlu0 %v1147, 16
        %v1154 = vpop.permute.xlu0 %1153
        %1155 = vrot.lane.b32.xlu0 %v1148, 16
        %v1156 = vpop.permute.xlu0 %1155
        %1157 = vrot.lane.b32.xlu0 %v1149, 16
        %v1158 = vpop.permute.xlu0 %1157
        %vm1159 = vcmask 130048
        %v1160 = vsel %vm1159, %v1154, %v1156
        %v1161 = vsel %vm1159, %v1156, %v1158
        %1164 = vst [vmem:[#allocation3 + $0x10] sm:$0xf] %v1160
        %1165 = vst [vmem:[#allocation3 + $0x18] sm:$0xf] %v1161
        %v1166 = vld [vmem:[#allocation2] sm:$0xf]
        %v1167 = vld [vmem:[#allocation2 + $0x8] sm:$0xf]
        %v1168 = vld [vmem:[#allocation2 + $0x10] sm:$0xf]
        %1171 = vrot.lane.b32.xlu0 %v1112, 113
        %v1172 = vpop.permute.xlu0 %1171
        %1173 = vrot.lane.b32.xlu0 %v1113, 113
        %v1174 = vpop.permute.xlu0 %1173
        %vm1175 = vcmask 924672
        %v1176 = vsel %vm1175, %v1172, %v1174
        %v1180 = vmul.f32 %v1166, %v1172
        %v1181 = vmul.f32 %v1167, %v1176
        %v1182 = vmul.f32 %v1168, %v1174
        %1186 = vrot.lane.b32.xlu0 %v1180, 15
        %v1187 = vpop.permute.xlu0 %1186
        %1188 = vrot.lane.b32.xlu0 %v1181, 15
        %v1189 = vpop.permute.xlu0 %1188
        %1190 = vrot.lane.b32.xlu0 %v1182, 15
        %v1191 = vpop.permute.xlu0 %1190
        %vm1192 = vcmask 121856
        %v1193 = vsel %vm1192, %v1187, %v1189
        %v1194 = vsel %vm1192, %v1189, %v1191
        %1197 = vst [vmem:[#allocation3 + $0x20] sm:$0xf] %v1193
        %1198 = vst [vmem:[#allocation3 + $0x28] sm:$0xf] %v1194
        %v1199 = vld [vmem:[#allocation2] sm:$0xf]
        %v1200 = vld [vmem:[#allocation2 + $0x8] sm:$0xf]
        %v1201 = vld [vmem:[#allocation2 + $0x10] sm:$0xf]
        %1202 = vrot.lane.b32.xlu0 %v1106, 127
        %v1203 = vpop.permute.xlu0 %1202
        %1204 = vrot.lane.b32.xlu0 %v1107, 127
        %v1205 = vpop.permute.xlu0 %1204
        %vm1206 = vcmask 1039360
        %v1207 = vsel %vm1206, %v1203, %v1205
        %v1211 = vmul.f32 %v1199, %v1203
        %v1212 = vmul.f32 %v1200, %v1207
        %v1213 = vmul.f32 %v1201, %v1205
        %1217 = vrot.lane.b32.xlu0 %v1211, 1
        %v1218 = vpop.permute.xlu0 %1217
        %1219 = vrot.lane.b32.xlu0 %v1212, 1
        %v1220 = vpop.permute.xlu0 %1219
        %1221 = vrot.lane.b32.xlu0 %v1213, 1
        %v1222 = vpop.permute.xlu0 %1221
        %vm1223 = vcmask 7168
        %v1224 = vsel %vm1223, %v1218, %v1220
        %v1225 = vsel %vm1223, %v1220, %v1222
        %1228 = vst [vmem:[#allocation3 + $0x30] sm:$0xf] %v1224
        %1229 = vst [vmem:[#allocation3 + $0x38] sm:$0xf] %v1225
        %v1230 = vld [vmem:[#allocation2 + $0x8] sm:$0xf]
        %v1231 = vld [vmem:[#allocation2 + $0x10] sm:$0xf]
        %1232 = vst [vmem:[#allocation3 + $0x40] sm:$0xf] %v1230
        %1233 = vst [vmem:[#allocation3 + $0x48] sm:$0xf] %v1231
        %v1234 = vld [vmem:[#allocation2 + $0x8] sm:$0xf]
        %v1235 = vld [vmem:[#allocation2 + $0x10] sm:$0xf]
        %v1236 = vld [vmem:[#allocation2 + $0x18] sm:$0xf]
        %1237 = vrot.lane.b32.xlu0 %v1112, 1
        %v1238 = vpop.permute.xlu0 %1237
        %1239 = vrot.lane.b32.xlu0 %v1113, 1
        %v1240 = vpop.permute.xlu0 %1239
        %v1241 = vsel %vm1223, %v1238, %v1240
        %v1245 = vmul.f32 %v1234, %v1238
        %v1246 = vmul.f32 %v1235, %v1241
        %v1247 = vmul.f32 %v1236, %v1240
        %1251 = vrot.lane.b32.xlu0 %v1245, 127
        %v1252 = vpop.permute.xlu0 %1251
        %1253 = vrot.lane.b32.xlu0 %v1246, 127
        %v1254 = vpop.permute.xlu0 %1253
        %1255 = vrot.lane.b32.xlu0 %v1247, 127
        %v1256 = vpop.permute.xlu0 %1255
        %v1257 = vsel %vm1206, %v1252, %v1254
        %v1258 = vsel %vm1206, %v1254, %v1256
        %1261 = vst [vmem:[#allocation3 + $0x50] sm:$0xf] %v1257
        %1262 = vst [vmem:[#allocation3 + $0x58] sm:$0xf] %v1258
        %v1263 = vld [vmem:[#allocation2 + $0x8] sm:$0xf]
        %v1264 = vld [vmem:[#allocation2 + $0x10] sm:$0xf]
        %v1265 = vld [vmem:[#allocation2 + $0x18] sm:$0xf]
        %1266 = vrot.lane.b32.xlu0 %v1106, 15
        %v1267 = vpop.permute.xlu0 %1266
        %1268 = vrot.lane.b32.xlu0 %v1107, 15
        %v1269 = vpop.permute.xlu0 %1268
        %v1270 = vsel %vm1192, %v1267, %v1269
        %v1274 = vmul.f32 %v1263, %v1267
        %v1275 = vmul.f32 %v1264, %v1270
        %v1276 = vmul.f32 %v1265, %v1269
        %1280 = vrot.lane.b32.xlu0 %v1274, 113
        %v1281 = vpop.permute.xlu0 %1280
        %1282 = vrot.lane.b32.xlu0 %v1275, 113
        %v1283 = vpop.permute.xlu0 %1282
        %1284 = vrot.lane.b32.xlu0 %v1276, 113
        %v1285 = vpop.permute.xlu0 %1284
        %v1286 = vsel %vm1175, %v1281, %v1283
        %v1287 = vsel %vm1175, %v1283, %v1285
        %1290 = vst [vmem:[#allocation3 + $0x60] sm:$0xf] %v1286
        %1291 = vst [vmem:[#allocation3 + $0x68] sm:$0xf] %v1287
        %v1292 = vld [vmem:[#allocation2 + $0x8] sm:$0xf]
        %v1293 = vld [vmem:[#allocation2 + $0x10] sm:$0xf]
        %v1294 = vld [vmem:[#allocation2 + $0x18] sm:$0xf]
        %1298 = vrot.lane.b32.xlu0 %v1292, 112
        %v1299 = vpop.permute.xlu0 %1298
        %1300 = vrot.lane.b32.xlu0 %v1293, 112
        %v1301 = vpop.permute.xlu0 %1300
        %1302 = vrot.lane.b32.xlu0 %v1294, 112
        %v1303 = vpop.permute.xlu0 %1302
        %vm1304 = vcmask 916480
        %v1305 = vsel %vm1304, %v1299, %v1301
        %v1306 = vsel %vm1304, %v1301, %v1303
        %1309 = vst [vmem:[#allocation3 + $0x70] sm:$0xf] %v1305
        %1310 = vst [vmem:[#allocation3 + $0x78] sm:$0xf] %v1306
        %v1311 = vld [vmem:[#allocation2 + $0x8] sm:$0xf]
        %v1312 = vld [vmem:[#allocation2 + $0x10] sm:$0xf]
        %v1313 = vld [vmem:[#allocation2 + $0x18] sm:$0xf]
        %1314 = vrot.lane.b32.xlu0 %v1112, 17
        %v1315 = vpop.permute.xlu0 %1314
        %1316 = vrot.lane.b32.xlu0 %v1113, 17
        %v1317 = vpop.permute.xlu0 %1316
        %v1318 = vsel %vm1140, %v1315, %v1317
        %v1322 = vmul.f32 %v1311, %v1315
        %v1323 = vmul.f32 %v1312, %v1318
        %v1324 = vmul.f32 %v1313, %v1317
        %1328 = vrot.lane.b32.xlu0 %v1322, 111
        %v1329 = vpop.permute.xlu0 %1328
        %1330 = vrot.lane.b32.xlu0 %v1323, 111
        %v1331 = vpop.permute.xlu0 %1330
        %1332 = vrot.lane.b32.xlu0 %v1324, 111
        %v1333 = vpop.permute.xlu0 %1332
        %v1334 = vsel %vm1123, %v1329, %v1331
        %v1335 = vsel %vm1123, %v1331, %v1333
        %1338 = vst [vmem:[#allocation3 + $0x80] sm:$0xf] %v1334
        %1339 = vst [vmem:[#allocation3 + $0x88] sm:$0xf] %v1335
        %v1340 = vld [vmem:[#allocation3] sm:$0xff]
        %v1341 = vld [vmem:[#allocation3 + $0x8] sm:$0xff]
        %v1342 = vld [vmem:[#allocation3 + $0x10] sm:$0xff]
        %v1343 = vld [vmem:[#allocation3 + $0x18] sm:$0xff]
        %v1344 = vld [vmem:[#allocation3 + $0x20] sm:$0xff]
        %v1345 = vld [vmem:[#allocation3 + $0x28] sm:$0xff]
        %v1346 = vld [vmem:[#allocation3 + $0x30] sm:$0xff]
        %v1347 = vld [vmem:[#allocation3 + $0x38] sm:$0xff]
        %v1348 = vld [vmem:[#allocation3 + $0x40] sm:$0xff]
        %v1349 = vld [vmem:[#allocation3 + $0x48] sm:$0xff]
        %v1350 = vld [vmem:[#allocation3 + $0x50] sm:$0xff]
        %v1351 = vld [vmem:[#allocation3 + $0x58] sm:$0xff]
        %v1352 = vld [vmem:[#allocation3 + $0x60] sm:$0xff]
        %v1353 = vld [vmem:[#allocation3 + $0x68] sm:$0xff]
        %v1354 = vld [vmem:[#allocation3 + $0x70] sm:$0xff]
        %v1355 = vld [vmem:[#allocation3 + $0x78] sm:$0xff]
        %v1356 = vld [vmem:[#allocation3 + $0x80] sm:$0xff]
        %v1357 = vld [vmem:[#allocation3 + $0x88] sm:$0xff]
        %1359 = vset.pattern.permute.xlu0 0
        %1360 = vperm.xlu0 %1359, %v1067
        %v1361 = vpop.permute.xlu0 %1360
        %vm1363 = vcmask 588800
        %v1365 = vsel %vm1363, %v1066, 0
        %1367 = vmatprep.subr.mxu0 0.0
        %1368 = vmatpush1.msra.mxu0 0.0
        %1369 = vmatprep.subr.mxu0 0.0
        %1370 = vmatpush1.msra.mxu0 0.0
        %1371 = vmatprep.subr.mxu0 0.0
        %1372 = vmatpush1.msra.mxu0 0.0
        %1373 = vmatprep.subr.mxu0 0.0
        %1374 = vmatpush1.msra.mxu0 0.0
        %1375 = vmatprep.subr.mxu0 0.0
        %1376 = vmatpush1.msra.mxu0 0.0
        %1377 = vmatprep.subr.mxu0 0.0
        %1378 = vmatpush1.msra.mxu0 0.0
        %1379 = vmatprep.subr.mxu0 0.0
        %1380 = vmatpush1.msra.mxu0 0.0
        %1381 = vmatprep.subr.mxu0 %v1357
        %1382 = vmatpush1.msra.mxu0 %v1356
        %1383 = vmatprep.subr.mxu0 %v1355
        %1384 = vmatpush1.msra.mxu0 %v1354
        %1385 = vmatprep.subr.mxu0 %v1353
        %1386 = vmatpush1.msra.mxu0 %v1352
        %1387 = vmatprep.subr.mxu0 %v1351
        %1388 = vmatpush1.msra.mxu0 %v1350
        %1389 = vmatprep.subr.mxu0 %v1349
        %1390 = vmatpush1.msra.mxu0 %v1348
        %1391 = vmatprep.subr.mxu0 %v1347
        %1392 = vmatpush1.msra.mxu0 %v1346
        %1393 = vmatprep.subr.mxu0 %v1345
        %1394 = vmatpush1.msra.mxu0 %v1344
        %1395 = vmatprep.subr.mxu0 %v1343
        %1396 = vmatpush1.msra.mxu0 %v1342
        %1397 = vmatprep.subr.mxu0 %v1341
        %1398 = vmatpush1.msra.mxu0 %v1340
        %1399 = vmatprep.subr.mxu0 0.0
        %1400 = vmatpush2.msra.mxu0 0.0
        %1401 = vmatprep.subr.mxu0 0.0
        %1402 = vmatpush2.msra.mxu0 0.0
        %1403 = vmatprep.subr.mxu0 0.0
        %1404 = vmatpush2.msra.mxu0 0.0
        %1405 = vmatprep.subr.mxu0 0.0
        %1406 = vmatpush2.msra.mxu0 0.0
        %1407 = vmatprep.subr.mxu0 0.0
        %1408 = vmatpush2.msra.mxu0 0.0
        %1409 = vmatprep.subr.mxu0 0.0
        %1410 = vmatpush2.msra.mxu0 0.0
        %1411 = vmatprep.subr.mxu0 0.0
        %1412 = vmatpush2.msra.mxu0 0.0
        %1413 = vmatprep.subr.mxu0 0.0
        %1414 = vmatpush2.msra.mxu0 0.0
        %1415 = vmatprep.subr.mxu0 0.0
        %1416 = vmatpush2.msra.mxu0 0.0
        %1417 = vmatprep.subr.mxu0 0.0
        %1418 = vmatpush2.msra.mxu0 0.0
        %1419 = vmatprep.subr.mxu0 0.0
        %1420 = vmatpush2.msra.mxu0 0.0
        %1421 = vmatprep.subr.mxu0 0.0
        %1422 = vmatpush2.msra.mxu0 0.0
        %1423 = vmatprep.subr.mxu0 0.0
        %1424 = vmatpush2.msra.mxu0 0.0
        %1425 = vmatprep.subr.mxu0 0.0
        %1426 = vmatpush2.msra.mxu0 0.0
        %1427 = vmatprep.subr.mxu0 0.0
        %1428 = vmatpush2.msra.mxu0 0.0
        %1429 = vmatprep.subr.mxu0 0.0
        %1430 = vmatpush2.msra.mxu0 0.0
        %1431 = vmatprep.mubr.f32.mxu0 0.0
        %1432 = vmatmul.mubr.f32.gmra.mxu0 %v1365
        %v1433 = vpop.f32.mrf.mxu0
        %v1434 = vadd.f32 %v1361, %v1433
        %v1435 = vpop.f32.mrf.mxu0
        %v1436 = vadd.f32 %v1361, %v1435
        %1437 = vdwg.mxu0
        %v1438 = vmax.f32 %v1434, 0.0
        %v1439 = vmax.f32 %v1436, 0.0
        %v1440 = vld [vmem:[#allocation4] sm:$0xff]
        %v1441 = vld [vmem:[%s4] sm:$0xff]
        %1442 = vst [vmem:[#allocation2] sm:$0xff] 0.0
        %1443 = vst [vmem:[#allocation2 + $0x8] sm:$0xff] 0.0
        %1444 = vst [vmem:[#allocation2 + $0x10] sm:$0xff] 0.0
        %1445 = vst [vmem:[#allocation2 + $0x18] sm:$0xff] 0.0
        %1446 = vst [vmem:[#allocation2 + $0x20] sm:$0xff] 0.0
        %1447 = vst [vmem:[#allocation2 + $0x28] sm:$0xff] 0.0
        %1448 = vst [vmem:[#allocation2 + $0x30] sm:$0xff] 0.0
        %1449 = vst [vmem:[#allocation2 + $0x38] sm:$0xff] 0.0
        %1450 = vst [vmem:[#allocation2 + $0x40] sm:$0xff] 0.0
        %1451 = vst [vmem:[#allocation2 + $0x48] sm:$0xff] 0.0
        %1452 = vst [vmem:[#allocation2 + $0x50] sm:$0xff] 0.0
        %1453 = vst [vmem:[#allocation2 + $0x58] sm:$0xff] 0.0
        %1454 = vst [vmem:[#allocation2 + $0x60] sm:$0xff] 0.0
        %1455 = vst [vmem:[#allocation2 + $0x68] sm:$0xff] 0.0
        %1456 = vst [vmem:[#allocation2 + $0x70] sm:$0xff] 0.0
        %1457 = vst [vmem:[#allocation2 + $0x78] sm:$0xff] 0.0
        %1458 = vst [vmem:[#allocation2 + $0x80] sm:$0xff] 0.0
        %1459 = vst [vmem:[#allocation2 + $0x88] sm:$0xff] 0.0
        %1460 = vst [vmem:[#allocation2 + $0x90] sm:$0xff] 0.0
        %1461 = vst [vmem:[#allocation2 + $0x98] sm:$0xff] 0.0
        %1462 = vst [vmem:[#allocation2 + $0xa0] sm:$0xff] 0.0
        %1463 = vst [vmem:[#allocation2 + $0xa8] sm:$0xff] 0.0
        %1464 = vst [vmem:[#allocation2 + $0xb0] sm:$0xff] 0.0
        %1465 = vst [vmem:[#allocation2 + $0xb8] sm:$0xff] 0.0
        %1466 = vst [vmem:[#allocation2 + $0x8] sm:$0xff] %v1438
        %1467 = vst [vmem:[#allocation2 + $0x10] sm:$0xff] %v1439
        %v1468 = vld [vmem:[#allocation2] sm:$0xff]
        %v1469 = vld [vmem:[#allocation2 + $0x8] sm:$0xff]
        %v1470 = vld [vmem:[#allocation2 + $0x10] sm:$0xff]
        %v1471 = vmul.f32 %v1468, %v1120
        %v1472 = vmul.f32 %v1469, %v1124
        %v1473 = vmul.f32 %v1470, %v1122
        %1477 = vrot.lane.b32.xlu0 %v1471, 17
        %v1478 = vpop.permute.xlu0 %1477
        %1479 = vrot.lane.b32.xlu0 %v1472, 17
        %v1480 = vpop.permute.xlu0 %1479
        %1481 = vrot.lane.b32.xlu0 %v1473, 17
        %v1482 = vpop.permute.xlu0 %1481
        %v1483 = vsel %vm1140, %v1478, %v1480
        %v1484 = vsel %vm1140, %v1480, %v1482
        %1487 = vst [vmem:[#allocation3] sm:$0xff] %v1483
        %1488 = vst [vmem:[#allocation3 + $0x8] sm:$0xff] %v1484
        %v1489 = vld [vmem:[#allocation2] sm:$0xff]
        %v1490 = vld [vmem:[#allocation2 + $0x8] sm:$0xff]
        %v1491 = vld [vmem:[#allocation2 + $0x10] sm:$0xff]
        %1495 = vrot.lane.b32.xlu0 %v1489, 16
        %v1496 = vpop.permute.xlu0 %1495
        %1497 = vrot.lane.b32.xlu0 %v1490, 16
        %v1498 = vpop.permute.xlu0 %1497
        %1499 = vrot.lane.b32.xlu0 %v1491, 16
        %v1500 = vpop.permute.xlu0 %1499
        %v1501 = vsel %vm1159, %v1496, %v1498
        %v1502 = vsel %vm1159, %v1498, %v1500
        %1505 = vst [vmem:[#allocation3 + $0x10] sm:$0xff] %v1501
        %1506 = vst [vmem:[#allocation3 + $0x18] sm:$0xff] %v1502
        %v1507 = vld [vmem:[#allocation2] sm:$0xff]
        %v1508 = vld [vmem:[#allocation2 + $0x8] sm:$0xff]
        %v1509 = vld [vmem:[#allocation2 + $0x10] sm:$0xff]
        %v1510 = vmul.f32 %v1507, %v1172
        %v1511 = vmul.f32 %v1508, %v1176
        %v1512 = vmul.f32 %v1509, %v1174
        %1516 = vrot.lane.b32.xlu0 %v1510, 15
        %v1517 = vpop.permute.xlu0 %1516
        %1518 = vrot.lane.b32.xlu0 %v1511, 15
        %v1519 = vpop.permute.xlu0 %1518
        %1520 = vrot.lane.b32.xlu0 %v1512, 15
        %v1521 = vpop.permute.xlu0 %1520
        %v1522 = vsel %vm1192, %v1517, %v1519
        %v1523 = vsel %vm1192, %v1519, %v1521
        %1526 = vst [vmem:[#allocation3 + $0x20] sm:$0xff] %v1522
        %1527 = vst [vmem:[#allocation3 + $0x28] sm:$0xff] %v1523
        %v1528 = vld [vmem:[#allocation2] sm:$0xff]
        %v1529 = vld [vmem:[#allocation2 + $0x8] sm:$0xff]
        %v1530 = vld [vmem:[#allocation2 + $0x10] sm:$0xff]
        %v1531 = vmul.f32 %v1528, %v1203
        %v1532 = vmul.f32 %v1529, %v1207
        %v1533 = vmul.f32 %v1530, %v1205
        %1537 = vrot.lane.b32.xlu0 %v1531, 1
        %v1538 = vpop.permute.xlu0 %1537
        %1539 = vrot.lane.b32.xlu0 %v1532, 1
        %v1540 = vpop.permute.xlu0 %1539
        %1541 = vrot.lane.b32.xlu0 %v1533, 1
        %v1542 = vpop.permute.xlu0 %1541
        %v1543 = vsel %vm1223, %v1538, %v1540
        %v1544 = vsel %vm1223, %v1540, %v1542
        %1547 = vst [vmem:[#allocation3 + $0x30] sm:$0xff] %v1543
        %1548 = vst [vmem:[#allocation3 + $0x38] sm:$0xff] %v1544
        %v1549 = vld [vmem:[#allocation2 + $0x8] sm:$0xff]
        %v1550 = vld [vmem:[#allocation2 + $0x10] sm:$0xff]
        %1551 = vst [vmem:[#allocation3 + $0x40] sm:$0xff] %v1549
        %1552 = vst [vmem:[#allocation3 + $0x48] sm:$0xff] %v1550
        %v1553 = vld [vmem:[#allocation2 + $0x8] sm:$0xff]
        %v1554 = vld [vmem:[#allocation2 + $0x10] sm:$0xff]
        %v1555 = vld [vmem:[#allocation2 + $0x18] sm:$0xff]
        %v1556 = vmul.f32 %v1553, %v1238
        %v1557 = vmul.f32 %v1554, %v1241
        %v1558 = vmul.f32 %v1555, %v1240
        %1562 = vrot.lane.b32.xlu0 %v1556, 127
        %v1563 = vpop.permute.xlu0 %1562
        %1564 = vrot.lane.b32.xlu0 %v1557, 127
        %v1565 = vpop.permute.xlu0 %1564
        %1566 = vrot.lane.b32.xlu0 %v1558, 127
        %v1567 = vpop.permute.xlu0 %1566
        %v1568 = vsel %vm1206, %v1563, %v1565
        %v1569 = vsel %vm1206, %v1565, %v1567
        %1572 = vst [vmem:[#allocation3 + $0x50] sm:$0xff] %v1568
        %1573 = vst [vmem:[#allocation3 + $0x58] sm:$0xff] %v1569
        %v1574 = vld [vmem:[#allocation2 + $0x8] sm:$0xff]
        %v1575 = vld [vmem:[#allocation2 + $0x10] sm:$0xff]
        %v1576 = vld [vmem:[#allocation2 + $0x18] sm:$0xff]
        %v1577 = vmul.f32 %v1574, %v1267
        %v1578 = vmul.f32 %v1575, %v1270
        %v1579 = vmul.f32 %v1576, %v1269
        %1583 = vrot.lane.b32.xlu0 %v1577, 113
        %v1584 = vpop.permute.xlu0 %1583
        %1585 = vrot.lane.b32.xlu0 %v1578, 113
        %v1586 = vpop.permute.xlu0 %1585
        %1587 = vrot.lane.b32.xlu0 %v1579, 113
        %v1588 = vpop.permute.xlu0 %1587
        %v1589 = vsel %vm1175, %v1584, %v1586
        %v1590 = vsel %vm1175, %v1586, %v1588
        %1593 = vst [vmem:[#allocation3 + $0x60] sm:$0xff] %v1589
        %1594 = vst [vmem:[#allocation3 + $0x68] sm:$0xff] %v1590
        %v1595 = vld [vmem:[#allocation2 + $0x8] sm:$0xff]
        %v1596 = vld [vmem:[#allocation2 + $0x10] sm:$0xff]
        %v1597 = vld [vmem:[#allocation2 + $0x18] sm:$0xff]
        %1601 = vrot.lane.b32.xlu0 %v1595, 112
        %v1602 = vpop.permute.xlu0 %1601
        %1603 = vrot.lane.b32.xlu0 %v1596, 112
        %v1604 = vpop.permute.xlu0 %1603
        %1605 = vrot.lane.b32.xlu0 %v1597, 112
        %v1606 = vpop.permute.xlu0 %1605
        %v1607 = vsel %vm1304, %v1602, %v1604
        %v1608 = vsel %vm1304, %v1604, %v1606
        %1611 = vst [vmem:[#allocation3 + $0x70] sm:$0xff] %v1607
        %1612 = vst [vmem:[#allocation3 + $0x78] sm:$0xff] %v1608
        %v1613 = vld [vmem:[#allocation2 + $0x8] sm:$0xff]
        %v1614 = vld [vmem:[#allocation2 + $0x10] sm:$0xff]
        %v1615 = vld [vmem:[#allocation2 + $0x18] sm:$0xff]
        %v1616 = vmul.f32 %v1613, %v1315
        %v1617 = vmul.f32 %v1614, %v1318
        %v1618 = vmul.f32 %v1615, %v1317
        %1622 = vrot.lane.b32.xlu0 %v1616, 111
        %v1623 = vpop.permute.xlu0 %1622
        %1624 = vrot.lane.b32.xlu0 %v1617, 111
        %v1625 = vpop.permute.xlu0 %1624
        %1626 = vrot.lane.b32.xlu0 %v1618, 111
        %v1627 = vpop.permute.xlu0 %1626
        %v1628 = vsel %vm1123, %v1623, %v1625
        %v1629 = vsel %vm1123, %v1625, %v1627
        %1632 = vst [vmem:[#allocation3 + $0x80] sm:$0xff] %v1628
        %1633 = vst [vmem:[#allocation3 + $0x88] sm:$0xff] %v1629
        %v1634 = vld [vmem:[#allocation3] sm:$0xff]
        %v1635 = vld [vmem:[#allocation3 + $0x8] sm:$0xff]
        %v1636 = vld [vmem:[#allocation3 + $0x10] sm:$0xff]
        %v1637 = vld [vmem:[#allocation3 + $0x18] sm:$0xff]
        %v1638 = vld [vmem:[#allocation3 + $0x20] sm:$0xff]
        %v1639 = vld [vmem:[#allocation3 + $0x28] sm:$0xff]
        %v1640 = vld [vmem:[#allocation3 + $0x30] sm:$0xff]
        %v1641 = vld [vmem:[#allocation3 + $0x38] sm:$0xff]
        %v1642 = vld [vmem:[#allocation3 + $0x40] sm:$0xff]
        %v1643 = vld [vmem:[#allocation3 + $0x48] sm:$0xff]
        %v1644 = vld [vmem:[#allocation3 + $0x50] sm:$0xff]
        %v1645 = vld [vmem:[#allocation3 + $0x58] sm:$0xff]
        %v1646 = vld [vmem:[#allocation3 + $0x60] sm:$0xff]
        %v1647 = vld [vmem:[#allocation3 + $0x68] sm:$0xff]
        %v1648 = vld [vmem:[#allocation3 + $0x70] sm:$0xff]
        %v1649 = vld [vmem:[#allocation3 + $0x78] sm:$0xff]
        %v1650 = vld [vmem:[#allocation3 + $0x80] sm:$0xff]
        %v1651 = vld [vmem:[#allocation3 + $0x88] sm:$0xff]
        %1653 = vset.pattern.permute.xlu0 0
        %1654 = vperm.xlu0 %1653, %v1441
        %v1655 = vpop.permute.xlu0 %1654
        %v1658 = vsel %vm1363, %v1440, 0
        %1660 = vmatprep.subr.mxu0 0.0
        %1661 = vmatpush1.msra.mxu0 0.0
        %1662 = vmatprep.subr.mxu0 0.0
        %1663 = vmatpush1.msra.mxu0 0.0
        %1664 = vmatprep.subr.mxu0 0.0
        %1665 = vmatpush1.msra.mxu0 0.0
        %1666 = vmatprep.subr.mxu0 0.0
        %1667 = vmatpush1.msra.mxu0 0.0
        %1668 = vmatprep.subr.mxu0 0.0
        %1669 = vmatpush1.msra.mxu0 0.0
        %1670 = vmatprep.subr.mxu0 0.0
        %1671 = vmatpush1.msra.mxu0 0.0
        %1672 = vmatprep.subr.mxu0 0.0
        %1673 = vmatpush1.msra.mxu0 0.0
        %1674 = vmatprep.subr.mxu0 %v1651
        %1675 = vmatpush1.msra.mxu0 %v1650
        %1676 = vmatprep.subr.mxu0 %v1649
        %1677 = vmatpush1.msra.mxu0 %v1648
        %1678 = vmatprep.subr.mxu0 %v1647
        %1679 = vmatpush1.msra.mxu0 %v1646
        %1680 = vmatprep.subr.mxu0 %v1645
        %1681 = vmatpush1.msra.mxu0 %v1644
        %1682 = vmatprep.subr.mxu0 %v1643
        %1683 = vmatpush1.msra.mxu0 %v1642
        %1684 = vmatprep.subr.mxu0 %v1641
        %1685 = vmatpush1.msra.mxu0 %v1640
        %1686 = vmatprep.subr.mxu0 %v1639
        %1687 = vmatpush1.msra.mxu0 %v1638
        %1688 = vmatprep.subr.mxu0 %v1637
        %1689 = vmatpush1.msra.mxu0 %v1636
        %1690 = vmatprep.subr.mxu0 %v1635
        %1691 = vmatpush1.msra.mxu0 %v1634
        %1692 = vmatprep.subr.mxu0 0.0
        %1693 = vmatpush2.msra.mxu0 0.0
        %1694 = vmatprep.subr.mxu0 0.0
        %1695 = vmatpush2.msra.mxu0 0.0
        %1696 = vmatprep.subr.mxu0 0.0
        %1697 = vmatpush2.msra.mxu0 0.0
        %1698 = vmatprep.subr.mxu0 0.0
        %1699 = vmatpush2.msra.mxu0 0.0
        %1700 = vmatprep.subr.mxu0 0.0
        %1701 = vmatpush2.msra.mxu0 0.0
        %1702 = vmatprep.subr.mxu0 0.0
        %1703 = vmatpush2.msra.mxu0 0.0
        %1704 = vmatprep.subr.mxu0 0.0
        %1705 = vmatpush2.msra.mxu0 0.0
        %1706 = vmatprep.subr.mxu0 0.0
        %1707 = vmatpush2.msra.mxu0 0.0
        %1708 = vmatprep.subr.mxu0 0.0
        %1709 = vmatpush2.msra.mxu0 0.0
        %1710 = vmatprep.subr.mxu0 0.0
        %1711 = vmatpush2.msra.mxu0 0.0
        %1712 = vmatprep.subr.mxu0 0.0
        %1713 = vmatpush2.msra.mxu0 0.0
        %1714 = vmatprep.subr.mxu0 0.0
        %1715 = vmatpush2.msra.mxu0 0.0
        %1716 = vmatprep.subr.mxu0 0.0
        %1717 = vmatpush2.msra.mxu0 0.0
        %1718 = vmatprep.subr.mxu0 0.0
        %1719 = vmatpush2.msra.mxu0 0.0
        %1720 = vmatprep.subr.mxu0 0.0
        %1721 = vmatpush2.msra.mxu0 0.0
        %1722 = vmatprep.subr.mxu0 0.0
        %1723 = vmatpush2.msra.mxu0 0.0
        %1724 = vmatprep.mubr.f32.mxu0 0.0
        %1725 = vmatmul.mubr.f32.gmra.mxu0 %v1658
        %v1726 = vpop.f32.mrf.mxu0
        %v1727 = vadd.f32 %v1655, %v1726
        %v1728 = vpop.f32.mrf.mxu0
        %v1729 = vadd.f32 %v1655, %v1728
        %1730 = vdwg.mxu0
        %v1731 = vmax.f32 %v1727, 0.0
        %v1732 = vmax.f32 %v1729, 0.0
        %v1733 = vld [vmem:[%s23] sm:$0xff]
        %v1734 = vld [vmem:[%s23 + $0x8] sm:$0xff]
        %v1735 = vld [vmem:[%s23 + $0x10] sm:$0xff]
        %v1736 = vld [vmem:[%s23 + $0x18] sm:$0xff]
        %v1737 = vld [vmem:[%s23 + $0x20] sm:$0xff]
        %v1738 = vld [vmem:[%s23 + $0x28] sm:$0xff]
        %v1739 = vld [vmem:[%s23 + $0x30] sm:$0xff]
        %v1740 = vld [vmem:[%s23 + $0x38] sm:$0xff]
        %v1741 = vld [vmem:[%s23 + $0x40] sm:$0xff]
        %v1742 = vld [vmem:[%s23 + $0x48] sm:$0xff]
        %v1743 = vld [vmem:[%s23 + $0x50] sm:$0xff]
        %v1744 = vld [vmem:[%s23 + $0x58] sm:$0xff]
        %v1745 = vld [vmem:[%s23 + $0x60] sm:$0xff]
        %v1746 = vld [vmem:[%s23 + $0x68] sm:$0xff]
        %v1747 = vld [vmem:[%s23 + $0x70] sm:$0xff]
        %v1748 = vld [vmem:[%s23 + $0x78] sm:$0xff]
        %v1749 = vld [vmem:[%s23 + $0x80] sm:$0xff]
        %v1750 = vld [vmem:[%s23 + $0x88] sm:$0xff]
        %v1751 = vld [vmem:[%s23 + $0x90] sm:$0xff]
        %v1752 = vld [vmem:[%s23 + $0x98] sm:$0xff]
        %v1753 = vld [vmem:[%s23 + $0xa0] sm:$0xff]
        %v1754 = vld [vmem:[%s23 + $0xa8] sm:$0xff]
        %v1755 = vld [vmem:[%s23 + $0xb0] sm:$0xff]
        %v1756 = vld [vmem:[%s23 + $0xb8] sm:$0xff]
        %v1757 = vld [vmem:[%s23 + $0xc0] sm:$0xff]
        %v1758 = vld [vmem:[%s23 + $0xc8] sm:$0xff]
        %v1759 = vld [vmem:[%s23 + $0xd0] sm:$0xff]
        %v1760 = vld [vmem:[%s23 + $0xd8] sm:$0xff]
        %v1761 = vld [vmem:[%s23 + $0xe0] sm:$0xff]
        %v1762 = vld [vmem:[%s23 + $0xe8] sm:$0xff]
        %v1763 = vld [vmem:[%s23 + $0xf0] sm:$0xff]
        %v1764 = vld [vmem:[%s23 + $0xf8] sm:$0xff]
        %1765 = vst [vmem:[#allocation2] sm:$0xff] 0.0
        %1766 = vst [vmem:[#allocation2 + $0x8] sm:$0xff] 0.0
        %1767 = vst [vmem:[#allocation2 + $0x10] sm:$0xff] 0.0
        %1768 = vst [vmem:[#allocation2 + $0x18] sm:$0xff] 0.0
        %1769 = vst [vmem:[#allocation2 + $0x20] sm:$0xff] 0.0
        %1770 = vst [vmem:[#allocation2 + $0x28] sm:$0xff] 0.0
        %1771 = vst [vmem:[#allocation2 + $0x30] sm:$0xff] 0.0
        %1772 = vst [vmem:[#allocation2 + $0x38] sm:$0xff] 0.0
        %1773 = vst [vmem:[#allocation2 + $0x40] sm:$0xff] 0.0
        %1774 = vst [vmem:[#allocation2 + $0x48] sm:$0xff] 0.0
        %1775 = vst [vmem:[#allocation2 + $0x50] sm:$0xff] 0.0
        %1776 = vst [vmem:[#allocation2 + $0x58] sm:$0xff] 0.0
        %1777 = vst [vmem:[#allocation2 + $0x60] sm:$0xff] 0.0
        %1778 = vst [vmem:[#allocation2 + $0x68] sm:$0xff] 0.0
        %1779 = vst [vmem:[#allocation2 + $0x70] sm:$0xff] 0.0
        %1780 = vst [vmem:[#allocation2 + $0x78] sm:$0xff] 0.0
        %1781 = vst [vmem:[#allocation2 + $0x80] sm:$0xff] 0.0
        %1782 = vst [vmem:[#allocation2 + $0x88] sm:$0xff] 0.0
        %1783 = vst [vmem:[#allocation2 + $0x90] sm:$0xff] 0.0
        %1784 = vst [vmem:[#allocation2 + $0x98] sm:$0xff] 0.0
        %1785 = vst [vmem:[#allocation2 + $0xa0] sm:$0xff] 0.0
        %1786 = vst [vmem:[#allocation2 + $0xa8] sm:$0xff] 0.0
        %1787 = vst [vmem:[#allocation2 + $0xb0] sm:$0xff] 0.0
        %1788 = vst [vmem:[#allocation2 + $0xb8] sm:$0xff] 0.0
        %1789 = vst [vmem:[#allocation2 + $0x8] sm:$0xff] %v1731
        %1790 = vst [vmem:[#allocation2 + $0x10] sm:$0xff] %v1732
        %v1791 = vld [vmem:[#allocation2 + $0x8] sm:$0xff]
        %v1792 = vld [vmem:[#allocation2 + $0x10] sm:$0xff]
        %v1793 = vld [vmem:[#allocation2 + $0x18] sm:$0xff]
        %1797 = vrot.lane.b32.xlu0 %v1791, 127
        %v1798 = vpop.permute.xlu0 %1797
        %1799 = vrot.lane.b32.xlu0 %v1792, 127
        %v1800 = vpop.permute.xlu0 %1799
        %1801 = vrot.lane.b32.xlu0 %v1793, 127
        %v1802 = vpop.permute.xlu0 %1801
        %v1803 = vsel %vm1206, %v1798, %v1800
        %v1804 = vsel %vm1206, %v1800, %v1802
        %v1807 = vmax.f32 %v1731, %v1803
        %v1808 = vmax.f32 %v1732, %v1804
        %v1810 = vmax.f32 %v1791, %v1803
        %v1811 = vmax.f32 %v1792, %v1804
        %v1812 = vmax.f32 %v1793, %v1802
        %1816 = vrot.lane.b32.xlu0 %v1810, 112
        %v1817 = vpop.permute.xlu0 %1816
        %1818 = vrot.lane.b32.xlu0 %v1811, 112
        %v1819 = vpop.permute.xlu0 %1818
        %1820 = vrot.lane.b32.xlu0 %v1812, 112
        %v1821 = vpop.permute.xlu0 %1820
        %v1822 = vsel %vm1304, %v1817, %v1819
        %v1823 = vsel %vm1304, %v1819, %v1821
        %v1826 = vmax.f32 %v1807, %v1822
        %v1827 = vmax.f32 %v1808, %v1823
        %1828 = vmatprep.subr.mxu0 0.0
        %1829 = vmatpush1.msra.mxu0 %v1748
        %1830 = vmatprep.subr.mxu0 0.0
        %1831 = vmatpush1.msra.mxu0 %v1747
        %1832 = vmatprep.subr.mxu0 0.0
        %1833 = vmatpush1.msra.mxu0 %v1746
        %1834 = vmatprep.subr.mxu0 0.0
        %1835 = vmatpush1.msra.mxu0 %v1745
        %1836 = vmatprep.subr.mxu0 0.0
        %1837 = vmatpush1.msra.mxu0 %v1744
        %1838 = vmatprep.subr.mxu0 0.0
        %1839 = vmatpush1.msra.mxu0 %v1743
        %1840 = vmatprep.subr.mxu0 0.0
        %1841 = vmatpush1.msra.mxu0 %v1742
        %1842 = vmatprep.subr.mxu0 0.0
        %1843 = vmatpush1.msra.mxu0 %v1741
        %1844 = vmatprep.subr.mxu0 0.0
        %1845 = vmatpush1.msra.mxu0 %v1740
        %1846 = vmatprep.subr.mxu0 0.0
        %1847 = vmatpush1.msra.mxu0 %v1739
        %1848 = vmatprep.subr.mxu0 0.0
        %1849 = vmatpush1.msra.mxu0 %v1738
        %1850 = vmatprep.subr.mxu0 0.0
        %1851 = vmatpush1.msra.mxu0 %v1737
        %1852 = vmatprep.subr.mxu0 0.0
        %1853 = vmatpush1.msra.mxu0 %v1736
        %1854 = vmatprep.subr.mxu0 0.0
        %1855 = vmatpush1.msra.mxu0 %v1735
        %1856 = vmatprep.subr.mxu0 0.0
        %1857 = vmatpush1.msra.mxu0 %v1734
        %1858 = vmatprep.subr.mxu0 0.0
        %1859 = vmatpush1.msra.mxu0 %v1733
        %1860 = vmatprep.subr.mxu0 0.0
        %1861 = vmatpush2.msra.mxu0 %v1764
        %1862 = vmatprep.subr.mxu0 0.0
        %1863 = vmatpush2.msra.mxu0 %v1763
        %1864 = vmatprep.subr.mxu0 0.0
        %1865 = vmatpush2.msra.mxu0 %v1762
        %1866 = vmatprep.subr.mxu0 0.0
        %1867 = vmatpush2.msra.mxu0 %v1761
        %1868 = vmatprep.subr.mxu0 0.0
        %1869 = vmatpush2.msra.mxu0 %v1760
        %1870 = vmatprep.subr.mxu0 0.0
        %1871 = vmatpush2.msra.mxu0 %v1759
        %1872 = vmatprep.subr.mxu0 0.0
        %1873 = vmatpush2.msra.mxu0 %v1758
        %1874 = vmatprep.subr.mxu0 0.0
        %1875 = vmatpush2.msra.mxu0 %v1757
        %1876 = vmatprep.subr.mxu0 0.0
        %1877 = vmatpush2.msra.mxu0 %v1756
        %1878 = vmatprep.subr.mxu0 0.0
        %1879 = vmatpush2.msra.mxu0 %v1755
        %1880 = vmatprep.subr.mxu0 0.0
        %1881 = vmatpush2.msra.mxu0 %v1754
        %1882 = vmatprep.subr.mxu0 0.0
        %1883 = vmatpush2.msra.mxu0 %v1753
        %1884 = vmatprep.subr.mxu0 0.0
        %1885 = vmatpush2.msra.mxu0 %v1752
        %1886 = vmatprep.subr.mxu0 0.0
        %1887 = vmatpush2.msra.mxu0 %v1751
        %1888 = vmatprep.subr.mxu0 0.0
        %1889 = vmatpush2.msra.mxu0 %v1750
        %1890 = vmatprep.subr.mxu0 0.0
        %1891 = vmatpush2.msra.mxu0 %v1749
        %1892 = vmatprep.mubr.f32.mxu0 %v1827
        %1893 = vmatmul.mubr.f32.gmra.mxu0 %v1826
        %v1894 = vpop.f32.mrf.mxu0
        %v1895 = vadd.f32 0.0, %v1894
        %v1896 = vpop.f32.mrf.mxu0
        %1897 = vdwg.mxu0
        %v1898 = vld [vmem:[#allocation6] sm:$0xff]
        %v1899 = vld [vmem:[#allocation6 + $0x8] sm:$0xff]
        %v1900 = vld [vmem:[%s6] sm:$0xff]
        %v1901 = vld [vmem:[%s6 + $0x8] sm:$0xff]
        %1902 = vst [vmem:[#allocation2] sm:$0xff] 0.0
        %1903 = vst [vmem:[#allocation2 + $0x8] sm:$0xff] 0.0
        %1904 = vst [vmem:[#allocation2 + $0x10] sm:$0xff] 0.0
        %1905 = vst [vmem:[#allocation2 + $0x18] sm:$0xff] 0.0
        %1906 = vst [vmem:[#allocation2 + $0x20] sm:$0xff] 0.0
        %1907 = vst [vmem:[#allocation2 + $0x28] sm:$0xff] 0.0
        %1908 = vst [vmem:[#allocation2 + $0x30] sm:$0xff] 0.0
        %1909 = vst [vmem:[#allocation2 + $0x38] sm:$0xff] 0.0
        %1910 = vst [vmem:[#allocation2 + $0x40] sm:$0xff] 0.0
        %1911 = vst [vmem:[#allocation2 + $0x48] sm:$0xff] 0.0
        %1912 = vst [vmem:[#allocation2 + $0x50] sm:$0xff] 0.0
        %1913 = vst [vmem:[#allocation2 + $0x58] sm:$0xff] 0.0
        %1914 = vst [vmem:[#allocation2 + $0x60] sm:$0xff] 0.0
        %1915 = vst [vmem:[#allocation2 + $0x68] sm:$0xff] 0.0
        %1916 = vst [vmem:[#allocation2 + $0x70] sm:$0xff] 0.0
        %1917 = vst [vmem:[#allocation2 + $0x78] sm:$0xff] 0.0
        %1918 = vst [vmem:[#allocation2 + $0x80] sm:$0xff] 0.0
        %1919 = vst [vmem:[#allocation2 + $0x88] sm:$0xff] 0.0
        %1920 = vst [vmem:[#allocation2 + $0x90] sm:$0xff] 0.0
        %1921 = vst [vmem:[#allocation2 + $0x98] sm:$0xff] 0.0
        %1922 = vst [vmem:[#allocation2 + $0xa0] sm:$0xff] 0.0
        %1923 = vst [vmem:[#allocation2 + $0xa8] sm:$0xff] 0.0
        %1924 = vst [vmem:[#allocation2 + $0xb0] sm:$0xff] 0.0
        %1925 = vst [vmem:[#allocation2 + $0xb8] sm:$0xff] 0.0
        %vm1926 = vcmask 523264
        %1927 = vst.msk [vmem:[#allocation2 + $0x8] sm:$0xff] %vm1926, %v1895
        %v1928 = vand.u32 %v1098, 7
        %vm1929 = vcmp.ge.s32.totalorder %v1928, 1
        %v1930 = vsel %vm1929, 1, 0
        %v1931 = vcvt.s32.f32 %v1930
        %vm1932 = vcmp.le.s32.totalorder %v1928, 6
        %v1933 = vsel %vm1932, 1, 0
        %v1934 = vcvt.s32.f32 %v1933
        %v1935 = vld [vmem:[#allocation2] sm:$0xff]
        %v1936 = vld [vmem:[#allocation2 + $0x8] sm:$0xff]
        %1938 = vrot.lane.b32.xlu0 %v1931, 119
        %v1939 = vpop.permute.xlu0 %1938
        %v1941 = vmul.f32 %v1935, %v1939
        %v1942 = vmul.f32 %v1936, %v1939
        %1945 = vrot.lane.b32.xlu0 %v1941, 9
        %v1946 = vpop.permute.xlu0 %1945
        %1947 = vrot.lane.b32.xlu0 %v1942, 9
        %v1948 = vpop.permute.xlu0 %1947
        %vm1949 = vcmask 72704
        %v1950 = vsel %vm1949, %v1946, %v1948
        %1952 = vst.msk [vmem:[#allocation3] sm:$0xff] %vm1926, %v1950
        %v1953 = vld [vmem:[#allocation2] sm:$0xff]
        %v1954 = vld [vmem:[#allocation2 + $0x8] sm:$0xff]
        %1957 = vrot.lane.b32.xlu0 %v1953, 8
        %v1958 = vpop.permute.xlu0 %1957
        %1959 = vrot.lane.b32.xlu0 %v1954, 8
        %v1960 = vpop.permute.xlu0 %1959
        %vm1961 = vcmask 64512
        %v1962 = vsel %vm1961, %v1958, %v1960
        %1964 = vst.msk [vmem:[#allocation3 + $0x10] sm:$0xff] %vm1926, %v1962
        %v1965 = vld [vmem:[#allocation2] sm:$0xff]
        %v1966 = vld [vmem:[#allocation2 + $0x8] sm:$0xff]
        %1968 = vrot.lane.b32.xlu0 %v1934, 121
        %v1969 = vpop.permute.xlu0 %1968
        %v1971 = vmul.f32 %v1965, %v1969
        %v1972 = vmul.f32 %v1966, %v1969
        %1975 = vrot.lane.b32.xlu0 %v1971, 7
        %v1976 = vpop.permute.xlu0 %1975
        %1977 = vrot.lane.b32.xlu0 %v1972, 7
        %v1978 = vpop.permute.xlu0 %1977
        %vm1979 = vcmask 56320
        %v1980 = vsel %vm1979, %v1976, %v1978
        %1982 = vst.msk [vmem:[#allocation3 + $0x20] sm:$0xff] %vm1926, %v1980
        %v1983 = vld [vmem:[#allocation2] sm:$0xff]
        %v1984 = vld [vmem:[#allocation2 + $0x8] sm:$0xff]
        %1985 = vrot.lane.b32.xlu0 %v1931, 127
        %v1986 = vpop.permute.xlu0 %1985
        %v1988 = vmul.f32 %v1983, %v1986
        %v1989 = vmul.f32 %v1984, %v1986
        %1992 = vrot.lane.b32.xlu0 %v1988, 1
        %v1993 = vpop.permute.xlu0 %1992
        %1994 = vrot.lane.b32.xlu0 %v1989, 1
        %v1995 = vpop.permute.xlu0 %1994
        %v1996 = vsel %vm1223, %v1993, %v1995
        %1998 = vst.msk [vmem:[#allocation3 + $0x30] sm:$0xff] %vm1926, %v1996
        %v1999 = vld [vmem:[#allocation2 + $0x8] sm:$0xff]
        %2000 = vst.msk [vmem:[#allocation3 + $0x40] sm:$0xff] %vm1926, %v1999
        %v2001 = vld [vmem:[#allocation2 + $0x8] sm:$0xff]
        %2002 = vrot.lane.b32.xlu0 %v1934, 1
        %v2003 = vpop.permute.xlu0 %2002
        %v2005 = vmul.f32 %v2001, %v2003
        %2007 = vrot.lane.b32.xlu0 %v2005, 127
        %v2008 = vpop.permute.xlu0 %2007
        %2010 = vst.msk [vmem:[#allocation3 + $0x50] sm:$0xff] %vm1926, %v2008
        %v2011 = vld [vmem:[#allocation2 + $0x8] sm:$0xff]
        %2012 = vrot.lane.b32.xlu0 %v1931, 7
        %v2013 = vpop.permute.xlu0 %2012
        %v2015 = vmul.f32 %v2011, %v2013
        %2017 = vrot.lane.b32.xlu0 %v2015, 121
        %v2018 = vpop.permute.xlu0 %2017
        %2020 = vst.msk [vmem:[#allocation3 + $0x60] sm:$0xff] %vm1926, %v2018
        %v2021 = vld [vmem:[#allocation2 + $0x8] sm:$0xff]
        %2023 = vrot.lane.b32.xlu0 %v2021, 120
        %v2024 = vpop.permute.xlu0 %2023
        %2026 = vst.msk [vmem:[#allocation3 + $0x70] sm:$0xff] %vm1926, %v2024
        %v2027 = vld [vmem:[#allocation2 + $0x8] sm:$0xff]
        %2028 = vrot.lane.b32.xlu0 %v1934, 9
        %v2029 = vpop.permute.xlu0 %2028
        %v2031 = vmul.f32 %v2027, %v2029
        %2033 = vrot.lane.b32.xlu0 %v2031, 119
        %v2034 = vpop.permute.xlu0 %2033
        %2036 = vst.msk [vmem:[#allocation3 + $0x80] sm:$0xff] %vm1926, %v2034
        %v2037 = vld [vmem:[#allocation3] sm:$0xff]
        %v2038 = vld [vmem:[#allocation3 + $0x10] sm:$0xff]
        %v2039 = vld [vmem:[#allocation3 + $0x20] sm:$0xff]
        %v2040 = vld [vmem:[#allocation3 + $0x30] sm:$0xff]
        %v2041 = vld [vmem:[#allocation3 + $0x40] sm:$0xff]
        %v2042 = vld [vmem:[#allocation3 + $0x50] sm:$0xff]
        %v2043 = vld [vmem:[#allocation3 + $0x60] sm:$0xff]
        %v2044 = vld [vmem:[#allocation3 + $0x70] sm:$0xff]
        %v2045 = vld [vmem:[#allocation3 + $0x80] sm:$0xff]
        %2047 = vset.pattern.permute.xlu0 0
        %2048 = vperm.xlu0 %2047, %v1900
        %v2049 = vpop.permute.xlu0 %2048
        %2052 = vset.pattern.permute.xlu0 0
        %2053 = vperm.xlu0 %2052, %v1901
        %v2054 = vpop.permute.xlu0 %2053
        %v2057 = vsel %vm1363, %v1898, 0
        %v2060 = vsel %vm1363, %v1899, 0
        %2062 = vmatprep.subr.mxu0 0.0
        %2063 = vmatpush1.msra.mxu0 0.0
        %2064 = vmatprep.subr.mxu0 0.0
        %2065 = vmatpush1.msra.mxu0 0.0
        %2066 = vmatprep.subr.mxu0 0.0
        %2067 = vmatpush1.msra.mxu0 0.0
        %2068 = vmatprep.subr.mxu0 0.0
        %2069 = vmatpush1.msra.mxu0 0.0
        %2070 = vmatprep.subr.mxu0 0.0
        %2071 = vmatpush1.msra.mxu0 0.0
        %2072 = vmatprep.subr.mxu0 0.0
        %2073 = vmatpush1.msra.mxu0 0.0
        %2074 = vmatprep.subr.mxu0 0.0
        %2075 = vmatpush1.msra.mxu0 0.0
        %2076 = vmatprep.subr.mxu0 0.0
        %2077 = vmatpush1.msra.mxu0 %v2045
        %2078 = vmatprep.subr.mxu0 0.0
        %2079 = vmatpush1.msra.mxu0 %v2044
        %2080 = vmatprep.subr.mxu0 0.0
        %2081 = vmatpush1.msra.mxu0 %v2043
        %2082 = vmatprep.subr.mxu0 0.0
        %2083 = vmatpush1.msra.mxu0 %v2042
        %2084 = vmatprep.subr.mxu0 0.0
        %2085 = vmatpush1.msra.mxu0 %v2041
        %2086 = vmatprep.subr.mxu0 0.0
        %2087 = vmatpush1.msra.mxu0 %v2040
        %2088 = vmatprep.subr.mxu0 0.0
        %2089 = vmatpush1.msra.mxu0 %v2039
        %2090 = vmatprep.subr.mxu0 0.0
        %2091 = vmatpush1.msra.mxu0 %v2038
        %2092 = vmatprep.subr.mxu0 0.0
        %2093 = vmatpush1.msra.mxu0 %v2037
        %2094 = vmatprep.subr.mxu0 0.0
        %2095 = vmatpush2.msra.mxu0 0.0
        %2096 = vmatprep.subr.mxu0 0.0
        %2097 = vmatpush2.msra.mxu0 0.0
        %2098 = vmatprep.subr.mxu0 0.0
        %2099 = vmatpush2.msra.mxu0 0.0
        %2100 = vmatprep.subr.mxu0 0.0
        %2101 = vmatpush2.msra.mxu0 0.0
        %2102 = vmatprep.subr.mxu0 0.0
        %2103 = vmatpush2.msra.mxu0 0.0
        %2104 = vmatprep.subr.mxu0 0.0
        %2105 = vmatpush2.msra.mxu0 0.0
        %2106 = vmatprep.subr.mxu0 0.0
        %2107 = vmatpush2.msra.mxu0 0.0
        %2108 = vmatprep.subr.mxu0 0.0
        %2109 = vmatpush2.msra.mxu0 0.0
        %2110 = vmatprep.subr.mxu0 0.0
        %2111 = vmatpush2.msra.mxu0 0.0
        %2112 = vmatprep.subr.mxu0 0.0
        %2113 = vmatpush2.msra.mxu0 0.0
        %2114 = vmatprep.subr.mxu0 0.0
        %2115 = vmatpush2.msra.mxu0 0.0
        %2116 = vmatprep.subr.mxu0 0.0
        %2117 = vmatpush2.msra.mxu0 0.0
        %2118 = vmatprep.subr.mxu0 0.0
        %2119 = vmatpush2.msra.mxu0 0.0
        %2120 = vmatprep.subr.mxu0 0.0
        %2121 = vmatpush2.msra.mxu0 0.0
        %2122 = vmatprep.subr.mxu0 0.0
        %2123 = vmatpush2.msra.mxu0 0.0
        %2124 = vmatprep.subr.mxu0 0.0
        %2125 = vmatpush2.msra.mxu0 0.0
        %2126 = vmatprep.mubr.f32.mxu0 0.0
        %2127 = vmatmul.mubr.f32.gmra.mxu0 %v2057
        %v2128 = vpop.f32.mrf.mxu0
        %v2129 = vadd.f32 %v2049, %v2128
        %v2130 = vpop.f32.mrf.mxu0
        %2131 = vmatprep.mubr.f32.mxu0 0.0
        %2132 = vmatmul.mubr.f32.gmra.mxu0 %v2060
        %v2133 = vpop.f32.mrf.mxu0
        %v2134 = vadd.f32 %v2054, %v2133
        %v2135 = vpop.f32.mrf.mxu0
        %2136 = vdwg.mxu0
        %v2137 = vmax.f32 %v2129, 0.0
        %v2138 = vmax.f32 %v2134, 0.0
        %v2139 = vld [vmem:[#allocation8] sm:$0xff]
        %v2140 = vld [vmem:[#allocation8 + $0x8] sm:$0xff]
        %v2141 = vld [vmem:[#allocation8 + $0x10] sm:$0xff]
        %v2142 = vld [vmem:[#allocation8 + $0x18] sm:$0xff]
        %v2143 = vld [vmem:[%s8] sm:$0xff]
        %v2144 = vld [vmem:[%s8 + $0x8] sm:$0xff]
        %2145 = vst [vmem:[#allocation2] sm:$0xff] 0.0
        %2146 = vst [vmem:[#allocation2 + $0x8] sm:$0xff] 0.0
        %2147 = vst [vmem:[#allocation2 + $0x10] sm:$0xff] 0.0
        %2148 = vst [vmem:[#allocation2 + $0x18] sm:$0xff] 0.0
        %2149 = vst [vmem:[#allocation2 + $0x20] sm:$0xff] 0.0
        %2150 = vst [vmem:[#allocation2 + $0x28] sm:$0xff] 0.0
        %2151 = vst [vmem:[#allocation2 + $0x30] sm:$0xff] 0.0
        %2152 = vst [vmem:[#allocation2 + $0x38] sm:$0xff] 0.0
        %2153 = vst [vmem:[#allocation2 + $0x40] sm:$0xff] 0.0
        %2154 = vst [vmem:[#allocation2 + $0x48] sm:$0xff] 0.0
        %2155 = vst [vmem:[#allocation2 + $0x50] sm:$0xff] 0.0
        %2156 = vst [vmem:[#allocation2 + $0x58] sm:$0xff] 0.0
        %2157 = vst [vmem:[#allocation2 + $0x60] sm:$0xff] 0.0
        %2158 = vst [vmem:[#allocation2 + $0x68] sm:$0xff] 0.0
        %2159 = vst [vmem:[#allocation2 + $0x70] sm:$0xff] 0.0
        %2160 = vst [vmem:[#allocation2 + $0x78] sm:$0xff] 0.0
        %2161 = vst [vmem:[#allocation2 + $0x80] sm:$0xff] 0.0
        %2162 = vst [vmem:[#allocation2 + $0x88] sm:$0xff] 0.0
        %2163 = vst [vmem:[#allocation2 + $0x90] sm:$0xff] 0.0
        %2164 = vst [vmem:[#allocation2 + $0x98] sm:$0xff] 0.0
        %2165 = vst [vmem:[#allocation2 + $0xa0] sm:$0xff] 0.0
        %2166 = vst [vmem:[#allocation2 + $0xa8] sm:$0xff] 0.0
        %2167 = vst [vmem:[#allocation2 + $0xb0] sm:$0xff] 0.0
        %2168 = vst [vmem:[#allocation2 + $0xb8] sm:$0xff] 0.0
        %2169 = vst.msk [vmem:[#allocation2 + $0x8] sm:$0xff] %vm1926, %v2137
        %2170 = vst.msk [vmem:[#allocation2 + $0x28] sm:$0xff] %vm1926, %v2138
        %v2171 = vld [vmem:[#allocation2] sm:$0xff]
        %v2172 = vld [vmem:[#allocation2 + $0x8] sm:$0xff]
        %v2173 = vld [vmem:[#allocation2 + $0x20] sm:$0xff]
        %v2174 = vld [vmem:[#allocation2 + $0x28] sm:$0xff]
        %v2175 = vmul.f32 %v2171, %v1939
        %v2176 = vmul.f32 %v2172, %v1939
        %v2177 = vmul.f32 %v2173, %v1939
        %v2178 = vmul.f32 %v2174, %v1939
        %2183 = vrot.lane.b32.xlu0 %v2175, 9
        %v2184 = vpop.permute.xlu0 %2183
        %2185 = vrot.lane.b32.xlu0 %v2176, 9
        %v2186 = vpop.permute.xlu0 %2185
        %2187 = vrot.lane.b32.xlu0 %v2177, 9
        %v2188 = vpop.permute.xlu0 %2187
        %2189 = vrot.lane.b32.xlu0 %v2178, 9
        %v2190 = vpop.permute.xlu0 %2189
        %v2191 = vsel %vm1949, %v2184, %v2186
        %v2192 = vsel %vm1949, %v2188, %v2190
        %2195 = vst.msk [vmem:[#allocation3] sm:$0xff] %vm1926, %v2191
        %2196 = vst.msk [vmem:[#allocation3 + $0x10] sm:$0xff] %vm1926, %v2192
        %v2197 = vld [vmem:[#allocation2] sm:$0xff]
        %v2198 = vld [vmem:[#allocation2 + $0x8] sm:$0xff]
        %v2199 = vld [vmem:[#allocation2 + $0x20] sm:$0xff]
        %v2200 = vld [vmem:[#allocation2 + $0x28] sm:$0xff]
        %2205 = vrot.lane.b32.xlu0 %v2197, 8
        %v2206 = vpop.permute.xlu0 %2205
        %2207 = vrot.lane.b32.xlu0 %v2198, 8
        %v2208 = vpop.permute.xlu0 %2207
        %2209 = vrot.lane.b32.xlu0 %v2199, 8
        %v2210 = vpop.permute.xlu0 %2209
        %2211 = vrot.lane.b32.xlu0 %v2200, 8
        %v2212 = vpop.permute.xlu0 %2211
        %v2213 = vsel %vm1961, %v2206, %v2208
        %v2214 = vsel %vm1961, %v2210, %v2212
        %2217 = vst.msk [vmem:[#allocation3 + $0x20] sm:$0xff] %vm1926, %v2213
        %2218 = vst.msk [vmem:[#allocation3 + $0x30] sm:$0xff] %vm1926, %v2214
        %v2219 = vld [vmem:[#allocation2] sm:$0xff]
        %v2220 = vld [vmem:[#allocation2 + $0x8] sm:$0xff]
        %v2221 = vld [vmem:[#allocation2 + $0x20] sm:$0xff]
        %v2222 = vld [vmem:[#allocation2 + $0x28] sm:$0xff]
        %v2223 = vmul.f32 %v2219, %v1969
        %v2224 = vmul.f32 %v2220, %v1969
        %v2225 = vmul.f32 %v2221, %v1969
        %v2226 = vmul.f32 %v2222, %v1969
        %2231 = vrot.lane.b32.xlu0 %v2223, 7
        %v2232 = vpop.permute.xlu0 %2231
        %2233 = vrot.lane.b32.xlu0 %v2224, 7
        %v2234 = vpop.permute.xlu0 %2233
        %2235 = vrot.lane.b32.xlu0 %v2225, 7
        %v2236 = vpop.permute.xlu0 %2235
        %2237 = vrot.lane.b32.xlu0 %v2226, 7
        %v2238 = vpop.permute.xlu0 %2237
        %v2239 = vsel %vm1979, %v2232, %v2234
        %v2240 = vsel %vm1979, %v2236, %v2238
        %2243 = vst.msk [vmem:[#allocation3 + $0x40] sm:$0xff] %vm1926, %v2239
        %2244 = vst.msk [vmem:[#allocation3 + $0x50] sm:$0xff] %vm1926, %v2240
        %v2245 = vld [vmem:[#allocation2] sm:$0xff]
        %v2246 = vld [vmem:[#allocation2 + $0x8] sm:$0xff]
        %v2247 = vld [vmem:[#allocation2 + $0x20] sm:$0xff]
        %v2248 = vld [vmem:[#allocation2 + $0x28] sm:$0xff]
        %v2249 = vmul.f32 %v2245, %v1986
        %v2250 = vmul.f32 %v2246, %v1986
        %v2251 = vmul.f32 %v2247, %v1986
        %v2252 = vmul.f32 %v2248, %v1986
        %2257 = vrot.lane.b32.xlu0 %v2249, 1
        %v2258 = vpop.permute.xlu0 %2257
        %2259 = vrot.lane.b32.xlu0 %v2250, 1
        %v2260 = vpop.permute.xlu0 %2259
        %2261 = vrot.lane.b32.xlu0 %v2251, 1
        %v2262 = vpop.permute.xlu0 %2261
        %2263 = vrot.lane.b32.xlu0 %v2252, 1
        %v2264 = vpop.permute.xlu0 %2263
        %v2265 = vsel %vm1223, %v2258, %v2260
        %v2266 = vsel %vm1223, %v2262, %v2264
        %2269 = vst.msk [vmem:[#allocation3 + $0x60] sm:$0xff] %vm1926, %v2265
        %2270 = vst.msk [vmem:[#allocation3 + $0x70] sm:$0xff] %vm1926, %v2266
        %v2271 = vld [vmem:[#allocation2 + $0x8] sm:$0xff]
        %v2272 = vld [vmem:[#allocation2 + $0x28] sm:$0xff]
        %2273 = vst.msk [vmem:[#allocation3 + $0x80] sm:$0xff] %vm1926, %v2271
        %2274 = vst.msk [vmem:[#allocation3 + $0x90] sm:$0xff] %vm1926, %v2272
        %v2275 = vld [vmem:[#allocation2 + $0x8] sm:$0xff]
        %v2276 = vld [vmem:[#allocation2 + $0x28] sm:$0xff]
        %v2277 = vmul.f32 %v2275, %v2003
        %v2278 = vmul.f32 %v2276, %v2003
        %2281 = vrot.lane.b32.xlu0 %v2277, 127
        %v2282 = vpop.permute.xlu0 %2281
        %2283 = vrot.lane.b32.xlu0 %v2278, 127
        %v2284 = vpop.permute.xlu0 %2283
        %2287 = vst.msk [vmem:[#allocation3 + $0xa0] sm:$0xff] %vm1926, %v2282
        %2288 = vst.msk [vmem:[#allocation3 + $0xb0] sm:$0xff] %vm1926, %v2284
        %v2289 = vld [vmem:[#allocation2 + $0x8] sm:$0xff]
        %v2290 = vld [vmem:[#allocation2 + $0x28] sm:$0xff]
        %v2291 = vmul.f32 %v2289, %v2013
        %v2292 = vmul.f32 %v2290, %v2013
        %2295 = vrot.lane.b32.xlu0 %v2291, 121
        %v2296 = vpop.permute.xlu0 %2295
        %2297 = vrot.lane.b32.xlu0 %v2292, 121
        %v2298 = vpop.permute.xlu0 %2297
        %2301 = vst.msk [vmem:[#allocation3 + $0xc0] sm:$0xff] %vm1926, %v2296
        %2302 = vst.msk [vmem:[#allocation3 + $0xd0] sm:$0xff] %vm1926, %v2298
        %v2303 = vld [vmem:[#allocation2 + $0x8] sm:$0xff]
        %v2304 = vld [vmem:[#allocation2 + $0x28] sm:$0xff]
        %2307 = vrot.lane.b32.xlu0 %v2303, 120
        %v2308 = vpop.permute.xlu0 %2307
        %2309 = vrot.lane.b32.xlu0 %v2304, 120
        %v2310 = vpop.permute.xlu0 %2309
        %2313 = vst.msk [vmem:[#allocation3 + $0xe0] sm:$0xff] %vm1926, %v2308
        %2314 = vst.msk [vmem:[#allocation3 + $0xf0] sm:$0xff] %vm1926, %v2310
        %v2315 = vld [vmem:[#allocation2 + $0x8] sm:$0xff]
        %v2316 = vld [vmem:[#allocation2 + $0x28] sm:$0xff]
        %v2317 = vmul.f32 %v2315, %v2029
        %v2318 = vmul.f32 %v2316, %v2029
        %2321 = vrot.lane.b32.xlu0 %v2317, 119
        %v2322 = vpop.permute.xlu0 %2321
        %2323 = vrot.lane.b32.xlu0 %v2318, 119
        %v2324 = vpop.permute.xlu0 %2323
        %2327 = vst.msk [vmem:[#allocation3 + $0x100] sm:$0xff] %vm1926, %v2322
        %2328 = vst.msk [vmem:[#allocation3 + $0x110] sm:$0xff] %vm1926, %v2324
        %v2329 = vld [vmem:[#allocation3] sm:$0xff]
        %v2330 = vld [vmem:[#allocation3 + $0x10] sm:$0xff]
        %v2331 = vld [vmem:[#allocation3 + $0x20] sm:$0xff]
        %v2332 = vld [vmem:[#allocation3 + $0x30] sm:$0xff]
        %v2333 = vld [vmem:[#allocation3 + $0x40] sm:$0xff]
        %v2334 = vld [vmem:[#allocation3 + $0x50] sm:$0xff]
        %v2335 = vld [vmem:[#allocation3 + $0x60] sm:$0xff]
        %v2336 = vld [vmem:[#allocation3 + $0x70] sm:$0xff]
        %v2337 = vld [vmem:[#allocation3 + $0x80] sm:$0xff]
        %v2338 = vld [vmem:[#allocation3 + $0x90] sm:$0xff]
        %v2339 = vld [vmem:[#allocation3 + $0xa0] sm:$0xff]
        %v2340 = vld [vmem:[#allocation3 + $0xb0] sm:$0xff]
        %v2341 = vld [vmem:[#allocation3 + $0xc0] sm:$0xff]
        %v2342 = vld [vmem:[#allocation3 + $0xd0] sm:$0xff]
        %v2343 = vld [vmem:[#allocation3 + $0xe0] sm:$0xff]
        %v2344 = vld [vmem:[#allocation3 + $0xf0] sm:$0xff]
        %v2345 = vld [vmem:[#allocation3 + $0x100] sm:$0xff]
        %v2346 = vld [vmem:[#allocation3 + $0x110] sm:$0xff]
        %2348 = vset.pattern.permute.xlu0 0
        %2349 = vperm.xlu0 %2348, %v2143
        %v2350 = vpop.permute.xlu0 %2349
        %2353 = vset.pattern.permute.xlu0 0
        %2354 = vperm.xlu0 %2353, %v2144
        %v2355 = vpop.permute.xlu0 %2354
        %v2358 = vsel %vm1159, %v2140, 0
        %v2361 = vsel %vm1159, %v2142, 0
        %2363 = vmatprep.subr.mxu0 0.0
        %2364 = vmatpush1.msra.mxu0 %v2344
        %2365 = vmatprep.subr.mxu0 0.0
        %2366 = vmatpush1.msra.mxu0 %v2343
        %2367 = vmatprep.subr.mxu0 0.0
        %2368 = vmatpush1.msra.mxu0 %v2342
        %2369 = vmatprep.subr.mxu0 0.0
        %2370 = vmatpush1.msra.mxu0 %v2341
        %2371 = vmatprep.subr.mxu0 0.0
        %2372 = vmatpush1.msra.mxu0 %v2340
        %2373 = vmatprep.subr.mxu0 0.0
        %2374 = vmatpush1.msra.mxu0 %v2339
        %2375 = vmatprep.subr.mxu0 0.0
        %2376 = vmatpush1.msra.mxu0 %v2338
        %2377 = vmatprep.subr.mxu0 0.0
        %2378 = vmatpush1.msra.mxu0 %v2337
        %2379 = vmatprep.subr.mxu0 0.0
        %2380 = vmatpush1.msra.mxu0 %v2336
        %2381 = vmatprep.subr.mxu0 0.0
        %2382 = vmatpush1.msra.mxu0 %v2335
        %2383 = vmatprep.subr.mxu0 0.0
        %2384 = vmatpush1.msra.mxu0 %v2334
        %2385 = vmatprep.subr.mxu0 0.0
        %2386 = vmatpush1.msra.mxu0 %v2333
        %2387 = vmatprep.subr.mxu0 0.0
        %2388 = vmatpush1.msra.mxu0 %v2332
        %2389 = vmatprep.subr.mxu0 0.0
        %2390 = vmatpush1.msra.mxu0 %v2331
        %2391 = vmatprep.subr.mxu0 0.0
        %2392 = vmatpush1.msra.mxu0 %v2330
        %2393 = vmatprep.subr.mxu0 0.0
        %2394 = vmatpush1.msra.mxu0 %v2329
        %2395 = vmatprep.subr.mxu0 0.0
        %2396 = vmatpush2.msra.mxu0 0.0
        %2397 = vmatprep.subr.mxu0 0.0
        %2398 = vmatpush2.msra.mxu0 0.0
        %2399 = vmatprep.subr.mxu0 0.0
        %2400 = vmatpush2.msra.mxu0 0.0
        %2401 = vmatprep.subr.mxu0 0.0
        %2402 = vmatpush2.msra.mxu0 0.0
        %2403 = vmatprep.subr.mxu0 0.0
        %2404 = vmatpush2.msra.mxu0 0.0
        %2405 = vmatprep.subr.mxu0 0.0
        %2406 = vmatpush2.msra.mxu0 0.0
        %2407 = vmatprep.subr.mxu0 0.0
        %2408 = vmatpush2.msra.mxu0 0.0
        %2409 = vmatprep.subr.mxu0 0.0
        %2410 = vmatpush2.msra.mxu0 0.0
        %2411 = vmatprep.subr.mxu0 0.0
        %2412 = vmatpush2.msra.mxu0 0.0
        %2413 = vmatprep.subr.mxu0 0.0
        %2414 = vmatpush2.msra.mxu0 0.0
        %2415 = vmatprep.subr.mxu0 0.0
        %2416 = vmatpush2.msra.mxu0 0.0
        %2417 = vmatprep.subr.mxu0 0.0
        %2418 = vmatpush2.msra.mxu0 0.0
        %2419 = vmatprep.subr.mxu0 0.0
        %2420 = vmatpush2.msra.mxu0 0.0
        %2421 = vmatprep.subr.mxu0 0.0
        %2422 = vmatpush2.msra.mxu0 0.0
        %2423 = vmatprep.subr.mxu0 0.0
        %2424 = vmatpush2.msra.mxu0 %v2346
        %2425 = vmatprep.subr.mxu0 0.0
        %2426 = vmatpush2.msra.mxu0 %v2345
        %2427 = vmatprep.mubr.f32.mxu0 %v2358
        %2428 = vmatmul.mubr.f32.gmra.mxu0 %v2139
        %v2429 = vpop.f32.mrf.mxu0
        %v2430 = vadd.f32 %v2350, %v2429
        %v2431 = vpop.f32.mrf.mxu0
        %2432 = vmatprep.mubr.f32.mxu0 %v2361
        %2433 = vmatmul.mubr.f32.gmra.mxu0 %v2141
        %v2434 = vpop.f32.mrf.mxu0
        %v2435 = vadd.f32 %v2355, %v2434
        %v2436 = vpop.f32.mrf.mxu0
        %2437 = vdwg.mxu0
        %v2438 = vmax.f32 %v2430, 0.0
        %v2439 = vmax.f32 %v2435, 0.0
        %v2440 = vld [vmem:[%s24] sm:$0xff]
        %v2441 = vld [vmem:[%s24 + $0x8] sm:$0xff]
        %v2442 = vld [vmem:[%s24 + $0x10] sm:$0xff]
        %v2443 = vld [vmem:[%s24 + $0x18] sm:$0xff]
        %v2444 = vld [vmem:[%s24 + $0x20] sm:$0xff]
        %v2445 = vld [vmem:[%s24 + $0x28] sm:$0xff]
        %v2446 = vld [vmem:[%s24 + $0x30] sm:$0xff]
        %v2447 = vld [vmem:[%s24 + $0x38] sm:$0xff]
        %2448 = vst [vmem:[#allocation2] sm:$0xff] 0.0
        %2449 = vst [vmem:[#allocation2 + $0x8] sm:$0xff] 0.0
        %2450 = vst [vmem:[#allocation2 + $0x10] sm:$0xff] 0.0
        %2451 = vst [vmem:[#allocation2 + $0x18] sm:$0xff] 0.0
        %2452 = vst [vmem:[#allocation2 + $0x20] sm:$0xff] 0.0
        %2453 = vst [vmem:[#allocation2 + $0x28] sm:$0xff] 0.0
        %2454 = vst [vmem:[#allocation2 + $0x30] sm:$0xff] 0.0
        %2455 = vst [vmem:[#allocation2 + $0x38] sm:$0xff] 0.0
        %2456 = vst [vmem:[#allocation2 + $0x40] sm:$0xff] 0.0
        %2457 = vst [vmem:[#allocation2 + $0x48] sm:$0xff] 0.0
        %2458 = vst [vmem:[#allocation2 + $0x50] sm:$0xff] 0.0
        %2459 = vst [vmem:[#allocation2 + $0x58] sm:$0xff] 0.0
        %2460 = vst [vmem:[#allocation2 + $0x60] sm:$0xff] 0.0
        %2461 = vst [vmem:[#allocation2 + $0x68] sm:$0xff] 0.0
        %2462 = vst [vmem:[#allocation2 + $0x70] sm:$0xff] 0.0
        %2463 = vst [vmem:[#allocation2 + $0x78] sm:$0xff] 0.0
        %2464 = vst [vmem:[#allocation2 + $0x80] sm:$0xff] 0.0
        %2465 = vst [vmem:[#allocation2 + $0x88] sm:$0xff] 0.0
        %2466 = vst [vmem:[#allocation2 + $0x90] sm:$0xff] 0.0
        %2467 = vst [vmem:[#allocation2 + $0x98] sm:$0xff] 0.0
        %2468 = vst [vmem:[#allocation2 + $0xa0] sm:$0xff] 0.0
        %2469 = vst [vmem:[#allocation2 + $0xa8] sm:$0xff] 0.0
        %2470 = vst [vmem:[#allocation2 + $0xb0] sm:$0xff] 0.0
        %2471 = vst [vmem:[#allocation2 + $0xb8] sm:$0xff] 0.0
        %2472 = vst.msk [vmem:[#allocation2 + $0x8] sm:$0xff] %vm1926, %v2438
        %2473 = vst.msk [vmem:[#allocation2 + $0x28] sm:$0xff] %vm1926, %v2439
        %v2474 = vld [vmem:[#allocation2 + $0x8] sm:$0xff]
        %v2475 = vld [vmem:[#allocation2 + $0x28] sm:$0xff]
        %2478 = vrot.lane.b32.xlu0 %v2474, 127
        %v2479 = vpop.permute.xlu0 %2478
        %2480 = vrot.lane.b32.xlu0 %v2475, 127
        %v2481 = vpop.permute.xlu0 %2480
        %v2484 = vmax.f32 %v2438, %v2479
        %v2485 = vmax.f32 %v2439, %v2481
        %v2486 = vmax.f32 %v2474, %v2479
        %v2487 = vmax.f32 %v2475, %v2481
        %2490 = vrot.lane.b32.xlu0 %v2486, 120
        %v2491 = vpop.permute.xlu0 %2490
        %2492 = vrot.lane.b32.xlu0 %v2487, 120
        %v2493 = vpop.permute.xlu0 %2492
        %v2496 = vmax.f32 %v2484, %v2491
        %v2497 = vmax.f32 %v2485, %v2493
        %v2499 = vsel %vm1926, %v2496, 0
        %v2502 = vsel %vm1926, %v2497, 0
        %2504 = vmatprep.subr.mxu0 0.0
        %2505 = vmatpush1.msra.mxu0 0.0
        %2506 = vmatprep.subr.mxu0 0.0
        %2507 = vmatpush1.msra.mxu0 0.0
        %2508 = vmatprep.subr.mxu0 0.0
        %2509 = vmatpush1.msra.mxu0 0.0
        %2510 = vmatprep.subr.mxu0 0.0
        %2511 = vmatpush1.msra.mxu0 0.0
        %2512 = vmatprep.subr.mxu0 0.0
        %2513 = vmatpush1.msra.mxu0 0.0
        %2514 = vmatprep.subr.mxu0 0.0
        %2515 = vmatpush1.msra.mxu0 0.0
        %2516 = vmatprep.subr.mxu0 0.0
        %2517 = vmatpush1.msra.mxu0 0.0
        %2518 = vmatprep.subr.mxu0 0.0
        %2519 = vmatpush1.msra.mxu0 0.0
        %2520 = vmatprep.subr.mxu0 0.0
        %2521 = vmatpush1.msra.mxu0 %v2447
        %2522 = vmatprep.subr.mxu0 0.0
        %2523 = vmatpush1.msra.mxu0 %v2446
        %2524 = vmatprep.subr.mxu0 0.0
        %2525 = vmatpush1.msra.mxu0 %v2445
        %2526 = vmatprep.subr.mxu0 0.0
        %2527 = vmatpush1.msra.mxu0 %v2444
        %2528 = vmatprep.subr.mxu0 0.0
        %2529 = vmatpush1.msra.mxu0 %v2443
        %2530 = vmatprep.subr.mxu0 0.0
        %2531 = vmatpush1.msra.mxu0 %v2442
        %2532 = vmatprep.subr.mxu0 0.0
        %2533 = vmatpush1.msra.mxu0 %v2441
        %2534 = vmatprep.subr.mxu0 0.0
        %2535 = vmatpush1.msra.mxu0 %v2440
        %2536 = vmatprep.subr.mxu0 0.0
        %2537 = vmatpush2.msra.mxu0 0.0
        %2538 = vmatprep.subr.mxu0 0.0
        %2539 = vmatpush2.msra.mxu0 0.0
        %2540 = vmatprep.subr.mxu0 0.0
        %2541 = vmatpush2.msra.mxu0 0.0
        %2542 = vmatprep.subr.mxu0 0.0
        %2543 = vmatpush2.msra.mxu0 0.0
        %2544 = vmatprep.subr.mxu0 0.0
        %2545 = vmatpush2.msra.mxu0 0.0
        %2546 = vmatprep.subr.mxu0 0.0
        %2547 = vmatpush2.msra.mxu0 0.0
        %2548 = vmatprep.subr.mxu0 0.0
        %2549 = vmatpush2.msra.mxu0 0.0
        %2550 = vmatprep.subr.mxu0 0.0
        %2551 = vmatpush2.msra.mxu0 0.0
        %2552 = vmatprep.subr.mxu0 0.0
        %2553 = vmatpush2.msra.mxu0 0.0
        %2554 = vmatprep.subr.mxu0 0.0
        %2555 = vmatpush2.msra.mxu0 0.0
        %2556 = vmatprep.subr.mxu0 0.0
        %2557 = vmatpush2.msra.mxu0 0.0
        %2558 = vmatprep.subr.mxu0 0.0
        %2559 = vmatpush2.msra.mxu0 0.0
        %2560 = vmatprep.subr.mxu0 0.0
        %2561 = vmatpush2.msra.mxu0 0.0
        %2562 = vmatprep.subr.mxu0 0.0
        %2563 = vmatpush2.msra.mxu0 0.0
        %2564 = vmatprep.subr.mxu0 0.0
        %2565 = vmatpush2.msra.mxu0 0.0
        %2566 = vmatprep.subr.mxu0 0.0
        %2567 = vmatpush2.msra.mxu0 0.0
        %2568 = vmatprep.mubr.f32.mxu0 0.0
        %2569 = vmatmul.mubr.f32.gmra.mxu0 %v2499
        %v2570 = vpop.f32.mrf.mxu0
        %v2571 = vadd.f32 0.0, %v2570
        %v2572 = vpop.f32.mrf.mxu0
        %2573 = vmatprep.mubr.f32.mxu0 0.0
        %2574 = vmatmul.mubr.f32.gmra.mxu0 %v2502
        %v2575 = vpop.f32.mrf.mxu0
        %v2576 = vadd.f32 0.0, %v2575
        %v2577 = vpop.f32.mrf.mxu0
        %2578 = vdwg.mxu0
        %v2579 = vld [vmem:[#allocation9] sm:$0xff]
        %v2580 = vld [vmem:[#allocation9 + $0x8] sm:$0xff]
        %v2581 = vld [vmem:[#allocation9 + $0x10] sm:$0xff]
        %v2582 = vld [vmem:[#allocation9 + $0x18] sm:$0xff]
        %v2583 = vld [vmem:[#allocation9 + $0x20] sm:$0xff]
        %v2584 = vld [vmem:[#allocation9 + $0x28] sm:$0xff]
        %v2585 = vld [vmem:[#allocation9 + $0x30] sm:$0xff]
        %v2586 = vld [vmem:[#allocation9 + $0x38] sm:$0xff]
        %v2587 = vld [vmem:[%s10] sm:$0xff]
        %v2588 = vld [vmem:[%s10 + $0x8] sm:$0xff]
        %v2589 = vld [vmem:[%s10 + $0x10] sm:$0xff]
        %v2590 = vld [vmem:[%s10 + $0x18] sm:$0xff]
        %2591 = vst [vmem:[#allocation2] sm:$0xff] 0.0
        %2592 = vst [vmem:[#allocation2 + $0x8] sm:$0xff] 0.0
        %2593 = vst [vmem:[#allocation2 + $0x10] sm:$0xff] 0.0
        %2594 = vst [vmem:[#allocation2 + $0x18] sm:$0xff] 0.0
        %2595 = vst [vmem:[#allocation2 + $0x20] sm:$0xff] 0.0
        %2596 = vst [vmem:[#allocation2 + $0x28] sm:$0xff] 0.0
        %2597 = vst [vmem:[#allocation2 + $0x30] sm:$0xff] 0.0
        %2598 = vst [vmem:[#allocation2 + $0x38] sm:$0xff] 0.0
        %2599 = vst [vmem:[#allocation2 + $0x40] sm:$0xff] 0.0
        %2600 = vst [vmem:[#allocation2 + $0x48] sm:$0xff] 0.0
        %2601 = vst [vmem:[#allocation2 + $0x50] sm:$0xff] 0.0
        %2602 = vst [vmem:[#allocation2 + $0x58] sm:$0xff] 0.0
        %2603 = vst [vmem:[#allocation2 + $0x60] sm:$0xff] 0.0
        %2604 = vst [vmem:[#allocation2 + $0x68] sm:$0xff] 0.0
        %2605 = vst [vmem:[#allocation2 + $0x70] sm:$0xff] 0.0
        %2606 = vst [vmem:[#allocation2 + $0x78] sm:$0xff] 0.0
        %2607 = vst [vmem:[#allocation2 + $0x80] sm:$0xff] 0.0
        %2608 = vst [vmem:[#allocation2 + $0x88] sm:$0xff] 0.0
        %2609 = vst [vmem:[#allocation2 + $0x90] sm:$0xff] 0.0
        %2610 = vst [vmem:[#allocation2 + $0x98] sm:$0xff] 0.0
        %2611 = vst [vmem:[#allocation2 + $0xa0] sm:$0xff] 0.0
        %2612 = vst [vmem:[#allocation2 + $0xa8] sm:$0xff] 0.0
        %2613 = vst [vmem:[#allocation2 + $0xb0] sm:$0xff] 0.0
        %2614 = vst [vmem:[#allocation2 + $0xb8] sm:$0xff] 0.0
        %2615 = vst.msk [vmem:[#allocation2 + $0x8] sm:$0xff] %vm1159, %v2571
        %2616 = vst.msk [vmem:[#allocation2 + $0x28] sm:$0xff] %vm1159, %v2576
        %v2617 = vand.u32 %v1098, 3
        %vm2618 = vcmp.ge.s32.totalorder %v2617, 1
        %v2619 = vsel %vm2618, 1, 0
        %v2620 = vcvt.s32.f32 %v2619
        %vm2621 = vcmp.le.s32.totalorder %v2617, 2
        %v2622 = vsel %vm2621, 1, 0
        %v2623 = vcvt.s32.f32 %v2622
        %v2624 = vld [vmem:[#allocation2] sm:$0xff]
        %v2625 = vld [vmem:[#allocation2 + $0x8] sm:$0xff]
        %v2626 = vld [vmem:[#allocation2 + $0x20] sm:$0xff]
        %v2627 = vld [vmem:[#allocation2 + $0x28] sm:$0xff]
        %2629 = vrot.lane.b32.xlu0 %v2620, 123
        %v2630 = vpop.permute.xlu0 %2629
        %v2632 = vmul.f32 %v2624, %v2630
        %v2633 = vmul.f32 %v2625, %v2630
        %v2634 = vmul.f32 %v2626, %v2630
        %v2635 = vmul.f32 %v2627, %v2630
        %2640 = vrot.lane.b32.xlu0 %v2632, 5
        %v2641 = vpop.permute.xlu0 %2640
        %2642 = vrot.lane.b32.xlu0 %v2633, 5
        %v2643 = vpop.permute.xlu0 %2642
        %2644 = vrot.lane.b32.xlu0 %v2634, 5
        %v2645 = vpop.permute.xlu0 %2644
        %2646 = vrot.lane.b32.xlu0 %v2635, 5
        %v2647 = vpop.permute.xlu0 %2646
        %vm2648 = vcmask 39936
        %v2649 = vsel %vm2648, %v2641, %v2643
        %v2650 = vsel %vm2648, %v2645, %v2647
        %2653 = vst.msk [vmem:[#allocation3] sm:$0xff] %vm1159, %v2649
        %2654 = vst.msk [vmem:[#allocation3 + $0x10] sm:$0xff] %vm1159, %v2650
        %v2655 = vld [vmem:[#allocation2] sm:$0xff]
        %v2656 = vld [vmem:[#allocation2 + $0x8] sm:$0xff]
        %v2657 = vld [vmem:[#allocation2 + $0x20] sm:$0xff]
        %v2658 = vld [vmem:[#allocation2 + $0x28] sm:$0xff]
        %2663 = vrot.lane.b32.xlu0 %v2655, 4
        %v2664 = vpop.permute.xlu0 %2663
        %2665 = vrot.lane.b32.xlu0 %v2656, 4
        %v2666 = vpop.permute.xlu0 %2665
        %2667 = vrot.lane.b32.xlu0 %v2657, 4
        %v2668 = vpop.permute.xlu0 %2667
        %2669 = vrot.lane.b32.xlu0 %v2658, 4
        %v2670 = vpop.permute.xlu0 %2669
        %vm2671 = vcmask 31744
        %v2672 = vsel %vm2671, %v2664, %v2666
        %v2673 = vsel %vm2671, %v2668, %v2670
        %2676 = vst.msk [vmem:[#allocation3 + $0x20] sm:$0xff] %vm1159, %v2672
        %2677 = vst.msk [vmem:[#allocation3 + $0x30] sm:$0xff] %vm1159, %v2673
        %v2678 = vld [vmem:[#allocation2] sm:$0xff]
        %v2679 = vld [vmem:[#allocation2 + $0x8] sm:$0xff]
        %v2680 = vld [vmem:[#allocation2 + $0x20] sm:$0xff]
        %v2681 = vld [vmem:[#allocation2 + $0x28] sm:$0xff]
        %2683 = vrot.lane.b32.xlu0 %v2623, 125
        %v2684 = vpop.permute.xlu0 %2683
        %v2686 = vmul.f32 %v2678, %v2684
        %v2687 = vmul.f32 %v2679, %v2684
        %v2688 = vmul.f32 %v2680, %v2684
        %v2689 = vmul.f32 %v2681, %v2684
        %2694 = vrot.lane.b32.xlu0 %v2686, 3
        %v2695 = vpop.permute.xlu0 %2694
        %2696 = vrot.lane.b32.xlu0 %v2687, 3
        %v2697 = vpop.permute.xlu0 %2696
        %2698 = vrot.lane.b32.xlu0 %v2688, 3
        %v2699 = vpop.permute.xlu0 %2698
        %2700 = vrot.lane.b32.xlu0 %v2689, 3
        %v2701 = vpop.permute.xlu0 %2700
        %vm2702 = vcmask 23552
        %v2703 = vsel %vm2702, %v2695, %v2697
        %v2704 = vsel %vm2702, %v2699, %v2701
        %2707 = vst.msk [vmem:[#allocation3 + $0x40] sm:$0xff] %vm1159, %v2703
        %2708 = vst.msk [vmem:[#allocation3 + $0x50] sm:$0xff] %vm1159, %v2704
        %v2709 = vld [vmem:[#allocation2] sm:$0xff]
        %v2710 = vld [vmem:[#allocation2 + $0x8] sm:$0xff]
        %v2711 = vld [vmem:[#allocation2 + $0x20] sm:$0xff]
        %v2712 = vld [vmem:[#allocation2 + $0x28] sm:$0xff]
        %2713 = vrot.lane.b32.xlu0 %v2620, 127
        %v2714 = vpop.permute.xlu0 %2713
        %v2716 = vmul.f32 %v2709, %v2714
        %v2717 = vmul.f32 %v2710, %v2714
        %v2718 = vmul.f32 %v2711, %v2714
        %v2719 = vmul.f32 %v2712, %v2714
        %2724 = vrot.lane.b32.xlu0 %v2716, 1
        %v2725 = vpop.permute.xlu0 %2724
        %2726 = vrot.lane.b32.xlu0 %v2717, 1
        %v2727 = vpop.permute.xlu0 %2726
        %2728 = vrot.lane.b32.xlu0 %v2718, 1
        %v2729 = vpop.permute.xlu0 %2728
        %2730 = vrot.lane.b32.xlu0 %v2719, 1
        %v2731 = vpop.permute.xlu0 %2730
        %v2732 = vsel %vm1223, %v2725, %v2727
        %v2733 = vsel %vm1223, %v2729, %v2731
        %2736 = vst.msk [vmem:[#allocation3 + $0x60] sm:$0xff] %vm1159, %v2732
        %2737 = vst.msk [vmem:[#allocation3 + $0x70] sm:$0xff] %vm1159, %v2733
        %v2738 = vld [vmem:[#allocation2 + $0x8] sm:$0xff]
        %v2739 = vld [vmem:[#allocation2 + $0x28] sm:$0xff]
        %2740 = vst.msk [vmem:[#allocation3 + $0x80] sm:$0xff] %vm1159, %v2738
        %2741 = vst.msk [vmem:[#allocation3 + $0x90] sm:$0xff] %vm1159, %v2739
        %v2742 = vld [vmem:[#allocation2 + $0x8] sm:$0xff]
        %v2743 = vld [vmem:[#allocation2 + $0x28] sm:$0xff]
        %2744 = vrot.lane.b32.xlu0 %v2623, 1
        %v2745 = vpop.permute.xlu0 %2744
        %v2747 = vmul.f32 %v2742, %v2745
        %v2748 = vmul.f32 %v2743, %v2745
        %2751 = vrot.lane.b32.xlu0 %v2747, 127
        %v2752 = vpop.permute.xlu0 %2751
        %2753 = vrot.lane.b32.xlu0 %v2748, 127
        %v2754 = vpop.permute.xlu0 %2753
        %2757 = vst.msk [vmem:[#allocation3 + $0xa0] sm:$0xff] %vm1159, %v2752
        %2758 = vst.msk [vmem:[#allocation3 + $0xb0] sm:$0xff] %vm1159, %v2754
        %v2759 = vld [vmem:[#allocation2 + $0x8] sm:$0xff]
        %v2760 = vld [vmem:[#allocation2 + $0x28] sm:$0xff]
        %2761 = vrot.lane.b32.xlu0 %v2620, 3
        %v2762 = vpop.permute.xlu0 %2761
        %v2764 = vmul.f32 %v2759, %v2762
        %v2765 = vmul.f32 %v2760, %v2762
        %2768 = vrot.lane.b32.xlu0 %v2764, 125
        %v2769 = vpop.permute.xlu0 %2768
        %2770 = vrot.lane.b32.xlu0 %v2765, 125
        %v2771 = vpop.permute.xlu0 %2770
        %2774 = vst.msk [vmem:[#allocation3 + $0xc0] sm:$0xff] %vm1159, %v2769
        %2775 = vst.msk [vmem:[#allocation3 + $0xd0] sm:$0xff] %vm1159, %v2771
        %v2776 = vld [vmem:[#allocation2 + $0x8] sm:$0xff]
        %v2777 = vld [vmem:[#allocation2 + $0x28] sm:$0xff]
        %2780 = vrot.lane.b32.xlu0 %v2776, 124
        %v2781 = vpop.permute.xlu0 %2780
        %2782 = vrot.lane.b32.xlu0 %v2777, 124
        %v2783 = vpop.permute.xlu0 %2782
        %2786 = vst.msk [vmem:[#allocation3 + $0xe0] sm:$0xff] %vm1159, %v2781
        %2787 = vst.msk [vmem:[#allocation3 + $0xf0] sm:$0xff] %vm1159, %v2783
        %v2788 = vld [vmem:[#allocation2 + $0x8] sm:$0xff]
        %v2789 = vld [vmem:[#allocation2 + $0x28] sm:$0xff]
        %2790 = vrot.lane.b32.xlu0 %v2623, 5
        %v2791 = vpop.permute.xlu0 %2790
        %v2793 = vmul.f32 %v2788, %v2791
        %v2794 = vmul.f32 %v2789, %v2791
        %2797 = vrot.lane.b32.xlu0 %v2793, 123
        %v2798 = vpop.permute.xlu0 %2797
        %2799 = vrot.lane.b32.xlu0 %v2794, 123
        %v2800 = vpop.permute.xlu0 %2799
        %2803 = vst.msk [vmem:[#allocation3 + $0x100] sm:$0xff] %vm1159, %v2798
        %2804 = vst.msk [vmem:[#allocation3 + $0x110] sm:$0xff] %vm1159, %v2800
        %v2805 = vld [vmem:[#allocation3] sm:$0xff]
        %v2806 = vld [vmem:[#allocation3 + $0x10] sm:$0xff]
        %v2807 = vld [vmem:[#allocation3 + $0x20] sm:$0xff]
        %v2808 = vld [vmem:[#allocation3 + $0x30] sm:$0xff]
        %v2809 = vld [vmem:[#allocation3 + $0x40] sm:$0xff]
        %v2810 = vld [vmem:[#allocation3 + $0x50] sm:$0xff]
        %v2811 = vld [vmem:[#allocation3 + $0x60] sm:$0xff]
        %v2812 = vld [vmem:[#allocation3 + $0x70] sm:$0xff]
        %v2813 = vld [vmem:[#allocation3 + $0x80] sm:$0xff]
        %v2814 = vld [vmem:[#allocation3 + $0x90] sm:$0xff]
        %v2815 = vld [vmem:[#allocation3 + $0xa0] sm:$0xff]
        %v2816 = vld [vmem:[#allocation3 + $0xb0] sm:$0xff]
        %v2817 = vld [vmem:[#allocation3 + $0xc0] sm:$0xff]
        %v2818 = vld [vmem:[#allocation3 + $0xd0] sm:$0xff]
        %v2819 = vld [vmem:[#allocation3 + $0xe0] sm:$0xff]
        %v2820 = vld [vmem:[#allocation3 + $0xf0] sm:$0xff]
        %v2821 = vld [vmem:[#allocation3 + $0x100] sm:$0xff]
        %v2822 = vld [vmem:[#allocation3 + $0x110] sm:$0xff]
        %2824 = vset.pattern.permute.xlu0 0
        %2825 = vperm.xlu0 %2824, %v2587
        %v2826 = vpop.permute.xlu0 %2825
        %2829 = vset.pattern.permute.xlu0 0
        %2830 = vperm.xlu0 %2829, %v2588
        %v2831 = vpop.permute.xlu0 %2830
        %2834 = vset.pattern.permute.xlu0 0
        %2835 = vperm.xlu0 %2834, %v2589
        %v2836 = vpop.permute.xlu0 %2835
        %2839 = vset.pattern.permute.xlu0 0
        %2840 = vperm.xlu0 %2839, %v2590
        %v2841 = vpop.permute.xlu0 %2840
        %v2844 = vsel %vm1159, %v2580, 0
        %v2847 = vsel %vm1159, %v2582, 0
        %v2850 = vsel %vm1159, %v2584, 0
        %v2853 = vsel %vm1159, %v2586, 0
        %2855 = vmatprep.subr.mxu0 0.0
        %2856 = vmatpush1.msra.mxu0 %v2820
        %2857 = vmatprep.subr.mxu0 0.0
        %2858 = vmatpush1.msra.mxu0 %v2819
        %2859 = vmatprep.subr.mxu0 0.0
        %2860 = vmatpush1.msra.mxu0 %v2818
        %2861 = vmatprep.subr.mxu0 0.0
        %2862 = vmatpush1.msra.mxu0 %v2817
        %2863 = vmatprep.subr.mxu0 0.0
        %2864 = vmatpush1.msra.mxu0 %v2816
        %2865 = vmatprep.subr.mxu0 0.0
        %2866 = vmatpush1.msra.mxu0 %v2815
        %2867 = vmatprep.subr.mxu0 0.0
        %2868 = vmatpush1.msra.mxu0 %v2814
        %2869 = vmatprep.subr.mxu0 0.0
        %2870 = vmatpush1.msra.mxu0 %v2813
        %2871 = vmatprep.subr.mxu0 0.0
        %2872 = vmatpush1.msra.mxu0 %v2812
        %2873 = vmatprep.subr.mxu0 0.0
        %2874 = vmatpush1.msra.mxu0 %v2811
        %2875 = vmatprep.subr.mxu0 0.0
        %2876 = vmatpush1.msra.mxu0 %v2810
        %2877 = vmatprep.subr.mxu0 0.0
        %2878 = vmatpush1.msra.mxu0 %v2809
        %2879 = vmatprep.subr.mxu0 0.0
        %2880 = vmatpush1.msra.mxu0 %v2808
        %2881 = vmatprep.subr.mxu0 0.0
        %2882 = vmatpush1.msra.mxu0 %v2807
        %2883 = vmatprep.subr.mxu0 0.0
        %2884 = vmatpush1.msra.mxu0 %v2806
        %2885 = vmatprep.subr.mxu0 0.0
        %2886 = vmatpush1.msra.mxu0 %v2805
        %2887 = vmatprep.subr.mxu0 0.0
        %2888 = vmatpush2.msra.mxu0 0.0
        %2889 = vmatprep.subr.mxu0 0.0
        %2890 = vmatpush2.msra.mxu0 0.0
        %2891 = vmatprep.subr.mxu0 0.0
        %2892 = vmatpush2.msra.mxu0 0.0
        %2893 = vmatprep.subr.mxu0 0.0
        %2894 = vmatpush2.msra.mxu0 0.0
        %2895 = vmatprep.subr.mxu0 0.0
        %2896 = vmatpush2.msra.mxu0 0.0
        %2897 = vmatprep.subr.mxu0 0.0
        %2898 = vmatpush2.msra.mxu0 0.0
        %2899 = vmatprep.subr.mxu0 0.0
        %2900 = vmatpush2.msra.mxu0 0.0
        %2901 = vmatprep.subr.mxu0 0.0
        %2902 = vmatpush2.msra.mxu0 0.0
        %2903 = vmatprep.subr.mxu0 0.0
        %2904 = vmatpush2.msra.mxu0 0.0
        %2905 = vmatprep.subr.mxu0 0.0
        %2906 = vmatpush2.msra.mxu0 0.0
        %2907 = vmatprep.subr.mxu0 0.0
        %2908 = vmatpush2.msra.mxu0 0.0
        %2909 = vmatprep.subr.mxu0 0.0
        %2910 = vmatpush2.msra.mxu0 0.0
        %2911 = vmatprep.subr.mxu0 0.0
        %2912 = vmatpush2.msra.mxu0 0.0
        %2913 = vmatprep.subr.mxu0 0.0
        %2914 = vmatpush2.msra.mxu0 0.0
        %2915 = vmatprep.subr.mxu0 0.0
        %2916 = vmatpush2.msra.mxu0 %v2822
        %2917 = vmatprep.subr.mxu0 0.0
        %2918 = vmatpush2.msra.mxu0 %v2821
        %2919 = vmatprep.mubr.f32.mxu0 %v2844
        %2920 = vmatmul.mubr.f32.gmra.mxu0 %v2579
        %v2921 = vpop.f32.mrf.mxu0
        %v2922 = vadd.f32 %v2826, %v2921
        %v2923 = vpop.f32.mrf.mxu0
        %2924 = vmatprep.mubr.f32.mxu0 %v2847
        %2925 = vmatmul.mubr.f32.gmra.mxu0 %v2581
        %v2926 = vpop.f32.mrf.mxu0
        %v2927 = vadd.f32 %v2831, %v2926
        %v2928 = vpop.f32.mrf.mxu0
        %2929 = vmatprep.mubr.f32.mxu0 %v2850
        %2930 = vmatmul.mubr.f32.gmra.mxu0 %v2583
        %v2931 = vpop.f32.mrf.mxu0
        %v2932 = vadd.f32 %v2836, %v2931
        %v2933 = vpop.f32.mrf.mxu0
        %2934 = vmatprep.mubr.f32.mxu0 %v2853
        %2935 = vmatmul.mubr.f32.gmra.mxu0 %v2585
        %v2936 = vpop.f32.mrf.mxu0
        %v2937 = vadd.f32 %v2841, %v2936
        %v2938 = vpop.f32.mrf.mxu0
        %2939 = vdwg.mxu0
        %v2940 = vmax.f32 %v2922, 0.0
        %v2941 = vmax.f32 %v2927, 0.0
        %v2942 = vmax.f32 %v2932, 0.0
        %v2943 = vmax.f32 %v2937, 0.0
        %v2944 = vld [vmem:[%s11] sm:$0xff]
        %v2945 = vld [vmem:[%s11 + $0x8] sm:$0xff]
        %v2946 = vld [vmem:[%s11 + $0x10] sm:$0xff]
        %v2947 = vld [vmem:[%s11 + $0x18] sm:$0xff]
        %v2948 = vld [vmem:[%s11 + $0x20] sm:$0xff]
        %v2949 = vld [vmem:[%s11 + $0x28] sm:$0xff]
        %v2950 = vld [vmem:[%s11 + $0x30] sm:$0xff]
        %v2951 = vld [vmem:[%s11 + $0x38] sm:$0xff]
        %v2952 = vld [vmem:[%s11 + $0x40] sm:$0xff]
        %v2953 = vld [vmem:[%s11 + $0x48] sm:$0xff]
        %v2954 = vld [vmem:[%s11 + $0x50] sm:$0xff]
        %v2955 = vld [vmem:[%s11 + $0x58] sm:$0xff]
        %v2956 = vld [vmem:[%s12] sm:$0xff]
        %v2957 = vld [vmem:[%s12 + $0x8] sm:$0xff]
        %v2958 = vld [vmem:[%s12 + $0x10] sm:$0xff]
        %v2959 = vld [vmem:[%s12 + $0x18] sm:$0xff]
        %2960 = vst [vmem:[#allocation2] sm:$0xff] 0.0
        %2961 = vst [vmem:[#allocation2 + $0x8] sm:$0xff] 0.0
        %2962 = vst [vmem:[#allocation2 + $0x10] sm:$0xff] 0.0
        %2963 = vst [vmem:[#allocation2 + $0x18] sm:$0xff] 0.0
        %2964 = vst [vmem:[#allocation2 + $0x20] sm:$0xff] 0.0
        %2965 = vst [vmem:[#allocation2 + $0x28] sm:$0xff] 0.0
        %2966 = vst [vmem:[#allocation2 + $0x30] sm:$0xff] 0.0
        %2967 = vst [vmem:[#allocation2 + $0x38] sm:$0xff] 0.0
        %2968 = vst [vmem:[#allocation2 + $0x40] sm:$0xff] 0.0
        %2969 = vst [vmem:[#allocation2 + $0x48] sm:$0xff] 0.0
        %2970 = vst [vmem:[#allocation2 + $0x50] sm:$0xff] 0.0
        %2971 = vst [vmem:[#allocation2 + $0x58] sm:$0xff] 0.0
        %2972 = vst [vmem:[#allocation2 + $0x60] sm:$0xff] 0.0
        %2973 = vst [vmem:[#allocation2 + $0x68] sm:$0xff] 0.0
        %2974 = vst [vmem:[#allocation2 + $0x70] sm:$0xff] 0.0
        %2975 = vst [vmem:[#allocation2 + $0x78] sm:$0xff] 0.0
        %2976 = vst [vmem:[#allocation2 + $0x80] sm:$0xff] 0.0
        %2977 = vst [vmem:[#allocation2 + $0x88] sm:$0xff] 0.0
        %2978 = vst [vmem:[#allocation2 + $0x90] sm:$0xff] 0.0
        %2979 = vst [vmem:[#allocation2 + $0x98] sm:$0xff] 0.0
        %2980 = vst [vmem:[#allocation2 + $0xa0] sm:$0xff] 0.0
        %2981 = vst [vmem:[#allocation2 + $0xa8] sm:$0xff] 0.0
        %2982 = vst [vmem:[#allocation2 + $0xb0] sm:$0xff] 0.0
        %2983 = vst [vmem:[#allocation2 + $0xb8] sm:$0xff] 0.0
        %2984 = vst.msk [vmem:[#allocation2 + $0x8] sm:$0xff] %vm1159, %v2940
        %2985 = vst.msk [vmem:[#allocation2 + $0x28] sm:$0xff] %vm1159, %v2941
        %2986 = vst.msk [vmem:[#allocation2 + $0x48] sm:$0xff] %vm1159, %v2942
        %2987 = vst.msk [vmem:[#allocation2 + $0x68] sm:$0xff] %vm1159, %v2943
        %v2988 = vld [vmem:[#allocation2] sm:$0xff]
        %v2989 = vld [vmem:[#allocation2 + $0x8] sm:$0xff]
        %v2990 = vld [vmem:[#allocation2 + $0x20] sm:$0xff]
        %v2991 = vld [vmem:[#allocation2 + $0x28] sm:$0xff]
        %v2992 = vld [vmem:[#allocation2 + $0x40] sm:$0xff]
        %v2993 = vld [vmem:[#allocation2 + $0x48] sm:$0xff]
        %v2994 = vld [vmem:[#allocation2 + $0x60] sm:$0xff]
        %v2995 = vld [vmem:[#allocation2 + $0x68] sm:$0xff]
        %v2996 = vmul.f32 %v2988, %v2630
        %v2997 = vmul.f32 %v2989, %v2630
        %v2998 = vmul.f32 %v2990, %v2630
        %v2999 = vmul.f32 %v2991, %v2630
        %v3000 = vmul.f32 %v2992, %v2630
        %v3001 = vmul.f32 %v2993, %v2630
        %v3002 = vmul.f32 %v2994, %v2630
        %v3003 = vmul.f32 %v2995, %v2630
        %3012 = vrot.lane.b32.xlu0 %v2996, 5
        %v3013 = vpop.permute.xlu0 %3012
        %3014 = vrot.lane.b32.xlu0 %v2997, 5
        %v3015 = vpop.permute.xlu0 %3014
        %3016 = vrot.lane.b32.xlu0 %v2998, 5
        %v3017 = vpop.permute.xlu0 %3016
        %3018 = vrot.lane.b32.xlu0 %v2999, 5
        %v3019 = vpop.permute.xlu0 %3018
        %3020 = vrot.lane.b32.xlu0 %v3000, 5
        %v3021 = vpop.permute.xlu0 %3020
        %3022 = vrot.lane.b32.xlu0 %v3001, 5
        %v3023 = vpop.permute.xlu0 %3022
        %3024 = vrot.lane.b32.xlu0 %v3002, 5
        %v3025 = vpop.permute.xlu0 %3024
        %3026 = vrot.lane.b32.xlu0 %v3003, 5
        %v3027 = vpop.permute.xlu0 %3026
        %v3028 = vsel %vm2648, %v3013, %v3015
        %v3029 = vsel %vm2648, %v3017, %v3019
        %v3030 = vsel %vm2648, %v3021, %v3023
        %v3031 = vsel %vm2648, %v3025, %v3027
        %3036 = vst.msk [vmem:[#allocation3] sm:$0xff] %vm1159, %v3028
        %3037 = vst.msk [vmem:[#allocation3 + $0x10] sm:$0xff] %vm1159, %v3029
        %3038 = vst.msk [vmem:[#allocation3 + $0x20] sm:$0xff] %vm1159, %v3030
        %3039 = vst.msk [vmem:[#allocation3 + $0x30] sm:$0xff] %vm1159, %v3031
        %v3040 = vld [vmem:[#allocation2] sm:$0xff]
        %v3041 = vld [vmem:[#allocation2 + $0x8] sm:$0xff]
        %v3042 = vld [vmem:[#allocation2 + $0x20] sm:$0xff]
        %v3043 = vld [vmem:[#allocation2 + $0x28] sm:$0xff]
        %v3044 = vld [vmem:[#allocation2 + $0x40] sm:$0xff]
        %v3045 = vld [vmem:[#allocation2 + $0x48] sm:$0xff]
        %v3046 = vld [vmem:[#allocation2 + $0x60] sm:$0xff]
        %v3047 = vld [vmem:[#allocation2 + $0x68] sm:$0xff]
        %3056 = vrot.lane.b32.xlu0 %v3040, 4
        %v3057 = vpop.permute.xlu0 %3056
        %3058 = vrot.lane.b32.xlu0 %v3041, 4
        %v3059 = vpop.permute.xlu0 %3058
        %3060 = vrot.lane.b32.xlu0 %v3042, 4
        %v3061 = vpop.permute.xlu0 %3060
        %3062 = vrot.lane.b32.xlu0 %v3043, 4
        %v3063 = vpop.permute.xlu0 %3062
        %3064 = vrot.lane.b32.xlu0 %v3044, 4
        %v3065 = vpop.permute.xlu0 %3064
        %3066 = vrot.lane.b32.xlu0 %v3045, 4
        %v3067 = vpop.permute.xlu0 %3066
        %3068 = vrot.lane.b32.xlu0 %v3046, 4
        %v3069 = vpop.permute.xlu0 %3068
        %3070 = vrot.lane.b32.xlu0 %v3047, 4
        %v3071 = vpop.permute.xlu0 %3070
        %v3072 = vsel %vm2671, %v3057, %v3059
        %v3073 = vsel %vm2671, %v3061, %v3063
        %v3074 = vsel %vm2671, %v3065, %v3067
        %v3075 = vsel %vm2671, %v3069, %v3071
        %3080 = vst.msk [vmem:[#allocation3 + $0x40] sm:$0xff] %vm1159, %v3072
        %3081 = vst.msk [vmem:[#allocation3 + $0x50] sm:$0xff] %vm1159, %v3073
        %3082 = vst.msk [vmem:[#allocation3 + $0x60] sm:$0xff] %vm1159, %v3074
        %3083 = vst.msk [vmem:[#allocation3 + $0x70] sm:$0xff] %vm1159, %v3075
        %v3084 = vld [vmem:[#allocation2] sm:$0xff]
        %v3085 = vld [vmem:[#allocation2 + $0x8] sm:$0xff]
        %v3086 = vld [vmem:[#allocation2 + $0x20] sm:$0xff]
        %v3087 = vld [vmem:[#allocation2 + $0x28] sm:$0xff]
        %v3088 = vld [vmem:[#allocation2 + $0x40] sm:$0xff]
        %v3089 = vld [vmem:[#allocation2 + $0x48] sm:$0xff]
        %v3090 = vld [vmem:[#allocation2 + $0x60] sm:$0xff]
        %v3091 = vld [vmem:[#allocation2 + $0x68] sm:$0xff]
        %v3092 = vmul.f32 %v3084, %v2684
        %v3093 = vmul.f32 %v3085, %v2684
        %v3094 = vmul.f32 %v3086, %v2684
        %v3095 = vmul.f32 %v3087, %v2684
        %v3096 = vmul.f32 %v3088, %v2684
        %v3097 = vmul.f32 %v3089, %v2684
        %v3098 = vmul.f32 %v3090, %v2684
        %v3099 = vmul.f32 %v3091, %v2684
        %3108 = vrot.lane.b32.xlu0 %v3092, 3
        %v3109 = vpop.permute.xlu0 %3108
        %3110 = vrot.lane.b32.xlu0 %v3093, 3
        %v3111 = vpop.permute.xlu0 %3110
        %3112 = vrot.lane.b32.xlu0 %v3094, 3
        %v3113 = vpop.permute.xlu0 %3112
        %3114 = vrot.lane.b32.xlu0 %v3095, 3
        %v3115 = vpop.permute.xlu0 %3114
        %3116 = vrot.lane.b32.xlu0 %v3096, 3
        %v3117 = vpop.permute.xlu0 %3116
        %3118 = vrot.lane.b32.xlu0 %v3097, 3
        %v3119 = vpop.permute.xlu0 %3118
        %3120 = vrot.lane.b32.xlu0 %v3098, 3
        %v3121 = vpop.permute.xlu0 %3120
        %3122 = vrot.lane.b32.xlu0 %v3099, 3
        %v3123 = vpop.permute.xlu0 %3122
        %v3124 = vsel %vm2702, %v3109, %v3111
        %v3125 = vsel %vm2702, %v3113, %v3115
        %v3126 = vsel %vm2702, %v3117, %v3119
        %v3127 = vsel %vm2702, %v3121, %v3123
        %3132 = vst.msk [vmem:[#allocation3 + $0x80] sm:$0xff] %vm1159, %v3124
        %3133 = vst.msk [vmem:[#allocation3 + $0x90] sm:$0xff] %vm1159, %v3125
        %3134 = vst.msk [vmem:[#allocation3 + $0xa0] sm:$0xff] %vm1159, %v3126
        %3135 = vst.msk [vmem:[#allocation3 + $0xb0] sm:$0xff] %vm1159, %v3127
        %v3136 = vld [vmem:[#allocation2] sm:$0xff]
        %v3137 = vld [vmem:[#allocation2 + $0x8] sm:$0xff]
        %v3138 = vld [vmem:[#allocation2 + $0x20] sm:$0xff]
        %v3139 = vld [vmem:[#allocation2 + $0x28] sm:$0xff]
        %v3140 = vld [vmem:[#allocation2 + $0x40] sm:$0xff]
        %v3141 = vld [vmem:[#allocation2 + $0x48] sm:$0xff]
        %v3142 = vld [vmem:[#allocation2 + $0x60] sm:$0xff]
        %v3143 = vld [vmem:[#allocation2 + $0x68] sm:$0xff]
        %v3144 = vmul.f32 %v3136, %v2714
        %v3145 = vmul.f32 %v3137, %v2714
        %v3146 = vmul.f32 %v3138, %v2714
        %v3147 = vmul.f32 %v3139, %v2714
        %v3148 = vmul.f32 %v3140, %v2714
        %v3149 = vmul.f32 %v3141, %v2714
        %v3150 = vmul.f32 %v3142, %v2714
        %v3151 = vmul.f32 %v3143, %v2714
        %3160 = vrot.lane.b32.xlu0 %v3144, 1
        %v3161 = vpop.permute.xlu0 %3160
        %3162 = vrot.lane.b32.xlu0 %v3145, 1
        %v3163 = vpop.permute.xlu0 %3162
        %3164 = vrot.lane.b32.xlu0 %v3146, 1
        %v3165 = vpop.permute.xlu0 %3164
        %3166 = vrot.lane.b32.xlu0 %v3147, 1
        %v3167 = vpop.permute.xlu0 %3166
        %3168 = vrot.lane.b32.xlu0 %v3148, 1
        %v3169 = vpop.permute.xlu0 %3168
        %3170 = vrot.lane.b32.xlu0 %v3149, 1
        %v3171 = vpop.permute.xlu0 %3170
        %3172 = vrot.lane.b32.xlu0 %v3150, 1
        %v3173 = vpop.permute.xlu0 %3172
        %3174 = vrot.lane.b32.xlu0 %v3151, 1
        %v3175 = vpop.permute.xlu0 %3174
        %v3176 = vsel %vm1223, %v3161, %v3163
        %v3177 = vsel %vm1223, %v3165, %v3167
        %v3178 = vsel %vm1223, %v3169, %v3171
        %v3179 = vsel %vm1223, %v3173, %v3175
        %3184 = vst.msk [vmem:[#allocation3 + $0xc0] sm:$0xff] %vm1159, %v3176
        %3185 = vst.msk [vmem:[#allocation3 + $0xd0] sm:$0xff] %vm1159, %v3177
        %3186 = vst.msk [vmem:[#allocation3 + $0xe0] sm:$0xff] %vm1159, %v3178
        %3187 = vst.msk [vmem:[#allocation3 + $0xf0] sm:$0xff] %vm1159, %v3179
        %v3188 = vld [vmem:[#allocation2 + $0x8] sm:$0xff]
        %v3189 = vld [vmem:[#allocation2 + $0x28] sm:$0xff]
        %v3190 = vld [vmem:[#allocation2 + $0x48] sm:$0xff]
        %v3191 = vld [vmem:[#allocation2 + $0x68] sm:$0xff]
        %3192 = vst.msk [vmem:[#allocation3 + $0x100] sm:$0xff] %vm1159, %v3188
        %3193 = vst.msk [vmem:[#allocation3 + $0x110] sm:$0xff] %vm1159, %v3189
        %3194 = vst.msk [vmem:[#allocation3 + $0x120] sm:$0xff] %vm1159, %v3190
        %3195 = vst.msk [vmem:[#allocation3 + $0x130] sm:$0xff] %vm1159, %v3191
        %v3196 = vld [vmem:[#allocation2 + $0x8] sm:$0xff]
        %v3197 = vld [vmem:[#allocation2 + $0x28] sm:$0xff]
        %v3198 = vld [vmem:[#allocation2 + $0x48] sm:$0xff]
        %v3199 = vld [vmem:[#allocation2 + $0x68] sm:$0xff]
        %v3200 = vmul.f32 %v3196, %v2745
        %v3201 = vmul.f32 %v3197, %v2745
        %v3202 = vmul.f32 %v3198, %v2745
        %v3203 = vmul.f32 %v3199, %v2745
        %3208 = vrot.lane.b32.xlu0 %v3200, 127
        %v3209 = vpop.permute.xlu0 %3208
        %3210 = vrot.lane.b32.xlu0 %v3201, 127
        %v3211 = vpop.permute.xlu0 %3210
        %3212 = vrot.lane.b32.xlu0 %v3202, 127
        %v3213 = vpop.permute.xlu0 %3212
        %3214 = vrot.lane.b32.xlu0 %v3203, 127
        %v3215 = vpop.permute.xlu0 %3214
        %3220 = vst.msk [vmem:[#allocation3 + $0x140] sm:$0xff] %vm1159, %v3209
        %3221 = vst.msk [vmem:[#allocation3 + $0x150] sm:$0xff] %vm1159, %v3211
        %3222 = vst.msk [vmem:[#allocation3 + $0x160] sm:$0xff] %vm1159, %v3213
        %3223 = vst.msk [vmem:[#allocation3 + $0x170] sm:$0xff] %vm1159, %v3215
        %v3224 = vld [vmem:[#allocation2 + $0x8] sm:$0xff]
        %v3225 = vld [vmem:[#allocation2 + $0x28] sm:$0xff]
        %v3226 = vld [vmem:[#allocation2 + $0x48] sm:$0xff]
        %v3227 = vld [vmem:[#allocation2 + $0x68] sm:$0xff]
        %v3228 = vmul.f32 %v3224, %v2762
        %v3229 = vmul.f32 %v3225, %v2762
        %v3230 = vmul.f32 %v3226, %v2762
        %v3231 = vmul.f32 %v3227, %v2762
        %3236 = vrot.lane.b32.xlu0 %v3228, 125
        %v3237 = vpop.permute.xlu0 %3236
        %3238 = vrot.lane.b32.xlu0 %v3229, 125
        %v3239 = vpop.permute.xlu0 %3238
        %3240 = vrot.lane.b32.xlu0 %v3230, 125
        %v3241 = vpop.permute.xlu0 %3240
        %3242 = vrot.lane.b32.xlu0 %v3231, 125
        %v3243 = vpop.permute.xlu0 %3242
        %3248 = vst.msk [vmem:[#allocation3 + $0x180] sm:$0xff] %vm1159, %v3237
        %3249 = vst.msk [vmem:[#allocation3 + $0x190] sm:$0xff] %vm1159, %v3239
        %3250 = vst.msk [vmem:[#allocation3 + $0x1a0] sm:$0xff] %vm1159, %v3241
        %3251 = vst.msk [vmem:[#allocation3 + $0x1b0] sm:$0xff] %vm1159, %v3243
        %v3252 = vld [vmem:[#allocation2 + $0x8] sm:$0xff]
        %v3253 = vld [vmem:[#allocation2 + $0x28] sm:$0xff]
        %v3254 = vld [vmem:[#allocation2 + $0x48] sm:$0xff]
        %v3255 = vld [vmem:[#allocation2 + $0x68] sm:$0xff]
        %3260 = vrot.lane.b32.xlu0 %v3252, 124
        %v3261 = vpop.permute.xlu0 %3260
        %3262 = vrot.lane.b32.xlu0 %v3253, 124
        %v3263 = vpop.permute.xlu0 %3262
        %3264 = vrot.lane.b32.xlu0 %v3254, 124
        %v3265 = vpop.permute.xlu0 %3264
        %3266 = vrot.lane.b32.xlu0 %v3255, 124
        %v3267 = vpop.permute.xlu0 %3266
        %3272 = vst.msk [vmem:[#allocation3 + $0x1c0] sm:$0xff] %vm1159, %v3261
        %3273 = vst.msk [vmem:[#allocation3 + $0x1d0] sm:$0xff] %vm1159, %v3263
        %3274 = vst.msk [vmem:[#allocation3 + $0x1e0] sm:$0xff] %vm1159, %v3265
        %3275 = vst.msk [vmem:[#allocation3 + $0x1f0] sm:$0xff] %vm1159, %v3267
        %v3276 = vld [vmem:[#allocation2 + $0x8] sm:$0xff]
        %v3277 = vld [vmem:[#allocation2 + $0x28] sm:$0xff]
        %v3278 = vld [vmem:[#allocation2 + $0x48] sm:$0xff]
        %v3279 = vld [vmem:[#allocation2 + $0x68] sm:$0xff]
        %v3280 = vmul.f32 %v3276, %v2791
        %v3281 = vmul.f32 %v3277, %v2791
        %v3282 = vmul.f32 %v3278, %v2791
        %v3283 = vmul.f32 %v3279, %v2791
        %3288 = vrot.lane.b32.xlu0 %v3280, 123
        %v3289 = vpop.permute.xlu0 %3288
        %3290 = vrot.lane.b32.xlu0 %v3281, 123
        %v3291 = vpop.permute.xlu0 %3290
        %3292 = vrot.lane.b32.xlu0 %v3282, 123
        %v3293 = vpop.permute.xlu0 %3292
        %3294 = vrot.lane.b32.xlu0 %v3283, 123
        %v3295 = vpop.permute.xlu0 %3294
        %3300 = vst.msk [vmem:[#allocation3 + $0x200] sm:$0xff] %vm1159, %v3289
        %3301 = vst.msk [vmem:[#allocation3 + $0x210] sm:$0xff] %vm1159, %v3291
        %3302 = vst.msk [vmem:[#allocation3 + $0x220] sm:$0xff] %vm1159, %v3293
        %3303 = vst.msk [vmem:[#allocation3 + $0x230] sm:$0xff] %vm1159, %v3295
        %v3304 = vld [vmem:[#allocation3] sm:$0xff]
        %v3305 = vld [vmem:[#allocation3 + $0x10] sm:$0xff]
        %v3306 = vld [vmem:[#allocation3 + $0x20] sm:$0xff]
        %v3307 = vld [vmem:[#allocation3 + $0x30] sm:$0xff]
        %v3308 = vld [vmem:[#allocation3 + $0x40] sm:$0xff]
        %v3309 = vld [vmem:[#allocation3 + $0x50] sm:$0xff]
        %v3310 = vld [vmem:[#allocation3 + $0x60] sm:$0xff]
        %v3311 = vld [vmem:[#allocation3 + $0x70] sm:$0xff]
        %v3312 = vld [vmem:[#allocation3 + $0x80] sm:$0xff]
        %v3313 = vld [vmem:[#allocation3 + $0x90] sm:$0xff]
        %v3314 = vld [vmem:[#allocation3 + $0xa0] sm:$0xff]
        %v3315 = vld [vmem:[#allocation3 + $0xb0] sm:$0xff]
        %v3316 = vld [vmem:[#allocation3 + $0xc0] sm:$0xff]
        %v3317 = vld [vmem:[#allocation3 + $0xd0] sm:$0xff]
        %v3318 = vld [vmem:[#allocation3 + $0xe0] sm:$0xff]
        %v3319 = vld [vmem:[#allocation3 + $0xf0] sm:$0xff]
        %v3320 = vld [vmem:[#allocation3 + $0x100] sm:$0xff]
        %v3321 = vld [vmem:[#allocation3 + $0x110] sm:$0xff]
        %v3322 = vld [vmem:[#allocation3 + $0x120] sm:$0xff]
        %v3323 = vld [vmem:[#allocation3 + $0x130] sm:$0xff]
        %v3324 = vld [vmem:[#allocation3 + $0x140] sm:$0xff]
        %v3325 = vld [vmem:[#allocation3 + $0x150] sm:$0xff]
        %v3326 = vld [vmem:[#allocation3 + $0x160] sm:$0xff]
        %v3327 = vld [vmem:[#allocation3 + $0x170] sm:$0xff]
        %v3328 = vld [vmem:[#allocation3 + $0x180] sm:$0xff]
        %v3329 = vld [vmem:[#allocation3 + $0x190] sm:$0xff]
        %v3330 = vld [vmem:[#allocation3 + $0x1a0] sm:$0xff]
        %v3331 = vld [vmem:[#allocation3 + $0x1b0] sm:$0xff]
        %v3332 = vld [vmem:[#allocation3 + $0x1c0] sm:$0xff]
        %v3333 = vld [vmem:[#allocation3 + $0x1d0] sm:$0xff]
        %v3334 = vld [vmem:[#allocation3 + $0x1e0] sm:$0xff]
        %v3335 = vld [vmem:[#allocation3 + $0x1f0] sm:$0xff]
        %v3336 = vld [vmem:[#allocation3 + $0x200] sm:$0xff]
        %v3337 = vld [vmem:[#allocation3 + $0x210] sm:$0xff]
        %v3338 = vld [vmem:[#allocation3 + $0x220] sm:$0xff]
        %v3339 = vld [vmem:[#allocation3 + $0x230] sm:$0xff]
        %3341 = vset.pattern.permute.xlu0 0
        %3342 = vperm.xlu0 %3341, %v2956
        %v3343 = vpop.permute.xlu0 %3342
        %3346 = vset.pattern.permute.xlu0 0
        %3347 = vperm.xlu0 %3346, %v2957
        %v3348 = vpop.permute.xlu0 %3347
        %3351 = vset.pattern.permute.xlu0 0
        %3352 = vperm.xlu0 %3351, %v2958
        %v3353 = vpop.permute.xlu0 %3352
        %3356 = vset.pattern.permute.xlu0 0
        %3357 = vperm.xlu0 %3356, %v2959
        %v3358 = vpop.permute.xlu0 %3357
        %vm3360 = vcmask 261120
        %v3362 = vsel %vm3360, %v2946, 0
        %v3365 = vsel %vm3360, %v2949, 0
        %v3368 = vsel %vm3360, %v2952, 0
        %v3371 = vsel %vm3360, %v2955, 0
        %3373 = vmatprep.subr.mxu0 0.0
        %3374 = vmatpush1.msra.mxu0 %v3319
        %3375 = vmatprep.subr.mxu0 0.0
        %3376 = vmatpush1.msra.mxu0 %v3318
        %3377 = vmatprep.subr.mxu0 0.0
        %3378 = vmatpush1.msra.mxu0 %v3317
        %3379 = vmatprep.subr.mxu0 0.0
        %3380 = vmatpush1.msra.mxu0 %v3316
        %3381 = vmatprep.subr.mxu0 0.0
        %3382 = vmatpush1.msra.mxu0 %v3315
        %3383 = vmatprep.subr.mxu0 0.0
        %3384 = vmatpush1.msra.mxu0 %v3314
        %3385 = vmatprep.subr.mxu0 0.0
        %3386 = vmatpush1.msra.mxu0 %v3313
        %3387 = vmatprep.subr.mxu0 0.0
        %3388 = vmatpush1.msra.mxu0 %v3312
        %3389 = vmatprep.subr.mxu0 0.0
        %3390 = vmatpush1.msra.mxu0 %v3311
        %3391 = vmatprep.subr.mxu0 0.0
        %3392 = vmatpush1.msra.mxu0 %v3310
        %3393 = vmatprep.subr.mxu0 0.0
        %3394 = vmatpush1.msra.mxu0 %v3309
        %3395 = vmatprep.subr.mxu0 0.0
        %3396 = vmatpush1.msra.mxu0 %v3308
        %3397 = vmatprep.subr.mxu0 0.0
        %3398 = vmatpush1.msra.mxu0 %v3307
        %3399 = vmatprep.subr.mxu0 0.0
        %3400 = vmatpush1.msra.mxu0 %v3306
        %3401 = vmatprep.subr.mxu0 0.0
        %3402 = vmatpush1.msra.mxu0 %v3305
        %3403 = vmatprep.subr.mxu0 0.0
        %3404 = vmatpush1.msra.mxu0 %v3304
        %3405 = vmatprep.subr.mxu0 0.0
        %3406 = vmatpush2.msra.mxu0 %v3335
        %3407 = vmatprep.subr.mxu0 0.0
        %3408 = vmatpush2.msra.mxu0 %v3334
        %3409 = vmatprep.subr.mxu0 0.0
        %3410 = vmatpush2.msra.mxu0 %v3333
        %3411 = vmatprep.subr.mxu0 0.0
        %3412 = vmatpush2.msra.mxu0 %v3332
        %3413 = vmatprep.subr.mxu0 0.0
        %3414 = vmatpush2.msra.mxu0 %v3331
        %3415 = vmatprep.subr.mxu0 0.0
        %3416 = vmatpush2.msra.mxu0 %v3330
        %3417 = vmatprep.subr.mxu0 0.0
        %3418 = vmatpush2.msra.mxu0 %v3329
        %3419 = vmatprep.subr.mxu0 0.0
        %3420 = vmatpush2.msra.mxu0 %v3328
        %3421 = vmatprep.subr.mxu0 0.0
        %3422 = vmatpush2.msra.mxu0 %v3327
        %3423 = vmatprep.subr.mxu0 0.0
        %3424 = vmatpush2.msra.mxu0 %v3326
        %3425 = vmatprep.subr.mxu0 0.0
        %3426 = vmatpush2.msra.mxu0 %v3325
        %3427 = vmatprep.subr.mxu0 0.0
        %3428 = vmatpush2.msra.mxu0 %v3324
        %3429 = vmatprep.subr.mxu0 0.0
        %3430 = vmatpush2.msra.mxu0 %v3323
        %3431 = vmatprep.subr.mxu0 0.0
        %3432 = vmatpush2.msra.mxu0 %v3322
        %3433 = vmatprep.subr.mxu0 0.0
        %3434 = vmatpush2.msra.mxu0 %v3321
        %3435 = vmatprep.subr.mxu0 0.0
        %3436 = vmatpush2.msra.mxu0 %v3320
        %3437 = vmatprep.mubr.f32.mxu0 %v2945
        %3438 = vmatmul.mubr.f32.gmra.mxu0 %v2944
        %v3439 = vpop.f32.mrf.mxu0
        %v3440 = vadd.f32 %v3343, %v3439
        %v3441 = vpop.f32.mrf.mxu0
        %3442 = vmatprep.mubr.f32.mxu0 %v2948
        %3443 = vmatmul.mubr.f32.gmra.mxu0 %v2947
        %v3444 = vpop.f32.mrf.mxu0
        %v3445 = vadd.f32 %v3348, %v3444
        %v3446 = vpop.f32.mrf.mxu0
        %3447 = vmatprep.mubr.f32.mxu0 %v2951
        %3448 = vmatmul.mubr.f32.gmra.mxu0 %v2950
        %v3449 = vpop.f32.mrf.mxu0
        %v3450 = vadd.f32 %v3353, %v3449
        %v3451 = vpop.f32.mrf.mxu0
        %3452 = vmatprep.mubr.f32.mxu0 %v2954
        %3453 = vmatmul.mubr.f32.gmra.mxu0 %v2953
        %v3454 = vpop.f32.mrf.mxu0
        %v3455 = vadd.f32 %v3358, %v3454
        %v3456 = vpop.f32.mrf.mxu0
        %3457 = vdwg.mxu0
        %3458 = vmatprep.subr.mxu0 0.0
        %3459 = vmatpush1.msra.mxu0 0.0
        %3460 = vmatprep.subr.mxu0 0.0
        %3461 = vmatpush1.msra.mxu0 0.0
        %3462 = vmatprep.subr.mxu0 0.0
        %3463 = vmatpush1.msra.mxu0 0.0
        %3464 = vmatprep.subr.mxu0 0.0
        %3465 = vmatpush1.msra.mxu0 0.0
        %3466 = vmatprep.subr.mxu0 0.0
        %3467 = vmatpush1.msra.mxu0 0.0
        %3468 = vmatprep.subr.mxu0 0.0
        %3469 = vmatpush1.msra.mxu0 0.0
        %3470 = vmatprep.subr.mxu0 0.0
        %3471 = vmatpush1.msra.mxu0 0.0
        %3472 = vmatprep.subr.mxu0 0.0
        %3473 = vmatpush1.msra.mxu0 0.0
        %3474 = vmatprep.subr.mxu0 0.0
        %3475 = vmatpush1.msra.mxu0 0.0
        %3476 = vmatprep.subr.mxu0 0.0
        %3477 = vmatpush1.msra.mxu0 0.0
        %3478 = vmatprep.subr.mxu0 0.0
        %3479 = vmatpush1.msra.mxu0 0.0
        %3480 = vmatprep.subr.mxu0 0.0
        %3481 = vmatpush1.msra.mxu0 0.0
        %3482 = vmatprep.subr.mxu0 0.0
        %3483 = vmatpush1.msra.mxu0 %v3339
        %3484 = vmatprep.subr.mxu0 0.0
        %3485 = vmatpush1.msra.mxu0 %v3338
        %3486 = vmatprep.subr.mxu0 0.0
        %3487 = vmatpush1.msra.mxu0 %v3337
        %3488 = vmatprep.subr.mxu0 0.0
        %3489 = vmatpush1.msra.mxu0 %v3336
        %3490 = vmatprep.subr.mxu0 0.0
        %3491 = vmatpush2.msra.mxu0 0.0
        %3492 = vmatprep.subr.mxu0 0.0
        %3493 = vmatpush2.msra.mxu0 0.0
        %3494 = vmatprep.subr.mxu0 0.0
        %3495 = vmatpush2.msra.mxu0 0.0
        %3496 = vmatprep.subr.mxu0 0.0
        %3497 = vmatpush2.msra.mxu0 0.0
        %3498 = vmatprep.subr.mxu0 0.0
        %3499 = vmatpush2.msra.mxu0 0.0
        %3500 = vmatprep.subr.mxu0 0.0
        %3501 = vmatpush2.msra.mxu0 0.0
        %3502 = vmatprep.subr.mxu0 0.0
        %3503 = vmatpush2.msra.mxu0 0.0
        %3504 = vmatprep.subr.mxu0 0.0
        %3505 = vmatpush2.msra.mxu0 0.0
        %3506 = vmatprep.subr.mxu0 0.0
        %3507 = vmatpush2.msra.mxu0 0.0
        %3508 = vmatprep.subr.mxu0 0.0
        %3509 = vmatpush2.msra.mxu0 0.0
        %3510 = vmatprep.subr.mxu0 0.0
        %3511 = vmatpush2.msra.mxu0 0.0
        %3512 = vmatprep.subr.mxu0 0.0
        %3513 = vmatpush2.msra.mxu0 0.0
        %3514 = vmatprep.subr.mxu0 0.0
        %3515 = vmatpush2.msra.mxu0 0.0
        %3516 = vmatprep.subr.mxu0 0.0
        %3517 = vmatpush2.msra.mxu0 0.0
        %3518 = vmatprep.subr.mxu0 0.0
        %3519 = vmatpush2.msra.mxu0 0.0
        %3520 = vmatprep.subr.mxu0 0.0
        %3521 = vmatpush2.msra.mxu0 0.0
        %3522 = vmatprep.mubr.f32.mxu0 0.0
        %3523 = vmatmul.mubr.f32.gmra.mxu0 %v3362
        %v3524 = vpop.f32.mrf.mxu0
        %v3525 = vadd.f32 %v3440, %v3524
        %v3526 = vpop.f32.mrf.mxu0
        %3527 = vmatprep.mubr.f32.mxu0 0.0
        %3528 = vmatmul.mubr.f32.gmra.mxu0 %v3365
        %v3529 = vpop.f32.mrf.mxu0
        %v3530 = vadd.f32 %v3445, %v3529
        %v3531 = vpop.f32.mrf.mxu0
        %3532 = vmatprep.mubr.f32.mxu0 0.0
        %3533 = vmatmul.mubr.f32.gmra.mxu0 %v3368
        %v3534 = vpop.f32.mrf.mxu0
        %v3535 = vadd.f32 %v3450, %v3534
        %v3536 = vpop.f32.mrf.mxu0
        %3537 = vmatprep.mubr.f32.mxu0 0.0
        %3538 = vmatmul.mubr.f32.gmra.mxu0 %v3371
        %v3539 = vpop.f32.mrf.mxu0
        %v3540 = vadd.f32 %v3455, %v3539
        %v3541 = vpop.f32.mrf.mxu0
        %3542 = vdwg.mxu0
        %v3543 = vmax.f32 %v3525, 0.0
        %v3544 = vmax.f32 %v3530, 0.0
        %v3545 = vmax.f32 %v3535, 0.0
        %v3546 = vmax.f32 %v3540, 0.0
        %v3547 = vld [vmem:[#allocation18] sm:$0xff]
        %v3548 = vld [vmem:[#allocation18 + $0x8] sm:$0xff]
        %v3550 = vsel %vm1159, %v3543, 0
        %v3553 = vsel %vm1159, %v3544, 0
        %v3556 = vsel %vm1159, %v3545, 0
        %v3559 = vsel %vm1159, %v3546, 0
        %3561 = vmatprep.subr.mxu0 0.0
        %3562 = vmatpush1.msra.mxu0 0.0
        %3563 = vmatprep.subr.mxu0 0.0
        %3564 = vmatpush1.msra.mxu0 0.0
        %3565 = vmatprep.subr.mxu0 0.0
        %3566 = vmatpush1.msra.mxu0 0.0
        %3567 = vmatprep.subr.mxu0 0.0
        %3568 = vmatpush1.msra.mxu0 0.0
        %3569 = vmatprep.subr.mxu0 0.0
        %3570 = vmatpush1.msra.mxu0 0.0
        %3571 = vmatprep.subr.mxu0 0.0
        %3572 = vmatpush1.msra.mxu0 0.0
        %3573 = vmatprep.subr.mxu0 0.0
        %3574 = vmatpush1.msra.mxu0 0.0
        %3575 = vmatprep.subr.mxu0 0.0
        %3576 = vmatpush1.msra.mxu0 0.0
        %3577 = vmatprep.subr.mxu0 0.0
        %3578 = vmatpush1.msra.mxu0 0.0
        %3579 = vmatprep.subr.mxu0 0.0
        %3580 = vmatpush1.msra.mxu0 0.0
        %3581 = vmatprep.subr.mxu0 0.0
        %3582 = vmatpush1.msra.mxu0 0.0
        %3583 = vmatprep.subr.mxu0 0.0
        %3584 = vmatpush1.msra.mxu0 0.0
        %3585 = vmatprep.subr.mxu0 0.0
        %3586 = vmatpush1.msra.mxu0 0.0
        %3587 = vmatprep.subr.mxu0 0.0
        %3588 = vmatpush1.msra.mxu0 0.0
        %3589 = vmatprep.subr.mxu0 0.0
        %3590 = vmatpush1.msra.mxu0 %v3548
        %3591 = vmatprep.subr.mxu0 0.0
        %3592 = vmatpush1.msra.mxu0 %v3547
        %3593 = vmatprep.subr.mxu0 0.0
        %3594 = vmatpush2.msra.mxu0 0.0
        %3595 = vmatprep.subr.mxu0 0.0
        %3596 = vmatpush2.msra.mxu0 0.0
        %3597 = vmatprep.subr.mxu0 0.0
        %3598 = vmatpush2.msra.mxu0 0.0
        %3599 = vmatprep.subr.mxu0 0.0
        %3600 = vmatpush2.msra.mxu0 0.0
        %3601 = vmatprep.subr.mxu0 0.0
        %3602 = vmatpush2.msra.mxu0 0.0
        %3603 = vmatprep.subr.mxu0 0.0
        %3604 = vmatpush2.msra.mxu0 0.0
        %3605 = vmatprep.subr.mxu0 0.0
        %3606 = vmatpush2.msra.mxu0 0.0
        %3607 = vmatprep.subr.mxu0 0.0
        %3608 = vmatpush2.msra.mxu0 0.0
        %3609 = vmatprep.subr.mxu0 0.0
        %3610 = vmatpush2.msra.mxu0 0.0
        %3611 = vmatprep.subr.mxu0 0.0
        %3612 = vmatpush2.msra.mxu0 0.0
        %3613 = vmatprep.subr.mxu0 0.0
        %3614 = vmatpush2.msra.mxu0 0.0
        %3615 = vmatprep.subr.mxu0 0.0
        %3616 = vmatpush2.msra.mxu0 0.0
        %3617 = vmatprep.subr.mxu0 0.0
        %3618 = vmatpush2.msra.mxu0 0.0
        %3619 = vmatprep.subr.mxu0 0.0
        %3620 = vmatpush2.msra.mxu0 0.0
        %3621 = vmatprep.subr.mxu0 0.0
        %3622 = vmatpush2.msra.mxu0 0.0
        %3623 = vmatprep.subr.mxu0 0.0
        %3624 = vmatpush2.msra.mxu0 0.0
        %3625 = vmatprep.mubr.f32.mxu0 0.0
        %3626 = vmatmul.mubr.f32.gmra.mxu0 %v3550
        %v3627 = vpop.f32.mrf.mxu0
        %v3628 = vadd.f32 0.0, %v3627
        %v3629 = vpop.f32.mrf.mxu0
        %3630 = vmatprep.mubr.f32.mxu0 0.0
        %3631 = vmatmul.mubr.f32.gmra.mxu0 %v3553
        %v3632 = vpop.f32.mrf.mxu0
        %v3633 = vadd.f32 0.0, %v3632
        %v3634 = vpop.f32.mrf.mxu0
        %3635 = vmatprep.mubr.f32.mxu0 0.0
        %3636 = vmatmul.mubr.f32.gmra.mxu0 %v3556
        %v3637 = vpop.f32.mrf.mxu0
        %v3638 = vadd.f32 0.0, %v3637
        %v3639 = vpop.f32.mrf.mxu0
        %3640 = vmatprep.mubr.f32.mxu0 0.0
        %3641 = vmatmul.mubr.f32.gmra.mxu0 %v3559
        %v3642 = vpop.f32.mrf.mxu0
        %v3643 = vadd.f32 0.0, %v3642
        %v3644 = vpop.f32.mrf.mxu0
        %3645 = vdwg.mxu0
        %v3646 = vld [vmem:[#allocation11] sm:$0xff]
        %v3647 = vld [vmem:[#allocation11 + $0x8] sm:$0xff]
        %v3648 = vld [vmem:[#allocation11 + $0x10] sm:$0xff]
        %v3649 = vld [vmem:[#allocation11 + $0x18] sm:$0xff]
        %v3650 = vld [vmem:[#allocation11 + $0x20] sm:$0xff]
        %v3651 = vld [vmem:[#allocation11 + $0x28] sm:$0xff]
        %v3652 = vld [vmem:[#allocation11 + $0x30] sm:$0xff]
        %v3653 = vld [vmem:[#allocation11 + $0x38] sm:$0xff]
        %v3654 = vld [vmem:[%s14] sm:$0xff]
        %v3655 = vld [vmem:[%s14 + $0x8] sm:$0xff]
        %3656 = vst [vmem:[#allocation2] sm:$0xff] 0.0
        %3657 = vst [vmem:[#allocation2 + $0x8] sm:$0xff] 0.0
        %3658 = vst [vmem:[#allocation2 + $0x10] sm:$0xff] 0.0
        %3659 = vst [vmem:[#allocation2 + $0x18] sm:$0xff] 0.0
        %3660 = vst [vmem:[#allocation2 + $0x20] sm:$0xff] 0.0
        %3661 = vst [vmem:[#allocation2 + $0x28] sm:$0xff] 0.0
        %3662 = vst [vmem:[#allocation2 + $0x30] sm:$0xff] 0.0
        %3663 = vst [vmem:[#allocation2 + $0x38] sm:$0xff] 0.0
        %3664 = vst [vmem:[#allocation2 + $0x40] sm:$0xff] 0.0
        %3665 = vst [vmem:[#allocation2 + $0x48] sm:$0xff] 0.0
        %3666 = vst [vmem:[#allocation2 + $0x50] sm:$0xff] 0.0
        %3667 = vst [vmem:[#allocation2 + $0x58] sm:$0xff] 0.0
        %3668 = vst [vmem:[#allocation2 + $0x60] sm:$0xff] 0.0
        %3669 = vst [vmem:[#allocation2 + $0x68] sm:$0xff] 0.0
        %3670 = vst [vmem:[#allocation2 + $0x70] sm:$0xff] 0.0
        %3671 = vst [vmem:[#allocation2 + $0x78] sm:$0xff] 0.0
        %3672 = vst [vmem:[#allocation2 + $0x80] sm:$0xff] 0.0
        %3673 = vst [vmem:[#allocation2 + $0x88] sm:$0xff] 0.0
        %3674 = vst [vmem:[#allocation2 + $0x90] sm:$0xff] 0.0
        %3675 = vst [vmem:[#allocation2 + $0x98] sm:$0xff] 0.0
        %3676 = vst [vmem:[#allocation2 + $0xa0] sm:$0xff] 0.0
        %3677 = vst [vmem:[#allocation2 + $0xa8] sm:$0xff] 0.0
        %3678 = vst [vmem:[#allocation2 + $0xb0] sm:$0xff] 0.0
        %3679 = vst [vmem:[#allocation2 + $0xb8] sm:$0xff] 0.0
        %3680 = vst.msk [vmem:[#allocation2 + $0x8] sm:$0xff] %vm1926, %v3628
        %3681 = vst.msk [vmem:[#allocation2 + $0x28] sm:$0xff] %vm1926, %v3633
        %3682 = vst.msk [vmem:[#allocation2 + $0x48] sm:$0xff] %vm1926, %v3638
        %3683 = vst.msk [vmem:[#allocation2 + $0x68] sm:$0xff] %vm1926, %v3643
        %3684 = vst.msk [vmem:[#allocation2 + $0x88] sm:$0xff] %vm1926, %v2438
        %3685 = vst.msk [vmem:[#allocation2 + $0xa8] sm:$0xff] %vm1926, %v2439
        %v3686 = vld [vmem:[#allocation2] sm:$0xff]
        %v3687 = vld [vmem:[#allocation2 + $0x8] sm:$0xff]
        %v3688 = vld [vmem:[#allocation2 + $0x20] sm:$0xff]
        %v3689 = vld [vmem:[#allocation2 + $0x28] sm:$0xff]
        %v3690 = vld [vmem:[#allocation2 + $0x40] sm:$0xff]
        %v3691 = vld [vmem:[#allocation2 + $0x48] sm:$0xff]
        %v3692 = vld [vmem:[#allocation2 + $0x60] sm:$0xff]
        %v3693 = vld [vmem:[#allocation2 + $0x68] sm:$0xff]
        %v3694 = vld [vmem:[#allocation2 + $0x80] sm:$0xff]
        %v3695 = vld [vmem:[#allocation2 + $0x88] sm:$0xff]
        %v3696 = vld [vmem:[#allocation2 + $0xa0] sm:$0xff]
        %v3697 = vld [vmem:[#allocation2 + $0xa8] sm:$0xff]
        %v3698 = vmul.f32 %v3686, %v1939
        %v3699 = vmul.f32 %v3687, %v1939
        %v3700 = vmul.f32 %v3688, %v1939
        %v3701 = vmul.f32 %v3689, %v1939
        %v3702 = vmul.f32 %v3690, %v1939
        %v3703 = vmul.f32 %v3691, %v1939
        %v3704 = vmul.f32 %v3692, %v1939
        %v3705 = vmul.f32 %v3693, %v1939
        %v3706 = vmul.f32 %v3694, %v1939
        %v3707 = vmul.f32 %v3695, %v1939
        %v3708 = vmul.f32 %v3696, %v1939
        %v3709 = vmul.f32 %v3697, %v1939
        %3722 = vrot.lane.b32.xlu0 %v3698, 9
        %v3723 = vpop.permute.xlu0 %3722
        %3724 = vrot.lane.b32.xlu0 %v3699, 9
        %v3725 = vpop.permute.xlu0 %3724
        %3726 = vrot.lane.b32.xlu0 %v3700, 9
        %v3727 = vpop.permute.xlu0 %3726
        %3728 = vrot.lane.b32.xlu0 %v3701, 9
        %v3729 = vpop.permute.xlu0 %3728
        %3730 = vrot.lane.b32.xlu0 %v3702, 9
        %v3731 = vpop.permute.xlu0 %3730
        %3732 = vrot.lane.b32.xlu0 %v3703, 9
        %v3733 = vpop.permute.xlu0 %3732
        %3734 = vrot.lane.b32.xlu0 %v3704, 9
        %v3735 = vpop.permute.xlu0 %3734
        %3736 = vrot.lane.b32.xlu0 %v3705, 9
        %v3737 = vpop.permute.xlu0 %3736
        %3738 = vrot.lane.b32.xlu0 %v3706, 9
        %v3739 = vpop.permute.xlu0 %3738
        %3740 = vrot.lane.b32.xlu0 %v3707, 9
        %v3741 = vpop.permute.xlu0 %3740
        %3742 = vrot.lane.b32.xlu0 %v3708, 9
        %v3743 = vpop.permute.xlu0 %3742
        %3744 = vrot.lane.b32.xlu0 %v3709, 9
        %v3745 = vpop.permute.xlu0 %3744
        %v3746 = vsel %vm1949, %v3723, %v3725
        %v3747 = vsel %vm1949, %v3727, %v3729
        %v3748 = vsel %vm1949, %v3731, %v3733
        %v3749 = vsel %vm1949, %v3735, %v3737
        %v3750 = vsel %vm1949, %v3739, %v3741
        %v3751 = vsel %vm1949, %v3743, %v3745
        %3758 = vst.msk [vmem:[#allocation3] sm:$0xff] %vm1926, %v3746
        %3759 = vst.msk [vmem:[#allocation3 + $0x10] sm:$0xff] %vm1926, %v3747
        %3760 = vst.msk [vmem:[#allocation3 + $0x20] sm:$0xff] %vm1926, %v3748
        %3761 = vst.msk [vmem:[#allocation3 + $0x30] sm:$0xff] %vm1926, %v3749
        %3762 = vst.msk [vmem:[#allocation3 + $0x40] sm:$0xff] %vm1926, %v3750
        %3763 = vst.msk [vmem:[#allocation3 + $0x50] sm:$0xff] %vm1926, %v3751
        %v3764 = vld [vmem:[#allocation2] sm:$0xff]
        %v3765 = vld [vmem:[#allocation2 + $0x8] sm:$0xff]
        %v3766 = vld [vmem:[#allocation2 + $0x20] sm:$0xff]
        %v3767 = vld [vmem:[#allocation2 + $0x28] sm:$0xff]
        %v3768 = vld [vmem:[#allocation2 + $0x40] sm:$0xff]
        %v3769 = vld [vmem:[#allocation2 + $0x48] sm:$0xff]
        %v3770 = vld [vmem:[#allocation2 + $0x60] sm:$0xff]
        %v3771 = vld [vmem:[#allocation2 + $0x68] sm:$0xff]
        %v3772 = vld [vmem:[#allocation2 + $0x80] sm:$0xff]
        %v3773 = vld [vmem:[#allocation2 + $0x88] sm:$0xff]
        %v3774 = vld [vmem:[#allocation2 + $0xa0] sm:$0xff]
        %v3775 = vld [vmem:[#allocation2 + $0xa8] sm:$0xff]
        %3788 = vrot.lane.b32.xlu0 %v3764, 8
        %v3789 = vpop.permute.xlu0 %3788
        %3790 = vrot.lane.b32.xlu0 %v3765, 8
        %v3791 = vpop.permute.xlu0 %3790
        %3792 = vrot.lane.b32.xlu0 %v3766, 8
        %v3793 = vpop.permute.xlu0 %3792
        %3794 = vrot.lane.b32.xlu0 %v3767, 8
        %v3795 = vpop.permute.xlu0 %3794
        %3796 = vrot.lane.b32.xlu0 %v3768, 8
        %v3797 = vpop.permute.xlu0 %3796
        %3798 = vrot.lane.b32.xlu0 %v3769, 8
        %v3799 = vpop.permute.xlu0 %3798
        %3800 = vrot.lane.b32.xlu0 %v3770, 8
        %v3801 = vpop.permute.xlu0 %3800
        %3802 = vrot.lane.b32.xlu0 %v3771, 8
        %v3803 = vpop.permute.xlu0 %3802
        %3804 = vrot.lane.b32.xlu0 %v3772, 8
        %v3805 = vpop.permute.xlu0 %3804
        %3806 = vrot.lane.b32.xlu0 %v3773, 8
        %v3807 = vpop.permute.xlu0 %3806
        %3808 = vrot.lane.b32.xlu0 %v3774, 8
        %v3809 = vpop.permute.xlu0 %3808
        %3810 = vrot.lane.b32.xlu0 %v3775, 8
        %v3811 = vpop.permute.xlu0 %3810
        %v3812 = vsel %vm1961, %v3789, %v3791
        %v3813 = vsel %vm1961, %v3793, %v3795
        %v3814 = vsel %vm1961, %v3797, %v3799
        %v3815 = vsel %vm1961, %v3801, %v3803
        %v3816 = vsel %vm1961, %v3805, %v3807
        %v3817 = vsel %vm1961, %v3809, %v3811
        %3824 = vst.msk [vmem:[#allocation3 + $0x60] sm:$0xff] %vm1926, %v3812
        %3825 = vst.msk [vmem:[#allocation3 + $0x70] sm:$0xff] %vm1926, %v3813
        %3826 = vst.msk [vmem:[#allocation3 + $0x80] sm:$0xff] %vm1926, %v3814
        %3827 = vst.msk [vmem:[#allocation3 + $0x90] sm:$0xff] %vm1926, %v3815
        %3828 = vst.msk [vmem:[#allocation3 + $0xa0] sm:$0xff] %vm1926, %v3816
        %3829 = vst.msk [vmem:[#allocation3 + $0xb0] sm:$0xff] %vm1926, %v3817
        %v3830 = vld [vmem:[#allocation2] sm:$0xff]
        %v3831 = vld [vmem:[#allocation2 + $0x8] sm:$0xff]
        %v3832 = vld [vmem:[#allocation2 + $0x20] sm:$0xff]
        %v3833 = vld [vmem:[#allocation2 + $0x28] sm:$0xff]
        %v3834 = vld [vmem:[#allocation2 + $0x40] sm:$0xff]
        %v3835 = vld [vmem:[#allocation2 + $0x48] sm:$0xff]
        %v3836 = vld [vmem:[#allocation2 + $0x60] sm:$0xff]
        %v3837 = vld [vmem:[#allocation2 + $0x68] sm:$0xff]
        %v3838 = vld [vmem:[#allocation2 + $0x80] sm:$0xff]
        %v3839 = vld [vmem:[#allocation2 + $0x88] sm:$0xff]
        %v3840 = vld [vmem:[#allocation2 + $0xa0] sm:$0xff]
        %v3841 = vld [vmem:[#allocation2 + $0xa8] sm:$0xff]
        %v3842 = vmul.f32 %v3830, %v1969
        %v3843 = vmul.f32 %v3831, %v1969
        %v3844 = vmul.f32 %v3832, %v1969
        %v3845 = vmul.f32 %v3833, %v1969
        %v3846 = vmul.f32 %v3834, %v1969
        %v3847 = vmul.f32 %v3835, %v1969
        %v3848 = vmul.f32 %v3836, %v1969
        %v3849 = vmul.f32 %v3837, %v1969
        %v3850 = vmul.f32 %v3838, %v1969
        %v3851 = vmul.f32 %v3839, %v1969
        %v3852 = vmul.f32 %v3840, %v1969
        %v3853 = vmul.f32 %v3841, %v1969
        %3866 = vrot.lane.b32.xlu0 %v3842, 7
        %v3867 = vpop.permute.xlu0 %3866
        %3868 = vrot.lane.b32.xlu0 %v3843, 7
        %v3869 = vpop.permute.xlu0 %3868
        %3870 = vrot.lane.b32.xlu0 %v3844, 7
        %v3871 = vpop.permute.xlu0 %3870
        %3872 = vrot.lane.b32.xlu0 %v3845, 7
        %v3873 = vpop.permute.xlu0 %3872
        %3874 = vrot.lane.b32.xlu0 %v3846, 7
        %v3875 = vpop.permute.xlu0 %3874
        %3876 = vrot.lane.b32.xlu0 %v3847, 7
        %v3877 = vpop.permute.xlu0 %3876
        %3878 = vrot.lane.b32.xlu0 %v3848, 7
        %v3879 = vpop.permute.xlu0 %3878
        %3880 = vrot.lane.b32.xlu0 %v3849, 7
        %v3881 = vpop.permute.xlu0 %3880
        %3882 = vrot.lane.b32.xlu0 %v3850, 7
        %v3883 = vpop.permute.xlu0 %3882
        %3884 = vrot.lane.b32.xlu0 %v3851, 7
        %v3885 = vpop.permute.xlu0 %3884
        %3886 = vrot.lane.b32.xlu0 %v3852, 7
        %v3887 = vpop.permute.xlu0 %3886
        %3888 = vrot.lane.b32.xlu0 %v3853, 7
        %v3889 = vpop.permute.xlu0 %3888
        %v3890 = vsel %vm1979, %v3867, %v3869
        %v3891 = vsel %vm1979, %v3871, %v3873
        %v3892 = vsel %vm1979, %v3875, %v3877
        %v3893 = vsel %vm1979, %v3879, %v3881
        %v3894 = vsel %vm1979, %v3883, %v3885
        %v3895 = vsel %vm1979, %v3887, %v3889
        %3902 = vst.msk [vmem:[#allocation3 + $0xc0] sm:$0xff] %vm1926, %v3890
        %3903 = vst.msk [vmem:[#allocation3 + $0xd0] sm:$0xff] %vm1926, %v3891
        %3904 = vst.msk [vmem:[#allocation3 + $0xe0] sm:$0xff] %vm1926, %v3892
        %3905 = vst.msk [vmem:[#allocation3 + $0xf0] sm:$0xff] %vm1926, %v3893
        %3906 = vst.msk [vmem:[#allocation3 + $0x100] sm:$0xff] %vm1926, %v3894
        %3907 = vst.msk [vmem:[#allocation3 + $0x110] sm:$0xff] %vm1926, %v3895
        %v3908 = vld [vmem:[#allocation2] sm:$0xff]
        %v3909 = vld [vmem:[#allocation2 + $0x8] sm:$0xff]
        %v3910 = vld [vmem:[#allocation2 + $0x20] sm:$0xff]
        %v3911 = vld [vmem:[#allocation2 + $0x28] sm:$0xff]
        %v3912 = vld [vmem:[#allocation2 + $0x40] sm:$0xff]
        %v3913 = vld [vmem:[#allocation2 + $0x48] sm:$0xff]
        %v3914 = vld [vmem:[#allocation2 + $0x60] sm:$0xff]
        %v3915 = vld [vmem:[#allocation2 + $0x68] sm:$0xff]
        %v3916 = vld [vmem:[#allocation2 + $0x80] sm:$0xff]
        %v3917 = vld [vmem:[#allocation2 + $0x88] sm:$0xff]
        %v3918 = vld [vmem:[#allocation2 + $0xa0] sm:$0xff]
        %v3919 = vld [vmem:[#allocation2 + $0xa8] sm:$0xff]
        %v3920 = vmul.f32 %v3908, %v1986
        %v3921 = vmul.f32 %v3909, %v1986
        %v3922 = vmul.f32 %v3910, %v1986
        %v3923 = vmul.f32 %v3911, %v1986
        %v3924 = vmul.f32 %v3912, %v1986
        %v3925 = vmul.f32 %v3913, %v1986
        %v3926 = vmul.f32 %v3914, %v1986
        %v3927 = vmul.f32 %v3915, %v1986
        %v3928 = vmul.f32 %v3916, %v1986
        %v3929 = vmul.f32 %v3917, %v1986
        %v3930 = vmul.f32 %v3918, %v1986
        %v3931 = vmul.f32 %v3919, %v1986
        %3944 = vrot.lane.b32.xlu0 %v3920, 1
        %v3945 = vpop.permute.xlu0 %3944
        %3946 = vrot.lane.b32.xlu0 %v3921, 1
        %v3947 = vpop.permute.xlu0 %3946
        %3948 = vrot.lane.b32.xlu0 %v3922, 1
        %v3949 = vpop.permute.xlu0 %3948
        %3950 = vrot.lane.b32.xlu0 %v3923, 1
        %v3951 = vpop.permute.xlu0 %3950
        %3952 = vrot.lane.b32.xlu0 %v3924, 1
        %v3953 = vpop.permute.xlu0 %3952
        %3954 = vrot.lane.b32.xlu0 %v3925, 1
        %v3955 = vpop.permute.xlu0 %3954
        %3956 = vrot.lane.b32.xlu0 %v3926, 1
        %v3957 = vpop.permute.xlu0 %3956
        %3958 = vrot.lane.b32.xlu0 %v3927, 1
        %v3959 = vpop.permute.xlu0 %3958
        %3960 = vrot.lane.b32.xlu0 %v3928, 1
        %v3961 = vpop.permute.xlu0 %3960
        %3962 = vrot.lane.b32.xlu0 %v3929, 1
        %v3963 = vpop.permute.xlu0 %3962
        %3964 = vrot.lane.b32.xlu0 %v3930, 1
        %v3965 = vpop.permute.xlu0 %3964
        %3966 = vrot.lane.b32.xlu0 %v3931, 1
        %v3967 = vpop.permute.xlu0 %3966
        %v3968 = vsel %vm1223, %v3945, %v3947
        %v3969 = vsel %vm1223, %v3949, %v3951
        %v3970 = vsel %vm1223, %v3953, %v3955
        %v3971 = vsel %vm1223, %v3957, %v3959
        %v3972 = vsel %vm1223, %v3961, %v3963
        %v3973 = vsel %vm1223, %v3965, %v3967
        %3980 = vst.msk [vmem:[#allocation3 + $0x120] sm:$0xff] %vm1926, %v3968
        %3981 = vst.msk [vmem:[#allocation3 + $0x130] sm:$0xff] %vm1926, %v3969
        %3982 = vst.msk [vmem:[#allocation3 + $0x140] sm:$0xff] %vm1926, %v3970
        %3983 = vst.msk [vmem:[#allocation3 + $0x150] sm:$0xff] %vm1926, %v3971
        %3984 = vst.msk [vmem:[#allocation3 + $0x160] sm:$0xff] %vm1926, %v3972
        %3985 = vst.msk [vmem:[#allocation3 + $0x170] sm:$0xff] %vm1926, %v3973
        %v3986 = vld [vmem:[#allocation2 + $0x8] sm:$0xff]
        %v3987 = vld [vmem:[#allocation2 + $0x28] sm:$0xff]
        %v3988 = vld [vmem:[#allocation2 + $0x48] sm:$0xff]
        %v3989 = vld [vmem:[#allocation2 + $0x68] sm:$0xff]
        %v3990 = vld [vmem:[#allocation2 + $0x88] sm:$0xff]
        %v3991 = vld [vmem:[#allocation2 + $0xa8] sm:$0xff]
        %3992 = vst.msk [vmem:[#allocation3 + $0x180] sm:$0xff] %vm1926, %v3986
        %3993 = vst.msk [vmem:[#allocation3 + $0x190] sm:$0xff] %vm1926, %v3987
        %3994 = vst.msk [vmem:[#allocation3 + $0x1a0] sm:$0xff] %vm1926, %v3988
        %3995 = vst.msk [vmem:[#allocation3 + $0x1b0] sm:$0xff] %vm1926, %v3989
        %3996 = vst.msk [vmem:[#allocation3 + $0x1c0] sm:$0xff] %vm1926, %v3990
        %3997 = vst.msk [vmem:[#allocation3 + $0x1d0] sm:$0xff] %vm1926, %v3991
        %v3998 = vld [vmem:[#allocation2 + $0x8] sm:$0xff]
        %v3999 = vld [vmem:[#allocation2 + $0x28] sm:$0xff]
        %v4000 = vld [vmem:[#allocation2 + $0x48] sm:$0xff]
        %v4001 = vld [vmem:[#allocation2 + $0x68] sm:$0xff]
        %v4002 = vld [vmem:[#allocation2 + $0x88] sm:$0xff]
        %v4003 = vld [vmem:[#allocation2 + $0xa8] sm:$0xff]
        %v4004 = vmul.f32 %v3998, %v2003
        %v4005 = vmul.f32 %v3999, %v2003
        %v4006 = vmul.f32 %v4000, %v2003
        %v4007 = vmul.f32 %v4001, %v2003
        %v4008 = vmul.f32 %v4002, %v2003
        %v4009 = vmul.f32 %v4003, %v2003
        %4016 = vrot.lane.b32.xlu0 %v4004, 127
        %v4017 = vpop.permute.xlu0 %4016
        %4018 = vrot.lane.b32.xlu0 %v4005, 127
        %v4019 = vpop.permute.xlu0 %4018
        %4020 = vrot.lane.b32.xlu0 %v4006, 127
        %v4021 = vpop.permute.xlu0 %4020
        %4022 = vrot.lane.b32.xlu0 %v4007, 127
        %v4023 = vpop.permute.xlu0 %4022
        %4024 = vrot.lane.b32.xlu0 %v4008, 127
        %v4025 = vpop.permute.xlu0 %4024
        %4026 = vrot.lane.b32.xlu0 %v4009, 127
        %v4027 = vpop.permute.xlu0 %4026
        %4034 = vst.msk [vmem:[#allocation3 + $0x1e0] sm:$0xff] %vm1926, %v4017
        %4035 = vst.msk [vmem:[#allocation3 + $0x1f0] sm:$0xff] %vm1926, %v4019
        %4036 = vst.msk [vmem:[#allocation3 + $0x200] sm:$0xff] %vm1926, %v4021
        %4037 = vst.msk [vmem:[#allocation3 + $0x210] sm:$0xff] %vm1926, %v4023
        %4038 = vst.msk [vmem:[#allocation3 + $0x220] sm:$0xff] %vm1926, %v4025
        %4039 = vst.msk [vmem:[#allocation3 + $0x230] sm:$0xff] %vm1926, %v4027
        %v4040 = vld [vmem:[#allocation2 + $0x8] sm:$0xff]
        %v4041 = vld [vmem:[#allocation2 + $0x28] sm:$0xff]
        %v4042 = vld [vmem:[#allocation2 + $0x48] sm:$0xff]
        %v4043 = vld [vmem:[#allocation2 + $0x68] sm:$0xff]
        %v4044 = vld [vmem:[#allocation2 + $0x88] sm:$0xff]
        %v4045 = vld [vmem:[#allocation2 + $0xa8] sm:$0xff]
        %v4046 = vmul.f32 %v4040, %v2013
        %v4047 = vmul.f32 %v4041, %v2013
        %v4048 = vmul.f32 %v4042, %v2013
        %v4049 = vmul.f32 %v4043, %v2013
        %v4050 = vmul.f32 %v4044, %v2013
        %v4051 = vmul.f32 %v4045, %v2013
        %4058 = vrot.lane.b32.xlu0 %v4046, 121
        %v4059 = vpop.permute.xlu0 %4058
        %4060 = vrot.lane.b32.xlu0 %v4047, 121
        %v4061 = vpop.permute.xlu0 %4060
        %4062 = vrot.lane.b32.xlu0 %v4048, 121
        %v4063 = vpop.permute.xlu0 %4062
        %4064 = vrot.lane.b32.xlu0 %v4049, 121
        %v4065 = vpop.permute.xlu0 %4064
        %4066 = vrot.lane.b32.xlu0 %v4050, 121
        %v4067 = vpop.permute.xlu0 %4066
        %4068 = vrot.lane.b32.xlu0 %v4051, 121
        %v4069 = vpop.permute.xlu0 %4068
        %4076 = vst.msk [vmem:[#allocation3 + $0x240] sm:$0xff] %vm1926, %v4059
        %4077 = vst.msk [vmem:[#allocation3 + $0x250] sm:$0xff] %vm1926, %v4061
        %4078 = vst.msk [vmem:[#allocation3 + $0x260] sm:$0xff] %vm1926, %v4063
        %4079 = vst.msk [vmem:[#allocation3 + $0x270] sm:$0xff] %vm1926, %v4065
        %4080 = vst.msk [vmem:[#allocation3 + $0x280] sm:$0xff] %vm1926, %v4067
        %4081 = vst.msk [vmem:[#allocation3 + $0x290] sm:$0xff] %vm1926, %v4069
        %v4082 = vld [vmem:[#allocation2 + $0x8] sm:$0xff]
        %v4083 = vld [vmem:[#allocation2 + $0x28] sm:$0xff]
        %v4084 = vld [vmem:[#allocation2 + $0x48] sm:$0xff]
        %v4085 = vld [vmem:[#allocation2 + $0x68] sm:$0xff]
        %v4086 = vld [vmem:[#allocation2 + $0x88] sm:$0xff]
        %v4087 = vld [vmem:[#allocation2 + $0xa8] sm:$0xff]
        %4094 = vrot.lane.b32.xlu0 %v4082, 120
        %v4095 = vpop.permute.xlu0 %4094
        %4096 = vrot.lane.b32.xlu0 %v4083, 120
        %v4097 = vpop.permute.xlu0 %4096
        %4098 = vrot.lane.b32.xlu0 %v4084, 120
        %v4099 = vpop.permute.xlu0 %4098
        %4100 = vrot.lane.b32.xlu0 %v4085, 120
        %v4101 = vpop.permute.xlu0 %4100
        %4102 = vrot.lane.b32.xlu0 %v4086, 120
        %v4103 = vpop.permute.xlu0 %4102
        %4104 = vrot.lane.b32.xlu0 %v4087, 120
        %v4105 = vpop.permute.xlu0 %4104
        %4112 = vst.msk [vmem:[#allocation3 + $0x2a0] sm:$0xff] %vm1926, %v4095
        %4113 = vst.msk [vmem:[#allocation3 + $0x2b0] sm:$0xff] %vm1926, %v4097
        %4114 = vst.msk [vmem:[#allocation3 + $0x2c0] sm:$0xff] %vm1926, %v4099
        %4115 = vst.msk [vmem:[#allocation3 + $0x2d0] sm:$0xff] %vm1926, %v4101
        %4116 = vst.msk [vmem:[#allocation3 + $0x2e0] sm:$0xff] %vm1926, %v4103
        %4117 = vst.msk [vmem:[#allocation3 + $0x2f0] sm:$0xff] %vm1926, %v4105
        %v4118 = vld [vmem:[#allocation2 + $0x8] sm:$0xff]
        %v4119 = vld [vmem:[#allocation2 + $0x28] sm:$0xff]
        %v4120 = vld [vmem:[#allocation2 + $0x48] sm:$0xff]
        %v4121 = vld [vmem:[#allocation2 + $0x68] sm:$0xff]
        %v4122 = vld [vmem:[#allocation2 + $0x88] sm:$0xff]
        %v4123 = vld [vmem:[#allocation2 + $0xa8] sm:$0xff]
        %v4124 = vmul.f32 %v4118, %v2029
        %v4125 = vmul.f32 %v4119, %v2029
        %v4126 = vmul.f32 %v4120, %v2029
        %v4127 = vmul.f32 %v4121, %v2029
        %v4128 = vmul.f32 %v4122, %v2029
        %v4129 = vmul.f32 %v4123, %v2029
        %4136 = vrot.lane.b32.xlu0 %v4124, 119
        %v4137 = vpop.permute.xlu0 %4136
        %4138 = vrot.lane.b32.xlu0 %v4125, 119
        %v4139 = vpop.permute.xlu0 %4138
        %4140 = vrot.lane.b32.xlu0 %v4126, 119
        %v4141 = vpop.permute.xlu0 %4140
        %4142 = vrot.lane.b32.xlu0 %v4127, 119
        %v4143 = vpop.permute.xlu0 %4142
        %4144 = vrot.lane.b32.xlu0 %v4128, 119
        %v4145 = vpop.permute.xlu0 %4144
        %4146 = vrot.lane.b32.xlu0 %v4129, 119
        %v4147 = vpop.permute.xlu0 %4146
        %4154 = vst.msk [vmem:[#allocation3 + $0x300] sm:$0xff] %vm1926, %v4137
        %4155 = vst.msk [vmem:[#allocation3 + $0x310] sm:$0xff] %vm1926, %v4139
        %4156 = vst.msk [vmem:[#allocation3 + $0x320] sm:$0xff] %vm1926, %v4141
        %4157 = vst.msk [vmem:[#allocation3 + $0x330] sm:$0xff] %vm1926, %v4143
        %4158 = vst.msk [vmem:[#allocation3 + $0x340] sm:$0xff] %vm1926, %v4145
        %4159 = vst.msk [vmem:[#allocation3 + $0x350] sm:$0xff] %vm1926, %v4147
        %v4160 = vld [vmem:[#allocation3] sm:$0xff]
        %v4161 = vld [vmem:[#allocation3 + $0x10] sm:$0xff]
        %v4162 = vld [vmem:[#allocation3 + $0x20] sm:$0xff]
        %v4163 = vld [vmem:[#allocation3 + $0x30] sm:$0xff]
        %v4164 = vld [vmem:[#allocation3 + $0x40] sm:$0xff]
        %v4165 = vld [vmem:[#allocation3 + $0x50] sm:$0xff]
        %v4166 = vld [vmem:[#allocation3 + $0x60] sm:$0xff]
        %v4167 = vld [vmem:[#allocation3 + $0x70] sm:$0xff]
        %v4168 = vld [vmem:[#allocation3 + $0x80] sm:$0xff]
        %v4169 = vld [vmem:[#allocation3 + $0x90] sm:$0xff]
        %v4170 = vld [vmem:[#allocation3 + $0xa0] sm:$0xff]
        %v4171 = vld [vmem:[#allocation3 + $0xb0] sm:$0xff]
        %v4172 = vld [vmem:[#allocation3 + $0xc0] sm:$0xff]
        %v4173 = vld [vmem:[#allocation3 + $0xd0] sm:$0xff]
        %v4174 = vld [vmem:[#allocation3 + $0xe0] sm:$0xff]
        %v4175 = vld [vmem:[#allocation3 + $0xf0] sm:$0xff]
        %v4176 = vld [vmem:[#allocation3 + $0x100] sm:$0xff]
        %v4177 = vld [vmem:[#allocation3 + $0x110] sm:$0xff]
        %v4178 = vld [vmem:[#allocation3 + $0x120] sm:$0xff]
        %v4179 = vld [vmem:[#allocation3 + $0x130] sm:$0xff]
        %v4180 = vld [vmem:[#allocation3 + $0x140] sm:$0xff]
        %v4181 = vld [vmem:[#allocation3 + $0x150] sm:$0xff]
        %v4182 = vld [vmem:[#allocation3 + $0x160] sm:$0xff]
        %v4183 = vld [vmem:[#allocation3 + $0x170] sm:$0xff]
        %v4184 = vld [vmem:[#allocation3 + $0x180] sm:$0xff]
        %v4185 = vld [vmem:[#allocation3 + $0x190] sm:$0xff]
        %v4186 = vld [vmem:[#allocation3 + $0x1a0] sm:$0xff]
        %v4187 = vld [vmem:[#allocation3 + $0x1b0] sm:$0xff]
        %v4188 = vld [vmem:[#allocation3 + $0x1c0] sm:$0xff]
        %v4189 = vld [vmem:[#allocation3 + $0x1d0] sm:$0xff]
        %v4190 = vld [vmem:[#allocation3 + $0x1e0] sm:$0xff]
        %v4191 = vld [vmem:[#allocation3 + $0x1f0] sm:$0xff]
        %v4192 = vld [vmem:[#allocation3 + $0x200] sm:$0xff]
        %v4193 = vld [vmem:[#allocation3 + $0x210] sm:$0xff]
        %v4194 = vld [vmem:[#allocation3 + $0x220] sm:$0xff]
        %v4195 = vld [vmem:[#allocation3 + $0x230] sm:$0xff]
        %v4196 = vld [vmem:[#allocation3 + $0x240] sm:$0xff]
        %v4197 = vld [vmem:[#allocation3 + $0x250] sm:$0xff]
        %v4198 = vld [vmem:[#allocation3 + $0x260] sm:$0xff]
        %v4199 = vld [vmem:[#allocation3 + $0x270] sm:$0xff]
        %v4200 = vld [vmem:[#allocation3 + $0x280] sm:$0xff]
        %v4201 = vld [vmem:[#allocation3 + $0x290] sm:$0xff]
        %v4202 = vld [vmem:[#allocation3 + $0x2a0] sm:$0xff]
        %v4203 = vld [vmem:[#allocation3 + $0x2b0] sm:$0xff]
        %v4204 = vld [vmem:[#allocation3 + $0x2c0] sm:$0xff]
        %v4205 = vld [vmem:[#allocation3 + $0x2d0] sm:$0xff]
        %v4206 = vld [vmem:[#allocation3 + $0x2e0] sm:$0xff]
        %v4207 = vld [vmem:[#allocation3 + $0x2f0] sm:$0xff]
        %v4208 = vld [vmem:[#allocation3 + $0x300] sm:$0xff]
        %v4209 = vld [vmem:[#allocation3 + $0x310] sm:$0xff]
        %v4210 = vld [vmem:[#allocation3 + $0x320] sm:$0xff]
        %v4211 = vld [vmem:[#allocation3 + $0x330] sm:$0xff]
        %v4212 = vld [vmem:[#allocation3 + $0x340] sm:$0xff]
        %v4213 = vld [vmem:[#allocation3 + $0x350] sm:$0xff]
        %4215 = vset.pattern.permute.xlu0 0
        %4216 = vperm.xlu0 %4215, %v3654
        %v4217 = vpop.permute.xlu0 %4216
        %4220 = vset.pattern.permute.xlu0 0
        %4221 = vperm.xlu0 %4220, %v3655
        %v4222 = vpop.permute.xlu0 %4221
        %vm4224 = vcmask 392192
        %v4226 = vsel %vm4224, %v3649, 0
        %v4229 = vsel %vm4224, %v3653, 0
        %4231 = vmatprep.subr.mxu0 0.0
        %4232 = vmatpush1.msra.mxu0 %v4175
        %4233 = vmatprep.subr.mxu0 0.0
        %4234 = vmatpush1.msra.mxu0 %v4174
        %4235 = vmatprep.subr.mxu0 0.0
        %4236 = vmatpush1.msra.mxu0 %v4173
        %4237 = vmatprep.subr.mxu0 0.0
        %4238 = vmatpush1.msra.mxu0 %v4172
        %4239 = vmatprep.subr.mxu0 0.0
        %4240 = vmatpush1.msra.mxu0 %v4171
        %4241 = vmatprep.subr.mxu0 0.0
        %4242 = vmatpush1.msra.mxu0 %v4170
        %4243 = vmatprep.subr.mxu0 0.0
        %4244 = vmatpush1.msra.mxu0 %v4169
        %4245 = vmatprep.subr.mxu0 0.0
        %4246 = vmatpush1.msra.mxu0 %v4168
        %4247 = vmatprep.subr.mxu0 0.0
        %4248 = vmatpush1.msra.mxu0 %v4167
        %4249 = vmatprep.subr.mxu0 0.0
        %4250 = vmatpush1.msra.mxu0 %v4166
        %4251 = vmatprep.subr.mxu0 0.0
        %4252 = vmatpush1.msra.mxu0 %v4165
        %4253 = vmatprep.subr.mxu0 0.0
        %4254 = vmatpush1.msra.mxu0 %v4164
        %4255 = vmatprep.subr.mxu0 0.0
        %4256 = vmatpush1.msra.mxu0 %v4163
        %4257 = vmatprep.subr.mxu0 0.0
        %4258 = vmatpush1.msra.mxu0 %v4162
        %4259 = vmatprep.subr.mxu0 0.0
        %4260 = vmatpush1.msra.mxu0 %v4161
        %4261 = vmatprep.subr.mxu0 0.0
        %4262 = vmatpush1.msra.mxu0 %v4160
        %4263 = vmatprep.subr.mxu0 0.0
        %4264 = vmatpush2.msra.mxu0 %v4191
        %4265 = vmatprep.subr.mxu0 0.0
        %4266 = vmatpush2.msra.mxu0 %v4190
        %4267 = vmatprep.subr.mxu0 0.0
        %4268 = vmatpush2.msra.mxu0 %v4189
        %4269 = vmatprep.subr.mxu0 0.0
        %4270 = vmatpush2.msra.mxu0 %v4188
        %4271 = vmatprep.subr.mxu0 0.0
        %4272 = vmatpush2.msra.mxu0 %v4187
        %4273 = vmatprep.subr.mxu0 0.0
        %4274 = vmatpush2.msra.mxu0 %v4186
        %4275 = vmatprep.subr.mxu0 0.0
        %4276 = vmatpush2.msra.mxu0 %v4185
        %4277 = vmatprep.subr.mxu0 0.0
        %4278 = vmatpush2.msra.mxu0 %v4184
        %4279 = vmatprep.subr.mxu0 0.0
        %4280 = vmatpush2.msra.mxu0 %v4183
        %4281 = vmatprep.subr.mxu0 0.0
        %4282 = vmatpush2.msra.mxu0 %v4182
        %4283 = vmatprep.subr.mxu0 0.0
        %4284 = vmatpush2.msra.mxu0 %v4181
        %4285 = vmatprep.subr.mxu0 0.0
        %4286 = vmatpush2.msra.mxu0 %v4180
        %4287 = vmatprep.subr.mxu0 0.0
        %4288 = vmatpush2.msra.mxu0 %v4179
        %4289 = vmatprep.subr.mxu0 0.0
        %4290 = vmatpush2.msra.mxu0 %v4178
        %4291 = vmatprep.subr.mxu0 0.0
        %4292 = vmatpush2.msra.mxu0 %v4177
        %4293 = vmatprep.subr.mxu0 0.0
        %4294 = vmatpush2.msra.mxu0 %v4176
        %4295 = vmatprep.mubr.f32.mxu0 %v3647
        %4296 = vmatmul.mubr.f32.gmra.mxu0 %v3646
        %v4297 = vpop.f32.mrf.mxu0
        %v4298 = vadd.f32 %v4217, %v4297
        %v4299 = vpop.f32.mrf.mxu0
        %4300 = vmatprep.mubr.f32.mxu0 %v3651
        %4301 = vmatmul.mubr.f32.gmra.mxu0 %v3650
        %v4302 = vpop.f32.mrf.mxu0
        %v4303 = vadd.f32 %v4222, %v4302
        %v4304 = vpop.f32.mrf.mxu0
        %4305 = vdwg.mxu0
        %4306 = vmatprep.subr.mxu0 0.0
        %4307 = vmatpush1.msra.mxu0 %v4207
        %4308 = vmatprep.subr.mxu0 0.0
        %4309 = vmatpush1.msra.mxu0 %v4206
        %4310 = vmatprep.subr.mxu0 0.0
        %4311 = vmatpush1.msra.mxu0 %v4205
        %4312 = vmatprep.subr.mxu0 0.0
        %4313 = vmatpush1.msra.mxu0 %v4204
        %4314 = vmatprep.subr.mxu0 0.0
        %4315 = vmatpush1.msra.mxu0 %v4203
        %4316 = vmatprep.subr.mxu0 0.0
        %4317 = vmatpush1.msra.mxu0 %v4202
        %4318 = vmatprep.subr.mxu0 0.0
        %4319 = vmatpush1.msra.mxu0 %v4201
        %4320 = vmatprep.subr.mxu0 0.0
        %4321 = vmatpush1.msra.mxu0 %v4200
        %4322 = vmatprep.subr.mxu0 0.0
        %4323 = vmatpush1.msra.mxu0 %v4199
        %4324 = vmatprep.subr.mxu0 0.0
        %4325 = vmatpush1.msra.mxu0 %v4198
        %4326 = vmatprep.subr.mxu0 0.0
        %4327 = vmatpush1.msra.mxu0 %v4197
        %4328 = vmatprep.subr.mxu0 0.0
        %4329 = vmatpush1.msra.mxu0 %v4196
        %4330 = vmatprep.subr.mxu0 0.0
        %4331 = vmatpush1.msra.mxu0 %v4195
        %4332 = vmatprep.subr.mxu0 0.0
        %4333 = vmatpush1.msra.mxu0 %v4194
        %4334 = vmatprep.subr.mxu0 0.0
        %4335 = vmatpush1.msra.mxu0 %v4193
        %4336 = vmatprep.subr.mxu0 0.0
        %4337 = vmatpush1.msra.mxu0 %v4192
        %4338 = vmatprep.subr.mxu0 0.0
        %4339 = vmatpush2.msra.mxu0 0.0
        %4340 = vmatprep.subr.mxu0 0.0
        %4341 = vmatpush2.msra.mxu0 0.0
        %4342 = vmatprep.subr.mxu0 0.0
        %4343 = vmatpush2.msra.mxu0 0.0
        %4344 = vmatprep.subr.mxu0 0.0
        %4345 = vmatpush2.msra.mxu0 0.0
        %4346 = vmatprep.subr.mxu0 0.0
        %4347 = vmatpush2.msra.mxu0 0.0
        %4348 = vmatprep.subr.mxu0 0.0
        %4349 = vmatpush2.msra.mxu0 0.0
        %4350 = vmatprep.subr.mxu0 0.0
        %4351 = vmatpush2.msra.mxu0 0.0
        %4352 = vmatprep.subr.mxu0 0.0
        %4353 = vmatpush2.msra.mxu0 0.0
        %4354 = vmatprep.subr.mxu0 0.0
        %4355 = vmatpush2.msra.mxu0 0.0
        %4356 = vmatprep.subr.mxu0 0.0
        %4357 = vmatpush2.msra.mxu0 0.0
        %4358 = vmatprep.subr.mxu0 0.0
        %4359 = vmatpush2.msra.mxu0 %v4213
        %4360 = vmatprep.subr.mxu0 0.0
        %4361 = vmatpush2.msra.mxu0 %v4212
        %4362 = vmatprep.subr.mxu0 0.0
        %4363 = vmatpush2.msra.mxu0 %v4211
        %4364 = vmatprep.subr.mxu0 0.0
        %4365 = vmatpush2.msra.mxu0 %v4210
        %4366 = vmatprep.subr.mxu0 0.0
        %4367 = vmatpush2.msra.mxu0 %v4209
        %4368 = vmatprep.subr.mxu0 0.0
        %4369 = vmatpush2.msra.mxu0 %v4208
        %4370 = vmatprep.mubr.f32.mxu0 %v4226
        %4371 = vmatmul.mubr.f32.gmra.mxu0 %v3648
        %v4372 = vpop.f32.mrf.mxu0
        %v4373 = vadd.f32 %v4298, %v4372
        %v4374 = vpop.f32.mrf.mxu0
        %4375 = vmatprep.mubr.f32.mxu0 %v4229
        %4376 = vmatmul.mubr.f32.gmra.mxu0 %v3652
        %v4377 = vpop.f32.mrf.mxu0
        %v4378 = vadd.f32 %v4303, %v4377
        %v4379 = vpop.f32.mrf.mxu0
        %4380 = vdwg.mxu0
        %v4381 = vmax.f32 %v4373, 0.0
        %v4382 = vmax.f32 %v4378, 0.0
        %v4383 = vld [vmem:[#allocation12] sm:$0xff]
        %v4384 = vld [vmem:[#allocation12 + $0x8] sm:$0xff]
        %v4385 = vld [vmem:[#allocation12 + $0x10] sm:$0xff]
        %v4386 = vld [vmem:[#allocation12 + $0x18] sm:$0xff]
        %v4387 = vld [vmem:[%s16] sm:$0xff]
        %v4388 = vld [vmem:[%s16 + $0x8] sm:$0xff]
        %4389 = vst [vmem:[#allocation2] sm:$0xff] 0.0
        %4390 = vst [vmem:[#allocation2 + $0x8] sm:$0xff] 0.0
        %4391 = vst [vmem:[#allocation2 + $0x10] sm:$0xff] 0.0
        %4392 = vst [vmem:[#allocation2 + $0x18] sm:$0xff] 0.0
        %4393 = vst [vmem:[#allocation2 + $0x20] sm:$0xff] 0.0
        %4394 = vst [vmem:[#allocation2 + $0x28] sm:$0xff] 0.0
        %4395 = vst [vmem:[#allocation2 + $0x30] sm:$0xff] 0.0
        %4396 = vst [vmem:[#allocation2 + $0x38] sm:$0xff] 0.0
        %4397 = vst [vmem:[#allocation2 + $0x40] sm:$0xff] 0.0
        %4398 = vst [vmem:[#allocation2 + $0x48] sm:$0xff] 0.0
        %4399 = vst [vmem:[#allocation2 + $0x50] sm:$0xff] 0.0
        %4400 = vst [vmem:[#allocation2 + $0x58] sm:$0xff] 0.0
        %4401 = vst [vmem:[#allocation2 + $0x60] sm:$0xff] 0.0
        %4402 = vst [vmem:[#allocation2 + $0x68] sm:$0xff] 0.0
        %4403 = vst [vmem:[#allocation2 + $0x70] sm:$0xff] 0.0
        %4404 = vst [vmem:[#allocation2 + $0x78] sm:$0xff] 0.0
        %4405 = vst [vmem:[#allocation2 + $0x80] sm:$0xff] 0.0
        %4406 = vst [vmem:[#allocation2 + $0x88] sm:$0xff] 0.0
        %4407 = vst [vmem:[#allocation2 + $0x90] sm:$0xff] 0.0
        %4408 = vst [vmem:[#allocation2 + $0x98] sm:$0xff] 0.0
        %4409 = vst [vmem:[#allocation2 + $0xa0] sm:$0xff] 0.0
        %4410 = vst [vmem:[#allocation2 + $0xa8] sm:$0xff] 0.0
        %4411 = vst [vmem:[#allocation2 + $0xb0] sm:$0xff] 0.0
        %4412 = vst [vmem:[#allocation2 + $0xb8] sm:$0xff] 0.0
        %4413 = vst.msk [vmem:[#allocation2 + $0x8] sm:$0xff] %vm1926, %v4381
        %4414 = vst.msk [vmem:[#allocation2 + $0x28] sm:$0xff] %vm1926, %v4382
        %v4415 = vld [vmem:[#allocation2] sm:$0xff]
        %v4416 = vld [vmem:[#allocation2 + $0x8] sm:$0xff]
        %v4417 = vld [vmem:[#allocation2 + $0x20] sm:$0xff]
        %v4418 = vld [vmem:[#allocation2 + $0x28] sm:$0xff]
        %v4419 = vmul.f32 %v4415, %v1939
        %v4420 = vmul.f32 %v4416, %v1939
        %v4421 = vmul.f32 %v4417, %v1939
        %v4422 = vmul.f32 %v4418, %v1939
        %4427 = vrot.lane.b32.xlu0 %v4419, 9
        %v4428 = vpop.permute.xlu0 %4427
        %4429 = vrot.lane.b32.xlu0 %v4420, 9
        %v4430 = vpop.permute.xlu0 %4429
        %4431 = vrot.lane.b32.xlu0 %v4421, 9
        %v4432 = vpop.permute.xlu0 %4431
        %4433 = vrot.lane.b32.xlu0 %v4422, 9
        %v4434 = vpop.permute.xlu0 %4433
        %v4435 = vsel %vm1949, %v4428, %v4430
        %v4436 = vsel %vm1949, %v4432, %v4434
        %4439 = vst.msk [vmem:[#allocation3] sm:$0xff] %vm1926, %v4435
        %4440 = vst.msk [vmem:[#allocation3 + $0x10] sm:$0xff] %vm1926, %v4436
        %v4441 = vld [vmem:[#allocation2] sm:$0xff]
        %v4442 = vld [vmem:[#allocation2 + $0x8] sm:$0xff]
        %v4443 = vld [vmem:[#allocation2 + $0x20] sm:$0xff]
        %v4444 = vld [vmem:[#allocation2 + $0x28] sm:$0xff]
        %4449 = vrot.lane.b32.xlu0 %v4441, 8
        %v4450 = vpop.permute.xlu0 %4449
        %4451 = vrot.lane.b32.xlu0 %v4442, 8
        %v4452 = vpop.permute.xlu0 %4451
        %4453 = vrot.lane.b32.xlu0 %v4443, 8
        %v4454 = vpop.permute.xlu0 %4453
        %4455 = vrot.lane.b32.xlu0 %v4444, 8
        %v4456 = vpop.permute.xlu0 %4455
        %v4457 = vsel %vm1961, %v4450, %v4452
        %v4458 = vsel %vm1961, %v4454, %v4456
        %4461 = vst.msk [vmem:[#allocation3 + $0x20] sm:$0xff] %vm1926, %v4457
        %4462 = vst.msk [vmem:[#allocation3 + $0x30] sm:$0xff] %vm1926, %v4458
        %v4463 = vld [vmem:[#allocation2] sm:$0xff]
        %v4464 = vld [vmem:[#allocation2 + $0x8] sm:$0xff]
        %v4465 = vld [vmem:[#allocation2 + $0x20] sm:$0xff]
        %v4466 = vld [vmem:[#allocation2 + $0x28] sm:$0xff]
        %v4467 = vmul.f32 %v4463, %v1969
        %v4468 = vmul.f32 %v4464, %v1969
        %v4469 = vmul.f32 %v4465, %v1969
        %v4470 = vmul.f32 %v4466, %v1969
        %4475 = vrot.lane.b32.xlu0 %v4467, 7
        %v4476 = vpop.permute.xlu0 %4475
        %4477 = vrot.lane.b32.xlu0 %v4468, 7
        %v4478 = vpop.permute.xlu0 %4477
        %4479 = vrot.lane.b32.xlu0 %v4469, 7
        %v4480 = vpop.permute.xlu0 %4479
        %4481 = vrot.lane.b32.xlu0 %v4470, 7
        %v4482 = vpop.permute.xlu0 %4481
        %v4483 = vsel %vm1979, %v4476, %v4478
        %v4484 = vsel %vm1979, %v4480, %v4482
        %4487 = vst.msk [vmem:[#allocation3 + $0x40] sm:$0xff] %vm1926, %v4483
        %4488 = vst.msk [vmem:[#allocation3 + $0x50] sm:$0xff] %vm1926, %v4484
        %v4489 = vld [vmem:[#allocation2] sm:$0xff]
        %v4490 = vld [vmem:[#allocation2 + $0x8] sm:$0xff]
        %v4491 = vld [vmem:[#allocation2 + $0x20] sm:$0xff]
        %v4492 = vld [vmem:[#allocation2 + $0x28] sm:$0xff]
        %v4493 = vmul.f32 %v4489, %v1986
        %v4494 = vmul.f32 %v4490, %v1986
        %v4495 = vmul.f32 %v4491, %v1986
        %v4496 = vmul.f32 %v4492, %v1986
        %4501 = vrot.lane.b32.xlu0 %v4493, 1
        %v4502 = vpop.permute.xlu0 %4501
        %4503 = vrot.lane.b32.xlu0 %v4494, 1
        %v4504 = vpop.permute.xlu0 %4503
        %4505 = vrot.lane.b32.xlu0 %v4495, 1
        %v4506 = vpop.permute.xlu0 %4505
        %4507 = vrot.lane.b32.xlu0 %v4496, 1
        %v4508 = vpop.permute.xlu0 %4507
        %v4509 = vsel %vm1223, %v4502, %v4504
        %v4510 = vsel %vm1223, %v4506, %v4508
        %4513 = vst.msk [vmem:[#allocation3 + $0x60] sm:$0xff] %vm1926, %v4509
        %4514 = vst.msk [vmem:[#allocation3 + $0x70] sm:$0xff] %vm1926, %v4510
        %v4515 = vld [vmem:[#allocation2 + $0x8] sm:$0xff]
        %v4516 = vld [vmem:[#allocation2 + $0x28] sm:$0xff]
        %4517 = vst.msk [vmem:[#allocation3 + $0x80] sm:$0xff] %vm1926, %v4515
        %4518 = vst.msk [vmem:[#allocation3 + $0x90] sm:$0xff] %vm1926, %v4516
        %v4519 = vld [vmem:[#allocation2 + $0x8] sm:$0xff]
        %v4520 = vld [vmem:[#allocation2 + $0x28] sm:$0xff]
        %v4521 = vmul.f32 %v4519, %v2003
        %v4522 = vmul.f32 %v4520, %v2003
        %4525 = vrot.lane.b32.xlu0 %v4521, 127
        %v4526 = vpop.permute.xlu0 %4525
        %4527 = vrot.lane.b32.xlu0 %v4522, 127
        %v4528 = vpop.permute.xlu0 %4527
        %4531 = vst.msk [vmem:[#allocation3 + $0xa0] sm:$0xff] %vm1926, %v4526
        %4532 = vst.msk [vmem:[#allocation3 + $0xb0] sm:$0xff] %vm1926, %v4528
        %v4533 = vld [vmem:[#allocation2 + $0x8] sm:$0xff]
        %v4534 = vld [vmem:[#allocation2 + $0x28] sm:$0xff]
        %v4535 = vmul.f32 %v4533, %v2013
        %v4536 = vmul.f32 %v4534, %v2013
        %4539 = vrot.lane.b32.xlu0 %v4535, 121
        %v4540 = vpop.permute.xlu0 %4539
        %4541 = vrot.lane.b32.xlu0 %v4536, 121
        %v4542 = vpop.permute.xlu0 %4541
        %4545 = vst.msk [vmem:[#allocation3 + $0xc0] sm:$0xff] %vm1926, %v4540
        %4546 = vst.msk [vmem:[#allocation3 + $0xd0] sm:$0xff] %vm1926, %v4542
        %v4547 = vld [vmem:[#allocation2 + $0x8] sm:$0xff]
        %v4548 = vld [vmem:[#allocation2 + $0x28] sm:$0xff]
        %4551 = vrot.lane.b32.xlu0 %v4547, 120
        %v4552 = vpop.permute.xlu0 %4551
        %4553 = vrot.lane.b32.xlu0 %v4548, 120
        %v4554 = vpop.permute.xlu0 %4553
        %4557 = vst.msk [vmem:[#allocation3 + $0xe0] sm:$0xff] %vm1926, %v4552
        %4558 = vst.msk [vmem:[#allocation3 + $0xf0] sm:$0xff] %vm1926, %v4554
        %v4559 = vld [vmem:[#allocation2 + $0x8] sm:$0xff]
        %v4560 = vld [vmem:[#allocation2 + $0x28] sm:$0xff]
        %v4561 = vmul.f32 %v4559, %v2029
        %v4562 = vmul.f32 %v4560, %v2029
        %4565 = vrot.lane.b32.xlu0 %v4561, 119
        %v4566 = vpop.permute.xlu0 %4565
        %4567 = vrot.lane.b32.xlu0 %v4562, 119
        %v4568 = vpop.permute.xlu0 %4567
        %4571 = vst.msk [vmem:[#allocation3 + $0x100] sm:$0xff] %vm1926, %v4566
        %4572 = vst.msk [vmem:[#allocation3 + $0x110] sm:$0xff] %vm1926, %v4568
        %v4573 = vld [vmem:[#allocation3] sm:$0xff]
        %v4574 = vld [vmem:[#allocation3 + $0x10] sm:$0xff]
        %v4575 = vld [vmem:[#allocation3 + $0x20] sm:$0xff]
        %v4576 = vld [vmem:[#allocation3 + $0x30] sm:$0xff]
        %v4577 = vld [vmem:[#allocation3 + $0x40] sm:$0xff]
        %v4578 = vld [vmem:[#allocation3 + $0x50] sm:$0xff]
        %v4579 = vld [vmem:[#allocation3 + $0x60] sm:$0xff]
        %v4580 = vld [vmem:[#allocation3 + $0x70] sm:$0xff]
        %v4581 = vld [vmem:[#allocation3 + $0x80] sm:$0xff]
        %v4582 = vld [vmem:[#allocation3 + $0x90] sm:$0xff]
        %v4583 = vld [vmem:[#allocation3 + $0xa0] sm:$0xff]
        %v4584 = vld [vmem:[#allocation3 + $0xb0] sm:$0xff]
        %v4585 = vld [vmem:[#allocation3 + $0xc0] sm:$0xff]
        %v4586 = vld [vmem:[#allocation3 + $0xd0] sm:$0xff]
        %v4587 = vld [vmem:[#allocation3 + $0xe0] sm:$0xff]
        %v4588 = vld [vmem:[#allocation3 + $0xf0] sm:$0xff]
        %v4589 = vld [vmem:[#allocation3 + $0x100] sm:$0xff]
        %v4590 = vld [vmem:[#allocation3 + $0x110] sm:$0xff]
        %4592 = vset.pattern.permute.xlu0 0
        %4593 = vperm.xlu0 %4592, %v4387
        %v4594 = vpop.permute.xlu0 %4593
        %4597 = vset.pattern.permute.xlu0 0
        %4598 = vperm.xlu0 %4597, %v4388
        %v4599 = vpop.permute.xlu0 %4598
        %v4602 = vsel %vm1159, %v4384, 0
        %v4605 = vsel %vm1159, %v4386, 0
        %4607 = vmatprep.subr.mxu0 0.0
        %4608 = vmatpush1.msra.mxu0 %v4588
        %4609 = vmatprep.subr.mxu0 0.0
        %4610 = vmatpush1.msra.mxu0 %v4587
        %4611 = vmatprep.subr.mxu0 0.0
        %4612 = vmatpush1.msra.mxu0 %v4586
        %4613 = vmatprep.subr.mxu0 0.0
        %4614 = vmatpush1.msra.mxu0 %v4585
        %4615 = vmatprep.subr.mxu0 0.0
        %4616 = vmatpush1.msra.mxu0 %v4584
        %4617 = vmatprep.subr.mxu0 0.0
        %4618 = vmatpush1.msra.mxu0 %v4583
        %4619 = vmatprep.subr.mxu0 0.0
        %4620 = vmatpush1.msra.mxu0 %v4582
        %4621 = vmatprep.subr.mxu0 0.0
        %4622 = vmatpush1.msra.mxu0 %v4581
        %4623 = vmatprep.subr.mxu0 0.0
        %4624 = vmatpush1.msra.mxu0 %v4580
        %4625 = vmatprep.subr.mxu0 0.0
        %4626 = vmatpush1.msra.mxu0 %v4579
        %4627 = vmatprep.subr.mxu0 0.0
        %4628 = vmatpush1.msra.mxu0 %v4578
        %4629 = vmatprep.subr.mxu0 0.0
        %4630 = vmatpush1.msra.mxu0 %v4577
        %4631 = vmatprep.subr.mxu0 0.0
        %4632 = vmatpush1.msra.mxu0 %v4576
        %4633 = vmatprep.subr.mxu0 0.0
        %4634 = vmatpush1.msra.mxu0 %v4575
        %4635 = vmatprep.subr.mxu0 0.0
        %4636 = vmatpush1.msra.mxu0 %v4574
        %4637 = vmatprep.subr.mxu0 0.0
        %4638 = vmatpush1.msra.mxu0 %v4573
        %4639 = vmatprep.subr.mxu0 0.0
        %4640 = vmatpush2.msra.mxu0 0.0
        %4641 = vmatprep.subr.mxu0 0.0
        %4642 = vmatpush2.msra.mxu0 0.0
        %4643 = vmatprep.subr.mxu0 0.0
        %4644 = vmatpush2.msra.mxu0 0.0
        %4645 = vmatprep.subr.mxu0 0.0
        %4646 = vmatpush2.msra.mxu0 0.0
        %4647 = vmatprep.subr.mxu0 0.0
        %4648 = vmatpush2.msra.mxu0 0.0
        %4649 = vmatprep.subr.mxu0 0.0
        %4650 = vmatpush2.msra.mxu0 0.0
        %4651 = vmatprep.subr.mxu0 0.0
        %4652 = vmatpush2.msra.mxu0 0.0
        %4653 = vmatprep.subr.mxu0 0.0
        %4654 = vmatpush2.msra.mxu0 0.0
        %4655 = vmatprep.subr.mxu0 0.0
        %4656 = vmatpush2.msra.mxu0 0.0
        %4657 = vmatprep.subr.mxu0 0.0
        %4658 = vmatpush2.msra.mxu0 0.0
        %4659 = vmatprep.subr.mxu0 0.0
        %4660 = vmatpush2.msra.mxu0 0.0
        %4661 = vmatprep.subr.mxu0 0.0
        %4662 = vmatpush2.msra.mxu0 0.0
        %4663 = vmatprep.subr.mxu0 0.0
        %4664 = vmatpush2.msra.mxu0 0.0
        %4665 = vmatprep.subr.mxu0 0.0
        %4666 = vmatpush2.msra.mxu0 0.0
        %4667 = vmatprep.subr.mxu0 0.0
        %4668 = vmatpush2.msra.mxu0 %v4590
        %4669 = vmatprep.subr.mxu0 0.0
        %4670 = vmatpush2.msra.mxu0 %v4589
        %4671 = vmatprep.mubr.f32.mxu0 %v4602
        %4672 = vmatmul.mubr.f32.gmra.mxu0 %v4383
        %v4673 = vpop.f32.mrf.mxu0
        %v4674 = vadd.f32 %v4594, %v4673
        %v4675 = vpop.f32.mrf.mxu0
        %4676 = vmatprep.mubr.f32.mxu0 %v4605
        %4677 = vmatmul.mubr.f32.gmra.mxu0 %v4385
        %v4678 = vpop.f32.mrf.mxu0
        %v4679 = vadd.f32 %v4599, %v4678
        %v4680 = vpop.f32.mrf.mxu0
        %4681 = vdwg.mxu0
        %v4682 = vmax.f32 %v4674, 0.0
        %v4683 = vmax.f32 %v4679, 0.0
        %v4684 = vld [vmem:[%s26] sm:$0xff]
        %v4685 = vld [vmem:[%s26 + $0x8] sm:$0xff]
        %v4686 = vld [vmem:[%s26 + $0x10] sm:$0xff]
        %v4687 = vld [vmem:[%s26 + $0x18] sm:$0xff]
        %v4688 = vld [vmem:[%s26 + $0x20] sm:$0xff]
        %v4689 = vld [vmem:[%s26 + $0x28] sm:$0xff]
        %v4690 = vld [vmem:[%s26 + $0x30] sm:$0xff]
        %v4691 = vld [vmem:[%s26 + $0x38] sm:$0xff]
        %v4692 = vld [vmem:[%s26 + $0x40] sm:$0xff]
        %v4693 = vld [vmem:[%s26 + $0x48] sm:$0xff]
        %v4694 = vld [vmem:[%s26 + $0x50] sm:$0xff]
        %v4695 = vld [vmem:[%s26 + $0x58] sm:$0xff]
        %v4696 = vld [vmem:[%s26 + $0x60] sm:$0xff]
        %v4697 = vld [vmem:[%s26 + $0x68] sm:$0xff]
        %v4698 = vld [vmem:[%s26 + $0x70] sm:$0xff]
        %v4699 = vld [vmem:[%s26 + $0x78] sm:$0xff]
        %v4701 = vsel %vm1926, %v4682, 0
        %v4704 = vsel %vm1926, %v4683, 0
        %4706 = vmatprep.subr.mxu0 0.0
        %4707 = vmatpush1.msra.mxu0 0.0
        %4708 = vmatprep.subr.mxu0 0.0
        %4709 = vmatpush1.msra.mxu0 0.0
        %4710 = vmatprep.subr.mxu0 0.0
        %4711 = vmatpush1.msra.mxu0 0.0
        %4712 = vmatprep.subr.mxu0 0.0
        %4713 = vmatpush1.msra.mxu0 0.0
        %4714 = vmatprep.subr.mxu0 0.0
        %4715 = vmatpush1.msra.mxu0 0.0
        %4716 = vmatprep.subr.mxu0 0.0
        %4717 = vmatpush1.msra.mxu0 0.0
        %4718 = vmatprep.subr.mxu0 0.0
        %4719 = vmatpush1.msra.mxu0 0.0
        %4720 = vmatprep.subr.mxu0 0.0
        %4721 = vmatpush1.msra.mxu0 0.0
        %4722 = vmatprep.subr.mxu0 %v4699
        %4723 = vmatpush1.msra.mxu0 %v4698
        %4724 = vmatprep.subr.mxu0 %v4697
        %4725 = vmatpush1.msra.mxu0 %v4696
        %4726 = vmatprep.subr.mxu0 %v4695
        %4727 = vmatpush1.msra.mxu0 %v4694
        %4728 = vmatprep.subr.mxu0 %v4693
        %4729 = vmatpush1.msra.mxu0 %v4692
        %4730 = vmatprep.subr.mxu0 %v4691
        %4731 = vmatpush1.msra.mxu0 %v4690
        %4732 = vmatprep.subr.mxu0 %v4689
        %4733 = vmatpush1.msra.mxu0 %v4688
        %4734 = vmatprep.subr.mxu0 %v4687
        %4735 = vmatpush1.msra.mxu0 %v4686
        %4736 = vmatprep.subr.mxu0 %v4685
        %4737 = vmatpush1.msra.mxu0 %v4684
        %4738 = vmatprep.subr.mxu0 0.0
        %4739 = vmatpush2.msra.mxu0 0.0
        %4740 = vmatprep.subr.mxu0 0.0
        %4741 = vmatpush2.msra.mxu0 0.0
        %4742 = vmatprep.subr.mxu0 0.0
        %4743 = vmatpush2.msra.mxu0 0.0
        %4744 = vmatprep.subr.mxu0 0.0
        %4745 = vmatpush2.msra.mxu0 0.0
        %4746 = vmatprep.subr.mxu0 0.0
        %4747 = vmatpush2.msra.mxu0 0.0
        %4748 = vmatprep.subr.mxu0 0.0
        %4749 = vmatpush2.msra.mxu0 0.0
        %4750 = vmatprep.subr.mxu0 0.0
        %4751 = vmatpush2.msra.mxu0 0.0
        %4752 = vmatprep.subr.mxu0 0.0
        %4753 = vmatpush2.msra.mxu0 0.0
        %4754 = vmatprep.subr.mxu0 0.0
        %4755 = vmatpush2.msra.mxu0 0.0
        %4756 = vmatprep.subr.mxu0 0.0
        %4757 = vmatpush2.msra.mxu0 0.0
        %4758 = vmatprep.subr.mxu0 0.0
        %4759 = vmatpush2.msra.mxu0 0.0
        %4760 = vmatprep.subr.mxu0 0.0
        %4761 = vmatpush2.msra.mxu0 0.0
        %4762 = vmatprep.subr.mxu0 0.0
        %4763 = vmatpush2.msra.mxu0 0.0
        %4764 = vmatprep.subr.mxu0 0.0
        %4765 = vmatpush2.msra.mxu0 0.0
        %4766 = vmatprep.subr.mxu0 0.0
        %4767 = vmatpush2.msra.mxu0 0.0
        %4768 = vmatprep.subr.mxu0 0.0
        %4769 = vmatpush2.msra.mxu0 0.0
        %4770 = vmatprep.mubr.f32.mxu0 0.0
        %4771 = vmatmul.mubr.f32.gmra.mxu0 %v4701
        %v4772 = vpop.f32.mrf.mxu0
        %v4773 = vadd.f32 0.0, %v4772
        %v4774 = vpop.f32.mrf.mxu0
        %v4775 = vadd.f32 0.0, %v4774
        %4776 = vmatprep.mubr.f32.mxu0 0.0
        %4777 = vmatmul.mubr.f32.gmra.mxu0 %v4704
        %v4778 = vpop.f32.mrf.mxu0
        %v4779 = vadd.f32 0.0, %v4778
        %v4780 = vpop.f32.mrf.mxu0
        %v4781 = vadd.f32 0.0, %v4780
        %4782 = vdwg.mxu0
        %v4783 = vld [vmem:[#allocation14] sm:$0xff]
        %v4784 = vld [vmem:[#allocation14 + $0x8] sm:$0xff]
        %v4785 = vld [vmem:[%s18] sm:$0xff]
        %4786 = vst [vmem:[#allocation2] sm:$0xff] 0.0
        %4787 = vst [vmem:[#allocation2 + $0x8] sm:$0xff] 0.0
        %4788 = vst [vmem:[#allocation2 + $0x10] sm:$0xff] 0.0
        %4789 = vst [vmem:[#allocation2 + $0x18] sm:$0xff] 0.0
        %4790 = vst [vmem:[#allocation2 + $0x20] sm:$0xff] 0.0
        %4791 = vst [vmem:[#allocation2 + $0x28] sm:$0xff] 0.0
        %4792 = vst [vmem:[#allocation2 + $0x30] sm:$0xff] 0.0
        %4793 = vst [vmem:[#allocation2 + $0x38] sm:$0xff] 0.0
        %4794 = vst [vmem:[#allocation2 + $0x40] sm:$0xff] 0.0
        %4795 = vst [vmem:[#allocation2 + $0x48] sm:$0xff] 0.0
        %4796 = vst [vmem:[#allocation2 + $0x50] sm:$0xff] 0.0
        %4797 = vst [vmem:[#allocation2 + $0x58] sm:$0xff] 0.0
        %4798 = vst [vmem:[#allocation2 + $0x60] sm:$0xff] 0.0
        %4799 = vst [vmem:[#allocation2 + $0x68] sm:$0xff] 0.0
        %4800 = vst [vmem:[#allocation2 + $0x70] sm:$0xff] 0.0
        %4801 = vst [vmem:[#allocation2 + $0x78] sm:$0xff] 0.0
        %4802 = vst [vmem:[#allocation2 + $0x80] sm:$0xff] 0.0
        %4803 = vst [vmem:[#allocation2 + $0x88] sm:$0xff] 0.0
        %4804 = vst [vmem:[#allocation2 + $0x90] sm:$0xff] 0.0
        %4805 = vst [vmem:[#allocation2 + $0x98] sm:$0xff] 0.0
        %4806 = vst [vmem:[#allocation2 + $0xa0] sm:$0xff] 0.0
        %4807 = vst [vmem:[#allocation2 + $0xa8] sm:$0xff] 0.0
        %4808 = vst [vmem:[#allocation2 + $0xb0] sm:$0xff] 0.0
        %4809 = vst [vmem:[#allocation2 + $0xb8] sm:$0xff] 0.0
        %4810 = vst [vmem:[#allocation2 + $0x8] sm:$0xff] %v4773
        %4811 = vst [vmem:[#allocation2 + $0x10] sm:$0xff] %v4775
        %4812 = vst [vmem:[#allocation2 + $0x28] sm:$0xff] %v4779
        %4813 = vst [vmem:[#allocation2 + $0x30] sm:$0xff] %v4781
        %4814 = vst [vmem:[#allocation2 + $0x48] sm:$0xff] %v1731
        %4815 = vst [vmem:[#allocation2 + $0x50] sm:$0xff] %v1732
        %v4816 = vld [vmem:[#allocation2] sm:$0xff]
        %v4817 = vld [vmem:[#allocation2 + $0x8] sm:$0xff]
        %v4818 = vld [vmem:[#allocation2 + $0x10] sm:$0xff]
        %v4819 = vld [vmem:[#allocation2 + $0x20] sm:$0xff]
        %v4820 = vld [vmem:[#allocation2 + $0x28] sm:$0xff]
        %v4821 = vld [vmem:[#allocation2 + $0x30] sm:$0xff]
        %v4822 = vld [vmem:[#allocation2 + $0x40] sm:$0xff]
        %v4823 = vld [vmem:[#allocation2 + $0x48] sm:$0xff]
        %v4824 = vld [vmem:[#allocation2 + $0x50] sm:$0xff]
        %v4825 = vmul.f32 %v4816, %v1120
        %v4826 = vmul.f32 %v4817, %v1124
        %v4827 = vmul.f32 %v4818, %v1122
        %v4828 = vmul.f32 %v4819, %v1120
        %v4829 = vmul.f32 %v4820, %v1124
        %v4830 = vmul.f32 %v4821, %v1122
        %v4831 = vmul.f32 %v4822, %v1120
        %v4832 = vmul.f32 %v4823, %v1124
        %v4833 = vmul.f32 %v4824, %v1122
        %4843 = vrot.lane.b32.xlu0 %v4825, 17
        %v4844 = vpop.permute.xlu0 %4843
        %4845 = vrot.lane.b32.xlu0 %v4826, 17
        %v4846 = vpop.permute.xlu0 %4845
        %4847 = vrot.lane.b32.xlu0 %v4827, 17
        %v4848 = vpop.permute.xlu0 %4847
        %4849 = vrot.lane.b32.xlu0 %v4828, 17
        %v4850 = vpop.permute.xlu0 %4849
        %4851 = vrot.lane.b32.xlu0 %v4829, 17
        %v4852 = vpop.permute.xlu0 %4851
        %4853 = vrot.lane.b32.xlu0 %v4830, 17
        %v4854 = vpop.permute.xlu0 %4853
        %4855 = vrot.lane.b32.xlu0 %v4831, 17
        %v4856 = vpop.permute.xlu0 %4855
        %4857 = vrot.lane.b32.xlu0 %v4832, 17
        %v4858 = vpop.permute.xlu0 %4857
        %4859 = vrot.lane.b32.xlu0 %v4833, 17
        %v4860 = vpop.permute.xlu0 %4859
        %v4861 = vsel %vm1140, %v4844, %v4846
        %v4862 = vsel %vm1140, %v4846, %v4848
        %v4863 = vsel %vm1140, %v4850, %v4852
        %v4864 = vsel %vm1140, %v4852, %v4854
        %v4865 = vsel %vm1140, %v4856, %v4858
        %v4866 = vsel %vm1140, %v4858, %v4860
        %4873 = vst [vmem:[#allocation3] sm:$0xff] %v4861
        %4874 = vst [vmem:[#allocation3 + $0x8] sm:$0xff] %v4862
        %4875 = vst [vmem:[#allocation3 + $0x10] sm:$0xff] %v4863
        %4876 = vst [vmem:[#allocation3 + $0x18] sm:$0xff] %v4864
        %4877 = vst [vmem:[#allocation3 + $0x20] sm:$0xff] %v4865
        %4878 = vst [vmem:[#allocation3 + $0x28] sm:$0xff] %v4866
        %v4879 = vld [vmem:[#allocation2] sm:$0xff]
        %v4880 = vld [vmem:[#allocation2 + $0x8] sm:$0xff]
        %v4881 = vld [vmem:[#allocation2 + $0x10] sm:$0xff]
        %v4882 = vld [vmem:[#allocation2 + $0x20] sm:$0xff]
        %v4883 = vld [vmem:[#allocation2 + $0x28] sm:$0xff]
        %v4884 = vld [vmem:[#allocation2 + $0x30] sm:$0xff]
        %v4885 = vld [vmem:[#allocation2 + $0x40] sm:$0xff]
        %v4886 = vld [vmem:[#allocation2 + $0x48] sm:$0xff]
        %v4887 = vld [vmem:[#allocation2 + $0x50] sm:$0xff]
        %4897 = vrot.lane.b32.xlu0 %v4879, 16
        %v4898 = vpop.permute.xlu0 %4897
        %4899 = vrot.lane.b32.xlu0 %v4880, 16
        %v4900 = vpop.permute.xlu0 %4899
        %4901 = vrot.lane.b32.xlu0 %v4881, 16
        %v4902 = vpop.permute.xlu0 %4901
        %4903 = vrot.lane.b32.xlu0 %v4882, 16
        %v4904 = vpop.permute.xlu0 %4903
        %4905 = vrot.lane.b32.xlu0 %v4883, 16
        %v4906 = vpop.permute.xlu0 %4905
        %4907 = vrot.lane.b32.xlu0 %v4884, 16
        %v4908 = vpop.permute.xlu0 %4907
        %4909 = vrot.lane.b32.xlu0 %v4885, 16
        %v4910 = vpop.permute.xlu0 %4909
        %4911 = vrot.lane.b32.xlu0 %v4886, 16
        %v4912 = vpop.permute.xlu0 %4911
        %4913 = vrot.lane.b32.xlu0 %v4887, 16
        %v4914 = vpop.permute.xlu0 %4913
        %v4915 = vsel %vm1159, %v4898, %v4900
        %v4916 = vsel %vm1159, %v4900, %v4902
        %v4917 = vsel %vm1159, %v4904, %v4906
        %v4918 = vsel %vm1159, %v4906, %v4908
        %v4919 = vsel %vm1159, %v4910, %v4912
        %v4920 = vsel %vm1159, %v4912, %v4914
        %4927 = vst [vmem:[#allocation3 + $0x30] sm:$0xff] %v4915
        %4928 = vst [vmem:[#allocation3 + $0x38] sm:$0xff] %v4916
        %4929 = vst [vmem:[#allocation3 + $0x40] sm:$0xff] %v4917
        %4930 = vst [vmem:[#allocation3 + $0x48] sm:$0xff] %v4918
        %4931 = vst [vmem:[#allocation3 + $0x50] sm:$0xff] %v4919
        %4932 = vst [vmem:[#allocation3 + $0x58] sm:$0xff] %v4920
        %v4933 = vld [vmem:[#allocation2] sm:$0xff]
        %v4934 = vld [vmem:[#allocation2 + $0x8] sm:$0xff]
        %v4935 = vld [vmem:[#allocation2 + $0x10] sm:$0xff]
        %v4936 = vld [vmem:[#allocation2 + $0x20] sm:$0xff]
        %v4937 = vld [vmem:[#allocation2 + $0x28] sm:$0xff]
        %v4938 = vld [vmem:[#allocation2 + $0x30] sm:$0xff]
        %v4939 = vld [vmem:[#allocation2 + $0x40] sm:$0xff]
        %v4940 = vld [vmem:[#allocation2 + $0x48] sm:$0xff]
        %v4941 = vld [vmem:[#allocation2 + $0x50] sm:$0xff]
        %v4942 = vmul.f32 %v4933, %v1172
        %v4943 = vmul.f32 %v4934, %v1176
        %v4944 = vmul.f32 %v4935, %v1174
        %v4945 = vmul.f32 %v4936, %v1172
        %v4946 = vmul.f32 %v4937, %v1176
        %v4947 = vmul.f32 %v4938, %v1174
        %v4948 = vmul.f32 %v4939, %v1172
        %v4949 = vmul.f32 %v4940, %v1176
        %v4950 = vmul.f32 %v4941, %v1174
        %4960 = vrot.lane.b32.xlu0 %v4942, 15
        %v4961 = vpop.permute.xlu0 %4960
        %4962 = vrot.lane.b32.xlu0 %v4943, 15
        %v4963 = vpop.permute.xlu0 %4962
        %4964 = vrot.lane.b32.xlu0 %v4944, 15
        %v4965 = vpop.permute.xlu0 %4964
        %4966 = vrot.lane.b32.xlu0 %v4945, 15
        %v4967 = vpop.permute.xlu0 %4966
        %4968 = vrot.lane.b32.xlu0 %v4946, 15
        %v4969 = vpop.permute.xlu0 %4968
        %4970 = vrot.lane.b32.xlu0 %v4947, 15
        %v4971 = vpop.permute.xlu0 %4970
        %4972 = vrot.lane.b32.xlu0 %v4948, 15
        %v4973 = vpop.permute.xlu0 %4972
        %4974 = vrot.lane.b32.xlu0 %v4949, 15
        %v4975 = vpop.permute.xlu0 %4974
        %4976 = vrot.lane.b32.xlu0 %v4950, 15
        %v4977 = vpop.permute.xlu0 %4976
        %v4978 = vsel %vm1192, %v4961, %v4963
        %v4979 = vsel %vm1192, %v4963, %v4965
        %v4980 = vsel %vm1192, %v4967, %v4969
        %v4981 = vsel %vm1192, %v4969, %v4971
        %v4982 = vsel %vm1192, %v4973, %v4975
        %v4983 = vsel %vm1192, %v4975, %v4977
        %4990 = vst [vmem:[#allocation3 + $0x60] sm:$0xff] %v4978
        %4991 = vst [vmem:[#allocation3 + $0x68] sm:$0xff] %v4979
        %4992 = vst [vmem:[#allocation3 + $0x70] sm:$0xff] %v4980
        %4993 = vst [vmem:[#allocation3 + $0x78] sm:$0xff] %v4981
        %4994 = vst [vmem:[#allocation3 + $0x80] sm:$0xff] %v4982
        %4995 = vst [vmem:[#allocation3 + $0x88] sm:$0xff] %v4983
        %v4996 = vld [vmem:[#allocation2] sm:$0xff]
        %v4997 = vld [vmem:[#allocation2 + $0x8] sm:$0xff]
        %v4998 = vld [vmem:[#allocation2 + $0x10] sm:$0xff]
        %v4999 = vld [vmem:[#allocation2 + $0x20] sm:$0xff]
        %v5000 = vld [vmem:[#allocation2 + $0x28] sm:$0xff]
        %v5001 = vld [vmem:[#allocation2 + $0x30] sm:$0xff]
        %v5002 = vld [vmem:[#allocation2 + $0x40] sm:$0xff]
        %v5003 = vld [vmem:[#allocation2 + $0x48] sm:$0xff]
        %v5004 = vld [vmem:[#allocation2 + $0x50] sm:$0xff]
        %v5005 = vmul.f32 %v4996, %v1203
        %v5006 = vmul.f32 %v4997, %v1207
        %v5007 = vmul.f32 %v4998, %v1205
        %v5008 = vmul.f32 %v4999, %v1203
        %v5009 = vmul.f32 %v5000, %v1207
        %v5010 = vmul.f32 %v5001, %v1205
        %v5011 = vmul.f32 %v5002, %v1203
        %v5012 = vmul.f32 %v5003, %v1207
        %v5013 = vmul.f32 %v5004, %v1205
        %5023 = vrot.lane.b32.xlu0 %v5005, 1
        %v5024 = vpop.permute.xlu0 %5023
        %5025 = vrot.lane.b32.xlu0 %v5006, 1
        %v5026 = vpop.permute.xlu0 %5025
        %5027 = vrot.lane.b32.xlu0 %v5007, 1
        %v5028 = vpop.permute.xlu0 %5027
        %5029 = vrot.lane.b32.xlu0 %v5008, 1
        %v5030 = vpop.permute.xlu0 %5029
        %5031 = vrot.lane.b32.xlu0 %v5009, 1
        %v5032 = vpop.permute.xlu0 %5031
        %5033 = vrot.lane.b32.xlu0 %v5010, 1
        %v5034 = vpop.permute.xlu0 %5033
        %5035 = vrot.lane.b32.xlu0 %v5011, 1
        %v5036 = vpop.permute.xlu0 %5035
        %5037 = vrot.lane.b32.xlu0 %v5012, 1
        %v5038 = vpop.permute.xlu0 %5037
        %5039 = vrot.lane.b32.xlu0 %v5013, 1
        %v5040 = vpop.permute.xlu0 %5039
        %v5041 = vsel %vm1223, %v5024, %v5026
        %v5042 = vsel %vm1223, %v5026, %v5028
        %v5043 = vsel %vm1223, %v5030, %v5032
        %v5044 = vsel %vm1223, %v5032, %v5034
        %v5045 = vsel %vm1223, %v5036, %v5038
        %v5046 = vsel %vm1223, %v5038, %v5040
        %5053 = vst [vmem:[#allocation3 + $0x90] sm:$0xff] %v5041
        %5054 = vst [vmem:[#allocation3 + $0x98] sm:$0xff] %v5042
        %5055 = vst [vmem:[#allocation3 + $0xa0] sm:$0xff] %v5043
        %5056 = vst [vmem:[#allocation3 + $0xa8] sm:$0xff] %v5044
        %5057 = vst [vmem:[#allocation3 + $0xb0] sm:$0xff] %v5045
        %5058 = vst [vmem:[#allocation3 + $0xb8] sm:$0xff] %v5046
        %v5059 = vld [vmem:[#allocation2 + $0x8] sm:$0xff]
        %v5060 = vld [vmem:[#allocation2 + $0x10] sm:$0xff]
        %v5061 = vld [vmem:[#allocation2 + $0x28] sm:$0xff]
        %v5062 = vld [vmem:[#allocation2 + $0x30] sm:$0xff]
        %v5063 = vld [vmem:[#allocation2 + $0x48] sm:$0xff]
        %v5064 = vld [vmem:[#allocation2 + $0x50] sm:$0xff]
        %5065 = vst [vmem:[#allocation3 + $0xc0] sm:$0xff] %v5059
        %5066 = vst [vmem:[#allocation3 + $0xc8] sm:$0xff] %v5060
        %5067 = vst [vmem:[#allocation3 + $0xd0] sm:$0xff] %v5061
        %5068 = vst [vmem:[#allocation3 + $0xd8] sm:$0xff] %v5062
        %5069 = vst [vmem:[#allocation3 + $0xe0] sm:$0xff] %v5063
        %5070 = vst [vmem:[#allocation3 + $0xe8] sm:$0xff] %v5064
        %v5071 = vld [vmem:[#allocation2 + $0x8] sm:$0xff]
        %v5072 = vld [vmem:[#allocation2 + $0x10] sm:$0xff]
        %v5073 = vld [vmem:[#allocation2 + $0x18] sm:$0xff]
        %v5074 = vld [vmem:[#allocation2 + $0x28] sm:$0xff]
        %v5075 = vld [vmem:[#allocation2 + $0x30] sm:$0xff]
        %v5076 = vld [vmem:[#allocation2 + $0x38] sm:$0xff]
        %v5077 = vld [vmem:[#allocation2 + $0x48] sm:$0xff]
        %v5078 = vld [vmem:[#allocation2 + $0x50] sm:$0xff]
        %v5079 = vld [vmem:[#allocation2 + $0x58] sm:$0xff]
        %v5080 = vmul.f32 %v5071, %v1238
        %v5081 = vmul.f32 %v5072, %v1241
        %v5082 = vmul.f32 %v5073, %v1240
        %v5083 = vmul.f32 %v5074, %v1238
        %v5084 = vmul.f32 %v5075, %v1241
        %v5085 = vmul.f32 %v5076, %v1240
        %v5086 = vmul.f32 %v5077, %v1238
        %v5087 = vmul.f32 %v5078, %v1241
        %v5088 = vmul.f32 %v5079, %v1240
        %5098 = vrot.lane.b32.xlu0 %v5080, 127
        %v5099 = vpop.permute.xlu0 %5098
        %5100 = vrot.lane.b32.xlu0 %v5081, 127
        %v5101 = vpop.permute.xlu0 %5100
        %5102 = vrot.lane.b32.xlu0 %v5082, 127
        %v5103 = vpop.permute.xlu0 %5102
        %5104 = vrot.lane.b32.xlu0 %v5083, 127
        %v5105 = vpop.permute.xlu0 %5104
        %5106 = vrot.lane.b32.xlu0 %v5084, 127
        %v5107 = vpop.permute.xlu0 %5106
        %5108 = vrot.lane.b32.xlu0 %v5085, 127
        %v5109 = vpop.permute.xlu0 %5108
        %5110 = vrot.lane.b32.xlu0 %v5086, 127
        %v5111 = vpop.permute.xlu0 %5110
        %5112 = vrot.lane.b32.xlu0 %v5087, 127
        %v5113 = vpop.permute.xlu0 %5112
        %5114 = vrot.lane.b32.xlu0 %v5088, 127
        %v5115 = vpop.permute.xlu0 %5114
        %v5116 = vsel %vm1206, %v5099, %v5101
        %v5117 = vsel %vm1206, %v5101, %v5103
        %v5118 = vsel %vm1206, %v5105, %v5107
        %v5119 = vsel %vm1206, %v5107, %v5109
        %v5120 = vsel %vm1206, %v5111, %v5113
        %v5121 = vsel %vm1206, %v5113, %v5115
        %5128 = vst [vmem:[#allocation3 + $0xf0] sm:$0xff] %v5116
        %5129 = vst [vmem:[#allocation3 + $0xf8] sm:$0xff] %v5117
        %5130 = vst [vmem:[#allocation3 + $0x100] sm:$0xff] %v5118
        %5131 = vst [vmem:[#allocation3 + $0x108] sm:$0xff] %v5119
        %5132 = vst [vmem:[#allocation3 + $0x110] sm:$0xff] %v5120
        %5133 = vst [vmem:[#allocation3 + $0x118] sm:$0xff] %v5121
        %v5134 = vld [vmem:[#allocation2 + $0x8] sm:$0xff]
        %v5135 = vld [vmem:[#allocation2 + $0x10] sm:$0xff]
        %v5136 = vld [vmem:[#allocation2 + $0x18] sm:$0xff]
        %v5137 = vld [vmem:[#allocation2 + $0x28] sm:$0xff]
        %v5138 = vld [vmem:[#allocation2 + $0x30] sm:$0xff]
        %v5139 = vld [vmem:[#allocation2 + $0x38] sm:$0xff]
        %v5140 = vld [vmem:[#allocation2 + $0x48] sm:$0xff]
        %v5141 = vld [vmem:[#allocation2 + $0x50] sm:$0xff]
        %v5142 = vld [vmem:[#allocation2 + $0x58] sm:$0xff]
        %v5143 = vmul.f32 %v5134, %v1267
        %v5144 = vmul.f32 %v5135, %v1270
        %v5145 = vmul.f32 %v5136, %v1269
        %v5146 = vmul.f32 %v5137, %v1267
        %v5147 = vmul.f32 %v5138, %v1270
        %v5148 = vmul.f32 %v5139, %v1269
        %v5149 = vmul.f32 %v5140, %v1267
        %v5150 = vmul.f32 %v5141, %v1270
        %v5151 = vmul.f32 %v5142, %v1269
        %5161 = vrot.lane.b32.xlu0 %v5143, 113
        %v5162 = vpop.permute.xlu0 %5161
        %5163 = vrot.lane.b32.xlu0 %v5144, 113
        %v5164 = vpop.permute.xlu0 %5163
        %5165 = vrot.lane.b32.xlu0 %v5145, 113
        %v5166 = vpop.permute.xlu0 %5165
        %5167 = vrot.lane.b32.xlu0 %v5146, 113
        %v5168 = vpop.permute.xlu0 %5167
        %5169 = vrot.lane.b32.xlu0 %v5147, 113
        %v5170 = vpop.permute.xlu0 %5169
        %5171 = vrot.lane.b32.xlu0 %v5148, 113
        %v5172 = vpop.permute.xlu0 %5171
        %5173 = vrot.lane.b32.xlu0 %v5149, 113
        %v5174 = vpop.permute.xlu0 %5173
        %5175 = vrot.lane.b32.xlu0 %v5150, 113
        %v5176 = vpop.permute.xlu0 %5175
        %5177 = vrot.lane.b32.xlu0 %v5151, 113
        %v5178 = vpop.permute.xlu0 %5177
        %v5179 = vsel %vm1175, %v5162, %v5164
        %v5180 = vsel %vm1175, %v5164, %v5166
        %v5181 = vsel %vm1175, %v5168, %v5170
        %v5182 = vsel %vm1175, %v5170, %v5172
        %v5183 = vsel %vm1175, %v5174, %v5176
        %v5184 = vsel %vm1175, %v5176, %v5178
        %5191 = vst [vmem:[#allocation3 + $0x120] sm:$0xff] %v5179
        %5192 = vst [vmem:[#allocation3 + $0x128] sm:$0xff] %v5180
        %5193 = vst [vmem:[#allocation3 + $0x130] sm:$0xff] %v5181
        %5194 = vst [vmem:[#allocation3 + $0x138] sm:$0xff] %v5182
        %5195 = vst [vmem:[#allocation3 + $0x140] sm:$0xff] %v5183
        %5196 = vst [vmem:[#allocation3 + $0x148] sm:$0xff] %v5184
        %v5197 = vld [vmem:[#allocation2 + $0x8] sm:$0xff]
        %v5198 = vld [vmem:[#allocation2 + $0x10] sm:$0xff]
        %v5199 = vld [vmem:[#allocation2 + $0x18] sm:$0xff]
        %v5200 = vld [vmem:[#allocation2 + $0x28] sm:$0xff]
        %v5201 = vld [vmem:[#allocation2 + $0x30] sm:$0xff]
        %v5202 = vld [vmem:[#allocation2 + $0x38] sm:$0xff]
        %v5203 = vld [vmem:[#allocation2 + $0x48] sm:$0xff]
        %v5204 = vld [vmem:[#allocation2 + $0x50] sm:$0xff]
        %v5205 = vld [vmem:[#allocation2 + $0x58] sm:$0xff]
        %5215 = vrot.lane.b32.xlu0 %v5197, 112
        %v5216 = vpop.permute.xlu0 %5215
        %5217 = vrot.lane.b32.xlu0 %v5198, 112
        %v5218 = vpop.permute.xlu0 %5217
        %5219 = vrot.lane.b32.xlu0 %v5199, 112
        %v5220 = vpop.permute.xlu0 %5219
        %5221 = vrot.lane.b32.xlu0 %v5200, 112
        %v5222 = vpop.permute.xlu0 %5221
        %5223 = vrot.lane.b32.xlu0 %v5201, 112
        %v5224 = vpop.permute.xlu0 %5223
        %5225 = vrot.lane.b32.xlu0 %v5202, 112
        %v5226 = vpop.permute.xlu0 %5225
        %5227 = vrot.lane.b32.xlu0 %v5203, 112
        %v5228 = vpop.permute.xlu0 %5227
        %5229 = vrot.lane.b32.xlu0 %v5204, 112
        %v5230 = vpop.permute.xlu0 %5229
        %5231 = vrot.lane.b32.xlu0 %v5205, 112
        %v5232 = vpop.permute.xlu0 %5231
        %v5233 = vsel %vm1304, %v5216, %v5218
        %v5234 = vsel %vm1304, %v5218, %v5220
        %v5235 = vsel %vm1304, %v5222, %v5224
        %v5236 = vsel %vm1304, %v5224, %v5226
        %v5237 = vsel %vm1304, %v5228, %v5230
        %v5238 = vsel %vm1304, %v5230, %v5232
        %5245 = vst [vmem:[#allocation3 + $0x150] sm:$0xff] %v5233
        %5246 = vst [vmem:[#allocation3 + $0x158] sm:$0xff] %v5234
        %5247 = vst [vmem:[#allocation3 + $0x160] sm:$0xff] %v5235
        %5248 = vst [vmem:[#allocation3 + $0x168] sm:$0xff] %v5236
        %5249 = vst [vmem:[#allocation3 + $0x170] sm:$0xff] %v5237
        %5250 = vst [vmem:[#allocation3 + $0x178] sm:$0xff] %v5238
        %v5251 = vld [vmem:[#allocation2 + $0x8] sm:$0xff]
        %v5252 = vld [vmem:[#allocation2 + $0x10] sm:$0xff]
        %v5253 = vld [vmem:[#allocation2 + $0x18] sm:$0xff]
        %v5254 = vld [vmem:[#allocation2 + $0x28] sm:$0xff]
        %v5255 = vld [vmem:[#allocation2 + $0x30] sm:$0xff]
        %v5256 = vld [vmem:[#allocation2 + $0x38] sm:$0xff]
        %v5257 = vld [vmem:[#allocation2 + $0x48] sm:$0xff]
        %v5258 = vld [vmem:[#allocation2 + $0x50] sm:$0xff]
        %v5259 = vld [vmem:[#allocation2 + $0x58] sm:$0xff]
        %v5260 = vmul.f32 %v5251, %v1315
        %v5261 = vmul.f32 %v5252, %v1318
        %v5262 = vmul.f32 %v5253, %v1317
        %v5263 = vmul.f32 %v5254, %v1315
        %v5264 = vmul.f32 %v5255, %v1318
        %v5265 = vmul.f32 %v5256, %v1317
        %v5266 = vmul.f32 %v5257, %v1315
        %v5267 = vmul.f32 %v5258, %v1318
        %v5268 = vmul.f32 %v5259, %v1317
        %5278 = vrot.lane.b32.xlu0 %v5260, 111
        %v5279 = vpop.permute.xlu0 %5278
        %5280 = vrot.lane.b32.xlu0 %v5261, 111
        %v5281 = vpop.permute.xlu0 %5280
        %5282 = vrot.lane.b32.xlu0 %v5262, 111
        %v5283 = vpop.permute.xlu0 %5282
        %5284 = vrot.lane.b32.xlu0 %v5263, 111
        %v5285 = vpop.permute.xlu0 %5284
        %5286 = vrot.lane.b32.xlu0 %v5264, 111
        %v5287 = vpop.permute.xlu0 %5286
        %5288 = vrot.lane.b32.xlu0 %v5265, 111
        %v5289 = vpop.permute.xlu0 %5288
        %5290 = vrot.lane.b32.xlu0 %v5266, 111
        %v5291 = vpop.permute.xlu0 %5290
        %5292 = vrot.lane.b32.xlu0 %v5267, 111
        %v5293 = vpop.permute.xlu0 %5292
        %5294 = vrot.lane.b32.xlu0 %v5268, 111
        %v5295 = vpop.permute.xlu0 %5294
        %v5296 = vsel %vm1123, %v5279, %v5281
        %v5297 = vsel %vm1123, %v5281, %v5283
        %v5298 = vsel %vm1123, %v5285, %v5287
        %v5299 = vsel %vm1123, %v5287, %v5289
        %v5300 = vsel %vm1123, %v5291, %v5293
        %v5301 = vsel %vm1123, %v5293, %v5295
        %5308 = vst [vmem:[#allocation3 + $0x180] sm:$0xff] %v5296
        %5309 = vst [vmem:[#allocation3 + $0x188] sm:$0xff] %v5297
        %5310 = vst [vmem:[#allocation3 + $0x190] sm:$0xff] %v5298
        %5311 = vst [vmem:[#allocation3 + $0x198] sm:$0xff] %v5299
        %5312 = vst [vmem:[#allocation3 + $0x1a0] sm:$0xff] %v5300
        %5313 = vst [vmem:[#allocation3 + $0x1a8] sm:$0xff] %v5301
        %v5314 = vld [vmem:[#allocation3] sm:$0xff]
        %v5315 = vld [vmem:[#allocation3 + $0x8] sm:$0xff]
        %v5316 = vld [vmem:[#allocation3 + $0x10] sm:$0xff]
        %v5317 = vld [vmem:[#allocation3 + $0x18] sm:$0xff]
        %v5318 = vld [vmem:[#allocation3 + $0x20] sm:$0xff]
        %v5319 = vld [vmem:[#allocation3 + $0x28] sm:$0xff]
        %v5320 = vld [vmem:[#allocation3 + $0x30] sm:$0xff]
        %v5321 = vld [vmem:[#allocation3 + $0x38] sm:$0xff]
        %v5322 = vld [vmem:[#allocation3 + $0x40] sm:$0xff]
        %v5323 = vld [vmem:[#allocation3 + $0x48] sm:$0xff]
        %v5324 = vld [vmem:[#allocation3 + $0x50] sm:$0xff]
        %v5325 = vld [vmem:[#allocation3 + $0x58] sm:$0xff]
        %v5326 = vld [vmem:[#allocation3 + $0x60] sm:$0xff]
        %v5327 = vld [vmem:[#allocation3 + $0x68] sm:$0xff]
        %v5328 = vld [vmem:[#allocation3 + $0x70] sm:$0xff]
        %v5329 = vld [vmem:[#allocation3 + $0x78] sm:$0xff]
        %v5330 = vld [vmem:[#allocation3 + $0x80] sm:$0xff]
        %v5331 = vld [vmem:[#allocation3 + $0x88] sm:$0xff]
        %v5332 = vld [vmem:[#allocation3 + $0x90] sm:$0xff]
        %v5333 = vld [vmem:[#allocation3 + $0x98] sm:$0xff]
        %v5334 = vld [vmem:[#allocation3 + $0xa0] sm:$0xff]
        %v5335 = vld [vmem:[#allocation3 + $0xa8] sm:$0xff]
        %v5336 = vld [vmem:[#allocation3 + $0xb0] sm:$0xff]
        %v5337 = vld [vmem:[#allocation3 + $0xb8] sm:$0xff]
        %v5338 = vld [vmem:[#allocation3 + $0xc0] sm:$0xff]
        %v5339 = vld [vmem:[#allocation3 + $0xc8] sm:$0xff]
        %v5340 = vld [vmem:[#allocation3 + $0xd0] sm:$0xff]
        %v5341 = vld [vmem:[#allocation3 + $0xd8] sm:$0xff]
        %v5342 = vld [vmem:[#allocation3 + $0xe0] sm:$0xff]
        %v5343 = vld [vmem:[#allocation3 + $0xe8] sm:$0xff]
        %v5344 = vld [vmem:[#allocation3 + $0xf0] sm:$0xff]
        %v5345 = vld [vmem:[#allocation3 + $0xf8] sm:$0xff]
        %v5346 = vld [vmem:[#allocation3 + $0x100] sm:$0xff]
        %v5347 = vld [vmem:[#allocation3 + $0x108] sm:$0xff]
        %v5348 = vld [vmem:[#allocation3 + $0x110] sm:$0xff]
        %v5349 = vld [vmem:[#allocation3 + $0x118] sm:$0xff]
        %v5350 = vld [vmem:[#allocation3 + $0x120] sm:$0xff]
        %v5351 = vld [vmem:[#allocation3 + $0x128] sm:$0xff]
        %v5352 = vld [vmem:[#allocation3 + $0x130] sm:$0xff]
        %v5353 = vld [vmem:[#allocation3 + $0x138] sm:$0xff]
        %v5354 = vld [vmem:[#allocation3 + $0x140] sm:$0xff]
        %v5355 = vld [vmem:[#allocation3 + $0x148] sm:$0xff]
        %v5356 = vld [vmem:[#allocation3 + $0x150] sm:$0xff]
        %v5357 = vld [vmem:[#allocation3 + $0x158] sm:$0xff]
        %v5358 = vld [vmem:[#allocation3 + $0x160] sm:$0xff]
        %v5359 = vld [vmem:[#allocation3 + $0x168] sm:$0xff]
        %v5360 = vld [vmem:[#allocation3 + $0x170] sm:$0xff]
        %v5361 = vld [vmem:[#allocation3 + $0x178] sm:$0xff]
        %v5362 = vld [vmem:[#allocation3 + $0x180] sm:$0xff]
        %v5363 = vld [vmem:[#allocation3 + $0x188] sm:$0xff]
        %v5364 = vld [vmem:[#allocation3 + $0x190] sm:$0xff]
        %v5365 = vld [vmem:[#allocation3 + $0x198] sm:$0xff]
        %v5366 = vld [vmem:[#allocation3 + $0x1a0] sm:$0xff]
        %v5367 = vld [vmem:[#allocation3 + $0x1a8] sm:$0xff]
        %5369 = vset.pattern.permute.xlu0 0
        %5370 = vperm.xlu0 %5369, %v4785
        %v5371 = vpop.permute.xlu0 %5370
        %vm5373 = vcmask 719872
        %v5375 = vsel %vm5373, %v4784, 0
        %5377 = vmatprep.subr.mxu0 %v5345
        %5378 = vmatpush1.msra.mxu0 %v5344
        %5379 = vmatprep.subr.mxu0 %v5343
        %5380 = vmatpush1.msra.mxu0 %v5342
        %5381 = vmatprep.subr.mxu0 %v5341
        %5382 = vmatpush1.msra.mxu0 %v5340
        %5383 = vmatprep.subr.mxu0 %v5339
        %5384 = vmatpush1.msra.mxu0 %v5338
        %5385 = vmatprep.subr.mxu0 %v5337
        %5386 = vmatpush1.msra.mxu0 %v5336
        %5387 = vmatprep.subr.mxu0 %v5335
        %5388 = vmatpush1.msra.mxu0 %v5334
        %5389 = vmatprep.subr.mxu0 %v5333
        %5390 = vmatpush1.msra.mxu0 %v5332
        %5391 = vmatprep.subr.mxu0 %v5331
        %5392 = vmatpush1.msra.mxu0 %v5330
        %5393 = vmatprep.subr.mxu0 %v5329
        %5394 = vmatpush1.msra.mxu0 %v5328
        %5395 = vmatprep.subr.mxu0 %v5327
        %5396 = vmatpush1.msra.mxu0 %v5326
        %5397 = vmatprep.subr.mxu0 %v5325
        %5398 = vmatpush1.msra.mxu0 %v5324
        %5399 = vmatprep.subr.mxu0 %v5323
        %5400 = vmatpush1.msra.mxu0 %v5322
        %5401 = vmatprep.subr.mxu0 %v5321
        %5402 = vmatpush1.msra.mxu0 %v5320
        %5403 = vmatprep.subr.mxu0 %v5319
        %5404 = vmatpush1.msra.mxu0 %v5318
        %5405 = vmatprep.subr.mxu0 %v5317
        %5406 = vmatpush1.msra.mxu0 %v5316
        %5407 = vmatprep.subr.mxu0 %v5315
        %5408 = vmatpush1.msra.mxu0 %v5314
        %5409 = vmatprep.subr.mxu0 0.0
        %5410 = vmatpush2.msra.mxu0 0.0
        %5411 = vmatprep.subr.mxu0 0.0
        %5412 = vmatpush2.msra.mxu0 0.0
        %5413 = vmatprep.subr.mxu0 0.0
        %5414 = vmatpush2.msra.mxu0 0.0
        %5415 = vmatprep.subr.mxu0 0.0
        %5416 = vmatpush2.msra.mxu0 0.0
        %5417 = vmatprep.subr.mxu0 0.0
        %5418 = vmatpush2.msra.mxu0 0.0
        %5419 = vmatprep.subr.mxu0 %v5367
        %5420 = vmatpush2.msra.mxu0 %v5366
        %5421 = vmatprep.subr.mxu0 %v5365
        %5422 = vmatpush2.msra.mxu0 %v5364
        %5423 = vmatprep.subr.mxu0 %v5363
        %5424 = vmatpush2.msra.mxu0 %v5362
        %5425 = vmatprep.subr.mxu0 %v5361
        %5426 = vmatpush2.msra.mxu0 %v5360
        %5427 = vmatprep.subr.mxu0 %v5359
        %5428 = vmatpush2.msra.mxu0 %v5358
        %5429 = vmatprep.subr.mxu0 %v5357
        %5430 = vmatpush2.msra.mxu0 %v5356
        %5431 = vmatprep.subr.mxu0 %v5355
        %5432 = vmatpush2.msra.mxu0 %v5354
        %5433 = vmatprep.subr.mxu0 %v5353
        %5434 = vmatpush2.msra.mxu0 %v5352
        %5435 = vmatprep.subr.mxu0 %v5351
        %5436 = vmatpush2.msra.mxu0 %v5350
        %5437 = vmatprep.subr.mxu0 %v5349
        %5438 = vmatpush2.msra.mxu0 %v5348
        %5439 = vmatprep.subr.mxu0 %v5347
        %5440 = vmatpush2.msra.mxu0 %v5346
        %5441 = vmatprep.mubr.f32.mxu0 %v5375
        %5442 = vmatmul.mubr.f32.gmra.mxu0 %v4783
        %v5443 = vpop.f32.mrf.mxu0
        %v5444 = vadd.f32 %v5371, %v5443
        %v5445 = vpop.f32.mrf.mxu0
        %v5446 = vadd.f32 %v5371, %v5445
        %5447 = vdwg.mxu0
        %v5448 = vmax.f32 %v5444, 0.0
        %v5449 = vmax.f32 %v5446, 0.0
        %v5450 = vld [vmem:[#allocation15] sm:$0xff]
        %v5451 = vld [vmem:[%s20] sm:$0xff]
        %5452 = vst [vmem:[#allocation2] sm:$0xff] 0.0
        %5453 = vst [vmem:[#allocation2 + $0x8] sm:$0xff] 0.0
        %5454 = vst [vmem:[#allocation2 + $0x10] sm:$0xff] 0.0
        %5455 = vst [vmem:[#allocation2 + $0x18] sm:$0xff] 0.0
        %5456 = vst [vmem:[#allocation2 + $0x20] sm:$0xff] 0.0
        %5457 = vst [vmem:[#allocation2 + $0x28] sm:$0xff] 0.0
        %5458 = vst [vmem:[#allocation2 + $0x30] sm:$0xff] 0.0
        %5459 = vst [vmem:[#allocation2 + $0x38] sm:$0xff] 0.0
        %5460 = vst [vmem:[#allocation2 + $0x40] sm:$0xff] 0.0
        %5461 = vst [vmem:[#allocation2 + $0x48] sm:$0xff] 0.0
        %5462 = vst [vmem:[#allocation2 + $0x50] sm:$0xff] 0.0
        %5463 = vst [vmem:[#allocation2 + $0x58] sm:$0xff] 0.0
        %5464 = vst [vmem:[#allocation2 + $0x60] sm:$0xff] 0.0
        %5465 = vst [vmem:[#allocation2 + $0x68] sm:$0xff] 0.0
        %5466 = vst [vmem:[#allocation2 + $0x70] sm:$0xff] 0.0
        %5467 = vst [vmem:[#allocation2 + $0x78] sm:$0xff] 0.0
        %5468 = vst [vmem:[#allocation2 + $0x80] sm:$0xff] 0.0
        %5469 = vst [vmem:[#allocation2 + $0x88] sm:$0xff] 0.0
        %5470 = vst [vmem:[#allocation2 + $0x90] sm:$0xff] 0.0
        %5471 = vst [vmem:[#allocation2 + $0x98] sm:$0xff] 0.0
        %5472 = vst [vmem:[#allocation2 + $0xa0] sm:$0xff] 0.0
        %5473 = vst [vmem:[#allocation2 + $0xa8] sm:$0xff] 0.0
        %5474 = vst [vmem:[#allocation2 + $0xb0] sm:$0xff] 0.0
        %5475 = vst [vmem:[#allocation2 + $0xb8] sm:$0xff] 0.0
        %5476 = vst [vmem:[#allocation2 + $0x8] sm:$0xff] %v5448
        %5477 = vst [vmem:[#allocation2 + $0x10] sm:$0xff] %v5449
        %v5478 = vld [vmem:[#allocation2] sm:$0xff]
        %v5479 = vld [vmem:[#allocation2 + $0x8] sm:$0xff]
        %v5480 = vld [vmem:[#allocation2 + $0x10] sm:$0xff]
        %v5481 = vmul.f32 %v5478, %v1120
        %v5482 = vmul.f32 %v5479, %v1124
        %v5483 = vmul.f32 %v5480, %v1122
        %5487 = vrot.lane.b32.xlu0 %v5481, 17
        %v5488 = vpop.permute.xlu0 %5487
        %5489 = vrot.lane.b32.xlu0 %v5482, 17
        %v5490 = vpop.permute.xlu0 %5489
        %5491 = vrot.lane.b32.xlu0 %v5483, 17
        %v5492 = vpop.permute.xlu0 %5491
        %v5493 = vsel %vm1140, %v5488, %v5490
        %v5494 = vsel %vm1140, %v5490, %v5492
        %5497 = vst [vmem:[#allocation3] sm:$0xff] %v5493
        %5498 = vst [vmem:[#allocation3 + $0x8] sm:$0xff] %v5494
        %v5499 = vld [vmem:[#allocation2] sm:$0xff]
        %v5500 = vld [vmem:[#allocation2 + $0x8] sm:$0xff]
        %v5501 = vld [vmem:[#allocation2 + $0x10] sm:$0xff]
        %5505 = vrot.lane.b32.xlu0 %v5499, 16
        %v5506 = vpop.permute.xlu0 %5505
        %5507 = vrot.lane.b32.xlu0 %v5500, 16
        %v5508 = vpop.permute.xlu0 %5507
        %5509 = vrot.lane.b32.xlu0 %v5501, 16
        %v5510 = vpop.permute.xlu0 %5509
        %v5511 = vsel %vm1159, %v5506, %v5508
        %v5512 = vsel %vm1159, %v5508, %v5510
        %5515 = vst [vmem:[#allocation3 + $0x10] sm:$0xff] %v5511
        %5516 = vst [vmem:[#allocation3 + $0x18] sm:$0xff] %v5512
        %v5517 = vld [vmem:[#allocation2] sm:$0xff]
        %v5518 = vld [vmem:[#allocation2 + $0x8] sm:$0xff]
        %v5519 = vld [vmem:[#allocation2 + $0x10] sm:$0xff]
        %v5520 = vmul.f32 %v5517, %v1172
        %v5521 = vmul.f32 %v5518, %v1176
        %v5522 = vmul.f32 %v5519, %v1174
        %5526 = vrot.lane.b32.xlu0 %v5520, 15
        %v5527 = vpop.permute.xlu0 %5526
        %5528 = vrot.lane.b32.xlu0 %v5521, 15
        %v5529 = vpop.permute.xlu0 %5528
        %5530 = vrot.lane.b32.xlu0 %v5522, 15
        %v5531 = vpop.permute.xlu0 %5530
        %v5532 = vsel %vm1192, %v5527, %v5529
        %v5533 = vsel %vm1192, %v5529, %v5531
        %5536 = vst [vmem:[#allocation3 + $0x20] sm:$0xff] %v5532
        %5537 = vst [vmem:[#allocation3 + $0x28] sm:$0xff] %v5533
        %v5538 = vld [vmem:[#allocation2] sm:$0xff]
        %v5539 = vld [vmem:[#allocation2 + $0x8] sm:$0xff]
        %v5540 = vld [vmem:[#allocation2 + $0x10] sm:$0xff]
        %v5541 = vmul.f32 %v5538, %v1203
        %v5542 = vmul.f32 %v5539, %v1207
        %v5543 = vmul.f32 %v5540, %v1205
        %5547 = vrot.lane.b32.xlu0 %v5541, 1
        %v5548 = vpop.permute.xlu0 %5547
        %5549 = vrot.lane.b32.xlu0 %v5542, 1
        %v5550 = vpop.permute.xlu0 %5549
        %5551 = vrot.lane.b32.xlu0 %v5543, 1
        %v5552 = vpop.permute.xlu0 %5551
        %v5553 = vsel %vm1223, %v5548, %v5550
        %v5554 = vsel %vm1223, %v5550, %v5552
        %5557 = vst [vmem:[#allocation3 + $0x30] sm:$0xff] %v5553
        %5558 = vst [vmem:[#allocation3 + $0x38] sm:$0xff] %v5554
        %v5559 = vld [vmem:[#allocation2 + $0x8] sm:$0xff]
        %v5560 = vld [vmem:[#allocation2 + $0x10] sm:$0xff]
        %5561 = vst [vmem:[#allocation3 + $0x40] sm:$0xff] %v5559
        %5562 = vst [vmem:[#allocation3 + $0x48] sm:$0xff] %v5560
        %v5563 = vld [vmem:[#allocation2 + $0x8] sm:$0xff]
        %v5564 = vld [vmem:[#allocation2 + $0x10] sm:$0xff]
        %v5565 = vld [vmem:[#allocation2 + $0x18] sm:$0xff]
        %v5566 = vmul.f32 %v5563, %v1238
        %v5567 = vmul.f32 %v5564, %v1241
        %v5568 = vmul.f32 %v5565, %v1240
        %5572 = vrot.lane.b32.xlu0 %v5566, 127
        %v5573 = vpop.permute.xlu0 %5572
        %5574 = vrot.lane.b32.xlu0 %v5567, 127
        %v5575 = vpop.permute.xlu0 %5574
        %5576 = vrot.lane.b32.xlu0 %v5568, 127
        %v5577 = vpop.permute.xlu0 %5576
        %v5578 = vsel %vm1206, %v5573, %v5575
        %v5579 = vsel %vm1206, %v5575, %v5577
        %5582 = vst [vmem:[#allocation3 + $0x50] sm:$0xff] %v5578
        %5583 = vst [vmem:[#allocation3 + $0x58] sm:$0xff] %v5579
        %v5584 = vld [vmem:[#allocation2 + $0x8] sm:$0xff]
        %v5585 = vld [vmem:[#allocation2 + $0x10] sm:$0xff]
        %v5586 = vld [vmem:[#allocation2 + $0x18] sm:$0xff]
        %v5587 = vmul.f32 %v5584, %v1267
        %v5588 = vmul.f32 %v5585, %v1270
        %v5589 = vmul.f32 %v5586, %v1269
        %5593 = vrot.lane.b32.xlu0 %v5587, 113
        %v5594 = vpop.permute.xlu0 %5593
        %5595 = vrot.lane.b32.xlu0 %v5588, 113
        %v5596 = vpop.permute.xlu0 %5595
        %5597 = vrot.lane.b32.xlu0 %v5589, 113
        %v5598 = vpop.permute.xlu0 %5597
        %v5599 = vsel %vm1175, %v5594, %v5596
        %v5600 = vsel %vm1175, %v5596, %v5598
        %5603 = vst [vmem:[#allocation3 + $0x60] sm:$0xff] %v5599
        %5604 = vst [vmem:[#allocation3 + $0x68] sm:$0xff] %v5600
        %v5605 = vld [vmem:[#allocation2 + $0x8] sm:$0xff]
        %v5606 = vld [vmem:[#allocation2 + $0x10] sm:$0xff]
        %v5607 = vld [vmem:[#allocation2 + $0x18] sm:$0xff]
        %5611 = vrot.lane.b32.xlu0 %v5605, 112
        %v5612 = vpop.permute.xlu0 %5611
        %5613 = vrot.lane.b32.xlu0 %v5606, 112
        %v5614 = vpop.permute.xlu0 %5613
        %5615 = vrot.lane.b32.xlu0 %v5607, 112
        %v5616 = vpop.permute.xlu0 %5615
        %v5617 = vsel %vm1304, %v5612, %v5614
        %v5618 = vsel %vm1304, %v5614, %v5616
        %5621 = vst [vmem:[#allocation3 + $0x70] sm:$0xff] %v5617
        %5622 = vst [vmem:[#allocation3 + $0x78] sm:$0xff] %v5618
        %v5623 = vld [vmem:[#allocation2 + $0x8] sm:$0xff]
        %v5624 = vld [vmem:[#allocation2 + $0x10] sm:$0xff]
        %v5625 = vld [vmem:[#allocation2 + $0x18] sm:$0xff]
        %v5626 = vmul.f32 %v5623, %v1315
        %v5627 = vmul.f32 %v5624, %v1318
        %v5628 = vmul.f32 %v5625, %v1317
        %5632 = vrot.lane.b32.xlu0 %v5626, 111
        %v5633 = vpop.permute.xlu0 %5632
        %5634 = vrot.lane.b32.xlu0 %v5627, 111
        %v5635 = vpop.permute.xlu0 %5634
        %5636 = vrot.lane.b32.xlu0 %v5628, 111
        %v5637 = vpop.permute.xlu0 %5636
        %v5638 = vsel %vm1123, %v5633, %v5635
        %v5639 = vsel %vm1123, %v5635, %v5637
        %5642 = vst [vmem:[#allocation3 + $0x80] sm:$0xff] %v5638
        %5643 = vst [vmem:[#allocation3 + $0x88] sm:$0xff] %v5639
        %v5644 = vld [vmem:[#allocation3] sm:$0xff]
        %v5645 = vld [vmem:[#allocation3 + $0x8] sm:$0xff]
        %v5646 = vld [vmem:[#allocation3 + $0x10] sm:$0xff]
        %v5647 = vld [vmem:[#allocation3 + $0x18] sm:$0xff]
        %v5648 = vld [vmem:[#allocation3 + $0x20] sm:$0xff]
        %v5649 = vld [vmem:[#allocation3 + $0x28] sm:$0xff]
        %v5650 = vld [vmem:[#allocation3 + $0x30] sm:$0xff]
        %v5651 = vld [vmem:[#allocation3 + $0x38] sm:$0xff]
        %v5652 = vld [vmem:[#allocation3 + $0x40] sm:$0xff]
        %v5653 = vld [vmem:[#allocation3 + $0x48] sm:$0xff]
        %v5654 = vld [vmem:[#allocation3 + $0x50] sm:$0xff]
        %v5655 = vld [vmem:[#allocation3 + $0x58] sm:$0xff]
        %v5656 = vld [vmem:[#allocation3 + $0x60] sm:$0xff]
        %v5657 = vld [vmem:[#allocation3 + $0x68] sm:$0xff]
        %v5658 = vld [vmem:[#allocation3 + $0x70] sm:$0xff]
        %v5659 = vld [vmem:[#allocation3 + $0x78] sm:$0xff]
        %v5660 = vld [vmem:[#allocation3 + $0x80] sm:$0xff]
        %v5661 = vld [vmem:[#allocation3 + $0x88] sm:$0xff]
        %5663 = vset.pattern.permute.xlu0 0
        %5664 = vperm.xlu0 %5663, %v5451
        %v5665 = vpop.permute.xlu0 %5664
        %v5668 = vsel %vm1363, %v5450, 0
        %5670 = vmatprep.subr.mxu0 0.0
        %5671 = vmatpush1.msra.mxu0 0.0
        %5672 = vmatprep.subr.mxu0 0.0
        %5673 = vmatpush1.msra.mxu0 0.0
        %5674 = vmatprep.subr.mxu0 0.0
        %5675 = vmatpush1.msra.mxu0 0.0
        %5676 = vmatprep.subr.mxu0 0.0
        %5677 = vmatpush1.msra.mxu0 0.0
        %5678 = vmatprep.subr.mxu0 0.0
        %5679 = vmatpush1.msra.mxu0 0.0
        %5680 = vmatprep.subr.mxu0 0.0
        %5681 = vmatpush1.msra.mxu0 0.0
        %5682 = vmatprep.subr.mxu0 0.0
        %5683 = vmatpush1.msra.mxu0 0.0
        %5684 = vmatprep.subr.mxu0 %v5661
        %5685 = vmatpush1.msra.mxu0 %v5660
        %5686 = vmatprep.subr.mxu0 %v5659
        %5687 = vmatpush1.msra.mxu0 %v5658
        %5688 = vmatprep.subr.mxu0 %v5657
        %5689 = vmatpush1.msra.mxu0 %v5656
        %5690 = vmatprep.subr.mxu0 %v5655
        %5691 = vmatpush1.msra.mxu0 %v5654
        %5692 = vmatprep.subr.mxu0 %v5653
        %5693 = vmatpush1.msra.mxu0 %v5652
        %5694 = vmatprep.subr.mxu0 %v5651
        %5695 = vmatpush1.msra.mxu0 %v5650
        %5696 = vmatprep.subr.mxu0 %v5649
        %5697 = vmatpush1.msra.mxu0 %v5648
        %5698 = vmatprep.subr.mxu0 %v5647
        %5699 = vmatpush1.msra.mxu0 %v5646
        %5700 = vmatprep.subr.mxu0 %v5645
        %5701 = vmatpush1.msra.mxu0 %v5644
        %5702 = vmatprep.subr.mxu0 0.0
        %5703 = vmatpush2.msra.mxu0 0.0
        %5704 = vmatprep.subr.mxu0 0.0
        %5705 = vmatpush2.msra.mxu0 0.0
        %5706 = vmatprep.subr.mxu0 0.0
        %5707 = vmatpush2.msra.mxu0 0.0
        %5708 = vmatprep.subr.mxu0 0.0
        %5709 = vmatpush2.msra.mxu0 0.0
        %5710 = vmatprep.subr.mxu0 0.0
        %5711 = vmatpush2.msra.mxu0 0.0
        %5712 = vmatprep.subr.mxu0 0.0
        %5713 = vmatpush2.msra.mxu0 0.0
        %5714 = vmatprep.subr.mxu0 0.0
        %5715 = vmatpush2.msra.mxu0 0.0
        %5716 = vmatprep.subr.mxu0 0.0
        %5717 = vmatpush2.msra.mxu0 0.0
        %5718 = vmatprep.subr.mxu0 0.0
        %5719 = vmatpush2.msra.mxu0 0.0
        %5720 = vmatprep.subr.mxu0 0.0
        %5721 = vmatpush2.msra.mxu0 0.0
        %5722 = vmatprep.subr.mxu0 0.0
        %5723 = vmatpush2.msra.mxu0 0.0
        %5724 = vmatprep.subr.mxu0 0.0
        %5725 = vmatpush2.msra.mxu0 0.0
        %5726 = vmatprep.subr.mxu0 0.0
        %5727 = vmatpush2.msra.mxu0 0.0
        %5728 = vmatprep.subr.mxu0 0.0
        %5729 = vmatpush2.msra.mxu0 0.0
        %5730 = vmatprep.subr.mxu0 0.0
        %5731 = vmatpush2.msra.mxu0 0.0
        %5732 = vmatprep.subr.mxu0 0.0
        %5733 = vmatpush2.msra.mxu0 0.0
        %5734 = vmatprep.mubr.f32.mxu0 0.0
        %5735 = vmatmul.mubr.f32.gmra.mxu0 %v5668
        %v5736 = vpop.f32.mrf.mxu0
        %v5737 = vadd.f32 %v5665, %v5736
        %v5738 = vpop.f32.mrf.mxu0
        %v5739 = vadd.f32 %v5665, %v5738
        %5740 = vdwg.mxu0
        %v5741 = vmax.f32 %v5737, 0.0
        %v5742 = vmax.f32 %v5739, 0.0
        %v5743 = vld [vmem:[#allocation17] sm:$0x7]
        %v5744 = vld [vmem:[%s22] sm:$0x7]
        %5745 = vst [vmem:[#allocation2] sm:$0xff] 0.0
        %5746 = vst [vmem:[#allocation2 + $0x8] sm:$0xff] 0.0
        %5747 = vst [vmem:[#allocation2 + $0x10] sm:$0xff] 0.0
        %5748 = vst [vmem:[#allocation2 + $0x18] sm:$0xff] 0.0
        %5749 = vst [vmem:[#allocation2 + $0x20] sm:$0xff] 0.0
        %5750 = vst [vmem:[#allocation2 + $0x28] sm:$0xff] 0.0
        %5751 = vst [vmem:[#allocation2 + $0x30] sm:$0xff] 0.0
        %5752 = vst [vmem:[#allocation2 + $0x38] sm:$0xff] 0.0
        %5753 = vst [vmem:[#allocation2 + $0x40] sm:$0xff] 0.0
        %5754 = vst [vmem:[#allocation2 + $0x48] sm:$0xff] 0.0
        %5755 = vst [vmem:[#allocation2 + $0x50] sm:$0xff] 0.0
        %5756 = vst [vmem:[#allocation2 + $0x58] sm:$0xff] 0.0
        %5757 = vst [vmem:[#allocation2 + $0x60] sm:$0xff] 0.0
        %5758 = vst [vmem:[#allocation2 + $0x68] sm:$0xff] 0.0
        %5759 = vst [vmem:[#allocation2 + $0x70] sm:$0xff] 0.0
        %5760 = vst [vmem:[#allocation2 + $0x78] sm:$0xff] 0.0
        %5761 = vst [vmem:[#allocation2 + $0x80] sm:$0xff] 0.0
        %5762 = vst [vmem:[#allocation2 + $0x88] sm:$0xff] 0.0
        %5763 = vst [vmem:[#allocation2 + $0x90] sm:$0xff] 0.0
        %5764 = vst [vmem:[#allocation2 + $0x98] sm:$0xff] 0.0
        %5765 = vst [vmem:[#allocation2 + $0xa0] sm:$0xff] 0.0
        %5766 = vst [vmem:[#allocation2 + $0xa8] sm:$0xff] 0.0
        %5767 = vst [vmem:[#allocation2 + $0xb0] sm:$0xff] 0.0
        %5768 = vst [vmem:[#allocation2 + $0xb8] sm:$0xff] 0.0
        %5769 = vst [vmem:[#allocation2 + $0x8] sm:$0xff] %v5741
        %5770 = vst [vmem:[#allocation2 + $0x10] sm:$0xff] %v5742
        %v5771 = vld [vmem:[#allocation2] sm:$0xff]
        %v5772 = vld [vmem:[#allocation2 + $0x8] sm:$0xff]
        %v5773 = vld [vmem:[#allocation2 + $0x10] sm:$0xff]
        %v5774 = vmul.f32 %v5771, %v1120
        %v5775 = vmul.f32 %v5772, %v1124
        %v5776 = vmul.f32 %v5773, %v1122
        %5780 = vrot.lane.b32.xlu0 %v5774, 17
        %v5781 = vpop.permute.xlu0 %5780
        %5782 = vrot.lane.b32.xlu0 %v5775, 17
        %v5783 = vpop.permute.xlu0 %5782
        %5784 = vrot.lane.b32.xlu0 %v5776, 17
        %v5785 = vpop.permute.xlu0 %5784
        %v5786 = vsel %vm1140, %v5781, %v5783
        %v5787 = vsel %vm1140, %v5783, %v5785
        %5790 = vst [vmem:[#allocation3] sm:$0xff] %v5786
        %5791 = vst [vmem:[#allocation3 + $0x8] sm:$0xff] %v5787
        %v5792 = vld [vmem:[#allocation2] sm:$0xff]
        %v5793 = vld [vmem:[#allocation2 + $0x8] sm:$0xff]
        %v5794 = vld [vmem:[#allocation2 + $0x10] sm:$0xff]
        %5798 = vrot.lane.b32.xlu0 %v5792, 16
        %v5799 = vpop.permute.xlu0 %5798
        %5800 = vrot.lane.b32.xlu0 %v5793, 16
        %v5801 = vpop.permute.xlu0 %5800
        %5802 = vrot.lane.b32.xlu0 %v5794, 16
        %v5803 = vpop.permute.xlu0 %5802
        %v5804 = vsel %vm1159, %v5799, %v5801
        %v5805 = vsel %vm1159, %v5801, %v5803
        %5808 = vst [vmem:[#allocation3 + $0x10] sm:$0xff] %v5804
        %5809 = vst [vmem:[#allocation3 + $0x18] sm:$0xff] %v5805
        %v5810 = vld [vmem:[#allocation2] sm:$0xff]
        %v5811 = vld [vmem:[#allocation2 + $0x8] sm:$0xff]
        %v5812 = vld [vmem:[#allocation2 + $0x10] sm:$0xff]
        %v5813 = vmul.f32 %v5810, %v1172
        %v5814 = vmul.f32 %v5811, %v1176
        %v5815 = vmul.f32 %v5812, %v1174
        %5819 = vrot.lane.b32.xlu0 %v5813, 15
        %v5820 = vpop.permute.xlu0 %5819
        %5821 = vrot.lane.b32.xlu0 %v5814, 15
        %v5822 = vpop.permute.xlu0 %5821
        %5823 = vrot.lane.b32.xlu0 %v5815, 15
        %v5824 = vpop.permute.xlu0 %5823
        %v5825 = vsel %vm1192, %v5820, %v5822
        %v5826 = vsel %vm1192, %v5822, %v5824
        %5829 = vst [vmem:[#allocation3 + $0x20] sm:$0xff] %v5825
        %5830 = vst [vmem:[#allocation3 + $0x28] sm:$0xff] %v5826
        %v5831 = vld [vmem:[#allocation2] sm:$0xff]
        %v5832 = vld [vmem:[#allocation2 + $0x8] sm:$0xff]
        %v5833 = vld [vmem:[#allocation2 + $0x10] sm:$0xff]
        %v5834 = vmul.f32 %v5831, %v1203
        %v5835 = vmul.f32 %v5832, %v1207
        %v5836 = vmul.f32 %v5833, %v1205
        %5840 = vrot.lane.b32.xlu0 %v5834, 1
        %v5841 = vpop.permute.xlu0 %5840
        %5842 = vrot.lane.b32.xlu0 %v5835, 1
        %v5843 = vpop.permute.xlu0 %5842
        %5844 = vrot.lane.b32.xlu0 %v5836, 1
        %v5845 = vpop.permute.xlu0 %5844
        %v5846 = vsel %vm1223, %v5841, %v5843
        %v5847 = vsel %vm1223, %v5843, %v5845
        %5850 = vst [vmem:[#allocation3 + $0x30] sm:$0xff] %v5846
        %5851 = vst [vmem:[#allocation3 + $0x38] sm:$0xff] %v5847
        %v5852 = vld [vmem:[#allocation2 + $0x8] sm:$0xff]
        %v5853 = vld [vmem:[#allocation2 + $0x10] sm:$0xff]
        %5854 = vst [vmem:[#allocation3 + $0x40] sm:$0xff] %v5852
        %5855 = vst [vmem:[#allocation3 + $0x48] sm:$0xff] %v5853
        %v5856 = vld [vmem:[#allocation2 + $0x8] sm:$0xff]
        %v5857 = vld [vmem:[#allocation2 + $0x10] sm:$0xff]
        %v5858 = vld [vmem:[#allocation2 + $0x18] sm:$0xff]
        %v5859 = vmul.f32 %v5856, %v1238
        %v5860 = vmul.f32 %v5857, %v1241
        %v5861 = vmul.f32 %v5858, %v1240
        %5865 = vrot.lane.b32.xlu0 %v5859, 127
        %v5866 = vpop.permute.xlu0 %5865
        %5867 = vrot.lane.b32.xlu0 %v5860, 127
        %v5868 = vpop.permute.xlu0 %5867
        %5869 = vrot.lane.b32.xlu0 %v5861, 127
        %v5870 = vpop.permute.xlu0 %5869
        %v5871 = vsel %vm1206, %v5866, %v5868
        %v5872 = vsel %vm1206, %v5868, %v5870
        %5875 = vst [vmem:[#allocation3 + $0x50] sm:$0xff] %v5871
        %5876 = vst [vmem:[#allocation3 + $0x58] sm:$0xff] %v5872
        %v5877 = vld [vmem:[#allocation2 + $0x8] sm:$0xff]
        %v5878 = vld [vmem:[#allocation2 + $0x10] sm:$0xff]
        %v5879 = vld [vmem:[#allocation2 + $0x18] sm:$0xff]
        %v5880 = vmul.f32 %v5877, %v1267
        %v5881 = vmul.f32 %v5878, %v1270
        %v5882 = vmul.f32 %v5879, %v1269
        %5886 = vrot.lane.b32.xlu0 %v5880, 113
        %v5887 = vpop.permute.xlu0 %5886
        %5888 = vrot.lane.b32.xlu0 %v5881, 113
        %v5889 = vpop.permute.xlu0 %5888
        %5890 = vrot.lane.b32.xlu0 %v5882, 113
        %v5891 = vpop.permute.xlu0 %5890
        %v5892 = vsel %vm1175, %v5887, %v5889
        %v5893 = vsel %vm1175, %v5889, %v5891
        %5896 = vst [vmem:[#allocation3 + $0x60] sm:$0xff] %v5892
        %5897 = vst [vmem:[#allocation3 + $0x68] sm:$0xff] %v5893
        %v5898 = vld [vmem:[#allocation2 + $0x8] sm:$0xff]
        %v5899 = vld [vmem:[#allocation2 + $0x10] sm:$0xff]
        %v5900 = vld [vmem:[#allocation2 + $0x18] sm:$0xff]
        %5904 = vrot.lane.b32.xlu0 %v5898, 112
        %v5905 = vpop.permute.xlu0 %5904
        %5906 = vrot.lane.b32.xlu0 %v5899, 112
        %v5907 = vpop.permute.xlu0 %5906
        %5908 = vrot.lane.b32.xlu0 %v5900, 112
        %v5909 = vpop.permute.xlu0 %5908
        %v5910 = vsel %vm1304, %v5905, %v5907
        %v5911 = vsel %vm1304, %v5907, %v5909
        %5914 = vst [vmem:[#allocation3 + $0x70] sm:$0xff] %v5910
        %5915 = vst [vmem:[#allocation3 + $0x78] sm:$0xff] %v5911
        %v5916 = vld [vmem:[#allocation2 + $0x8] sm:$0xff]
        %v5917 = vld [vmem:[#allocation2 + $0x10] sm:$0xff]
        %v5918 = vld [vmem:[#allocation2 + $0x18] sm:$0xff]
        %v5919 = vmul.f32 %v5916, %v1315
        %v5920 = vmul.f32 %v5917, %v1318
        %v5921 = vmul.f32 %v5918, %v1317
        %5925 = vrot.lane.b32.xlu0 %v5919, 111
        %v5926 = vpop.permute.xlu0 %5925
        %5927 = vrot.lane.b32.xlu0 %v5920, 111
        %v5928 = vpop.permute.xlu0 %5927
        %5929 = vrot.lane.b32.xlu0 %v5921, 111
        %v5930 = vpop.permute.xlu0 %5929
        %v5931 = vsel %vm1123, %v5926, %v5928
        %v5932 = vsel %vm1123, %v5928, %v5930
        %5935 = vst [vmem:[#allocation3 + $0x80] sm:$0xff] %v5931
        %5936 = vst [vmem:[#allocation3 + $0x88] sm:$0xff] %v5932
        %v5937 = vld [vmem:[#allocation3] sm:$0xff]
        %v5938 = vld [vmem:[#allocation3 + $0x8] sm:$0xff]
        %v5939 = vld [vmem:[#allocation3 + $0x10] sm:$0xff]
        %v5940 = vld [vmem:[#allocation3 + $0x18] sm:$0xff]
        %v5941 = vld [vmem:[#allocation3 + $0x20] sm:$0xff]
        %v5942 = vld [vmem:[#allocation3 + $0x28] sm:$0xff]
        %v5943 = vld [vmem:[#allocation3 + $0x30] sm:$0xff]
        %v5944 = vld [vmem:[#allocation3 + $0x38] sm:$0xff]
        %v5945 = vld [vmem:[#allocation3 + $0x40] sm:$0xff]
        %v5946 = vld [vmem:[#allocation3 + $0x48] sm:$0xff]
        %v5947 = vld [vmem:[#allocation3 + $0x50] sm:$0xff]
        %v5948 = vld [vmem:[#allocation3 + $0x58] sm:$0xff]
        %v5949 = vld [vmem:[#allocation3 + $0x60] sm:$0xff]
        %v5950 = vld [vmem:[#allocation3 + $0x68] sm:$0xff]
        %v5951 = vld [vmem:[#allocation3 + $0x70] sm:$0xff]
        %v5952 = vld [vmem:[#allocation3 + $0x78] sm:$0xff]
        %v5953 = vld [vmem:[#allocation3 + $0x80] sm:$0xff]
        %v5954 = vld [vmem:[#allocation3 + $0x88] sm:$0xff]
        %5956 = vset.pattern.permute.xlu0 0
        %5957 = vperm.xlu0 %5956, %v5744
        %v5958 = vpop.permute.xlu0 %5957
        %v5961 = vsel %vm1363, %v5743, 0
        %5963 = vmatprep.subr.mxu0 0.0
        %5964 = vmatpush1.msra.mxu0 0.0
        %5965 = vmatprep.subr.mxu0 0.0
        %5966 = vmatpush1.msra.mxu0 0.0
        %5967 = vmatprep.subr.mxu0 0.0
        %5968 = vmatpush1.msra.mxu0 0.0
        %5969 = vmatprep.subr.mxu0 0.0
        %5970 = vmatpush1.msra.mxu0 0.0
        %5971 = vmatprep.subr.mxu0 0.0
        %5972 = vmatpush1.msra.mxu0 0.0
        %5973 = vmatprep.subr.mxu0 0.0
        %5974 = vmatpush1.msra.mxu0 0.0
        %5975 = vmatprep.subr.mxu0 0.0
        %5976 = vmatpush1.msra.mxu0 0.0
        %5977 = vmatprep.subr.mxu0 %v5954
        %5978 = vmatpush1.msra.mxu0 %v5953
        %5979 = vmatprep.subr.mxu0 %v5952
        %5980 = vmatpush1.msra.mxu0 %v5951
        %5981 = vmatprep.subr.mxu0 %v5950
        %5982 = vmatpush1.msra.mxu0 %v5949
        %5983 = vmatprep.subr.mxu0 %v5948
        %5984 = vmatpush1.msra.mxu0 %v5947
        %5985 = vmatprep.subr.mxu0 %v5946
        %5986 = vmatpush1.msra.mxu0 %v5945
        %5987 = vmatprep.subr.mxu0 %v5944
        %5988 = vmatpush1.msra.mxu0 %v5943
        %5989 = vmatprep.subr.mxu0 %v5942
        %5990 = vmatpush1.msra.mxu0 %v5941
        %5991 = vmatprep.subr.mxu0 %v5940
        %5992 = vmatpush1.msra.mxu0 %v5939
        %5993 = vmatprep.subr.mxu0 %v5938
        %5994 = vmatpush1.msra.mxu0 %v5937
        %5995 = vmatprep.subr.mxu0 0.0
        %5996 = vmatpush2.msra.mxu0 0.0
        %5997 = vmatprep.subr.mxu0 0.0
        %5998 = vmatpush2.msra.mxu0 0.0
        %5999 = vmatprep.subr.mxu0 0.0
        %6000 = vmatpush2.msra.mxu0 0.0
        %6001 = vmatprep.subr.mxu0 0.0
        %6002 = vmatpush2.msra.mxu0 0.0
        %6003 = vmatprep.subr.mxu0 0.0
        %6004 = vmatpush2.msra.mxu0 0.0
        %6005 = vmatprep.subr.mxu0 0.0
        %6006 = vmatpush2.msra.mxu0 0.0
        %6007 = vmatprep.subr.mxu0 0.0
        %6008 = vmatpush2.msra.mxu0 0.0
        %6009 = vmatprep.subr.mxu0 0.0
        %6010 = vmatpush2.msra.mxu0 0.0
        %6011 = vmatprep.subr.mxu0 0.0
        %6012 = vmatpush2.msra.mxu0 0.0
        %6013 = vmatprep.subr.mxu0 0.0
        %6014 = vmatpush2.msra.mxu0 0.0
        %6015 = vmatprep.subr.mxu0 0.0
        %6016 = vmatpush2.msra.mxu0 0.0
        %6017 = vmatprep.subr.mxu0 0.0
        %6018 = vmatpush2.msra.mxu0 0.0
        %6019 = vmatprep.subr.mxu0 0.0
        %6020 = vmatpush2.msra.mxu0 0.0
        %6021 = vmatprep.subr.mxu0 0.0
        %6022 = vmatpush2.msra.mxu0 0.0
        %6023 = vmatprep.subr.mxu0 0.0
        %6024 = vmatpush2.msra.mxu0 0.0
        %6025 = vmatprep.subr.mxu0 0.0
        %6026 = vmatpush2.msra.mxu0 0.0
        %6027 = vmatprep.mubr.f32.mxu0 0.0
        %6028 = vmatmul.mubr.f32.gmra.mxu0 %v5961
        %v6029 = vpop.f32.mrf.mxu0
        %v6030 = vadd.f32 %v5958, %v6029
        %v6031 = vpop.f32.mrf.mxu0
        %v6032 = vadd.f32 %v5958, %v6031
        %6033 = vdwg.mxu0
        %v6034 = vxor.u32 %v6030, 2147483648
        %v6035 = vxor.u32 %v6032, 2147483648
        %v6036 = vmul.f32 %v6034, 1.442695
        %v6037 = vpow.pop %v6036
        %v6038 = vmul.f32 %v6035, 1.442695
        %v6039 = vpow.pop %v6038
        %v6040 = vadd.f32 %v6037, 1.0
        %v6041 = vadd.f32 %v6039, 1.0
        %v6042 = vrcp.pop %v6040
        %v6043 = vmul.f32 1.0, %v6042
        %v6044 = vrcp.pop %v6041
        %v6045 = vmul.f32 1.0, %v6044
        %v6048 = vcombine.low %v6043, %v6045
        %6050 = vst [vmem:[%s956] sm:$0x77] %v6048
        %p6051 = scmp.lt.s32.totalorder %s44, 1
        %s6052 = scalar_select %p6051, %s44, 1
        %s6053 = smul.addr %s6052, 2
        %s6054 = smul.addr %s6053, 4
        %s6055 = scalar_lea.vmem %s27, %s6054
        // Predicated region
        $region169: #{unet_forward.1} parent=127 // pred_check
          %p6056 = pneg %p634
        $region170: #{unet_forward.1} parent=127 // pred_check_branch
          %6058 = sbr.rel (%p6056) target = $region172
        $region171: #{unet_forward.1} parent=127 // pred_region
          _
        $region172: #{unet_forward.1} parent=127 // pred_fallthru
          _
      $region128: #{unet_forward.1} parent=5 // pred_fallthru
        _
      %p6059 = scmp.le.s32.totalorder 2, %s39
      // Predicated region
      $region173: #{unet_forward.1} parent=5 // pred_check
        %p6060 = pneg %p6059
      $region174: #{unet_forward.1} parent=5 // pred_check_branch
        %6062 = sbr.rel (%p6060) target = $region176
      $region175: #{unet_forward.1} parent=5 // pred_region
        %s6063 = ssub.s32 %s39, 2
        // Predicated region
        $region177: #{unet_forward.1} parent=175 // pred_check
          %p6064 = pneg %p640
        $region178: #{unet_forward.1} parent=175 // pred_check_branch
          %6066 = sbr.rel (%p6064) target = $region180
        $region179: #{unet_forward.1} parent=175 // pred_region
          %p6067 = scmp.lt.s32.totalorder %s45, 1
          %s6068 = scalar_select %p6067, %s45, 1
          %s6069 = smul.addr %s6068, 2
          %s6070 = smul.addr %s6069, 4
          %s6071 = scalar_lea.vmem %s27, %s6070
        $region180: #{unet_forward.1} parent=175 // pred_fallthru
          _
      $region176: #{unet_forward.1} parent=5 // pred_fallthru
        _
    $region6: #{unet_forward.1} parent=1 // loop_footer
      %s43 = sadd.s32 1, %s39
    $region7: #{unet_forward.1} parent=1 // loop_footer_branch
      %38 = sbr.rel target = $region3
    $region8: #{unet_forward.1} parent=1 // loop_exit
      _
    %6072 = vsyncpa [#allocation5], 1
    %s6073 = scalar_lea.sflag [#allocation5], 1
    %6074 = vsyncpa %s6073, 1
    %6075 = vsyncpa [#allocation7], 1
    %6076 = vsyncpa [#allocation10], 1
    %6077 = vsyncpa [#allocation13], 1
    %6078 = vsyncpa [#allocation16], 1
    %6079 = vsyncpa [#allocation19], 1

</llo_original>
